<compile_context>
chip_gen: v5e
topology: v5e:2x2
jax: 0.10.0
libtpu: 0.0.40
codegen_flags: <defaults>
</compile_context>

<pallas_src>
import functools

import jax
import jax.numpy as jnp
from jax.experimental import pallas as pl
from jax.experimental.pallas import tpu as pltpu

BN_EPS = 1e-5
LANE = 128                  # every stored activation channel axis is padded to 128


def _round_up(x, m):
    return ((x + m - 1) // m) * m


def _cpad(c):
    return _round_up(max(c, 1), LANE)


def _detect_num_tc():
    """2 TensorCores per chip (v7x, and v4/v5p megacore) shard a 'parallel' grid
    axis; v5e/v6e have a single TC so extra grid steps are pure overhead."""
    try:
        kind = jax.devices()[0].device_kind.lower()
    except Exception:
        return 1
    if "7" in kind or "v4" in kind or "v5p" in kind:
        return 2
    return 1


NUM_TC = _detect_num_tc()


def _block_rows(m):
    """Rows per grid step.
    Single-TC (v5e/v6e): grid=1 -- ~0.35us/step overhead dominates these
    sub-microsecond matmuls and the full block fits VMEM trivially.
    Dual-TC (v7x/megacore): split M>=256 calls into 2 parallel steps; the tiny
    deep-layer calls (M=128/32/8) stay grid=1."""
    if NUM_TC >= 2 and m >= 256 and m % 2 == 0 and (m // 2) % 8 == 0:
        return m // 2
    return m


_PARALLEL_1D = pltpu.CompilerParams(dimension_semantics=("parallel",))


# ---------------------------------------------------------------------------
# Pallas kernels
# ---------------------------------------------------------------------------

def _matmul_kernel(x_ref, w_ref, b_ref, *out_refs, relu, tap_max):
    """One MXU dot + bias (+ReLU), bf16 in / f32 accumulate / bf16 out.
    If tap_max, the input is a stack of maxpool taps (nt, bm, K) that is
    max-reduced first (fused MaxPool -> conv1); the max itself is emitted as a
    second output (it is the maxpool result, needed later as the residual
    identity of the consuming block)."""
    x = x_ref[...]
    if tap_max:
        o_ref, xmax_ref = out_refs
        x = jnp.max(x, axis=0)                       # (nt, bm, K) -> (bm, K)
        xmax_ref[...] = x.astype(xmax_ref.dtype)
    else:
        (o_ref,) = out_refs
    acc = jnp.dot(x, w_ref[...], preferred_element_type=jnp.float32)
    y = acc + b_ref[...]
    if relu:
        y = jnp.maximum(y, 0.0)
    o_ref[...] = y.astype(o_ref.dtype)


def _block_post_kernel(taps_ref, w2_ref, b2_ref, w3_ref, b3_ref, id_ref, *rest,
                       has_down, end_relu, fuse_next, pool_rows, pool_batch):
    """Fused tail of a Bottleneck block:
       conv2 (one packed-K dot) + BN + ReLU
       -> conv3 fused with the downsample as a single dot on [h2 | identity]
          (or conv3 + plain identity add when there is no downsample)
       (+ end ReLU)
       [+ conv1+BN+ReLU of the NEXT block, emitted as a 2nd output]
       [+ fused AdaptiveAvgPool2d((1,1)) on the last block, grid == 1]."""
    rest = list(rest)
    if fuse_next:
        w1n_ref = rest.pop(0)
        b1n_ref = rest.pop(0)
    o_ref = rest.pop(0)
    h1n_ref = rest.pop(0) if fuse_next else None
    pool_ref = rest.pop(0) if pool_rows else None

    h2 = jnp.dot(taps_ref[...], w2_ref[...], preferred_element_type=jnp.float32)
    h2 = jnp.maximum(h2 + b2_ref[...], 0.0).astype(jnp.bfloat16)

    if has_down:
        # conv3 + downsample as ONE 2*128-deep MXU dot: [h2 | id] @ [w3; wd] + (b3+bd)
        xin = jnp.concatenate([h2, id_ref[...]], axis=-1)
        y = jnp.dot(xin, w3_ref[...], preferred_element_type=jnp.float32) + b3_ref[...]
    else:
        y = jnp.dot(h2, w3_ref[...], preferred_element_type=jnp.float32) + b3_ref[...]
        y = y + id_ref[...].astype(jnp.float32)
    if end_relu:
        y = jnp.maximum(y, 0.0)
    yb = y.astype(jnp.bfloat16)
    o_ref[...] = yb

    if fuse_next:   # next block's conv1+BN+ReLU while the output is still live
        h1n = jnp.dot(yb, w1n_ref[...], preferred_element_type=jnp.float32)
        h1n_ref[...] = jnp.maximum(h1n + b1n_ref[...], 0.0).astype(h1n_ref.dtype)

    if pool_rows:   # fused global average pool (rows are (b, h, w) row-major)
        pool_ref[...] = (y.reshape(pool_batch, pool_rows, y.shape[-1]).sum(axis=1)
                         * (1.0 / pool_rows))


# ---------------------------------------------------------------------------
# pallas_call wrappers (M-tiled 1-D grid, "parallel")
# ---------------------------------------------------------------------------

def _mm_bias_act(x, w, b, *, relu, tap_max=False):
    """y = relu?(x @ w + b), bf16 output.  If tap_max, x is (nt, M, K) and the
    tap max is fused in; returns (y, xmax) in that case."""
    if tap_max:
        nt, M, K = x.shape
    else:
        M, K = x.shape
    N = w.shape[1]
    bm = _block_rows(M)
    if tap_max:
        x_spec = pl.BlockSpec((nt, bm, K), lambda i: (0, i, 0))
        out_shape = (jax.ShapeDtypeStruct((M, N), jnp.bfloat16),
                     jax.ShapeDtypeStruct((M, K), jnp.bfloat16))
        out_specs = (pl.BlockSpec((bm, N), lambda i: (i, 0)),
                     pl.BlockSpec((bm, K), lambda i: (i, 0)))
    else:
        x_spec = pl.BlockSpec((bm, K), lambda i: (i, 0))
        out_shape = jax.ShapeDtypeStruct((M, N), jnp.bfloat16)
        out_specs = pl.BlockSpec((bm, N), lambda i: (i, 0))
    return pl.pallas_call(
        functools.partial(_matmul_kernel, relu=relu, tap_max=tap_max),
        out_shape=out_shape,
        grid=(M // bm,),
        in_specs=[x_spec,
                  pl.BlockSpec((K, N), lambda i: (0, 0)),
                  pl.BlockSpec((1, N), lambda i: (0, 0))],
        out_specs=out_specs,
        compiler_params=_PARALLEL_1D,
    )(x, w, b)


def _block_post(taps, w2, b2, w3, b3, identity, w1n=None, b1n=None, *,
                has_down, end_relu, pool_batch=None):
    M, K2 = taps.shape
    Cm = w2.shape[1]
    K3, Co = w3.shape
    Cid = identity.shape[1]
    fuse_next = w1n is not None
    do_pool = pool_batch is not None
    bm = M if do_pool else _block_rows(M)     # pooled path needs a single block

    in_specs = [pl.BlockSpec((bm, K2), lambda i: (i, 0)),
                pl.BlockSpec((K2, Cm), lambda i: (0, 0)),
                pl.BlockSpec((1, Cm), lambda i: (0, 0)),
                pl.BlockSpec((K3, Co), lambda i: (0, 0)),
                pl.BlockSpec((1, Co), lambda i: (0, 0)),
                pl.BlockSpec((bm, Cid), lambda i: (i, 0))]
    args = [taps, w2, b2, w3, b3, identity]
    if fuse_next:
        Cn = w1n.shape[1]
        in_specs += [pl.BlockSpec((Co, Cn), lambda i: (0, 0)),
                     pl.BlockSpec((1, Cn), lambda i: (0, 0))]
        args += [w1n, b1n]

    out_shape = [jax.ShapeDtypeStruct((M, Co), jnp.bfloat16)]
    out_specs = [pl.BlockSpec((bm, Co), lambda i: (i, 0))]
    if fuse_next:
        out_shape.append(jax.ShapeDtypeStruct((M, Cn), jnp.bfloat16))
        out_specs.append(pl.BlockSpec((bm, Cn), lambda i: (i, 0)))
    pool_rows = 0
    if do_pool:
        pool_rows = M // pool_batch
        out_shape.append(jax.ShapeDtypeStruct((pool_batch, Co), jnp.float32))
        out_specs.append(pl.BlockSpec((pool_batch, Co), lambda i: (0, 0)))

    outs = pl.pallas_call(
        functools.partial(_block_post_kernel, has_down=has_down,
                          end_relu=end_relu, fuse_next=fuse_next,
                          pool_rows=pool_rows,
                          pool_batch=pool_batch if do_pool else 0),
        out_shape=tuple(out_shape),
        grid=(M // bm,),
        in_specs=in_specs,
        out_specs=tuple(out_specs),
        compiler_params=_PARALLEL_1D,
    )(*args)
    outs = list(outs) if isinstance(outs, (tuple, list)) else [outs]
    out = outs[0]
    h1n = outs[1] if fuse_next else None
    pooled = outs[-1] if do_pool else None
    return out, h1n, pooled


# ---------------------------------------------------------------------------
# Wrapper-side tap gathering (cheap XLA slicing on slim bf16 tensors)
# ---------------------------------------------------------------------------

def _conv_taps(x, k, stride, pad, pad_mode, c_true=None, k_pad=None):
    """NHWC -> (B*Ho*Wo, K): im2col with the taps concatenated along the channel
    axis so the conv becomes a single big-K matmul.  If c_true is given, only
    the first c_true (true, unpadded) channels are gathered; the concatenated
    K = k*k*c_true is then zero-padded once up to k_pad (a multiple of 128)."""
    if c_true is not None:
        x = x[..., :c_true]
    if pad:
        mode = "wrap" if pad_mode == "circular" else "constant"
        x = jnp.pad(x, ((0, 0), (pad, pad), (pad, pad), (0, 0)), mode=mode)
    B, Hp, Wp, C = x.shape
    Ho = (Hp - k) // stride + 1
    Wo = (Wp - k) // stride + 1
    taps = [x[:, di:di + stride * (Ho - 1) + 1:stride,
              dj:dj + stride * (Wo - 1) + 1:stride, :]
            for di in range(k) for dj in range(k)]
    if k_pad is not None and k_pad > k * k * C:
        taps.append(jnp.zeros((B, Ho, Wo, k_pad - k * k * C), x.dtype))
    t = jnp.concatenate(taps, axis=-1)
    return t.reshape(B * Ho * Wo, t.shape[-1]), (B, Ho, Wo)


def _pool_taps(x, k, stride, pad):
    """MaxPool taps stacked on a leading axis; the max itself is fused into the
    consumer kernel.  Zero padding is equivalent to PyTorch's -inf padding here
    ONLY because the input is post-ReLU (>= 0) -- keep that invariant."""
    x = jnp.pad(x, ((0, 0), (pad, pad), (pad, pad), (0, 0)))
    B, Hp, Wp, C = x.shape
    Ho = (Hp - k) // stride + 1
    Wo = (Wp - k) // stride + 1
    taps = [x[:, di:di + stride * (Ho - 1) + 1:stride,
              dj:dj + stride * (Wo - 1) + 1:stride, :]
            for di in range(k) for dj in range(k)]
    return jnp.stack(taps, 0).reshape(k * k, B * Ho * Wo, C), (B, Ho, Wo)


# ---------------------------------------------------------------------------
# Parameters: Kaiming-normal convs, identity eval-mode BN, folded + padded
# ---------------------------------------------------------------------------

def _kaiming(key, shape):
    # shape = (Kh*Kw, Cin, Cout); kaiming_normal_(fan_out) -> std=sqrt(2/(Cout*K))
    kk, _, cout = shape
    std = (2.0 / (cout * kk)) ** 0.5
    return std * jax.random.normal(key, shape, dtype=jnp.float32)


def _fold_conv_bn(w, gamma, beta, mean, var, cout_pad, cin_pad=None, k_pad=None):
    """Fold eval-mode BN into the conv weight.  cin is padded per-tap only when
    cin_pad is given (1x1 convs fed by lane-padded activations); otherwise the
    flattened K = kk*cin is zero-padded once to k_pad (packed-K convs).
    Returns (weight (K, cout_pad) bf16, bias (1, cout_pad) f32)."""
    kk, cin, cout = w.shape
    scale = gamma / jnp.sqrt(var + BN_EPS)
    bias = beta - mean * scale
    wf = w * scale[None, None, :]
    if cin_pad is not None and cin_pad > cin:
        wf = jnp.pad(wf, ((0, 0), (0, cin_pad - cin), (0, 0)))
    wf = jnp.pad(wf, ((0, 0), (0, 0), (0, cout_pad - cout)))
    wf = wf.reshape(-1, cout_pad)
    if k_pad is not None and k_pad > wf.shape[0]:
        wf = jnp.pad(wf, ((0, k_pad - wf.shape[0]), (0, 0)))
    bias = jnp.pad(bias, (0, cout_pad - cout))
    return wf.astype(jnp.bfloat16), bias.reshape(1, cout_pad).astype(jnp.float32)


def init_resnet_params(key, *, in_chan=3, chan=8, layers=(1, 1, 1, 1)):
    """Returns (params, cfg): params holds only arrays (jit-friendly pytree);
    cfg holds the static block structure (strides, relu flags, true widths)."""
    chans = [chan, chan * 2, chan * 4, chan * 8]
    exp = 4                                        # Bottleneck.expansion
    keys = jax.random.split(key, 256)
    ki = iter(range(256))

    def conv_bn(kk, cin, cout, cout_pad, cin_pad=None, k_pad=None):
        w = _kaiming(keys[next(ki)], (kk, cin, cout))
        ones = jnp.ones((cout,), jnp.float32)
        zeros = jnp.zeros((cout,), jnp.float32)
        # eval-mode BN with weight=1, bias=0, running_mean=0, running_var=1
        return _fold_conv_bn(w, ones, zeros, zeros, ones, cout_pad,
                             cin_pad=cin_pad, k_pad=k_pad)

    params = {"layers": []}
    cfg = {"layers": []}
    # stem: 7x7 conv, packed K = 49*in_chan (no per-tap padding)
    params["stem_w"], params["stem_b"] = conv_bn(7 * 7, in_chan, chans[0],
                                                 _cpad(chans[0]))

    inplanes = chans[0]
    strides = (1, 2, 2, 2)   # layer1 stride 1; strideLay2/3/4=2 (layerSizeReduce)
    for planes, s, nb in zip(chans, strides, layers):
        pblocks, cblocks = [], []
        for bi in range(nb):
            stride = s if bi == 0 else 1
            cin_p, cm_p, co_p = _cpad(inplanes), _cpad(planes), _cpad(planes * exp)
            has_down = stride != 1 or inplanes != planes * exp
            k2_pad = _round_up(9 * planes, LANE)      # packed true-channel K

            pblk = {}
            pblk["w1"], pblk["b1"] = conv_bn(1, inplanes, planes, cm_p,
                                             cin_pad=cin_p)
            pblk["w2"], pblk["b2"] = conv_bn(9, planes, planes, cm_p,
                                             k_pad=k2_pad)
            w3f, b3f = conv_bn(1, planes, planes * exp, co_p, cin_pad=cm_p)
            if has_down:
                wdf, bdf = conv_bn(1, inplanes, planes * exp, co_p, cin_pad=cin_p)
                # fused conv3+downsample: [h2 | identity] @ [w3; wd] + (b3+bd)
                pblk["w3"] = jnp.concatenate([w3f, wdf], axis=0)
                pblk["b3"] = b3f + bdf
            else:
                pblk["w3"], pblk["b3"] = w3f, b3f
            pblocks.append(pblk)
            cblocks.append({"stride": stride,
                            # _make_layer builds the first block of each layer
                            # with Bottleneck's default endRelu=False; later
                            # blocks are built with endRelu=True.
                            "end_relu": bi > 0,
                            "has_down": has_down,
                            "true_out": planes * exp,
                            "planes": planes,
                            "k2_pad": k2_pad,
                            "layer_end": bi == nb - 1})
            inplanes = planes * exp
        params["layers"].append(pblocks)
        cfg["layers"].append(cblocks)
    return params, cfg


# ---------------------------------------------------------------------------
# Model forward
# ---------------------------------------------------------------------------

def make_resnet_forward(cfg):
    cblocks_flat = [c for lay in cfg["layers"] for c in lay]
    nblocks = len(cblocks_flat)

    def forward(params, x_nchw):
        pblocks_flat = [p for lay in params["layers"] for p in lay]

        # NCHW (PyTorch convention) -> NHWC bf16 for the kernels
        x = jnp.transpose(x_nchw, (0, 2, 3, 1)).astype(jnp.bfloat16)
        # stem: conv 7x7 s2 p3 (zero pad) as a single K=147 matmul + folded BN + ReLU
        taps, (B, Hs, Ws) = _conv_taps(x, 7, 2, 3, "zeros")
        stem = _mm_bias_act(taps, params["stem_w"], params["stem_b"], relu=True)
        stem = stem.reshape(B, Hs, Ws, stem.shape[-1])
        # maxpool 3x3 s2 p1: only the taps are formed here; the max itself is
        # fused into layer1's conv1 kernel (zero pad valid: stem is post-ReLU).
        ptaps, (_, H, W) = _pool_taps(stem, 3, 2, 1)

        # A call: fused maxpool-max + conv1+BN+ReLU of the first Bottleneck block
        h1, xmax = _mm_bias_act(ptaps, pblocks_flat[0]["w1"], pblocks_flat[0]["b1"],
                                relu=True, tap_max=True)
        cur_h1 = h1.reshape(B, H, W, h1.shape[-1])       # conv1 output of block 0
        cur_id = xmax.reshape(B, H, W, xmax.shape[-1])   # block-0 input (identity)

        feats, pooled = [], None
        for bi in range(nblocks):
            pblk, cblk = pblocks_flat[bi], cblocks_flat[bi]
            s = cblk["stride"]
            # 3x3 circular-padded (stride s) conv taps from TRUE channels,
            # packed K padded once to a multiple of 128
            taps2, (_, Ho, Wo) = _conv_taps(cur_h1, 3, s, 1, "circular",
                                            c_true=cblk["planes"],
                                            k_pad=cblk["k2_pad"])
            ident = cur_id[:, ::s, ::s, :] if s > 1 else cur_id
            ident = ident.reshape(B * Ho * Wo, ident.shape[-1])

            is_last = bi == nblocks - 1
            w1n = b1n = None
            if not is_last:   # fuse next block's conv1 into this block's tail call
                w1n = pblocks_flat[bi + 1]["w1"]
                b1n = pblocks_flat[bi + 1]["b1"]

            out, h1n, pooled_b = _block_post(
                taps2, pblk["w2"], pblk["b2"], pblk["w3"], pblk["b3"], ident,
                w1n, b1n, has_down=cblk["has_down"], end_relu=cblk["end_relu"],
                pool_batch=B if is_last else None)

            H, W = Ho, Wo
            cur_id = out.reshape(B, H, W, out.shape[-1])
            if h1n is not None:
                cur_h1 = h1n.reshape(B, H, W, h1n.shape[-1])
            if cblk["layer_end"]:
                feats.append((cur_id, cblk["true_out"]))
            if is_last:
                pooled = pooled_b

        # featMap=False path: AdaptiveAvgPool2d((1,1)) + flatten (fused above).
        # TODO(synk): self.fc is defined in __init__ but never applied in forward(), so it is not translated.
        pooled = pooled[:, :cblocks_flat[-1]["true_out"]].astype(jnp.float32)
        to_nchw = lambda t, c: jnp.transpose(t[..., :c], (0, 3, 1, 2)).astype(jnp.float32)
        return {"x": pooled,
                "layerFeat": {i + 1: to_nchw(f, c)
                              for i, (f, c) in enumerate(feats)}}

    return forward


if __name__ == "__main__":
    key = jax.random.PRNGKey(0)
    pkey, xkey = jax.random.split(key)

    CHAN = 8                    # chan -> [8, 16, 32, 64]
    LAYERS = (1, 1, 1, 1)
    params, cfg = init_resnet_params(pkey, in_chan=3, chan=CHAN, layers=LAYERS)

    # small NCHW input, like the PyTorch module expects
    x = jax.random.normal(xkey, (2, 3, 64, 64), dtype=jnp.float32)

    forward = jax.jit(make_resnet_forward(cfg))
    out = forward(params, x)
    jax.block_until_ready(out)

    assert out["x"].shape == (2, CHAN * 8 * 4)                 # (2, 256)
    assert out["layerFeat"][1].shape == (2, CHAN * 4, 16, 16)
    assert out["layerFeat"][2].shape == (2, CHAN * 8, 8, 8)
    assert out["layerFeat"][3].shape == (2, CHAN * 16, 4, 4)
    assert out["layerFeat"][4].shape == (2, CHAN * 32, 2, 2)
    print("KERNEL_OK")
</pallas_src>

<mosaic_0001>
module attributes {stable_mosaic.version = 11 : i64} {
  func.func @_matmul_kernel(%arg0: i32, %arg1: memref<2048x147xbf16, #tpu.memory_space<vmem>>, %arg2: memref<147x128xbf16, #tpu.memory_space<vmem>>, %arg3: memref<1x128xf32, #tpu.memory_space<vmem>>, %arg4: memref<2048x128xbf16, #tpu.memory_space<vmem>>) attributes {dimension_semantics = [#tpu.dimension_semantics<parallel>], iteration_bounds = array<i64: 1>, scalar_prefetch = 0 : i64, scratch_operands = 0 : i64, tpu.core_type = #tpu.core_type<tc>, window_params = [{transform_indices = @transform_0, window_bounds = array<i64: 2048, 147>}, {pipeline_mode = #tpu.pipeline_mode<synchronous>, transform_indices = @transform_1, window_bounds = array<i64: 147, 128>}, {pipeline_mode = #tpu.pipeline_mode<synchronous>, transform_indices = @transform_2, window_bounds = array<i64: 1, 128>}, {transform_indices = @transform_3, window_bounds = array<i64: 2048, 128>}]} {
    %c0 = arith.constant 0 : index
    %c0_0 = arith.constant 0 : index
    %0 = vector.load %arg1[%c0, %c0_0] : memref<2048x147xbf16, #tpu.memory_space<vmem>>, vector<2048x147xbf16>
    %c0_1 = arith.constant 0 : index
    %c0_2 = arith.constant 0 : index
    %1 = vector.load %arg2[%c0_1, %c0_2] : memref<147x128xbf16, #tpu.memory_space<vmem>>, vector<147x128xbf16>
    %cst = arith.constant dense<0.000000e+00> : vector<2048x128xf32>
    %2 = tpu.matmul %0, %1, %cst {dimension_numbers = #tpu.dot_dimension_numbers<[1], [0], [0], [1], [0, 0, 1, 1], [], []>} : vector<2048x147xbf16>, vector<147x128xbf16>, vector<2048x128xf32> -> vector<2048x128xf32>
    %c0_3 = arith.constant 0 : index
    %c0_4 = arith.constant 0 : index
    %3 = vector.load %arg3[%c0_3, %c0_4] : memref<1x128xf32, #tpu.memory_space<vmem>>, vector<1x128xf32>
    %4 = vector.broadcast %3 : vector<1x128xf32> to vector<2048x128xf32>
    %5 = arith.addf %2, %4 : vector<2048x128xf32>
    %cst_5 = arith.constant 0.000000e+00 : f32
    %6 = vector.broadcast %cst_5 : f32 to vector<2048x128xf32>
    %7 = arith.maximumf %5, %6 : vector<2048x128xf32>
    %8 = arith.truncf %7 : vector<2048x128xf32> to vector<2048x128xbf16>
    %c0_6 = arith.constant 0 : index
    %c0_7 = arith.constant 0 : index
    %9 = vector.load %arg4[%c0_6, %c0_7] : memref<2048x128xbf16, #tpu.memory_space<vmem>>, vector<2048x128xbf16>
    tpu.vector_store %arg4[%c0_6, %c0_7], %8 {strides = array<i32>} : memref<2048x128xbf16, #tpu.memory_space<vmem>>, vector<2048x128xbf16>,
    return
  }
  func.func @transform_0(%arg0: i32) -> (i32, i32) {
    %c0_i32 = arith.constant 0 : i32
    %c0_i32_0 = arith.constant 0 : i32
    return %arg0, %c0_i32 : i32, i32
  }
  func.func @transform_1(%arg0: i32) -> (i32, i32) {
    %c0_i32 = arith.constant 0 : i32
    %c0_i32_0 = arith.constant 0 : i32
    %c0_i32_1 = arith.constant 0 : i32
    return %c0_i32, %c0_i32_0 : i32, i32
  }
  func.func @transform_2(%arg0: i32) -> (i32, i32) {
    %c0_i32 = arith.constant 0 : i32
    %c0_i32_0 = arith.constant 0 : i32
    %c0_i32_1 = arith.constant 0 : i32
    return %c0_i32, %c0_i32_0 : i32, i32
  }
  func.func @transform_3(%arg0: i32) -> (i32, i32) {
    %c0_i32 = arith.constant 0 : i32
    %c0_i32_0 = arith.constant 0 : i32
    return %arg0, %c0_i32 : i32, i32
  }
}

module attributes {stable_mosaic.version = 11 : i64} {
  func.func @_matmul_kernel(%arg0: i32, %arg1: memref<9x512x128xbf16, #tpu.memory_space<vmem>>, %arg2: memref<128x128xbf16, #tpu.memory_space<vmem>>, %arg3: memref<1x128xf32, #tpu.memory_space<vmem>>, %arg4: memref<512x128xbf16, #tpu.memory_space<vmem>>, %arg5: memref<512x128xbf16, #tpu.memory_space<vmem>>) attributes {dimension_semantics = [#tpu.dimension_semantics<parallel>], iteration_bounds = array<i64: 1>, scalar_prefetch = 0 : i64, scratch_operands = 0 : i64, tpu.core_type = #tpu.core_type<tc>, window_params = [{transform_indices = @transform_0, window_bounds = array<i64: 9, 512, 128>}, {pipeline_mode = #tpu.pipeline_mode<synchronous>, transform_indices = @transform_1, window_bounds = array<i64: 128, 128>}, {pipeline_mode = #tpu.pipeline_mode<synchronous>, transform_indices = @transform_2, window_bounds = array<i64: 1, 128>}, {transform_indices = @transform_3, window_bounds = array<i64: 512, 128>}, {transform_indices = @transform_4, window_bounds = array<i64: 512, 128>}]} {
    %c0 = arith.constant 0 : index
    %c0_0 = arith.constant 0 : index
    %c0_1 = arith.constant 0 : index
    %0 = vector.load %arg1[%c0, %c0_0, %c0_1] : memref<9x512x128xbf16, #tpu.memory_space<vmem>>, vector<9x512x128xbf16>
    %cst = arith.constant dense<0xFF80> : vector<512x128xbf16>
    %1 = vector.multi_reduction <maximumf>, %0, %cst [0] : vector<9x512x128xbf16> to vector<512x128xbf16>
    %c0_2 = arith.constant 0 : index
    %c0_3 = arith.constant 0 : index
    %2 = vector.load %arg5[%c0_2, %c0_3] : memref<512x128xbf16, #tpu.memory_space<vmem>>, vector<512x128xbf16>
    tpu.vector_store %arg5[%c0_2, %c0_3], %1 {strides = array<i32>} : memref<512x128xbf16, #tpu.memory_space<vmem>>, vector<512x128xbf16>,
    %c0_4 = arith.constant 0 : index
    %c0_5 = arith.constant 0 : index
    %3 = vector.load %arg2[%c0_4, %c0_5] : memref<128x128xbf16, #tpu.memory_space<vmem>>, vector<128x128xbf16>
    %cst_6 = arith.constant dense<0.000000e+00> : vector<512x128xf32>
    %4 = tpu.matmul %1, %3, %cst_6 {dimension_numbers = #tpu.dot_dimension_numbers<[1], [0], [0], [1], [0, 0, 1, 1], [], []>} : vector<512x128xbf16>, vector<128x128xbf16>, vector<512x128xf32> -> vector<512x128xf32>
    %c0_7 = arith.constant 0 : index
    %c0_8 = arith.constant 0 : index
    %5 = vector.load %arg3[%c0_7, %c0_8] : memref<1x128xf32, #tpu.memory_space<vmem>>, vector<1x128xf32>
    %6 = vector.broadcast %5 : vector<1x128xf32> to vector<512x128xf32>
    %7 = arith.addf %4, %6 : vector<512x128xf32>
    %cst_9 = arith.constant 0.000000e+00 : f32
    %8 = vector.broadcast %cst_9 : f32 to vector<512x128xf32>
    %9 = arith.maximumf %7, %8 : vector<512x128xf32>
    %10 = arith.truncf %9 : vector<512x128xf32> to vector<512x128xbf16>
    %c0_10 = arith.constant 0 : index
    %c0_11 = arith.constant 0 : index
    %11 = vector.load %arg4[%c0_10, %c0_11] : memref<512x128xbf16, #tpu.memory_space<vmem>>, vector<512x128xbf16>
    tpu.vector_store %arg4[%c0_10, %c0_11], %10 {strides = array<i32>} : memref<512x128xbf16, #tpu.memory_space<vmem>>, vector<512x128xbf16>,
    return
  }
  func.func @transform_0(%arg0: i32) -> (i32, i32, i32) {
    %c0_i32 = arith.constant 0 : i32
    %c0_i32_0 = arith.constant 0 : i32
    %c0_i32_1 = arith.constant 0 : i32
    return %c0_i32, %arg0, %c0_i32_0 : i32, i32, i32
  }
  func.func @transform_1(%arg0: i32) -> (i32, i32) {
    %c0_i32 = arith.constant 0 : i32
    %c0_i32_0 = arith.constant 0 : i32
    %c0_i32_1 = arith.constant 0 : i32
    return %c0_i32, %c0_i32_0 : i32, i32
  }
  func.func @transform_2(%arg0: i32) -> (i32, i32) {
    %c0_i32 = arith.constant 0 : i32
    %c0_i32_0 = arith.constant 0 : i32
    %c0_i32_1 = arith.constant 0 : i32
    return %c0_i32, %c0_i32_0 : i32, i32
  }
  func.func @transform_3(%arg0: i32) -> (i32, i32) {
    %c0_i32 = arith.constant 0 : i32
    %c0_i32_0 = arith.constant 0 : i32
    return %arg0, %c0_i32 : i32, i32
  }
  func.func @transform_4(%arg0: i32) -> (i32, i32) {
    %c0_i32 = arith.constant 0 : i32
    %c0_i32_0 = arith.constant 0 : i32
    return %arg0, %c0_i32 : i32, i32
  }
}

module attributes {stable_mosaic.version = 11 : i64} {
  func.func @_block_post_kernel(%arg0: i32, %arg1: memref<512x128xbf16, #tpu.memory_space<vmem>>, %arg2: memref<128x128xbf16, #tpu.memory_space<vmem>>, %arg3: memref<1x128xf32, #tpu.memory_space<vmem>>, %arg4: memref<256x128xbf16, #tpu.memory_space<vmem>>, %arg5: memref<1x128xf32, #tpu.memory_space<vmem>>, %arg6: memref<512x128xbf16, #tpu.memory_space<vmem>>, %arg7: memref<128x128xbf16, #tpu.memory_space<vmem>>, %arg8: memref<1x128xf32, #tpu.memory_space<vmem>>, %arg9: memref<512x128xbf16, #tpu.memory_space<vmem>>, %arg10: memref<512x128xbf16, #tpu.memory_space<vmem>>) attributes {dimension_semantics = [#tpu.dimension_semantics<parallel>], iteration_bounds = array<i64: 1>, scalar_prefetch = 0 : i64, scratch_operands = 0 : i64, tpu.core_type = #tpu.core_type<tc>, window_params = [{transform_indices = @transform_0, window_bounds = array<i64: 512, 128>}, {pipeline_mode = #tpu.pipeline_mode<synchronous>, transform_indices = @transform_1, window_bounds = array<i64: 128, 128>}, {pipeline_mode = #tpu.pipeline_mode<synchronous>, transform_indices = @transform_2, window_bounds = array<i64: 1, 128>}, {pipeline_mode = #tpu.pipeline_mode<synchronous>, transform_indices = @transform_3, window_bounds = array<i64: 256, 128>}, {pipeline_mode = #tpu.pipeline_mode<synchronous>, transform_indices = @transform_4, window_bounds = array<i64: 1, 128>}, {transform_indices = @transform_5, window_bounds = array<i64: 512, 128>}, {pipeline_mode = #tpu.pipeline_mode<synchronous>, transform_indices = @transform_6, window_bounds = array<i64: 128, 128>}, {pipeline_mode = #tpu.pipeline_mode<synchronous>, transform_indices = @transform_7, window_bounds = array<i64: 1, 128>}, {transform_indices = @transform_8, window_bounds = array<i64: 512, 128>}, {transform_indices = @transform_9, window_bounds = array<i64: 512, 128>}]} {
    %c0 = arith.constant 0 : index
    %c0_0 = arith.constant 0 : index
    %0 = vector.load %arg1[%c0, %c0_0] : memref<512x128xbf16, #tpu.memory_space<vmem>>, vector<512x128xbf16>
    %c0_1 = arith.constant 0 : index
    %c0_2 = arith.constant 0 : index
    %1 = vector.load %arg2[%c0_1, %c0_2] : memref<128x128xbf16, #tpu.memory_space<vmem>>, vector<128x128xbf16>
    %cst = arith.constant dense<0.000000e+00> : vector<512x128xf32>
    %2 = tpu.matmul %0, %1, %cst {dimension_numbers = #tpu.dot_dimension_numbers<[1], [0], [0], [1], [0, 0, 1, 1], [], []>} : vector<512x128xbf16>, vector<128x128xbf16>, vector<512x128xf32> -> vector<512x128xf32>
    %c0_3 = arith.constant 0 : index
    %c0_4 = arith.constant 0 : index
    %3 = vector.load %arg3[%c0_3, %c0_4] : memref<1x128xf32, #tpu.memory_space<vmem>>, vector<1x128xf32>
    %4 = vector.broadcast %3 : vector<1x128xf32> to vector<512x128xf32>
    %5 = arith.addf %2, %4 : vector<512x128xf32>
    %cst_5 = arith.constant 0.000000e+00 : f32
    %6 = vector.broadcast %cst_5 : f32 to vector<512x128xf32>
    %7 = arith.maximumf %5, %6 : vector<512x128xf32>
    %8 = arith.truncf %7 : vector<512x128xf32> to vector<512x128xbf16>
    %c0_6 = arith.constant 0 : index
    %c0_7 = arith.constant 0 : index
    %9 = vector.load %arg6[%c0_6, %c0_7] : memref<512x128xbf16, #tpu.memory_space<vmem>>, vector<512x128xbf16>
    %10 = tpu.concatenate %8, %9 in 1 : vector<512x128xbf16>, vector<512x128xbf16> -> vector<512x256xbf16>
    %c0_8 = arith.constant 0 : index
    %c0_9 = arith.constant 0 : index
    %11 = vector.load %arg4[%c0_8, %c0_9] : memref<256x128xbf16, #tpu.memory_space<vmem>>, vector<256x128xbf16>
    %cst_10 = arith.constant dense<0.000000e+00> : vector<512x128xf32>
    %12 = tpu.matmul %10, %11, %cst_10 {dimension_numbers = #tpu.dot_dimension_numbers<[1], [0], [0], [1], [0, 0, 1, 1], [], []>} : vector<512x256xbf16>, vector<256x128xbf16>, vector<512x128xf32> -> vector<512x128xf32>
    %c0_11 = arith.constant 0 : index
    %c0_12 = arith.constant 0 : index
    %13 = vector.load %arg5[%c0_11, %c0_12] : memref<1x128xf32, #tpu.memory_space<vmem>>, vector<1x128xf32>
    %14 = vector.broadcast %13 : vector<1x128xf32> to vector<512x128xf32>
    %15 = arith.addf %12, %14 : vector<512x128xf32>
    %16 = arith.truncf %15 : vector<512x128xf32> to vector<512x128xbf16>
    %c0_13 = arith.constant 0 : index
    %c0_14 = arith.constant 0 : index
    %17 = vector.load %arg9[%c0_13, %c0_14] : memref<512x128xbf16, #tpu.memory_space<vmem>>, vector<512x128xbf16>
    tpu.vector_store %arg9[%c0_13, %c0_14], %16 {strides = array<i32>} : memref<512x128xbf16, #tpu.memory_space<vmem>>, vector<512x128xbf16>,
    %c0_15 = arith.constant 0 : index
    %c0_16 = arith.constant 0 : index
    %18 = vector.load %arg7[%c0_15, %c0_16] : memref<128x128xbf16, #tpu.memory_space<vmem>>, vector<128x128xbf16>
    %cst_17 = arith.constant dense<0.000000e+00> : vector<512x128xf32>
    %19 = tpu.matmul %16, %18, %cst_17 {dimension_numbers = #tpu.dot_dimension_numbers<[1], [0], [0], [1], [0, 0, 1, 1], [], []>} : vector<512x128xbf16>, vector<128x128xbf16>, vector<512x128xf32> -> vector<512x128xf32>
    %c0_18 = arith.constant 0 : index
    %c0_19 = arith.constant 0 : index
    %20 = vector.load %arg8[%c0_18, %c0_19] : memref<1x128xf32, #tpu.memory_space<vmem>>, vector<1x128xf32>
    %21 = vector.broadcast %20 : vector<1x128xf32> to vector<512x128xf32>
    %22 = arith.addf %19, %21 : vector<512x128xf32>
    %cst_20 = arith.constant 0.000000e+00 : f32
    %23 = vector.broadcast %cst_20 : f32 to vector<512x128xf32>
    %24 = arith.maximumf %22, %23 : vector<512x128xf32>
    %25 = arith.truncf %24 : vector<512x128xf32> to vector<512x128xbf16>
    %c0_21 = arith.constant 0 : index
    %c0_22 = arith.constant 0 : index
    %26 = vector.load %arg10[%c0_21, %c0_22] : memref<512x128xbf16, #tpu.memory_space<vmem>>, vector<512x128xbf16>
    tpu.vector_store %arg10[%c0_21, %c0_22], %25 {strides = array<i32>} : memref<512x128xbf16, #tpu.memory_space<vmem>>, vector<512x128xbf16>,
    return
  }
  func.func @transform_0(%arg0: i32) -> (i32, i32) {
    %c0_i32 = arith.constant 0 : i32
    %c0_i32_0 = arith.constant 0 : i32
    return %arg0, %c0_i32 : i32, i32
  }
  func.func @transform_1(%arg0: i32) -> (i32, i32) {
    %c0_i32 = arith.constant 0 : i32
    %c0_i32_0 = arith.constant 0 : i32
    %c0_i32_1 = arith.constant 0 : i32
    return %c0_i32, %c0_i32_0 : i32, i32
  }
  func.func @transform_2(%arg0: i32) -> (i32, i32) {
    %c0_i32 = arith.constant 0 : i32
    %c0_i32_0 = arith.constant 0 : i32
    %c0_i32_1 = arith.constant 0 : i32
    return %c0_i32, %c0_i32_0 : i32, i32
  }
  func.func @transform_3(%arg0: i32) -> (i32, i32) {
    %c0_i32 = arith.constant 0 : i32
    %c0_i32_0 = arith.constant 0 : i32
    %c0_i32_1 = arith.constant 0 : i32
    return %c0_i32, %c0_i32_0 : i32, i32
  }
  func.func @transform_4(%arg0: i32) -> (i32, i32) {
    %c0_i32 = arith.constant 0 : i32
    %c0_i32_0 = arith.constant 0 : i32
    %c0_i32_1 = arith.constant 0 : i32
    return %c0_i32, %c0_i32_0 : i32, i32
  }
  func.func @transform_5(%arg0: i32) -> (i32, i32) {
    %c0_i32 = arith.constant 0 : i32
    %c0_i32_0 = arith.constant 0 : i32
    return %arg0, %c0_i32 : i32, i32
  }
  func.func @transform_6(%arg0: i32) -> (i32, i32) {
    %c0_i32 = arith.constant 0 : i32
    %c0_i32_0 = arith.constant 0 : i32
    %c0_i32_1 = arith.constant 0 : i32
    return %c0_i32, %c0_i32_0 : i32, i32
  }
  func.func @transform_7(%arg0: i32) -> (i32, i32) {
    %c0_i32 = arith.constant 0 : i32
    %c0_i32_0 = arith.constant 0 : i32
    %c0_i32_1 = arith.constant 0 : i32
    return %c0_i32, %c0_i32_0 : i32, i32
  }
  func.func @transform_8(%arg0: i32) -> (i32, i32) {
    %c0_i32 = arith.constant 0 : i32
    %c0_i32_0 = arith.constant 0 : i32
    return %arg0, %c0_i32 : i32, i32
  }
  func.func @transform_9(%arg0: i32) -> (i32, i32) {
    %c0_i32 = arith.constant 0 : i32
    %c0_i32_0 = arith.constant 0 : i32
    return %arg0, %c0_i32 : i32, i32
  }
}

module attributes {stable_mosaic.version = 11 : i64} {
  func.func @_block_post_kernel(%arg0: i32, %arg1: memref<128x256xbf16, #tpu.memory_space<vmem>>, %arg2: memref<256x128xbf16, #tpu.memory_space<vmem>>, %arg3: memref<1x128xf32, #tpu.memory_space<vmem>>, %arg4: memref<256x128xbf16, #tpu.memory_space<vmem>>, %arg5: memref<1x128xf32, #tpu.memory_space<vmem>>, %arg6: memref<128x128xbf16, #tpu.memory_space<vmem>>, %arg7: memref<128x128xbf16, #tpu.memory_space<vmem>>, %arg8: memref<1x128xf32, #tpu.memory_space<vmem>>, %arg9: memref<128x128xbf16, #tpu.memory_space<vmem>>, %arg10: memref<128x128xbf16, #tpu.memory_space<vmem>>) attributes {dimension_semantics = [#tpu.dimension_semantics<parallel>], iteration_bounds = array<i64: 1>, scalar_prefetch = 0 : i64, scratch_operands = 0 : i64, tpu.core_type = #tpu.core_type<tc>, window_params = [{transform_indices = @transform_0, window_bounds = array<i64: 128, 256>}, {pipeline_mode = #tpu.pipeline_mode<synchronous>, transform_indices = @transform_1, window_bounds = array<i64: 256, 128>}, {pipeline_mode = #tpu.pipeline_mode<synchronous>, transform_indices = @transform_2, window_bounds = array<i64: 1, 128>}, {pipeline_mode = #tpu.pipeline_mode<synchronous>, transform_indices = @transform_3, window_bounds = array<i64: 256, 128>}, {pipeline_mode = #tpu.pipeline_mode<synchronous>, transform_indices = @transform_4, window_bounds = array<i64: 1, 128>}, {transform_indices = @transform_5, window_bounds = array<i64: 128, 128>}, {pipeline_mode = #tpu.pipeline_mode<synchronous>, transform_indices = @transform_6, window_bounds = array<i64: 128, 128>}, {pipeline_mode = #tpu.pipeline_mode<synchronous>, transform_indices = @transform_7, window_bounds = array<i64: 1, 128>}, {transform_indices = @transform_8, window_bounds = array<i64: 128, 128>}, {transform_indices = @transform_9, window_bounds = array<i64: 128, 128>}]} {
    %c0 = arith.constant 0 : index
    %c0_0 = arith.constant 0 : index
    %0 = vector.load %arg1[%c0, %c0_0] : memref<128x256xbf16, #tpu.memory_space<vmem>>, vector<128x256xbf16>
    %c0_1 = arith.constant 0 : index
    %c0_2 = arith.constant 0 : index
    %1 = vector.load %arg2[%c0_1, %c0_2] : memref<256x128xbf16, #tpu.memory_space<vmem>>, vector<256x128xbf16>
    %cst = arith.constant dense<0.000000e+00> : vector<128x128xf32>
    %2 = tpu.matmul %0, %1, %cst {dimension_numbers = #tpu.dot_dimension_numbers<[1], [0], [0], [1], [0, 0, 1, 1], [], []>} : vector<128x256xbf16>, vector<256x128xbf16>, vector<128x128xf32> -> vector<128x128xf32>
    %c0_3 = arith.constant 0 : index
    %c0_4 = arith.constant 0 : index
    %3 = vector.load %arg3[%c0_3, %c0_4] : memref<1x128xf32, #tpu.memory_space<vmem>>, vector<1x128xf32>
    %4 = vector.broadcast %3 : vector<1x128xf32> to vector<128x128xf32>
    %5 = arith.addf %2, %4 : vector<128x128xf32>
    %cst_5 = arith.constant 0.000000e+00 : f32
    %6 = vector.broadcast %cst_5 : f32 to vector<128x128xf32>
    %7 = arith.maximumf %5, %6 : vector<128x128xf32>
    %8 = arith.truncf %7 : vector<128x128xf32> to vector<128x128xbf16>
    %c0_6 = arith.constant 0 : index
    %c0_7 = arith.constant 0 : index
    %9 = vector.load %arg6[%c0_6, %c0_7] : memref<128x128xbf16, #tpu.memory_space<vmem>>, vector<128x128xbf16>
    %10 = tpu.concatenate %8, %9 in 1 : vector<128x128xbf16>, vector<128x128xbf16> -> vector<128x256xbf16>
    %c0_8 = arith.constant 0 : index
    %c0_9 = arith.constant 0 : index
    %11 = vector.load %arg4[%c0_8, %c0_9] : memref<256x128xbf16, #tpu.memory_space<vmem>>, vector<256x128xbf16>
    %cst_10 = arith.constant dense<0.000000e+00> : vector<128x128xf32>
    %12 = tpu.matmul %10, %11, %cst_10 {dimension_numbers = #tpu.dot_dimension_numbers<[1], [0], [0], [1], [0, 0, 1, 1], [], []>} : vector<128x256xbf16>, vector<256x128xbf16>, vector<128x128xf32> -> vector<128x128xf32>
    %c0_11 = arith.constant 0 : index
    %c0_12 = arith.constant 0 : index
    %13 = vector.load %arg5[%c0_11, %c0_12] : memref<1x128xf32, #tpu.memory_space<vmem>>, vector<1x128xf32>
    %14 = vector.broadcast %13 : vector<1x128xf32> to vector<128x128xf32>
    %15 = arith.addf %12, %14 : vector<128x128xf32>
    %16 = arith.truncf %15 : vector<128x128xf32> to vector<128x128xbf16>
    %c0_13 = arith.constant 0 : index
    %c0_14 = arith.constant 0 : index
    %17 = vector.load %arg9[%c0_13, %c0_14] : memref<128x128xbf16, #tpu.memory_space<vmem>>, vector<128x128xbf16>
    tpu.vector_store %arg9[%c0_13, %c0_14], %16 {strides = array<i32>} : memref<128x128xbf16, #tpu.memory_space<vmem>>, vector<128x128xbf16>,
    %c0_15 = arith.constant 0 : index
    %c0_16 = arith.constant 0 : index
    %18 = vector.load %arg7[%c0_15, %c0_16] : memref<128x128xbf16, #tpu.memory_space<vmem>>, vector<128x128xbf16>
    %cst_17 = arith.constant dense<0.000000e+00> : vector<128x128xf32>
    %19 = tpu.matmul %16, %18, %cst_17 {dimension_numbers = #tpu.dot_dimension_numbers<[1], [0], [0], [1], [0, 0, 1, 1], [], []>} : vector<128x128xbf16>, vector<128x128xbf16>, vector<128x128xf32> -> vector<128x128xf32>
    %c0_18 = arith.constant 0 : index
    %c0_19 = arith.constant 0 : index
    %20 = vector.load %arg8[%c0_18, %c0_19] : memref<1x128xf32, #tpu.memory_space<vmem>>, vector<1x128xf32>
    %21 = vector.broadcast %20 : vector<1x128xf32> to vector<128x128xf32>
    %22 = arith.addf %19, %21 : vector<128x128xf32>
    %cst_20 = arith.constant 0.000000e+00 : f32
    %23 = vector.broadcast %cst_20 : f32 to vector<128x128xf32>
    %24 = arith.maximumf %22, %23 : vector<128x128xf32>
    %25 = arith.truncf %24 : vector<128x128xf32> to vector<128x128xbf16>
    %c0_21 = arith.constant 0 : index
    %c0_22 = arith.constant 0 : index
    %26 = vector.load %arg10[%c0_21, %c0_22] : memref<128x128xbf16, #tpu.memory_space<vmem>>, vector<128x128xbf16>
    tpu.vector_store %arg10[%c0_21, %c0_22], %25 {strides = array<i32>} : memref<128x128xbf16, #tpu.memory_space<vmem>>, vector<128x128xbf16>,
    return
  }
  func.func @transform_0(%arg0: i32) -> (i32, i32) {
    %c0_i32 = arith.constant 0 : i32
    %c0_i32_0 = arith.constant 0 : i32
    return %arg0, %c0_i32 : i32, i32
  }
  func.func @transform_1(%arg0: i32) -> (i32, i32) {
    %c0_i32 = arith.constant 0 : i32
    %c0_i32_0 = arith.constant 0 : i32
    %c0_i32_1 = arith.constant 0 : i32
    return %c0_i32, %c0_i32_0 : i32, i32
  }
  func.func @transform_2(%arg0: i32) -> (i32, i32) {
    %c0_i32 = arith.constant 0 : i32
    %c0_i32_0 = arith.constant 0 : i32
    %c0_i32_1 = arith.constant 0 : i32
    return %c0_i32, %c0_i32_0 : i32, i32
  }
  func.func @transform_3(%arg0: i32) -> (i32, i32) {
    %c0_i32 = arith.constant 0 : i32
    %c0_i32_0 = arith.constant 0 : i32
    %c0_i32_1 = arith.constant 0 : i32
    return %c0_i32, %c0_i32_0 : i32, i32
  }
  func.func @transform_4(%arg0: i32) -> (i32, i32) {
    %c0_i32 = arith.constant 0 : i32
    %c0_i32_0 = arith.constant 0 : i32
    %c0_i32_1 = arith.constant 0 : i32
    return %c0_i32, %c0_i32_0 : i32, i32
  }
  func.func @transform_5(%arg0: i32) -> (i32, i32) {
    %c0_i32 = arith.constant 0 : i32
    %c0_i32_0 = arith.constant 0 : i32
    return %arg0, %c0_i32 : i32, i32
  }
  func.func @transform_6(%arg0: i32) -> (i32, i32) {
    %c0_i32 = arith.constant 0 : i32
    %c0_i32_0 = arith.constant 0 : i32
    %c0_i32_1 = arith.constant 0 : i32
    return %c0_i32, %c0_i32_0 : i32, i32
  }
  func.func @transform_7(%arg0: i32) -> (i32, i32) {
    %c0_i32 = arith.constant 0 : i32
    %c0_i32_0 = arith.constant 0 : i32
    %c0_i32_1 = arith.constant 0 : i32
    return %c0_i32, %c0_i32_0 : i32, i32
  }
  func.func @transform_8(%arg0: i32) -> (i32, i32) {
    %c0_i32 = arith.constant 0 : i32
    %c0_i32_0 = arith.constant 0 : i32
    return %arg0, %c0_i32 : i32, i32
  }
  func.func @transform_9(%arg0: i32) -> (i32, i32) {
    %c0_i32 = arith.constant 0 : i32
    %c0_i32_0 = arith.constant 0 : i32
    return %arg0, %c0_i32 : i32, i32
  }
}

module attributes {stable_mosaic.version = 11 : i64} {
  func.func @_block_post_kernel(%arg0: i32, %arg1: memref<32x384xbf16, #tpu.memory_space<vmem>>, %arg2: memref<384x128xbf16, #tpu.memory_space<vmem>>, %arg3: memref<1x128xf32, #tpu.memory_space<vmem>>, %arg4: memref<256x128xbf16, #tpu.memory_space<vmem>>, %arg5: memref<1x128xf32, #tpu.memory_space<vmem>>, %arg6: memref<32x128xbf16, #tpu.memory_space<vmem>>, %arg7: memref<128x128xbf16, #tpu.memory_space<vmem>>, %arg8: memref<1x128xf32, #tpu.memory_space<vmem>>, %arg9: memref<32x128xbf16, #tpu.memory_space<vmem>>, %arg10: memref<32x128xbf16, #tpu.memory_space<vmem>>) attributes {dimension_semantics = [#tpu.dimension_semantics<parallel>], iteration_bounds = array<i64: 1>, scalar_prefetch = 0 : i64, scratch_operands = 0 : i64, tpu.core_type = #tpu.core_type<tc>, window_params = [{transform_indices = @transform_0, window_bounds = array<i64: 32, 384>}, {pipeline_mode = #tpu.pipeline_mode<synchronous>, transform_indices = @transform_1, window_bounds = array<i64: 384, 128>}, {pipeline_mode = #tpu.pipeline_mode<synchronous>, transform_indices = @transform_2, window_bounds = array<i64: 1, 128>}, {pipeline_mode = #tpu.pipeline_mode<synchronous>, transform_indices = @transform_3, window_bounds = array<i64: 256, 128>}, {pipeline_mode = #tpu.pipeline_mode<synchronous>, transform_indices = @transform_4, window_bounds = array<i64: 1, 128>}, {transform_indices = @transform_5, window_bounds = array<i64: 32, 128>}, {pipeline_mode = #tpu.pipeline_mode<synchronous>, transform_indices = @transform_6, window_bounds = array<i64: 128, 128>}, {pipeline_mode = #tpu.pipeline_mode<synchronous>, transform_indices = @transform_7, window_bounds = array<i64: 1, 128>}, {transform_indices = @transform_8, window_bounds = array<i64: 32, 128>}, {transform_indices = @transform_9, window_bounds = array<i64: 32, 128>}]} {
    %c0 = arith.constant 0 : index
    %c0_0 = arith.constant 0 : index
    %0 = vector.load %arg1[%c0, %c0_0] : memref<32x384xbf16, #tpu.memory_space<vmem>>, vector<32x384xbf16>
    %c0_1 = arith.constant 0 : index
    %c0_2 = arith.constant 0 : index
    %1 = vector.load %arg2[%c0_1, %c0_2] : memref<384x128xbf16, #tpu.memory_space<vmem>>, vector<384x128xbf16>
    %cst = arith.constant dense<0.000000e+00> : vector<32x128xf32>
    %2 = tpu.matmul %0, %1, %cst {dimension_numbers = #tpu.dot_dimension_numbers<[1], [0], [0], [1], [0, 0, 1, 1], [], []>} : vector<32x384xbf16>, vector<384x128xbf16>, vector<32x128xf32> -> vector<32x128xf32>
    %c0_3 = arith.constant 0 : index
    %c0_4 = arith.constant 0 : index
    %3 = vector.load %arg3[%c0_3, %c0_4] : memref<1x128xf32, #tpu.memory_space<vmem>>, vector<1x128xf32>
    %4 = vector.broadcast %3 : vector<1x128xf32> to vector<32x128xf32>
    %5 = arith.addf %2, %4 : vector<32x128xf32>
    %cst_5 = arith.constant 0.000000e+00 : f32
    %6 = vector.broadcast %cst_5 : f32 to vector<32x128xf32>
    %7 = arith.maximumf %5, %6 : vector<32x128xf32>
    %8 = arith.truncf %7 : vector<32x128xf32> to vector<32x128xbf16>
    %c0_6 = arith.constant 0 : index
    %c0_7 = arith.constant 0 : index
    %9 = vector.load %arg6[%c0_6, %c0_7] : memref<32x128xbf16, #tpu.memory_space<vmem>>, vector<32x128xbf16>
    %10 = tpu.concatenate %8, %9 in 1 : vector<32x128xbf16>, vector<32x128xbf16> -> vector<32x256xbf16>
    %c0_8 = arith.constant 0 : index
    %c0_9 = arith.constant 0 : index
    %11 = vector.load %arg4[%c0_8, %c0_9] : memref<256x128xbf16, #tpu.memory_space<vmem>>, vector<256x128xbf16>
    %cst_10 = arith.constant dense<0.000000e+00> : vector<32x128xf32>
    %12 = tpu.matmul %10, %11, %cst_10 {dimension_numbers = #tpu.dot_dimension_numbers<[1], [0], [0], [1], [0, 0, 1, 1], [], []>} : vector<32x256xbf16>, vector<256x128xbf16>, vector<32x128xf32> -> vector<32x128xf32>
    %c0_11 = arith.constant 0 : index
    %c0_12 = arith.constant 0 : index
    %13 = vector.load %arg5[%c0_11, %c0_12] : memref<1x128xf32, #tpu.memory_space<vmem>>, vector<1x128xf32>
    %14 = vector.broadcast %13 : vector<1x128xf32> to vector<32x128xf32>
    %15 = arith.addf %12, %14 : vector<32x128xf32>
    %16 = arith.truncf %15 : vector<32x128xf32> to vector<32x128xbf16>
    %c0_13 = arith.constant 0 : index
    %c0_14 = arith.constant 0 : index
    %17 = vector.load %arg9[%c0_13, %c0_14] : memref<32x128xbf16, #tpu.memory_space<vmem>>, vector<32x128xbf16>
    tpu.vector_store %arg9[%c0_13, %c0_14], %16 {strides = array<i32>} : memref<32x128xbf16, #tpu.memory_space<vmem>>, vector<32x128xbf16>,
    %c0_15 = arith.constant 0 : index
    %c0_16 = arith.constant 0 : index
    %18 = vector.load %arg7[%c0_15, %c0_16] : memref<128x128xbf16, #tpu.memory_space<vmem>>, vector<128x128xbf16>
    %cst_17 = arith.constant dense<0.000000e+00> : vector<32x128xf32>
    %19 = tpu.matmul %16, %18, %cst_17 {dimension_numbers = #tpu.dot_dimension_numbers<[1], [0], [0], [1], [0, 0, 1, 1], [], []>} : vector<32x128xbf16>, vector<128x128xbf16>, vector<32x128xf32> -> vector<32x128xf32>
    %c0_18 = arith.constant 0 : index
    %c0_19 = arith.constant 0 : index
    %20 = vector.load %arg8[%c0_18, %c0_19] : memref<1x128xf32, #tpu.memory_space<vmem>>, vector<1x128xf32>
    %21 = vector.broadcast %20 : vector<1x128xf32> to vector<32x128xf32>
    %22 = arith.addf %19, %21 : vector<32x128xf32>
    %cst_20 = arith.constant 0.000000e+00 : f32
    %23 = vector.broadcast %cst_20 : f32 to vector<32x128xf32>
    %24 = arith.maximumf %22, %23 : vector<32x128xf32>
    %25 = arith.truncf %24 : vector<32x128xf32> to vector<32x128xbf16>
    %c0_21 = arith.constant 0 : index
    %c0_22 = arith.constant 0 : index
    %26 = vector.load %arg10[%c0_21, %c0_22] : memref<32x128xbf16, #tpu.memory_space<vmem>>, vector<32x128xbf16>
    tpu.vector_store %arg10[%c0_21, %c0_22], %25 {strides = array<i32>} : memref<32x128xbf16, #tpu.memory_space<vmem>>, vector<32x128xbf16>,
    return
  }
  func.func @transform_0(%arg0: i32) -> (i32, i32) {
    %c0_i32 = arith.constant 0 : i32
    %c0_i32_0 = arith.constant 0 : i32
    return %arg0, %c0_i32 : i32, i32
  }
  func.func @transform_1(%arg0: i32) -> (i32, i32) {
    %c0_i32 = arith.constant 0 : i32
    %c0_i32_0 = arith.constant 0 : i32
    %c0_i32_1 = arith.constant 0 : i32
    return %c0_i32, %c0_i32_0 : i32, i32
  }
  func.func @transform_2(%arg0: i32) -> (i32, i32) {
    %c0_i32 = arith.constant 0 : i32
    %c0_i32_0 = arith.constant 0 : i32
    %c0_i32_1 = arith.constant 0 : i32
    return %c0_i32, %c0_i32_0 : i32, i32
  }
  func.func @transform_3(%arg0: i32) -> (i32, i32) {
    %c0_i32 = arith.constant 0 : i32
    %c0_i32_0 = arith.constant 0 : i32
    %c0_i32_1 = arith.constant 0 : i32
    return %c0_i32, %c0_i32_0 : i32, i32
  }
  func.func @transform_4(%arg0: i32) -> (i32, i32) {
    %c0_i32 = arith.constant 0 : i32
    %c0_i32_0 = arith.constant 0 : i32
    %c0_i32_1 = arith.constant 0 : i32
    return %c0_i32, %c0_i32_0 : i32, i32
  }
  func.func @transform_5(%arg0: i32) -> (i32, i32) {
    %c0_i32 = arith.constant 0 : i32
    %c0_i32_0 = arith.constant 0 : i32
    return %arg0, %c0_i32 : i32, i32
  }
  func.func @transform_6(%arg0: i32) -> (i32, i32) {
    %c0_i32 = arith.constant 0 : i32
    %c0_i32_0 = arith.constant 0 : i32
    %c0_i32_1 = arith.constant 0 : i32
    return %c0_i32, %c0_i32_0 : i32, i32
  }
  func.func @transform_7(%arg0: i32) -> (i32, i32) {
    %c0_i32 = arith.constant 0 : i32
    %c0_i32_0 = arith.constant 0 : i32
    %c0_i32_1 = arith.constant 0 : i32
    return %c0_i32, %c0_i32_0 : i32, i32
  }
  func.func @transform_8(%arg0: i32) -> (i32, i32) {
    %c0_i32 = arith.constant 0 : i32
    %c0_i32_0 = arith.constant 0 : i32
    return %arg0, %c0_i32 : i32, i32
  }
  func.func @transform_9(%arg0: i32) -> (i32, i32) {
    %c0_i32 = arith.constant 0 : i32
    %c0_i32_0 = arith.constant 0 : i32
    return %arg0, %c0_i32 : i32, i32
  }
}

module attributes {stable_mosaic.version = 11 : i64} {
  func.func @_block_post_kernel(%arg0: i32, %arg1: memref<8x640xbf16, #tpu.memory_space<vmem>>, %arg2: memref<640x128xbf16, #tpu.memory_space<vmem>>, %arg3: memref<1x128xf32, #tpu.memory_space<vmem>>, %arg4: memref<256x256xbf16, #tpu.memory_space<vmem>>, %arg5: memref<1x256xf32, #tpu.memory_space<vmem>>, %arg6: memref<8x128xbf16, #tpu.memory_space<vmem>>, %arg7: memref<8x256xbf16, #tpu.memory_space<vmem>>, %arg8: memref<2x256xf32, #tpu.memory_space<vmem>>) attributes {dimension_semantics = [#tpu.dimension_semantics<parallel>], iteration_bounds = array<i64: 1>, scalar_prefetch = 0 : i64, scratch_operands = 0 : i64, tpu.core_type = #tpu.core_type<tc>, window_params = [{transform_indices = @transform_0, window_bounds = array<i64: 8, 640>}, {pipeline_mode = #tpu.pipeline_mode<synchronous>, transform_indices = @transform_1, window_bounds = array<i64: 640, 128>}, {pipeline_mode = #tpu.pipeline_mode<synchronous>, transform_indices = @transform_2, window_bounds = array<i64: 1, 128>}, {pipeline_mode = #tpu.pipeline_mode<synchronous>, transform_indices = @transform_3, window_bounds = array<i64: 256, 256>}, {pipeline_mode = #tpu.pipeline_mode<synchronous>, transform_indices = @transform_4, window_bounds = array<i64: 1, 256>}, {transform_indices = @transform_5, window_bounds = array<i64: 8, 128>}, {transform_indices = @transform_6, window_bounds = array<i64: 8, 256>}, {pipeline_mode = #tpu.pipeline_mode<synchronous>, transform_indices = @transform_7, window_bounds = array<i64: 2, 256>}]} {
    %c0 = arith.constant 0 : index
    %c0_0 = arith.constant 0 : index
    %0 = vector.load %arg1[%c0, %c0_0] : memref<8x640xbf16, #tpu.memory_space<vmem>>, vector<8x640xbf16>
    %c0_1 = arith.constant 0 : index
    %c0_2 = arith.constant 0 : index
    %1 = vector.load %arg2[%c0_1, %c0_2] : memref<640x128xbf16, #tpu.memory_space<vmem>>, vector<640x128xbf16>
    %cst = arith.constant dense<0.000000e+00> : vector<8x128xf32>
    %2 = tpu.matmul %0, %1, %cst {dimension_numbers = #tpu.dot_dimension_numbers<[1], [0], [0], [1], [0, 0, 1, 1], [], []>} : vector<8x640xbf16>, vector<640x128xbf16>, vector<8x128xf32> -> vector<8x128xf32>
    %c0_3 = arith.constant 0 : index
    %c0_4 = arith.constant 0 : index
    %3 = vector.load %arg3[%c0_3, %c0_4] : memref<1x128xf32, #tpu.memory_space<vmem>>, vector<1x128xf32>
    %4 = vector.broadcast %3 : vector<1x128xf32> to vector<8x128xf32>
    %5 = arith.addf %2, %4 : vector<8x128xf32>
    %cst_5 = arith.constant 0.000000e+00 : f32
    %6 = vector.broadcast %cst_5 : f32 to vector<8x128xf32>
    %7 = arith.maximumf %5, %6 : vector<8x128xf32>
    %8 = arith.truncf %7 : vector<8x128xf32> to vector<8x128xbf16>
    %c0_6 = arith.constant 0 : index
    %c0_7 = arith.constant 0 : index
    %9 = vector.load %arg6[%c0_6, %c0_7] : memref<8x128xbf16, #tpu.memory_space<vmem>>, vector<8x128xbf16>
    %10 = tpu.concatenate %8, %9 in 1 : vector<8x128xbf16>, vector<8x128xbf16> -> vector<8x256xbf16>
    %c0_8 = arith.constant 0 : index
    %c0_9 = arith.constant 0 : index
    %11 = vector.load %arg4[%c0_8, %c0_9] : memref<256x256xbf16, #tpu.memory_space<vmem>>, vector<256x256xbf16>
    %cst_10 = arith.constant dense<0.000000e+00> : vector<8x256xf32>
    %12 = tpu.matmul %10, %11, %cst_10 {dimension_numbers = #tpu.dot_dimension_numbers<[1], [0], [0], [1], [0, 0, 1, 1], [], []>} : vector<8x256xbf16>, vector<256x256xbf16>, vector<8x256xf32> -> vector<8x256xf32>
    %c0_11 = arith.constant 0 : index
    %c0_12 = arith.constant 0 : index
    %13 = vector.load %arg5[%c0_11, %c0_12] : memref<1x256xf32, #tpu.memory_space<vmem>>, vector<1x256xf32>
    %14 = vector.broadcast %13 : vector<1x256xf32> to vector<8x256xf32>
    %15 = arith.addf %12, %14 : vector<8x256xf32>
    %16 = arith.truncf %15 : vector<8x256xf32> to vector<8x256xbf16>
    %c0_13 = arith.constant 0 : index
    %c0_14 = arith.constant 0 : index
    %17 = vector.load %arg7[%c0_13, %c0_14] : memref<8x256xbf16, #tpu.memory_space<vmem>>, vector<8x256xbf16>
    tpu.vector_store %arg7[%c0_13, %c0_14], %16 {strides = array<i32>} : memref<8x256xbf16, #tpu.memory_space<vmem>>, vector<8x256xbf16>,
    %18 = vector.shape_cast %15 : vector<8x256xf32> to vector<2x4x256xf32>
    %cst_15 = arith.constant dense<0.000000e+00> : vector<2x256xf32>
    %19 = vector.multi_reduction <add>, %18, %cst_15 [1] : vector<2x4x256xf32> to vector<2x256xf32>
    %cst_16 = arith.constant 2.500000e-01 : f32
    %20 = vector.broadcast %cst_16 : f32 to vector<2x256xf32>
    %21 = arith.mulf %19, %20 : vector<2x256xf32>
    %c0_17 = arith.constant 0 : index
    %c0_18 = arith.constant 0 : index
    %22 = vector.load %arg8[%c0_17, %c0_18] : memref<2x256xf32, #tpu.memory_space<vmem>>, vector<2x256xf32>
    tpu.vector_store %arg8[%c0_17, %c0_18], %21 {strides = array<i32>} : memref<2x256xf32, #tpu.memory_space<vmem>>, vector<2x256xf32>,
    return
  }
  func.func @transform_0(%arg0: i32) -> (i32, i32) {
    %c0_i32 = arith.constant 0 : i32
    %c0_i32_0 = arith.constant 0 : i32
    return %arg0, %c0_i32 : i32, i32
  }
  func.func @transform_1(%arg0: i32) -> (i32, i32) {
    %c0_i32 = arith.constant 0 : i32
    %c0_i32_0 = arith.constant 0 : i32
    %c0_i32_1 = arith.constant 0 : i32
    return %c0_i32, %c0_i32_0 : i32, i32
  }
  func.func @transform_2(%arg0: i32) -> (i32, i32) {
    %c0_i32 = arith.constant 0 : i32
    %c0_i32_0 = arith.constant 0 : i32
    %c0_i32_1 = arith.constant 0 : i32
    return %c0_i32, %c0_i32_0 : i32, i32
  }
  func.func @transform_3(%arg0: i32) -> (i32, i32) {
    %c0_i32 = arith.constant 0 : i32
    %c0_i32_0 = arith.constant 0 : i32
    %c0_i32_1 = arith.constant 0 : i32
    return %c0_i32, %c0_i32_0 : i32, i32
  }
  func.func @transform_4(%arg0: i32) -> (i32, i32) {
    %c0_i32 = arith.constant 0 : i32
    %c0_i32_0 = arith.constant 0 : i32
    %c0_i32_1 = arith.constant 0 : i32
    return %c0_i32, %c0_i32_0 : i32, i32
  }
  func.func @transform_5(%arg0: i32) -> (i32, i32) {
    %c0_i32 = arith.constant 0 : i32
    %c0_i32_0 = arith.constant 0 : i32
    return %arg0, %c0_i32 : i32, i32
  }
  func.func @transform_6(%arg0: i32) -> (i32, i32) {
    %c0_i32 = arith.constant 0 : i32
    %c0_i32_0 = arith.constant 0 : i32
    return %arg0, %c0_i32 : i32, i32
  }
  func.func @transform_7(%arg0: i32) -> (i32, i32) {
    %c0_i32 = arith.constant 0 : i32
    %c0_i32_0 = arith.constant 0 : i32
    %c0_i32_1 = arith.constant 0 : i32
    return %c0_i32, %c0_i32_0 : i32, i32
  }
}

</mosaic_0001>

<llo_original>
// kernel: forward.6
$region0: #{forward.6}
  #allocation0 [shape = 'u32[]', space=smem, size = 0x4, offset = 0x4, fixed_abs, tag = 'smem constant byte address 0x4 - core index']
  #allocation1 [shape = 'u32[72,128]{1,0:T(1,128)}', space=vmem, size = 0x9000, scoped, tag = 'internal scratch']
  %s0 = inlined_call_operand.vmem [shape: bf16[2048,147], index: 0, kind: input, shape index: {}]
  %s1 = inlined_call_operand.vmem [shape: bf16[147,128], index: 1, kind: input, shape index: {}]
  %s2 = inlined_call_operand.vmem [shape: f32[1,128], index: 2, kind: input, shape index: {}]
  %s3 = inlined_call_operand.vmem [shape: bf16[2048,128], index: 3, kind: output, shape index: {}]
  %s4 = sld [smem:[#allocation0]]
  $region22: #{forward.6} parent=0
    _
  %s6 = ssub.s32 1, %s4
  %s7 = scalar_select 0, %s6, %s4
  // Predicated region
  $region2: #{forward.6} parent=0 // pred_check
    _
  $region3: #{forward.6} parent=0 // pred_check_branch
    %9 = sbr.rel (0) target = $region5
  $region4: #{forward.6} parent=0 // pred_region
    _
  $region5: #{forward.6} parent=0 // pred_fallthru
    _
  // Predicated region
  $region6: #{forward.6} parent=0 // pred_check
    _
  $region7: #{forward.6} parent=0 // pred_check_branch
    %11 = sbr.rel (0) target = $region9
  $region8: #{forward.6} parent=0 // pred_region
    _
  $region9: #{forward.6} parent=0 // pred_fallthru
    _
  // Predicated region
  $region10: #{forward.6} parent=0 // pred_check
    _
  $region11: #{forward.6} parent=0 // pred_check_branch
    %13 = sbr.rel (0) target = $region13
  $region12: #{forward.6} parent=0 // pred_region
    _
  $region13: #{forward.6} parent=0 // pred_fallthru
    _
  %v15 = vld [vmem:[%s0] sm:$0xff]
  %v16 = vld [vmem:[%s0 + $0x8] sm:$0xff]
  %v17 = vld [vmem:[%s0 + $0x10] sm:$0xff]
  %v18 = vld [vmem:[%s0 + $0x18] sm:$0xff]
  %v19 = vld [vmem:[%s0 + $0x20] sm:$0xff]
  %v20 = vld [vmem:[%s0 + $0x28] sm:$0xff]
  %v21 = vld [vmem:[%s0 + $0x30] sm:$0xff]
  %v22 = vld [vmem:[%s0 + $0x38] sm:$0xff]
  %v23 = vld [vmem:[%s0 + $0x40] sm:$0xff]
  %v24 = vld [vmem:[%s0 + $0x48] sm:$0xff]
  %v25 = vld [vmem:[%s0 + $0x50] sm:$0xff]
  %v26 = vld [vmem:[%s0 + $0x58] sm:$0xff]
  %v27 = vld [vmem:[%s0 + $0x60] sm:$0xff]
  %v28 = vld [vmem:[%s0 + $0x68] sm:$0xff]
  %v29 = vld [vmem:[%s0 + $0x70] sm:$0xff]
  %v30 = vld [vmem:[%s0 + $0x78] sm:$0xff]
  %v31 = vld [vmem:[%s0 + $0x80] sm:$0xff]
  %v32 = vld [vmem:[%s0 + $0x88] sm:$0xff]
  %v33 = vld [vmem:[%s0 + $0x90] sm:$0xff]
  %v34 = vld [vmem:[%s0 + $0x98] sm:$0xff]
  %v35 = vld [vmem:[%s0 + $0xa0] sm:$0xff]
  %v36 = vld [vmem:[%s0 + $0xa8] sm:$0xff]
  %v37 = vld [vmem:[%s0 + $0xb0] sm:$0xff]
  %v38 = vld [vmem:[%s0 + $0xb8] sm:$0xff]
  %v39 = vld [vmem:[%s0 + $0xc0] sm:$0xff]
  %v40 = vld [vmem:[%s0 + $0xc8] sm:$0xff]
  %v41 = vld [vmem:[%s0 + $0xd0] sm:$0xff]
  %v42 = vld [vmem:[%s0 + $0xd8] sm:$0xff]
  %v43 = vld [vmem:[%s0 + $0xe0] sm:$0xff]
  %v44 = vld [vmem:[%s0 + $0xe8] sm:$0xff]
  %v45 = vld [vmem:[%s0 + $0xf0] sm:$0xff]
  %v46 = vld [vmem:[%s0 + $0xf8] sm:$0xff]
  %v47 = vld [vmem:[%s0 + $0x100] sm:$0xff]
  %v48 = vld [vmem:[%s0 + $0x108] sm:$0xff]
  %v49 = vld [vmem:[%s0 + $0x110] sm:$0xff]
  %v50 = vld [vmem:[%s0 + $0x118] sm:$0xff]
  %v51 = vld [vmem:[%s0 + $0x120] sm:$0xff]
  %v52 = vld [vmem:[%s0 + $0x128] sm:$0xff]
  %v53 = vld [vmem:[%s0 + $0x130] sm:$0xff]
  %v54 = vld [vmem:[%s0 + $0x138] sm:$0xff]
  %v55 = vld [vmem:[%s0 + $0x140] sm:$0xff]
  %v56 = vld [vmem:[%s0 + $0x148] sm:$0xff]
  %v57 = vld [vmem:[%s0 + $0x150] sm:$0xff]
  %v58 = vld [vmem:[%s0 + $0x158] sm:$0xff]
  %v59 = vld [vmem:[%s0 + $0x160] sm:$0xff]
  %v60 = vld [vmem:[%s0 + $0x168] sm:$0xff]
  %v61 = vld [vmem:[%s0 + $0x170] sm:$0xff]
  %v62 = vld [vmem:[%s0 + $0x178] sm:$0xff]
  %v63 = vld [vmem:[%s0 + $0x180] sm:$0xff]
  %v64 = vld [vmem:[%s0 + $0x188] sm:$0xff]
  %v65 = vld [vmem:[%s0 + $0x190] sm:$0xff]
  %v66 = vld [vmem:[%s0 + $0x198] sm:$0xff]
  %v67 = vld [vmem:[%s0 + $0x1a0] sm:$0xff]
  %v68 = vld [vmem:[%s0 + $0x1a8] sm:$0xff]
  %v69 = vld [vmem:[%s0 + $0x1b0] sm:$0xff]
  %v70 = vld [vmem:[%s0 + $0x1b8] sm:$0xff]
  %v71 = vld [vmem:[%s0 + $0x1c0] sm:$0xff]
  %v72 = vld [vmem:[%s0 + $0x1c8] sm:$0xff]
  %v73 = vld [vmem:[%s0 + $0x1d0] sm:$0xff]
  %v74 = vld [vmem:[%s0 + $0x1d8] sm:$0xff]
  %v75 = vld [vmem:[%s0 + $0x1e0] sm:$0xff]
  %v76 = vld [vmem:[%s0 + $0x1e8] sm:$0xff]
  %v77 = vld [vmem:[%s0 + $0x1f0] sm:$0xff]
  %v78 = vld [vmem:[%s0 + $0x1f8] sm:$0xff]
  %v79 = vld [vmem:[%s0 + $0x200] sm:$0xff]
  %v80 = vld [vmem:[%s0 + $0x208] sm:$0xff]
  %v81 = vld [vmem:[%s0 + $0x210] sm:$0xff]
  %v82 = vld [vmem:[%s0 + $0x218] sm:$0xff]
  %v83 = vld [vmem:[%s0 + $0x220] sm:$0xff]
  %v84 = vld [vmem:[%s0 + $0x228] sm:$0xff]
  %v85 = vld [vmem:[%s0 + $0x230] sm:$0xff]
  %v86 = vld [vmem:[%s0 + $0x238] sm:$0xff]
  %v87 = vld [vmem:[%s0 + $0x240] sm:$0xff]
  %v88 = vld [vmem:[%s0 + $0x248] sm:$0xff]
  %v89 = vld [vmem:[%s0 + $0x250] sm:$0xff]
  %v90 = vld [vmem:[%s0 + $0x258] sm:$0xff]
  %v91 = vld [vmem:[%s0 + $0x260] sm:$0xff]
  %v92 = vld [vmem:[%s0 + $0x268] sm:$0xff]
  %v93 = vld [vmem:[%s0 + $0x270] sm:$0xff]
  %v94 = vld [vmem:[%s0 + $0x278] sm:$0xff]
  %v95 = vld [vmem:[%s0 + $0x280] sm:$0xff]
  %v96 = vld [vmem:[%s0 + $0x288] sm:$0xff]
  %v97 = vld [vmem:[%s0 + $0x290] sm:$0xff]
  %v98 = vld [vmem:[%s0 + $0x298] sm:$0xff]
  %v99 = vld [vmem:[%s0 + $0x2a0] sm:$0xff]
  %v100 = vld [vmem:[%s0 + $0x2a8] sm:$0xff]
  %v101 = vld [vmem:[%s0 + $0x2b0] sm:$0xff]
  %v102 = vld [vmem:[%s0 + $0x2b8] sm:$0xff]
  %v103 = vld [vmem:[%s0 + $0x2c0] sm:$0xff]
  %v104 = vld [vmem:[%s0 + $0x2c8] sm:$0xff]
  %v105 = vld [vmem:[%s0 + $0x2d0] sm:$0xff]
  %v106 = vld [vmem:[%s0 + $0x2d8] sm:$0xff]
  %v107 = vld [vmem:[%s0 + $0x2e0] sm:$0xff]
  %v108 = vld [vmem:[%s0 + $0x2e8] sm:$0xff]
  %v109 = vld [vmem:[%s0 + $0x2f0] sm:$0xff]
  %v110 = vld [vmem:[%s0 + $0x2f8] sm:$0xff]
  %v111 = vld [vmem:[%s0 + $0x300] sm:$0xff]
  %v112 = vld [vmem:[%s0 + $0x308] sm:$0xff]
  %v113 = vld [vmem:[%s0 + $0x310] sm:$0xff]
  %v114 = vld [vmem:[%s0 + $0x318] sm:$0xff]
  %v115 = vld [vmem:[%s0 + $0x320] sm:$0xff]
  %v116 = vld [vmem:[%s0 + $0x328] sm:$0xff]
  %v117 = vld [vmem:[%s0 + $0x330] sm:$0xff]
  %v118 = vld [vmem:[%s0 + $0x338] sm:$0xff]
  %v119 = vld [vmem:[%s0 + $0x340] sm:$0xff]
  %v120 = vld [vmem:[%s0 + $0x348] sm:$0xff]
  %v121 = vld [vmem:[%s0 + $0x350] sm:$0xff]
  %v122 = vld [vmem:[%s0 + $0x358] sm:$0xff]
  %v123 = vld [vmem:[%s0 + $0x360] sm:$0xff]
  %v124 = vld [vmem:[%s0 + $0x368] sm:$0xff]
  %v125 = vld [vmem:[%s0 + $0x370] sm:$0xff]
  %v126 = vld [vmem:[%s0 + $0x378] sm:$0xff]
  %v127 = vld [vmem:[%s0 + $0x380] sm:$0xff]
  %v128 = vld [vmem:[%s0 + $0x388] sm:$0xff]
  %v129 = vld [vmem:[%s0 + $0x390] sm:$0xff]
  %v130 = vld [vmem:[%s0 + $0x398] sm:$0xff]
  %v131 = vld [vmem:[%s0 + $0x3a0] sm:$0xff]
  %v132 = vld [vmem:[%s0 + $0x3a8] sm:$0xff]
  %v133 = vld [vmem:[%s0 + $0x3b0] sm:$0xff]
  %v134 = vld [vmem:[%s0 + $0x3b8] sm:$0xff]
  %v135 = vld [vmem:[%s0 + $0x3c0] sm:$0xff]
  %v136 = vld [vmem:[%s0 + $0x3c8] sm:$0xff]
  %v137 = vld [vmem:[%s0 + $0x3d0] sm:$0xff]
  %v138 = vld [vmem:[%s0 + $0x3d8] sm:$0xff]
  %v139 = vld [vmem:[%s0 + $0x3e0] sm:$0xff]
  %v140 = vld [vmem:[%s0 + $0x3e8] sm:$0xff]
  %v141 = vld [vmem:[%s0 + $0x3f0] sm:$0xff]
  %v142 = vld [vmem:[%s0 + $0x3f8] sm:$0xff]
  %v143 = vld [vmem:[%s0 + $0x400] sm:$0xff]
  %v144 = vld [vmem:[%s0 + $0x408] sm:$0xff]
  %v145 = vld [vmem:[%s0 + $0x410] sm:$0xff]
  %v146 = vld [vmem:[%s0 + $0x418] sm:$0xff]
  %v147 = vld [vmem:[%s0 + $0x420] sm:$0xff]
  %v148 = vld [vmem:[%s0 + $0x428] sm:$0xff]
  %v149 = vld [vmem:[%s0 + $0x430] sm:$0xff]
  %v150 = vld [vmem:[%s0 + $0x438] sm:$0xff]
  %v151 = vld [vmem:[%s0 + $0x440] sm:$0xff]
  %v152 = vld [vmem:[%s0 + $0x448] sm:$0xff]
  %v153 = vld [vmem:[%s0 + $0x450] sm:$0xff]
  %v154 = vld [vmem:[%s0 + $0x458] sm:$0xff]
  %v155 = vld [vmem:[%s0 + $0x460] sm:$0xff]
  %v156 = vld [vmem:[%s0 + $0x468] sm:$0xff]
  %v157 = vld [vmem:[%s0 + $0x470] sm:$0xff]
  %v158 = vld [vmem:[%s0 + $0x478] sm:$0xff]
  %v159 = vld [vmem:[%s0 + $0x480] sm:$0xff]
  %v160 = vld [vmem:[%s0 + $0x488] sm:$0xff]
  %v161 = vld [vmem:[%s0 + $0x490] sm:$0xff]
  %v162 = vld [vmem:[%s0 + $0x498] sm:$0xff]
  %v163 = vld [vmem:[%s0 + $0x4a0] sm:$0xff]
  %v164 = vld [vmem:[%s0 + $0x4a8] sm:$0xff]
  %v165 = vld [vmem:[%s0 + $0x4b0] sm:$0xff]
  %v166 = vld [vmem:[%s0 + $0x4b8] sm:$0xff]
  %v167 = vld [vmem:[%s0 + $0x4c0] sm:$0xff]
  %v168 = vld [vmem:[%s0 + $0x4c8] sm:$0xff]
  %v169 = vld [vmem:[%s0 + $0x4d0] sm:$0xff]
  %v170 = vld [vmem:[%s0 + $0x4d8] sm:$0xff]
  %v171 = vld [vmem:[%s0 + $0x4e0] sm:$0xff]
  %v172 = vld [vmem:[%s0 + $0x4e8] sm:$0xff]
  %v173 = vld [vmem:[%s0 + $0x4f0] sm:$0xff]
  %v174 = vld [vmem:[%s0 + $0x4f8] sm:$0xff]
  %v175 = vld [vmem:[%s0 + $0x500] sm:$0xff]
  %v176 = vld [vmem:[%s0 + $0x508] sm:$0xff]
  %v177 = vld [vmem:[%s0 + $0x510] sm:$0xff]
  %v178 = vld [vmem:[%s0 + $0x518] sm:$0xff]
  %v179 = vld [vmem:[%s0 + $0x520] sm:$0xff]
  %v180 = vld [vmem:[%s0 + $0x528] sm:$0xff]
  %v181 = vld [vmem:[%s0 + $0x530] sm:$0xff]
  %v182 = vld [vmem:[%s0 + $0x538] sm:$0xff]
  %v183 = vld [vmem:[%s0 + $0x540] sm:$0xff]
  %v184 = vld [vmem:[%s0 + $0x548] sm:$0xff]
  %v185 = vld [vmem:[%s0 + $0x550] sm:$0xff]
  %v186 = vld [vmem:[%s0 + $0x558] sm:$0xff]
  %v187 = vld [vmem:[%s0 + $0x560] sm:$0xff]
  %v188 = vld [vmem:[%s0 + $0x568] sm:$0xff]
  %v189 = vld [vmem:[%s0 + $0x570] sm:$0xff]
  %v190 = vld [vmem:[%s0 + $0x578] sm:$0xff]
  %v191 = vld [vmem:[%s0 + $0x580] sm:$0xff]
  %v192 = vld [vmem:[%s0 + $0x588] sm:$0xff]
  %v193 = vld [vmem:[%s0 + $0x590] sm:$0xff]
  %v194 = vld [vmem:[%s0 + $0x598] sm:$0xff]
  %v195 = vld [vmem:[%s0 + $0x5a0] sm:$0xff]
  %v196 = vld [vmem:[%s0 + $0x5a8] sm:$0xff]
  %v197 = vld [vmem:[%s0 + $0x5b0] sm:$0xff]
  %v198 = vld [vmem:[%s0 + $0x5b8] sm:$0xff]
  %v199 = vld [vmem:[%s0 + $0x5c0] sm:$0xff]
  %v200 = vld [vmem:[%s0 + $0x5c8] sm:$0xff]
  %v201 = vld [vmem:[%s0 + $0x5d0] sm:$0xff]
  %v202 = vld [vmem:[%s0 + $0x5d8] sm:$0xff]
  %v203 = vld [vmem:[%s0 + $0x5e0] sm:$0xff]
  %v204 = vld [vmem:[%s0 + $0x5e8] sm:$0xff]
  %v205 = vld [vmem:[%s0 + $0x5f0] sm:$0xff]
  %v206 = vld [vmem:[%s0 + $0x5f8] sm:$0xff]
  %v207 = vld [vmem:[%s0 + $0x600] sm:$0xff]
  %v208 = vld [vmem:[%s0 + $0x608] sm:$0xff]
  %v209 = vld [vmem:[%s0 + $0x610] sm:$0xff]
  %v210 = vld [vmem:[%s0 + $0x618] sm:$0xff]
  %v211 = vld [vmem:[%s0 + $0x620] sm:$0xff]
  %v212 = vld [vmem:[%s0 + $0x628] sm:$0xff]
  %v213 = vld [vmem:[%s0 + $0x630] sm:$0xff]
  %v214 = vld [vmem:[%s0 + $0x638] sm:$0xff]
  %v215 = vld [vmem:[%s0 + $0x640] sm:$0xff]
  %v216 = vld [vmem:[%s0 + $0x648] sm:$0xff]
  %v217 = vld [vmem:[%s0 + $0x650] sm:$0xff]
  %v218 = vld [vmem:[%s0 + $0x658] sm:$0xff]
  %v219 = vld [vmem:[%s0 + $0x660] sm:$0xff]
  %v220 = vld [vmem:[%s0 + $0x668] sm:$0xff]
  %v221 = vld [vmem:[%s0 + $0x670] sm:$0xff]
  %v222 = vld [vmem:[%s0 + $0x678] sm:$0xff]
  %v223 = vld [vmem:[%s0 + $0x680] sm:$0xff]
  %v224 = vld [vmem:[%s0 + $0x688] sm:$0xff]
  %v225 = vld [vmem:[%s0 + $0x690] sm:$0xff]
  %v226 = vld [vmem:[%s0 + $0x698] sm:$0xff]
  %v227 = vld [vmem:[%s0 + $0x6a0] sm:$0xff]
  %v228 = vld [vmem:[%s0 + $0x6a8] sm:$0xff]
  %v229 = vld [vmem:[%s0 + $0x6b0] sm:$0xff]
  %v230 = vld [vmem:[%s0 + $0x6b8] sm:$0xff]
  %v231 = vld [vmem:[%s0 + $0x6c0] sm:$0xff]
  %v232 = vld [vmem:[%s0 + $0x6c8] sm:$0xff]
  %v233 = vld [vmem:[%s0 + $0x6d0] sm:$0xff]
  %v234 = vld [vmem:[%s0 + $0x6d8] sm:$0xff]
  %v235 = vld [vmem:[%s0 + $0x6e0] sm:$0xff]
  %v236 = vld [vmem:[%s0 + $0x6e8] sm:$0xff]
  %v237 = vld [vmem:[%s0 + $0x6f0] sm:$0xff]
  %v238 = vld [vmem:[%s0 + $0x6f8] sm:$0xff]
  %v239 = vld [vmem:[%s0 + $0x700] sm:$0xff]
  %v240 = vld [vmem:[%s0 + $0x708] sm:$0xff]
  %v241 = vld [vmem:[%s0 + $0x710] sm:$0xff]
  %v242 = vld [vmem:[%s0 + $0x718] sm:$0xff]
  %v243 = vld [vmem:[%s0 + $0x720] sm:$0xff]
  %v244 = vld [vmem:[%s0 + $0x728] sm:$0xff]
  %v245 = vld [vmem:[%s0 + $0x730] sm:$0xff]
  %v246 = vld [vmem:[%s0 + $0x738] sm:$0xff]
  %v247 = vld [vmem:[%s0 + $0x740] sm:$0xff]
  %v248 = vld [vmem:[%s0 + $0x748] sm:$0xff]
  %v249 = vld [vmem:[%s0 + $0x750] sm:$0xff]
  %v250 = vld [vmem:[%s0 + $0x758] sm:$0xff]
  %v251 = vld [vmem:[%s0 + $0x760] sm:$0xff]
  %v252 = vld [vmem:[%s0 + $0x768] sm:$0xff]
  %v253 = vld [vmem:[%s0 + $0x770] sm:$0xff]
  %v254 = vld [vmem:[%s0 + $0x778] sm:$0xff]
  %v255 = vld [vmem:[%s0 + $0x780] sm:$0xff]
  %v256 = vld [vmem:[%s0 + $0x788] sm:$0xff]
  %v257 = vld [vmem:[%s0 + $0x790] sm:$0xff]
  %v258 = vld [vmem:[%s0 + $0x798] sm:$0xff]
  %v259 = vld [vmem:[%s0 + $0x7a0] sm:$0xff]
  %v260 = vld [vmem:[%s0 + $0x7a8] sm:$0xff]
  %v261 = vld [vmem:[%s0 + $0x7b0] sm:$0xff]
  %v262 = vld [vmem:[%s0 + $0x7b8] sm:$0xff]
  %v263 = vld [vmem:[%s0 + $0x7c0] sm:$0xff]
  %v264 = vld [vmem:[%s0 + $0x7c8] sm:$0xff]
  %v265 = vld [vmem:[%s0 + $0x7d0] sm:$0xff]
  %v266 = vld [vmem:[%s0 + $0x7d8] sm:$0xff]
  %v267 = vld [vmem:[%s0 + $0x7e0] sm:$0xff]
  %v268 = vld [vmem:[%s0 + $0x7e8] sm:$0xff]
  %v269 = vld [vmem:[%s0 + $0x7f0] sm:$0xff]
  %v270 = vld [vmem:[%s0 + $0x7f8] sm:$0xff]
  %v271 = vld [vmem:[%s1] sm:$0xf]
  %v272 = vld [vmem:[%s1 + $0x4] sm:$0xf]
  %v273 = vld [vmem:[%s1 + $0x8] sm:$0xf]
  %v274 = vld [vmem:[%s1 + $0xc] sm:$0xf]
  %v275 = vld [vmem:[%s1 + $0x10] sm:$0xf]
  %v276 = vld [vmem:[%s1 + $0x14] sm:$0xf]
  %v277 = vld [vmem:[%s1 + $0x18] sm:$0xf]
  %v278 = vld [vmem:[%s1 + $0x1c] sm:$0xf]
  %v279 = vld [vmem:[%s1 + $0x20] sm:$0xf]
  %v280 = vld [vmem:[%s1 + $0x24] sm:$0xf]
  %v281 = vld [vmem:[%s1 + $0x28] sm:$0xf]
  %v282 = vld [vmem:[%s1 + $0x2c] sm:$0xf]
  %v283 = vld [vmem:[%s1 + $0x30] sm:$0xf]
  %v284 = vld [vmem:[%s1 + $0x34] sm:$0xf]
  %v285 = vld [vmem:[%s1 + $0x38] sm:$0xf]
  %v286 = vld [vmem:[%s1 + $0x3c] sm:$0xf]
  %v287 = vld [vmem:[%s1 + $0x40] sm:$0xf]
  %v288 = vld [vmem:[%s1 + $0x44] sm:$0xf]
  %v289 = vld [vmem:[%s1 + $0x48] sm:$0x3]
  %v290 = vld [vmem:[%s2] sm:$0x1]
  %v292 = vperm.slane %v290, 0
  %v550 = vunpack.c.l.b16 %v15
  %v551 = vunpack.c.h.b16 %v15
  %v552 = vunpack.c.l.b16 %v16
  %v553 = vunpack.c.h.b16 %v16
  %v554 = vunpack.c.l.b16 %v17
  %v555 = vunpack.c.h.b16 %v17
  %v556 = vunpack.c.l.b16 %v18
  %v557 = vunpack.c.h.b16 %v18
  %v558 = vunpack.c.l.b16 %v19
  %v559 = vunpack.c.h.b16 %v19
  %v560 = vunpack.c.l.b16 %v20
  %v561 = vunpack.c.h.b16 %v20
  %v562 = vunpack.c.l.b16 %v21
  %v563 = vunpack.c.h.b16 %v21
  %v564 = vunpack.c.l.b16 %v22
  %v565 = vunpack.c.h.b16 %v22
  %v566 = vunpack.c.l.b16 %v23
  %v567 = vunpack.c.h.b16 %v23
  %v568 = vunpack.c.l.b16 %v24
  %v569 = vunpack.c.h.b16 %v24
  %v570 = vunpack.c.l.b16 %v25
  %v571 = vunpack.c.h.b16 %v25
  %v572 = vunpack.c.l.b16 %v26
  %v573 = vunpack.c.h.b16 %v26
  %v574 = vunpack.c.l.b16 %v27
  %v575 = vunpack.c.h.b16 %v27
  %v576 = vunpack.c.l.b16 %v28
  %v577 = vunpack.c.h.b16 %v28
  %v578 = vunpack.c.l.b16 %v29
  %v579 = vunpack.c.h.b16 %v29
  %v580 = vunpack.c.l.b16 %v30
  %v581 = vunpack.c.h.b16 %v30
  %v582 = vunpack.c.l.b16 %v31
  %v583 = vunpack.c.h.b16 %v31
  %v584 = vunpack.c.l.b16 %v32
  %v585 = vunpack.c.h.b16 %v32
  %v586 = vunpack.c.l.b16 %v33
  %v587 = vunpack.c.h.b16 %v33
  %v588 = vunpack.c.l.b16 %v34
  %v589 = vunpack.c.h.b16 %v34
  %v590 = vunpack.c.l.b16 %v35
  %v591 = vunpack.c.h.b16 %v35
  %v592 = vunpack.c.l.b16 %v36
  %v593 = vunpack.c.h.b16 %v36
  %v594 = vunpack.c.l.b16 %v37
  %v595 = vunpack.c.h.b16 %v37
  %v596 = vunpack.c.l.b16 %v38
  %v597 = vunpack.c.h.b16 %v38
  %v598 = vunpack.c.l.b16 %v39
  %v599 = vunpack.c.h.b16 %v39
  %v600 = vunpack.c.l.b16 %v40
  %v601 = vunpack.c.h.b16 %v40
  %v602 = vunpack.c.l.b16 %v41
  %v603 = vunpack.c.h.b16 %v41
  %v604 = vunpack.c.l.b16 %v42
  %v605 = vunpack.c.h.b16 %v42
  %v606 = vunpack.c.l.b16 %v43
  %v607 = vunpack.c.h.b16 %v43
  %v608 = vunpack.c.l.b16 %v44
  %v609 = vunpack.c.h.b16 %v44
  %v610 = vunpack.c.l.b16 %v45
  %v611 = vunpack.c.h.b16 %v45
  %v612 = vunpack.c.l.b16 %v46
  %v613 = vunpack.c.h.b16 %v46
  %v614 = vunpack.c.l.b16 %v47
  %v615 = vunpack.c.h.b16 %v47
  %v616 = vunpack.c.l.b16 %v48
  %v617 = vunpack.c.h.b16 %v48
  %v618 = vunpack.c.l.b16 %v49
  %v619 = vunpack.c.h.b16 %v49
  %v620 = vunpack.c.l.b16 %v50
  %v621 = vunpack.c.h.b16 %v50
  %v622 = vunpack.c.l.b16 %v51
  %v623 = vunpack.c.h.b16 %v51
  %v624 = vunpack.c.l.b16 %v52
  %v625 = vunpack.c.h.b16 %v52
  %v626 = vunpack.c.l.b16 %v53
  %v627 = vunpack.c.h.b16 %v53
  %v628 = vunpack.c.l.b16 %v54
  %v629 = vunpack.c.h.b16 %v54
  %v630 = vunpack.c.l.b16 %v55
  %v631 = vunpack.c.h.b16 %v55
  %v632 = vunpack.c.l.b16 %v56
  %v633 = vunpack.c.h.b16 %v56
  %v634 = vunpack.c.l.b16 %v57
  %v635 = vunpack.c.h.b16 %v57
  %v636 = vunpack.c.l.b16 %v58
  %v637 = vunpack.c.h.b16 %v58
  %v638 = vunpack.c.l.b16 %v59
  %v639 = vunpack.c.h.b16 %v59
  %v640 = vunpack.c.l.b16 %v60
  %v641 = vunpack.c.h.b16 %v60
  %v642 = vunpack.c.l.b16 %v61
  %v643 = vunpack.c.h.b16 %v61
  %v644 = vunpack.c.l.b16 %v62
  %v645 = vunpack.c.h.b16 %v62
  %v646 = vunpack.c.l.b16 %v63
  %v647 = vunpack.c.h.b16 %v63
  %v648 = vunpack.c.l.b16 %v64
  %v649 = vunpack.c.h.b16 %v64
  %v650 = vunpack.c.l.b16 %v65
  %v651 = vunpack.c.h.b16 %v65
  %v652 = vunpack.c.l.b16 %v66
  %v653 = vunpack.c.h.b16 %v66
  %v654 = vunpack.c.l.b16 %v67
  %v655 = vunpack.c.h.b16 %v67
  %v656 = vunpack.c.l.b16 %v68
  %v657 = vunpack.c.h.b16 %v68
  %v658 = vunpack.c.l.b16 %v69
  %v659 = vunpack.c.h.b16 %v69
  %v660 = vunpack.c.l.b16 %v70
  %v661 = vunpack.c.h.b16 %v70
  %v662 = vunpack.c.l.b16 %v71
  %v663 = vunpack.c.h.b16 %v71
  %v664 = vunpack.c.l.b16 %v72
  %v665 = vunpack.c.h.b16 %v72
  %v666 = vunpack.c.l.b16 %v73
  %v667 = vunpack.c.h.b16 %v73
  %v668 = vunpack.c.l.b16 %v74
  %v669 = vunpack.c.h.b16 %v74
  %v670 = vunpack.c.l.b16 %v75
  %v671 = vunpack.c.h.b16 %v75
  %v672 = vunpack.c.l.b16 %v76
  %v673 = vunpack.c.h.b16 %v76
  %v674 = vunpack.c.l.b16 %v77
  %v675 = vunpack.c.h.b16 %v77
  %v676 = vunpack.c.l.b16 %v78
  %v677 = vunpack.c.h.b16 %v78
  %v678 = vunpack.c.l.b16 %v79
  %v679 = vunpack.c.h.b16 %v79
  %v680 = vunpack.c.l.b16 %v80
  %v681 = vunpack.c.h.b16 %v80
  %v682 = vunpack.c.l.b16 %v81
  %v683 = vunpack.c.h.b16 %v81
  %v684 = vunpack.c.l.b16 %v82
  %v685 = vunpack.c.h.b16 %v82
  %v686 = vunpack.c.l.b16 %v83
  %v687 = vunpack.c.h.b16 %v83
  %v688 = vunpack.c.l.b16 %v84
  %v689 = vunpack.c.h.b16 %v84
  %v690 = vunpack.c.l.b16 %v85
  %v691 = vunpack.c.h.b16 %v85
  %v692 = vunpack.c.l.b16 %v86
  %v693 = vunpack.c.h.b16 %v86
  %v694 = vunpack.c.l.b16 %v87
  %v695 = vunpack.c.h.b16 %v87
  %v696 = vunpack.c.l.b16 %v88
  %v697 = vunpack.c.h.b16 %v88
  %v698 = vunpack.c.l.b16 %v89
  %v699 = vunpack.c.h.b16 %v89
  %v700 = vunpack.c.l.b16 %v90
  %v701 = vunpack.c.h.b16 %v90
  %v702 = vunpack.c.l.b16 %v91
  %v703 = vunpack.c.h.b16 %v91
  %v704 = vunpack.c.l.b16 %v92
  %v705 = vunpack.c.h.b16 %v92
  %v706 = vunpack.c.l.b16 %v93
  %v707 = vunpack.c.h.b16 %v93
  %v708 = vunpack.c.l.b16 %v94
  %v709 = vunpack.c.h.b16 %v94
  %v710 = vunpack.c.l.b16 %v95
  %v711 = vunpack.c.h.b16 %v95
  %v712 = vunpack.c.l.b16 %v96
  %v713 = vunpack.c.h.b16 %v96
  %v714 = vunpack.c.l.b16 %v97
  %v715 = vunpack.c.h.b16 %v97
  %v716 = vunpack.c.l.b16 %v98
  %v717 = vunpack.c.h.b16 %v98
  %v718 = vunpack.c.l.b16 %v99
  %v719 = vunpack.c.h.b16 %v99
  %v720 = vunpack.c.l.b16 %v100
  %v721 = vunpack.c.h.b16 %v100
  %v722 = vunpack.c.l.b16 %v101
  %v723 = vunpack.c.h.b16 %v101
  %v724 = vunpack.c.l.b16 %v102
  %v725 = vunpack.c.h.b16 %v102
  %v726 = vunpack.c.l.b16 %v103
  %v727 = vunpack.c.h.b16 %v103
  %v728 = vunpack.c.l.b16 %v104
  %v729 = vunpack.c.h.b16 %v104
  %v730 = vunpack.c.l.b16 %v105
  %v731 = vunpack.c.h.b16 %v105
  %v732 = vunpack.c.l.b16 %v106
  %v733 = vunpack.c.h.b16 %v106
  %v734 = vunpack.c.l.b16 %v107
  %v735 = vunpack.c.h.b16 %v107
  %v736 = vunpack.c.l.b16 %v108
  %v737 = vunpack.c.h.b16 %v108
  %v738 = vunpack.c.l.b16 %v109
  %v739 = vunpack.c.h.b16 %v109
  %v740 = vunpack.c.l.b16 %v110
  %v741 = vunpack.c.h.b16 %v110
  %v742 = vunpack.c.l.b16 %v111
  %v743 = vunpack.c.h.b16 %v111
  %v744 = vunpack.c.l.b16 %v112
  %v745 = vunpack.c.h.b16 %v112
  %v746 = vunpack.c.l.b16 %v113
  %v747 = vunpack.c.h.b16 %v113
  %v748 = vunpack.c.l.b16 %v114
  %v749 = vunpack.c.h.b16 %v114
  %v750 = vunpack.c.l.b16 %v115
  %v751 = vunpack.c.h.b16 %v115
  %v752 = vunpack.c.l.b16 %v116
  %v753 = vunpack.c.h.b16 %v116
  %v754 = vunpack.c.l.b16 %v117
  %v755 = vunpack.c.h.b16 %v117
  %v756 = vunpack.c.l.b16 %v118
  %v757 = vunpack.c.h.b16 %v118
  %v758 = vunpack.c.l.b16 %v119
  %v759 = vunpack.c.h.b16 %v119
  %v760 = vunpack.c.l.b16 %v120
  %v761 = vunpack.c.h.b16 %v120
  %v762 = vunpack.c.l.b16 %v121
  %v763 = vunpack.c.h.b16 %v121
  %v764 = vunpack.c.l.b16 %v122
  %v765 = vunpack.c.h.b16 %v122
  %v766 = vunpack.c.l.b16 %v123
  %v767 = vunpack.c.h.b16 %v123
  %v768 = vunpack.c.l.b16 %v124
  %v769 = vunpack.c.h.b16 %v124
  %v770 = vunpack.c.l.b16 %v125
  %v771 = vunpack.c.h.b16 %v125
  %v772 = vunpack.c.l.b16 %v126
  %v773 = vunpack.c.h.b16 %v126
  %v774 = vunpack.c.l.b16 %v127
  %v775 = vunpack.c.h.b16 %v127
  %v776 = vunpack.c.l.b16 %v128
  %v777 = vunpack.c.h.b16 %v128
  %v778 = vunpack.c.l.b16 %v129
  %v779 = vunpack.c.h.b16 %v129
  %v780 = vunpack.c.l.b16 %v130
  %v781 = vunpack.c.h.b16 %v130
  %v782 = vunpack.c.l.b16 %v131
  %v783 = vunpack.c.h.b16 %v131
  %v784 = vunpack.c.l.b16 %v132
  %v785 = vunpack.c.h.b16 %v132
  %v786 = vunpack.c.l.b16 %v133
  %v787 = vunpack.c.h.b16 %v133
  %v788 = vunpack.c.l.b16 %v134
  %v789 = vunpack.c.h.b16 %v134
  %v790 = vunpack.c.l.b16 %v135
  %v791 = vunpack.c.h.b16 %v135
  %v792 = vunpack.c.l.b16 %v136
  %v793 = vunpack.c.h.b16 %v136
  %v794 = vunpack.c.l.b16 %v137
  %v795 = vunpack.c.h.b16 %v137
  %v796 = vunpack.c.l.b16 %v138
  %v797 = vunpack.c.h.b16 %v138
  %v798 = vunpack.c.l.b16 %v139
  %v799 = vunpack.c.h.b16 %v139
  %v800 = vunpack.c.l.b16 %v140
  %v801 = vunpack.c.h.b16 %v140
  %v802 = vunpack.c.l.b16 %v141
  %v803 = vunpack.c.h.b16 %v141
  %v804 = vunpack.c.l.b16 %v142
  %v805 = vunpack.c.h.b16 %v142
  %v806 = vunpack.c.l.b16 %v143
  %v807 = vunpack.c.h.b16 %v143
  %v808 = vunpack.c.l.b16 %v144
  %v809 = vunpack.c.h.b16 %v144
  %v810 = vunpack.c.l.b16 %v145
  %v811 = vunpack.c.h.b16 %v145
  %v812 = vunpack.c.l.b16 %v146
  %v813 = vunpack.c.h.b16 %v146
  %v814 = vunpack.c.l.b16 %v147
  %v815 = vunpack.c.h.b16 %v147
  %v816 = vunpack.c.l.b16 %v148
  %v817 = vunpack.c.h.b16 %v148
  %v818 = vunpack.c.l.b16 %v149
  %v819 = vunpack.c.h.b16 %v149
  %v820 = vunpack.c.l.b16 %v150
  %v821 = vunpack.c.h.b16 %v150
  %v822 = vunpack.c.l.b16 %v151
  %v823 = vunpack.c.h.b16 %v151
  %v824 = vunpack.c.l.b16 %v152
  %v825 = vunpack.c.h.b16 %v152
  %v826 = vunpack.c.l.b16 %v153
  %v827 = vunpack.c.h.b16 %v153
  %v828 = vunpack.c.l.b16 %v154
  %v829 = vunpack.c.h.b16 %v154
  %v830 = vunpack.c.l.b16 %v155
  %v831 = vunpack.c.h.b16 %v155
  %v832 = vunpack.c.l.b16 %v156
  %v833 = vunpack.c.h.b16 %v156
  %v834 = vunpack.c.l.b16 %v157
  %v835 = vunpack.c.h.b16 %v157
  %v836 = vunpack.c.l.b16 %v158
  %v837 = vunpack.c.h.b16 %v158
  %v838 = vunpack.c.l.b16 %v159
  %v839 = vunpack.c.h.b16 %v159
  %v840 = vunpack.c.l.b16 %v160
  %v841 = vunpack.c.h.b16 %v160
  %v842 = vunpack.c.l.b16 %v161
  %v843 = vunpack.c.h.b16 %v161
  %v844 = vunpack.c.l.b16 %v162
  %v845 = vunpack.c.h.b16 %v162
  %v846 = vunpack.c.l.b16 %v163
  %v847 = vunpack.c.h.b16 %v163
  %v848 = vunpack.c.l.b16 %v164
  %v849 = vunpack.c.h.b16 %v164
  %v850 = vunpack.c.l.b16 %v165
  %v851 = vunpack.c.h.b16 %v165
  %v852 = vunpack.c.l.b16 %v166
  %v853 = vunpack.c.h.b16 %v166
  %v854 = vunpack.c.l.b16 %v167
  %v855 = vunpack.c.h.b16 %v167
  %v856 = vunpack.c.l.b16 %v168
  %v857 = vunpack.c.h.b16 %v168
  %v858 = vunpack.c.l.b16 %v169
  %v859 = vunpack.c.h.b16 %v169
  %v860 = vunpack.c.l.b16 %v170
  %v861 = vunpack.c.h.b16 %v170
  %v862 = vunpack.c.l.b16 %v171
  %v863 = vunpack.c.h.b16 %v171
  %v864 = vunpack.c.l.b16 %v172
  %v865 = vunpack.c.h.b16 %v172
  %v866 = vunpack.c.l.b16 %v173
  %v867 = vunpack.c.h.b16 %v173
  %v868 = vunpack.c.l.b16 %v174
  %v869 = vunpack.c.h.b16 %v174
  %v870 = vunpack.c.l.b16 %v175
  %v871 = vunpack.c.h.b16 %v175
  %v872 = vunpack.c.l.b16 %v176
  %v873 = vunpack.c.h.b16 %v176
  %v874 = vunpack.c.l.b16 %v177
  %v875 = vunpack.c.h.b16 %v177
  %v876 = vunpack.c.l.b16 %v178
  %v877 = vunpack.c.h.b16 %v178
  %v878 = vunpack.c.l.b16 %v179
  %v879 = vunpack.c.h.b16 %v179
  %v880 = vunpack.c.l.b16 %v180
  %v881 = vunpack.c.h.b16 %v180
  %v882 = vunpack.c.l.b16 %v181
  %v883 = vunpack.c.h.b16 %v181
  %v884 = vunpack.c.l.b16 %v182
  %v885 = vunpack.c.h.b16 %v182
  %v886 = vunpack.c.l.b16 %v183
  %v887 = vunpack.c.h.b16 %v183
  %v888 = vunpack.c.l.b16 %v184
  %v889 = vunpack.c.h.b16 %v184
  %v890 = vunpack.c.l.b16 %v185
  %v891 = vunpack.c.h.b16 %v185
  %v892 = vunpack.c.l.b16 %v186
  %v893 = vunpack.c.h.b16 %v186
  %v894 = vunpack.c.l.b16 %v187
  %v895 = vunpack.c.h.b16 %v187
  %v896 = vunpack.c.l.b16 %v188
  %v897 = vunpack.c.h.b16 %v188
  %v898 = vunpack.c.l.b16 %v189
  %v899 = vunpack.c.h.b16 %v189
  %v900 = vunpack.c.l.b16 %v190
  %v901 = vunpack.c.h.b16 %v190
  %v902 = vunpack.c.l.b16 %v191
  %v903 = vunpack.c.h.b16 %v191
  %v904 = vunpack.c.l.b16 %v192
  %v905 = vunpack.c.h.b16 %v192
  %v906 = vunpack.c.l.b16 %v193
  %v907 = vunpack.c.h.b16 %v193
  %v908 = vunpack.c.l.b16 %v194
  %v909 = vunpack.c.h.b16 %v194
  %v910 = vunpack.c.l.b16 %v195
  %v911 = vunpack.c.h.b16 %v195
  %v912 = vunpack.c.l.b16 %v196
  %v913 = vunpack.c.h.b16 %v196
  %v914 = vunpack.c.l.b16 %v197
  %v915 = vunpack.c.h.b16 %v197
  %v916 = vunpack.c.l.b16 %v198
  %v917 = vunpack.c.h.b16 %v198
  %v918 = vunpack.c.l.b16 %v199
  %v919 = vunpack.c.h.b16 %v199
  %v920 = vunpack.c.l.b16 %v200
  %v921 = vunpack.c.h.b16 %v200
  %v922 = vunpack.c.l.b16 %v201
  %v923 = vunpack.c.h.b16 %v201
  %v924 = vunpack.c.l.b16 %v202
  %v925 = vunpack.c.h.b16 %v202
  %v926 = vunpack.c.l.b16 %v203
  %v927 = vunpack.c.h.b16 %v203
  %v928 = vunpack.c.l.b16 %v204
  %v929 = vunpack.c.h.b16 %v204
  %v930 = vunpack.c.l.b16 %v205
  %v931 = vunpack.c.h.b16 %v205
  %v932 = vunpack.c.l.b16 %v206
  %v933 = vunpack.c.h.b16 %v206
  %v934 = vunpack.c.l.b16 %v207
  %v935 = vunpack.c.h.b16 %v207
  %v936 = vunpack.c.l.b16 %v208
  %v937 = vunpack.c.h.b16 %v208
  %v938 = vunpack.c.l.b16 %v209
  %v939 = vunpack.c.h.b16 %v209
  %v940 = vunpack.c.l.b16 %v210
  %v941 = vunpack.c.h.b16 %v210
  %v942 = vunpack.c.l.b16 %v211
  %v943 = vunpack.c.h.b16 %v211
  %v944 = vunpack.c.l.b16 %v212
  %v945 = vunpack.c.h.b16 %v212
  %v946 = vunpack.c.l.b16 %v213
  %v947 = vunpack.c.h.b16 %v213
  %v948 = vunpack.c.l.b16 %v214
  %v949 = vunpack.c.h.b16 %v214
  %v950 = vunpack.c.l.b16 %v215
  %v951 = vunpack.c.h.b16 %v215
  %v952 = vunpack.c.l.b16 %v216
  %v953 = vunpack.c.h.b16 %v216
  %v954 = vunpack.c.l.b16 %v217
  %v955 = vunpack.c.h.b16 %v217
  %v956 = vunpack.c.l.b16 %v218
  %v957 = vunpack.c.h.b16 %v218
  %v958 = vunpack.c.l.b16 %v219
  %v959 = vunpack.c.h.b16 %v219
  %v960 = vunpack.c.l.b16 %v220
  %v961 = vunpack.c.h.b16 %v220
  %v962 = vunpack.c.l.b16 %v221
  %v963 = vunpack.c.h.b16 %v221
  %v964 = vunpack.c.l.b16 %v222
  %v965 = vunpack.c.h.b16 %v222
  %v966 = vunpack.c.l.b16 %v223
  %v967 = vunpack.c.h.b16 %v223
  %v968 = vunpack.c.l.b16 %v224
  %v969 = vunpack.c.h.b16 %v224
  %v970 = vunpack.c.l.b16 %v225
  %v971 = vunpack.c.h.b16 %v225
  %v972 = vunpack.c.l.b16 %v226
  %v973 = vunpack.c.h.b16 %v226
  %v974 = vunpack.c.l.b16 %v227
  %v975 = vunpack.c.h.b16 %v227
  %v976 = vunpack.c.l.b16 %v228
  %v977 = vunpack.c.h.b16 %v228
  %v978 = vunpack.c.l.b16 %v229
  %v979 = vunpack.c.h.b16 %v229
  %v980 = vunpack.c.l.b16 %v230
  %v981 = vunpack.c.h.b16 %v230
  %v982 = vunpack.c.l.b16 %v231
  %v983 = vunpack.c.h.b16 %v231
  %v984 = vunpack.c.l.b16 %v232
  %v985 = vunpack.c.h.b16 %v232
  %v986 = vunpack.c.l.b16 %v233
  %v987 = vunpack.c.h.b16 %v233
  %v988 = vunpack.c.l.b16 %v234
  %v989 = vunpack.c.h.b16 %v234
  %v990 = vunpack.c.l.b16 %v235
  %v991 = vunpack.c.h.b16 %v235
  %v992 = vunpack.c.l.b16 %v236
  %v993 = vunpack.c.h.b16 %v236
  %v994 = vunpack.c.l.b16 %v237
  %v995 = vunpack.c.h.b16 %v237
  %v996 = vunpack.c.l.b16 %v238
  %v997 = vunpack.c.h.b16 %v238
  %v998 = vunpack.c.l.b16 %v239
  %v999 = vunpack.c.h.b16 %v239
  %v1000 = vunpack.c.l.b16 %v240
  %v1001 = vunpack.c.h.b16 %v240
  %v1002 = vunpack.c.l.b16 %v241
  %v1003 = vunpack.c.h.b16 %v241
  %v1004 = vunpack.c.l.b16 %v242
  %v1005 = vunpack.c.h.b16 %v242
  %v1006 = vunpack.c.l.b16 %v243
  %v1007 = vunpack.c.h.b16 %v243
  %v1008 = vunpack.c.l.b16 %v244
  %v1009 = vunpack.c.h.b16 %v244
  %v1010 = vunpack.c.l.b16 %v245
  %v1011 = vunpack.c.h.b16 %v245
  %v1012 = vunpack.c.l.b16 %v246
  %v1013 = vunpack.c.h.b16 %v246
  %v1014 = vunpack.c.l.b16 %v247
  %v1015 = vunpack.c.h.b16 %v247
  %v1016 = vunpack.c.l.b16 %v248
  %v1017 = vunpack.c.h.b16 %v248
  %v1018 = vunpack.c.l.b16 %v249
  %v1019 = vunpack.c.h.b16 %v249
  %v1020 = vunpack.c.l.b16 %v250
  %v1021 = vunpack.c.h.b16 %v250
  %v1022 = vunpack.c.l.b16 %v251
  %v1023 = vunpack.c.h.b16 %v251
  %v1024 = vunpack.c.l.b16 %v252
  %v1025 = vunpack.c.h.b16 %v252
  %v1026 = vunpack.c.l.b16 %v253
  %v1027 = vunpack.c.h.b16 %v253
  %v1028 = vunpack.c.l.b16 %v254
  %v1029 = vunpack.c.h.b16 %v254
  %v1030 = vunpack.c.l.b16 %v255
  %v1031 = vunpack.c.h.b16 %v255
  %v1032 = vunpack.c.l.b16 %v256
  %v1033 = vunpack.c.h.b16 %v256
  %v1034 = vunpack.c.l.b16 %v257
  %v1035 = vunpack.c.h.b16 %v257
  %v1036 = vunpack.c.l.b16 %v258
  %v1037 = vunpack.c.h.b16 %v258
  %v1038 = vunpack.c.l.b16 %v259
  %v1039 = vunpack.c.h.b16 %v259
  %v1040 = vunpack.c.l.b16 %v260
  %v1041 = vunpack.c.h.b16 %v260
  %v1042 = vunpack.c.l.b16 %v261
  %v1043 = vunpack.c.h.b16 %v261
  %v1044 = vunpack.c.l.b16 %v262
  %v1045 = vunpack.c.h.b16 %v262
  %v1046 = vunpack.c.l.b16 %v263
  %v1047 = vunpack.c.h.b16 %v263
  %v1048 = vunpack.c.l.b16 %v264
  %v1049 = vunpack.c.h.b16 %v264
  %v1050 = vunpack.c.l.b16 %v265
  %v1051 = vunpack.c.h.b16 %v265
  %v1052 = vunpack.c.l.b16 %v266
  %v1053 = vunpack.c.h.b16 %v266
  %v1054 = vunpack.c.l.b16 %v267
  %v1055 = vunpack.c.h.b16 %v267
  %v1056 = vunpack.c.l.b16 %v268
  %v1057 = vunpack.c.h.b16 %v268
  %v1058 = vunpack.c.l.b16 %v269
  %v1059 = vunpack.c.h.b16 %v269
  %v1060 = vunpack.c.l.b16 %v270
  %v1061 = vunpack.c.h.b16 %v270
  %v1062 = vpack.c.b16 %v552, %v550
  %v1063 = vpack.c.b16 %v553, %v551
  %v1064 = vpack.c.b16 %v556, %v554
  %v1065 = vpack.c.b16 %v557, %v555
  %v1066 = vpack.c.b16 %v560, %v558
  %v1067 = vpack.c.b16 %v561, %v559
  %v1068 = vpack.c.b16 %v564, %v562
  %v1069 = vpack.c.b16 %v565, %v563
  %v1070 = vpack.c.b16 %v568, %v566
  %v1071 = vpack.c.b16 %v569, %v567
  %v1072 = vpack.c.b16 %v572, %v570
  %v1073 = vpack.c.b16 %v573, %v571
  %v1074 = vpack.c.b16 %v576, %v574
  %v1075 = vpack.c.b16 %v577, %v575
  %v1076 = vpack.c.b16 %v580, %v578
  %v1077 = vpack.c.b16 %v581, %v579
  %v1078 = vpack.c.b16 %v584, %v582
  %v1079 = vpack.c.b16 %v585, %v583
  %v1080 = vpack.c.b16 %v588, %v586
  %v1081 = vpack.c.b16 %v589, %v587
  %v1082 = vpack.c.b16 %v592, %v590
  %v1083 = vpack.c.b16 %v593, %v591
  %v1084 = vpack.c.b16 %v596, %v594
  %v1085 = vpack.c.b16 %v597, %v595
  %v1086 = vpack.c.b16 %v600, %v598
  %v1087 = vpack.c.b16 %v601, %v599
  %v1088 = vpack.c.b16 %v604, %v602
  %v1089 = vpack.c.b16 %v605, %v603
  %v1090 = vpack.c.b16 %v608, %v606
  %v1091 = vpack.c.b16 %v609, %v607
  %v1092 = vpack.c.b16 %v612, %v610
  %v1093 = vpack.c.b16 %v613, %v611
  %v1094 = vpack.c.b16 %v616, %v614
  %v1095 = vpack.c.b16 %v617, %v615
  %v1096 = vpack.c.b16 %v620, %v618
  %v1097 = vpack.c.b16 %v621, %v619
  %v1098 = vpack.c.b16 %v624, %v622
  %v1099 = vpack.c.b16 %v625, %v623
  %v1100 = vpack.c.b16 %v628, %v626
  %v1101 = vpack.c.b16 %v629, %v627
  %v1102 = vpack.c.b16 %v632, %v630
  %v1103 = vpack.c.b16 %v633, %v631
  %v1104 = vpack.c.b16 %v636, %v634
  %v1105 = vpack.c.b16 %v637, %v635
  %v1106 = vpack.c.b16 %v640, %v638
  %v1107 = vpack.c.b16 %v641, %v639
  %v1108 = vpack.c.b16 %v644, %v642
  %v1109 = vpack.c.b16 %v645, %v643
  %v1110 = vpack.c.b16 %v648, %v646
  %v1111 = vpack.c.b16 %v649, %v647
  %v1112 = vpack.c.b16 %v652, %v650
  %v1113 = vpack.c.b16 %v653, %v651
  %v1114 = vpack.c.b16 %v656, %v654
  %v1115 = vpack.c.b16 %v657, %v655
  %v1116 = vpack.c.b16 %v660, %v658
  %v1117 = vpack.c.b16 %v661, %v659
  %v1118 = vpack.c.b16 %v664, %v662
  %v1119 = vpack.c.b16 %v665, %v663
  %v1120 = vpack.c.b16 %v668, %v666
  %v1121 = vpack.c.b16 %v669, %v667
  %v1122 = vpack.c.b16 %v672, %v670
  %v1123 = vpack.c.b16 %v673, %v671
  %v1124 = vpack.c.b16 %v676, %v674
  %v1125 = vpack.c.b16 %v677, %v675
  %v1126 = vpack.c.b16 %v680, %v678
  %v1127 = vpack.c.b16 %v681, %v679
  %v1128 = vpack.c.b16 %v684, %v682
  %v1129 = vpack.c.b16 %v685, %v683
  %v1130 = vpack.c.b16 %v688, %v686
  %v1131 = vpack.c.b16 %v689, %v687
  %v1132 = vpack.c.b16 %v692, %v690
  %v1133 = vpack.c.b16 %v693, %v691
  %v1134 = vpack.c.b16 %v696, %v694
  %v1135 = vpack.c.b16 %v697, %v695
  %v1136 = vpack.c.b16 %v700, %v698
  %v1137 = vpack.c.b16 %v701, %v699
  %v1138 = vpack.c.b16 %v704, %v702
  %v1139 = vpack.c.b16 %v705, %v703
  %v1140 = vpack.c.b16 %v708, %v706
  %v1141 = vpack.c.b16 %v709, %v707
  %v1142 = vpack.c.b16 %v712, %v710
  %v1143 = vpack.c.b16 %v713, %v711
  %v1144 = vpack.c.b16 %v716, %v714
  %v1145 = vpack.c.b16 %v717, %v715
  %v1146 = vpack.c.b16 %v720, %v718
  %v1147 = vpack.c.b16 %v721, %v719
  %v1148 = vpack.c.b16 %v724, %v722
  %v1149 = vpack.c.b16 %v725, %v723
  %v1150 = vpack.c.b16 %v728, %v726
  %v1151 = vpack.c.b16 %v729, %v727
  %v1152 = vpack.c.b16 %v732, %v730
  %v1153 = vpack.c.b16 %v733, %v731
  %v1154 = vpack.c.b16 %v736, %v734
  %v1155 = vpack.c.b16 %v737, %v735
  %v1156 = vpack.c.b16 %v740, %v738
  %v1157 = vpack.c.b16 %v741, %v739
  %v1158 = vpack.c.b16 %v744, %v742
  %v1159 = vpack.c.b16 %v745, %v743
  %v1160 = vpack.c.b16 %v748, %v746
  %v1161 = vpack.c.b16 %v749, %v747
  %v1162 = vpack.c.b16 %v752, %v750
  %v1163 = vpack.c.b16 %v753, %v751
  %v1164 = vpack.c.b16 %v756, %v754
  %v1165 = vpack.c.b16 %v757, %v755
  %v1166 = vpack.c.b16 %v760, %v758
  %v1167 = vpack.c.b16 %v761, %v759
  %v1168 = vpack.c.b16 %v764, %v762
  %v1169 = vpack.c.b16 %v765, %v763
  %v1170 = vpack.c.b16 %v768, %v766
  %v1171 = vpack.c.b16 %v769, %v767
  %v1172 = vpack.c.b16 %v772, %v770
  %v1173 = vpack.c.b16 %v773, %v771
  %v1174 = vpack.c.b16 %v776, %v774
  %v1175 = vpack.c.b16 %v777, %v775
  %v1176 = vpack.c.b16 %v780, %v778
  %v1177 = vpack.c.b16 %v781, %v779
  %v1178 = vpack.c.b16 %v784, %v782
  %v1179 = vpack.c.b16 %v785, %v783
  %v1180 = vpack.c.b16 %v788, %v786
  %v1181 = vpack.c.b16 %v789, %v787
  %v1182 = vpack.c.b16 %v792, %v790
  %v1183 = vpack.c.b16 %v793, %v791
  %v1184 = vpack.c.b16 %v796, %v794
  %v1185 = vpack.c.b16 %v797, %v795
  %v1186 = vpack.c.b16 %v800, %v798
  %v1187 = vpack.c.b16 %v801, %v799
  %v1188 = vpack.c.b16 %v804, %v802
  %v1189 = vpack.c.b16 %v805, %v803
  %v1190 = vpack.c.b16 %v808, %v806
  %v1191 = vpack.c.b16 %v809, %v807
  %v1192 = vpack.c.b16 %v812, %v810
  %v1193 = vpack.c.b16 %v813, %v811
  %v1194 = vpack.c.b16 %v816, %v814
  %v1195 = vpack.c.b16 %v817, %v815
  %v1196 = vpack.c.b16 %v820, %v818
  %v1197 = vpack.c.b16 %v821, %v819
  %v1198 = vpack.c.b16 %v824, %v822
  %v1199 = vpack.c.b16 %v825, %v823
  %v1200 = vpack.c.b16 %v828, %v826
  %v1201 = vpack.c.b16 %v829, %v827
  %v1202 = vpack.c.b16 %v832, %v830
  %v1203 = vpack.c.b16 %v833, %v831
  %v1204 = vpack.c.b16 %v836, %v834
  %v1205 = vpack.c.b16 %v837, %v835
  %v1206 = vpack.c.b16 %v840, %v838
  %v1207 = vpack.c.b16 %v841, %v839
  %v1208 = vpack.c.b16 %v844, %v842
  %v1209 = vpack.c.b16 %v845, %v843
  %v1210 = vpack.c.b16 %v848, %v846
  %v1211 = vpack.c.b16 %v849, %v847
  %v1212 = vpack.c.b16 %v852, %v850
  %v1213 = vpack.c.b16 %v853, %v851
  %v1214 = vpack.c.b16 %v856, %v854
  %v1215 = vpack.c.b16 %v857, %v855
  %v1216 = vpack.c.b16 %v860, %v858
  %v1217 = vpack.c.b16 %v861, %v859
  %v1218 = vpack.c.b16 %v864, %v862
  %v1219 = vpack.c.b16 %v865, %v863
  %v1220 = vpack.c.b16 %v868, %v866
  %v1221 = vpack.c.b16 %v869, %v867
  %v1222 = vpack.c.b16 %v872, %v870
  %v1223 = vpack.c.b16 %v873, %v871
  %v1224 = vpack.c.b16 %v876, %v874
  %v1225 = vpack.c.b16 %v877, %v875
  %v1226 = vpack.c.b16 %v880, %v878
  %v1227 = vpack.c.b16 %v881, %v879
  %v1228 = vpack.c.b16 %v884, %v882
  %v1229 = vpack.c.b16 %v885, %v883
  %v1230 = vpack.c.b16 %v888, %v886
  %v1231 = vpack.c.b16 %v889, %v887
  %v1232 = vpack.c.b16 %v892, %v890
  %v1233 = vpack.c.b16 %v893, %v891
  %v1234 = vpack.c.b16 %v896, %v894
  %v1235 = vpack.c.b16 %v897, %v895
  %v1236 = vpack.c.b16 %v900, %v898
  %v1237 = vpack.c.b16 %v901, %v899
  %v1238 = vpack.c.b16 %v904, %v902
  %v1239 = vpack.c.b16 %v905, %v903
  %v1240 = vpack.c.b16 %v908, %v906
  %v1241 = vpack.c.b16 %v909, %v907
  %v1242 = vpack.c.b16 %v912, %v910
  %v1243 = vpack.c.b16 %v913, %v911
  %v1244 = vpack.c.b16 %v916, %v914
  %v1245 = vpack.c.b16 %v917, %v915
  %v1246 = vpack.c.b16 %v920, %v918
  %v1247 = vpack.c.b16 %v921, %v919
  %v1248 = vpack.c.b16 %v924, %v922
  %v1249 = vpack.c.b16 %v925, %v923
  %v1250 = vpack.c.b16 %v928, %v926
  %v1251 = vpack.c.b16 %v929, %v927
  %v1252 = vpack.c.b16 %v932, %v930
  %v1253 = vpack.c.b16 %v933, %v931
  %v1254 = vpack.c.b16 %v936, %v934
  %v1255 = vpack.c.b16 %v937, %v935
  %v1256 = vpack.c.b16 %v940, %v938
  %v1257 = vpack.c.b16 %v941, %v939
  %v1258 = vpack.c.b16 %v944, %v942
  %v1259 = vpack.c.b16 %v945, %v943
  %v1260 = vpack.c.b16 %v948, %v946
  %v1261 = vpack.c.b16 %v949, %v947
  %v1262 = vpack.c.b16 %v952, %v950
  %v1263 = vpack.c.b16 %v953, %v951
  %v1264 = vpack.c.b16 %v956, %v954
  %v1265 = vpack.c.b16 %v957, %v955
  %v1266 = vpack.c.b16 %v960, %v958
  %v1267 = vpack.c.b16 %v961, %v959
  %v1268 = vpack.c.b16 %v964, %v962
  %v1269 = vpack.c.b16 %v965, %v963
  %v1270 = vpack.c.b16 %v968, %v966
  %v1271 = vpack.c.b16 %v969, %v967
  %v1272 = vpack.c.b16 %v972, %v970
  %v1273 = vpack.c.b16 %v973, %v971
  %v1274 = vpack.c.b16 %v976, %v974
  %v1275 = vpack.c.b16 %v977, %v975
  %v1276 = vpack.c.b16 %v980, %v978
  %v1277 = vpack.c.b16 %v981, %v979
  %v1278 = vpack.c.b16 %v984, %v982
  %v1279 = vpack.c.b16 %v985, %v983
  %v1280 = vpack.c.b16 %v988, %v986
  %v1281 = vpack.c.b16 %v989, %v987
  %v1282 = vpack.c.b16 %v992, %v990
  %v1283 = vpack.c.b16 %v993, %v991
  %v1284 = vpack.c.b16 %v996, %v994
  %v1285 = vpack.c.b16 %v997, %v995
  %v1286 = vpack.c.b16 %v1000, %v998
  %v1287 = vpack.c.b16 %v1001, %v999
  %v1288 = vpack.c.b16 %v1004, %v1002
  %v1289 = vpack.c.b16 %v1005, %v1003
  %v1290 = vpack.c.b16 %v1008, %v1006
  %v1291 = vpack.c.b16 %v1009, %v1007
  %v1292 = vpack.c.b16 %v1012, %v1010
  %v1293 = vpack.c.b16 %v1013, %v1011
  %v1294 = vpack.c.b16 %v1016, %v1014
  %v1295 = vpack.c.b16 %v1017, %v1015
  %v1296 = vpack.c.b16 %v1020, %v1018
  %v1297 = vpack.c.b16 %v1021, %v1019
  %v1298 = vpack.c.b16 %v1024, %v1022
  %v1299 = vpack.c.b16 %v1025, %v1023
  %v1300 = vpack.c.b16 %v1028, %v1026
  %v1301 = vpack.c.b16 %v1029, %v1027
  %v1302 = vpack.c.b16 %v1032, %v1030
  %v1303 = vpack.c.b16 %v1033, %v1031
  %v1304 = vpack.c.b16 %v1036, %v1034
  %v1305 = vpack.c.b16 %v1037, %v1035
  %v1306 = vpack.c.b16 %v1040, %v1038
  %v1307 = vpack.c.b16 %v1041, %v1039
  %v1308 = vpack.c.b16 %v1044, %v1042
  %v1309 = vpack.c.b16 %v1045, %v1043
  %v1310 = vpack.c.b16 %v1048, %v1046
  %v1311 = vpack.c.b16 %v1049, %v1047
  %v1312 = vpack.c.b16 %v1052, %v1050
  %v1313 = vpack.c.b16 %v1053, %v1051
  %v1314 = vpack.c.b16 %v1056, %v1054
  %v1315 = vpack.c.b16 %v1057, %v1055
  %v1316 = vpack.c.b16 %v1060, %v1058
  %v1317 = vpack.c.b16 %v1061, %v1059
  %v1465 = vunpack.c.l.b16 %v271
  %v1466 = vunpack.c.l.b16 %v272
  %v1467 = vunpack.c.l.b16 %v273
  %v1468 = vunpack.c.l.b16 %v274
  %v1469 = vunpack.c.l.b16 %v275
  %v1470 = vunpack.c.l.b16 %v276
  %v1471 = vunpack.c.l.b16 %v277
  %v1472 = vunpack.c.l.b16 %v278
  %v1473 = vunpack.c.l.b16 %v279
  %v1474 = vunpack.c.l.b16 %v280
  %v1475 = vunpack.c.l.b16 %v281
  %v1476 = vunpack.c.l.b16 %v282
  %v1477 = vunpack.c.l.b16 %v283
  %v1478 = vunpack.c.l.b16 %v284
  %v1479 = vunpack.c.l.b16 %v285
  %v1480 = vunpack.c.l.b16 %v286
  %v1481 = vunpack.c.l.b16 %v287
  %v1482 = vunpack.c.l.b16 %v288
  %v1483 = vunpack.c.l.b16 %v289
  %v1484 = vpack.c.b16 %v1466, %v1465
  %v1485 = vpack.c.b16 %v1468, %v1467
  %v1486 = vpack.c.b16 %v1470, %v1469
  %v1487 = vpack.c.b16 %v1472, %v1471
  %v1488 = vpack.c.b16 %v1474, %v1473
  %v1489 = vpack.c.b16 %v1476, %v1475
  %v1490 = vpack.c.b16 %v1478, %v1477
  %v1491 = vpack.c.b16 %v1480, %v1479
  %v1492 = vpack.c.b16 %v1482, %v1481
  %v1493 = vpack.c.b16 %v1483, %v1483
  %vm1503 = vcmask 154624
  %v1505 = vsel %vm1503, %v1063, 0
  %v1508 = vsel %vm1503, %v1065, 0
  %v1511 = vsel %vm1503, %v1067, 0
  %v1514 = vsel %vm1503, %v1069, 0
  %v1517 = vsel %vm1503, %v1071, 0
  %v1520 = vsel %vm1503, %v1073, 0
  %v1523 = vsel %vm1503, %v1075, 0
  %v1526 = vsel %vm1503, %v1077, 0
  %v1529 = vsel %vm1503, %v1079, 0
  %v1532 = vsel %vm1503, %v1081, 0
  %v1535 = vsel %vm1503, %v1083, 0
  %v1538 = vsel %vm1503, %v1085, 0
  %v1541 = vsel %vm1503, %v1087, 0
  %v1544 = vsel %vm1503, %v1089, 0
  %v1547 = vsel %vm1503, %v1091, 0
  %v1550 = vsel %vm1503, %v1093, 0
  %v1553 = vsel %vm1503, %v1095, 0
  %v1556 = vsel %vm1503, %v1097, 0
  %v1559 = vsel %vm1503, %v1099, 0
  %v1562 = vsel %vm1503, %v1101, 0
  %v1565 = vsel %vm1503, %v1103, 0
  %v1568 = vsel %vm1503, %v1105, 0
  %v1571 = vsel %vm1503, %v1107, 0
  %v1574 = vsel %vm1503, %v1109, 0
  %v1577 = vsel %vm1503, %v1111, 0
  %v1580 = vsel %vm1503, %v1113, 0
  %v1583 = vsel %vm1503, %v1115, 0
  %v1586 = vsel %vm1503, %v1117, 0
  %v1589 = vsel %vm1503, %v1119, 0
  %v1592 = vsel %vm1503, %v1121, 0
  %v1595 = vsel %vm1503, %v1123, 0
  %v1598 = vsel %vm1503, %v1125, 0
  %v1601 = vsel %vm1503, %v1127, 0
  %v1604 = vsel %vm1503, %v1129, 0
  %v1607 = vsel %vm1503, %v1131, 0
  %v1610 = vsel %vm1503, %v1133, 0
  %v1613 = vsel %vm1503, %v1135, 0
  %v1616 = vsel %vm1503, %v1137, 0
  %v1619 = vsel %vm1503, %v1139, 0
  %v1622 = vsel %vm1503, %v1141, 0
  %v1625 = vsel %vm1503, %v1143, 0
  %v1628 = vsel %vm1503, %v1145, 0
  %v1631 = vsel %vm1503, %v1147, 0
  %v1634 = vsel %vm1503, %v1149, 0
  %v1637 = vsel %vm1503, %v1151, 0
  %v1640 = vsel %vm1503, %v1153, 0
  %v1643 = vsel %vm1503, %v1155, 0
  %v1646 = vsel %vm1503, %v1157, 0
  %v1649 = vsel %vm1503, %v1159, 0
  %v1652 = vsel %vm1503, %v1161, 0
  %v1655 = vsel %vm1503, %v1163, 0
  %v1658 = vsel %vm1503, %v1165, 0
  %v1661 = vsel %vm1503, %v1167, 0
  %v1664 = vsel %vm1503, %v1169, 0
  %v1667 = vsel %vm1503, %v1171, 0
  %v1670 = vsel %vm1503, %v1173, 0
  %v1673 = vsel %vm1503, %v1175, 0
  %v1676 = vsel %vm1503, %v1177, 0
  %v1679 = vsel %vm1503, %v1179, 0
  %v1682 = vsel %vm1503, %v1181, 0
  %v1685 = vsel %vm1503, %v1183, 0
  %v1688 = vsel %vm1503, %v1185, 0
  %v1691 = vsel %vm1503, %v1187, 0
  %v1694 = vsel %vm1503, %v1189, 0
  %v1697 = vsel %vm1503, %v1191, 0
  %v1700 = vsel %vm1503, %v1193, 0
  %v1703 = vsel %vm1503, %v1195, 0
  %v1706 = vsel %vm1503, %v1197, 0
  %v1709 = vsel %vm1503, %v1199, 0
  %v1712 = vsel %vm1503, %v1201, 0
  %v1715 = vsel %vm1503, %v1203, 0
  %v1718 = vsel %vm1503, %v1205, 0
  %v1721 = vsel %vm1503, %v1207, 0
  %v1724 = vsel %vm1503, %v1209, 0
  %v1727 = vsel %vm1503, %v1211, 0
  %v1730 = vsel %vm1503, %v1213, 0
  %v1733 = vsel %vm1503, %v1215, 0
  %v1736 = vsel %vm1503, %v1217, 0
  %v1739 = vsel %vm1503, %v1219, 0
  %v1742 = vsel %vm1503, %v1221, 0
  %v1745 = vsel %vm1503, %v1223, 0
  %v1748 = vsel %vm1503, %v1225, 0
  %v1751 = vsel %vm1503, %v1227, 0
  %v1754 = vsel %vm1503, %v1229, 0
  %v1757 = vsel %vm1503, %v1231, 0
  %v1760 = vsel %vm1503, %v1233, 0
  %v1763 = vsel %vm1503, %v1235, 0
  %v1766 = vsel %vm1503, %v1237, 0
  %v1769 = vsel %vm1503, %v1239, 0
  %v1772 = vsel %vm1503, %v1241, 0
  %v1775 = vsel %vm1503, %v1243, 0
  %v1778 = vsel %vm1503, %v1245, 0
  %v1781 = vsel %vm1503, %v1247, 0
  %v1784 = vsel %vm1503, %v1249, 0
  %v1787 = vsel %vm1503, %v1251, 0
  %v1790 = vsel %vm1503, %v1253, 0
  %v1793 = vsel %vm1503, %v1255, 0
  %v1796 = vsel %vm1503, %v1257, 0
  %v1799 = vsel %vm1503, %v1259, 0
  %v1802 = vsel %vm1503, %v1261, 0
  %v1805 = vsel %vm1503, %v1263, 0
  %v1808 = vsel %vm1503, %v1265, 0
  %v1811 = vsel %vm1503, %v1267, 0
  %v1814 = vsel %vm1503, %v1269, 0
  %v1817 = vsel %vm1503, %v1271, 0
  %v1820 = vsel %vm1503, %v1273, 0
  %v1823 = vsel %vm1503, %v1275, 0
  %v1826 = vsel %vm1503, %v1277, 0
  %v1829 = vsel %vm1503, %v1279, 0
  %v1832 = vsel %vm1503, %v1281, 0
  %v1835 = vsel %vm1503, %v1283, 0
  %v1838 = vsel %vm1503, %v1285, 0
  %v1841 = vsel %vm1503, %v1287, 0
  %v1844 = vsel %vm1503, %v1289, 0
  %v1847 = vsel %vm1503, %v1291, 0
  %v1850 = vsel %vm1503, %v1293, 0
  %v1853 = vsel %vm1503, %v1295, 0
  %v1856 = vsel %vm1503, %v1297, 0
  %v1859 = vsel %vm1503, %v1299, 0
  %v1862 = vsel %vm1503, %v1301, 0
  %v1865 = vsel %vm1503, %v1303, 0
  %v1868 = vsel %vm1503, %v1305, 0
  %v1871 = vsel %vm1503, %v1307, 0
  %v1874 = vsel %vm1503, %v1309, 0
  %v1877 = vsel %vm1503, %v1311, 0
  %v1880 = vsel %vm1503, %v1313, 0
  %v1883 = vsel %vm1503, %v1315, 0
  %v1886 = vsel %vm1503, %v1317, 0
  %vm1888 = vcmask 1040384
  %vm1889 = vcmask 1041408
  %v1890 = vsel %vm1888, 4294967295, 65535
  %v1891 = vsel %vm1889, %v1890, 0
  %v1893 = vand.u32 %v1493, %v1891
  %1895 = vmatpush.bf16.msra.mxu0 %v1491
  %1896 = vmatpush.bf16.msra.mxu0 %v1490
  %1897 = vmatpush.bf16.msra.mxu0 %v1489
  %1898 = vmatpush.bf16.msra.mxu0 %v1488
  %1899 = vmatpush.bf16.msra.mxu0 %v1487
  %1900 = vmatpush.bf16.msra.mxu0 %v1486
  %1901 = vmatpush.bf16.msra.mxu0 %v1485
  %1902 = vmatpush.bf16.msra.mxu0 %v1484
  %1903 = vmatmul.bf16.gmra.mxu0 %v1062
  %v1904 = vpop.f32.mrf.mxu0
  %v1905 = vadd.f32 %v292, %v1904
  %v1906 = vpop.f32.mrf.mxu0
  %v1907 = vadd.f32 %v292, %v1906
  %1908 = vmatmul.bf16.gmra.mxu0 %v1064
  %v1909 = vpop.f32.mrf.mxu0
  %v1910 = vadd.f32 %v292, %v1909
  %v1911 = vpop.f32.mrf.mxu0
  %v1912 = vadd.f32 %v292, %v1911
  %1913 = vmatmul.bf16.gmra.mxu0 %v1066
  %v1914 = vpop.f32.mrf.mxu0
  %v1915 = vadd.f32 %v292, %v1914
  %v1916 = vpop.f32.mrf.mxu0
  %v1917 = vadd.f32 %v292, %v1916
  %1918 = vmatmul.bf16.gmra.mxu0 %v1068
  %v1919 = vpop.f32.mrf.mxu0
  %v1920 = vadd.f32 %v292, %v1919
  %v1921 = vpop.f32.mrf.mxu0
  %v1922 = vadd.f32 %v292, %v1921
  %1923 = vmatmul.bf16.gmra.mxu0 %v1070
  %v1924 = vpop.f32.mrf.mxu0
  %v1925 = vadd.f32 %v292, %v1924
  %v1926 = vpop.f32.mrf.mxu0
  %v1927 = vadd.f32 %v292, %v1926
  %1928 = vmatmul.bf16.gmra.mxu0 %v1072
  %v1929 = vpop.f32.mrf.mxu0
  %v1930 = vadd.f32 %v292, %v1929
  %v1931 = vpop.f32.mrf.mxu0
  %v1932 = vadd.f32 %v292, %v1931
  %1933 = vmatmul.bf16.gmra.mxu0 %v1074
  %v1934 = vpop.f32.mrf.mxu0
  %v1935 = vadd.f32 %v292, %v1934
  %v1936 = vpop.f32.mrf.mxu0
  %v1937 = vadd.f32 %v292, %v1936
  %1938 = vmatmul.bf16.gmra.mxu0 %v1076
  %v1939 = vpop.f32.mrf.mxu0
  %v1940 = vadd.f32 %v292, %v1939
  %v1941 = vpop.f32.mrf.mxu0
  %v1942 = vadd.f32 %v292, %v1941
  %1943 = vmatmul.bf16.gmra.mxu0 %v1078
  %v1944 = vpop.f32.mrf.mxu0
  %v1945 = vadd.f32 %v292, %v1944
  %v1946 = vpop.f32.mrf.mxu0
  %v1947 = vadd.f32 %v292, %v1946
  %1948 = vmatmul.bf16.gmra.mxu0 %v1080
  %v1949 = vpop.f32.mrf.mxu0
  %v1950 = vadd.f32 %v292, %v1949
  %v1951 = vpop.f32.mrf.mxu0
  %v1952 = vadd.f32 %v292, %v1951
  %1953 = vmatmul.bf16.gmra.mxu0 %v1082
  %v1954 = vpop.f32.mrf.mxu0
  %v1955 = vadd.f32 %v292, %v1954
  %v1956 = vpop.f32.mrf.mxu0
  %v1957 = vadd.f32 %v292, %v1956
  %1958 = vmatmul.bf16.gmra.mxu0 %v1084
  %v1959 = vpop.f32.mrf.mxu0
  %v1960 = vadd.f32 %v292, %v1959
  %v1961 = vpop.f32.mrf.mxu0
  %v1962 = vadd.f32 %v292, %v1961
  %1963 = vmatmul.bf16.gmra.mxu0 %v1086
  %v1964 = vpop.f32.mrf.mxu0
  %v1965 = vadd.f32 %v292, %v1964
  %v1966 = vpop.f32.mrf.mxu0
  %v1967 = vadd.f32 %v292, %v1966
  %1968 = vmatmul.bf16.gmra.mxu0 %v1088
  %v1969 = vpop.f32.mrf.mxu0
  %v1970 = vadd.f32 %v292, %v1969
  %v1971 = vpop.f32.mrf.mxu0
  %v1972 = vadd.f32 %v292, %v1971
  %1973 = vmatmul.bf16.gmra.mxu0 %v1090
  %v1974 = vpop.f32.mrf.mxu0
  %v1975 = vadd.f32 %v292, %v1974
  %v1976 = vpop.f32.mrf.mxu0
  %v1977 = vadd.f32 %v292, %v1976
  %1978 = vmatmul.bf16.gmra.mxu0 %v1092
  %v1979 = vpop.f32.mrf.mxu0
  %v1980 = vadd.f32 %v292, %v1979
  %v1981 = vpop.f32.mrf.mxu0
  %v1982 = vadd.f32 %v292, %v1981
  %1983 = vmatmul.bf16.gmra.mxu0 %v1094
  %v1984 = vpop.f32.mrf.mxu0
  %v1985 = vadd.f32 %v292, %v1984
  %v1986 = vpop.f32.mrf.mxu0
  %v1987 = vadd.f32 %v292, %v1986
  %1988 = vmatmul.bf16.gmra.mxu0 %v1096
  %v1989 = vpop.f32.mrf.mxu0
  %v1990 = vadd.f32 %v292, %v1989
  %v1991 = vpop.f32.mrf.mxu0
  %v1992 = vadd.f32 %v292, %v1991
  %1993 = vmatmul.bf16.gmra.mxu0 %v1098
  %v1994 = vpop.f32.mrf.mxu0
  %v1995 = vadd.f32 %v292, %v1994
  %v1996 = vpop.f32.mrf.mxu0
  %v1997 = vadd.f32 %v292, %v1996
  %1998 = vmatmul.bf16.gmra.mxu0 %v1100
  %v1999 = vpop.f32.mrf.mxu0
  %v2000 = vadd.f32 %v292, %v1999
  %v2001 = vpop.f32.mrf.mxu0
  %v2002 = vadd.f32 %v292, %v2001
  %2003 = vmatmul.bf16.gmra.mxu0 %v1102
  %v2004 = vpop.f32.mrf.mxu0
  %v2005 = vadd.f32 %v292, %v2004
  %v2006 = vpop.f32.mrf.mxu0
  %v2007 = vadd.f32 %v292, %v2006
  %2008 = vmatmul.bf16.gmra.mxu0 %v1104
  %v2009 = vpop.f32.mrf.mxu0
  %v2010 = vadd.f32 %v292, %v2009
  %v2011 = vpop.f32.mrf.mxu0
  %v2012 = vadd.f32 %v292, %v2011
  %2013 = vmatmul.bf16.gmra.mxu0 %v1106
  %v2014 = vpop.f32.mrf.mxu0
  %v2015 = vadd.f32 %v292, %v2014
  %v2016 = vpop.f32.mrf.mxu0
  %v2017 = vadd.f32 %v292, %v2016
  %2018 = vmatmul.bf16.gmra.mxu0 %v1108
  %v2019 = vpop.f32.mrf.mxu0
  %v2020 = vadd.f32 %v292, %v2019
  %v2021 = vpop.f32.mrf.mxu0
  %v2022 = vadd.f32 %v292, %v2021
  %2023 = vmatmul.bf16.gmra.mxu0 %v1110
  %v2024 = vpop.f32.mrf.mxu0
  %v2025 = vadd.f32 %v292, %v2024
  %v2026 = vpop.f32.mrf.mxu0
  %v2027 = vadd.f32 %v292, %v2026
  %2028 = vmatmul.bf16.gmra.mxu0 %v1112
  %v2029 = vpop.f32.mrf.mxu0
  %v2030 = vadd.f32 %v292, %v2029
  %v2031 = vpop.f32.mrf.mxu0
  %v2032 = vadd.f32 %v292, %v2031
  %2033 = vmatmul.bf16.gmra.mxu0 %v1114
  %v2034 = vpop.f32.mrf.mxu0
  %v2035 = vadd.f32 %v292, %v2034
  %v2036 = vpop.f32.mrf.mxu0
  %v2037 = vadd.f32 %v292, %v2036
  %2038 = vmatmul.bf16.gmra.mxu0 %v1116
  %v2039 = vpop.f32.mrf.mxu0
  %v2040 = vadd.f32 %v292, %v2039
  %v2041 = vpop.f32.mrf.mxu0
  %v2042 = vadd.f32 %v292, %v2041
  %2043 = vmatmul.bf16.gmra.mxu0 %v1118
  %v2044 = vpop.f32.mrf.mxu0
  %v2045 = vadd.f32 %v292, %v2044
  %v2046 = vpop.f32.mrf.mxu0
  %v2047 = vadd.f32 %v292, %v2046
  %2048 = vmatmul.bf16.gmra.mxu0 %v1120
  %v2049 = vpop.f32.mrf.mxu0
  %v2050 = vadd.f32 %v292, %v2049
  %v2051 = vpop.f32.mrf.mxu0
  %v2052 = vadd.f32 %v292, %v2051
  %2053 = vmatmul.bf16.gmra.mxu0 %v1122
  %v2054 = vpop.f32.mrf.mxu0
  %v2055 = vadd.f32 %v292, %v2054
  %v2056 = vpop.f32.mrf.mxu0
  %v2057 = vadd.f32 %v292, %v2056
  %2058 = vmatmul.bf16.gmra.mxu0 %v1124
  %v2059 = vpop.f32.mrf.mxu0
  %v2060 = vadd.f32 %v292, %v2059
  %v2061 = vpop.f32.mrf.mxu0
  %v2062 = vadd.f32 %v292, %v2061
  %2063 = vmatmul.bf16.gmra.mxu0 %v1126
  %v2064 = vpop.f32.mrf.mxu0
  %v2065 = vadd.f32 %v292, %v2064
  %v2066 = vpop.f32.mrf.mxu0
  %v2067 = vadd.f32 %v292, %v2066
  %2068 = vmatmul.bf16.gmra.mxu0 %v1128
  %v2069 = vpop.f32.mrf.mxu0
  %v2070 = vadd.f32 %v292, %v2069
  %v2071 = vpop.f32.mrf.mxu0
  %v2072 = vadd.f32 %v292, %v2071
  %2073 = vmatmul.bf16.gmra.mxu0 %v1130
  %v2074 = vpop.f32.mrf.mxu0
  %v2075 = vadd.f32 %v292, %v2074
  %v2076 = vpop.f32.mrf.mxu0
  %v2077 = vadd.f32 %v292, %v2076
  %2078 = vmatmul.bf16.gmra.mxu0 %v1132
  %v2079 = vpop.f32.mrf.mxu0
  %v2080 = vadd.f32 %v292, %v2079
  %v2081 = vpop.f32.mrf.mxu0
  %v2082 = vadd.f32 %v292, %v2081
  %2083 = vmatmul.bf16.gmra.mxu0 %v1134
  %v2084 = vpop.f32.mrf.mxu0
  %v2085 = vadd.f32 %v292, %v2084
  %v2086 = vpop.f32.mrf.mxu0
  %v2087 = vadd.f32 %v292, %v2086
  %2088 = vmatmul.bf16.gmra.mxu0 %v1136
  %v2089 = vpop.f32.mrf.mxu0
  %v2090 = vadd.f32 %v292, %v2089
  %v2091 = vpop.f32.mrf.mxu0
  %v2092 = vadd.f32 %v292, %v2091
  %2093 = vmatmul.bf16.gmra.mxu0 %v1138
  %v2094 = vpop.f32.mrf.mxu0
  %v2095 = vadd.f32 %v292, %v2094
  %v2096 = vpop.f32.mrf.mxu0
  %v2097 = vadd.f32 %v292, %v2096
  %2098 = vmatmul.bf16.gmra.mxu0 %v1140
  %v2099 = vpop.f32.mrf.mxu0
  %v2100 = vadd.f32 %v292, %v2099
  %v2101 = vpop.f32.mrf.mxu0
  %v2102 = vadd.f32 %v292, %v2101
  %2103 = vmatmul.bf16.gmra.mxu0 %v1142
  %v2104 = vpop.f32.mrf.mxu0
  %v2105 = vadd.f32 %v292, %v2104
  %v2106 = vpop.f32.mrf.mxu0
  %v2107 = vadd.f32 %v292, %v2106
  %2108 = vmatmul.bf16.gmra.mxu0 %v1144
  %v2109 = vpop.f32.mrf.mxu0
  %v2110 = vadd.f32 %v292, %v2109
  %v2111 = vpop.f32.mrf.mxu0
  %v2112 = vadd.f32 %v292, %v2111
  %2113 = vmatmul.bf16.gmra.mxu0 %v1146
  %v2114 = vpop.f32.mrf.mxu0
  %v2115 = vadd.f32 %v292, %v2114
  %v2116 = vpop.f32.mrf.mxu0
  %v2117 = vadd.f32 %v292, %v2116
  %2118 = vmatmul.bf16.gmra.mxu0 %v1148
  %v2119 = vpop.f32.mrf.mxu0
  %v2120 = vadd.f32 %v292, %v2119
  %v2121 = vpop.f32.mrf.mxu0
  %v2122 = vadd.f32 %v292, %v2121
  %2123 = vmatmul.bf16.gmra.mxu0 %v1150
  %v2124 = vpop.f32.mrf.mxu0
  %v2125 = vadd.f32 %v292, %v2124
  %v2126 = vpop.f32.mrf.mxu0
  %v2127 = vadd.f32 %v292, %v2126
  %2128 = vmatmul.bf16.gmra.mxu0 %v1152
  %v2129 = vpop.f32.mrf.mxu0
  %v2130 = vadd.f32 %v292, %v2129
  %v2131 = vpop.f32.mrf.mxu0
  %v2132 = vadd.f32 %v292, %v2131
  %2133 = vmatmul.bf16.gmra.mxu0 %v1154
  %v2134 = vpop.f32.mrf.mxu0
  %v2135 = vadd.f32 %v292, %v2134
  %v2136 = vpop.f32.mrf.mxu0
  %v2137 = vadd.f32 %v292, %v2136
  %2138 = vmatmul.bf16.gmra.mxu0 %v1156
  %v2139 = vpop.f32.mrf.mxu0
  %v2140 = vadd.f32 %v292, %v2139
  %v2141 = vpop.f32.mrf.mxu0
  %v2142 = vadd.f32 %v292, %v2141
  %2143 = vmatmul.bf16.gmra.mxu0 %v1158
  %v2144 = vpop.f32.mrf.mxu0
  %v2145 = vadd.f32 %v292, %v2144
  %v2146 = vpop.f32.mrf.mxu0
  %v2147 = vadd.f32 %v292, %v2146
  %2148 = vmatmul.bf16.gmra.mxu0 %v1160
  %v2149 = vpop.f32.mrf.mxu0
  %v2150 = vadd.f32 %v292, %v2149
  %v2151 = vpop.f32.mrf.mxu0
  %v2152 = vadd.f32 %v292, %v2151
  %2153 = vmatmul.bf16.gmra.mxu0 %v1162
  %v2154 = vpop.f32.mrf.mxu0
  %v2155 = vadd.f32 %v292, %v2154
  %v2156 = vpop.f32.mrf.mxu0
  %v2157 = vadd.f32 %v292, %v2156
  %2158 = vmatmul.bf16.gmra.mxu0 %v1164
  %v2159 = vpop.f32.mrf.mxu0
  %v2160 = vadd.f32 %v292, %v2159
  %v2161 = vpop.f32.mrf.mxu0
  %v2162 = vadd.f32 %v292, %v2161
  %2163 = vmatmul.bf16.gmra.mxu0 %v1166
  %v2164 = vpop.f32.mrf.mxu0
  %v2165 = vadd.f32 %v292, %v2164
  %v2166 = vpop.f32.mrf.mxu0
  %v2167 = vadd.f32 %v292, %v2166
  %2168 = vmatmul.bf16.gmra.mxu0 %v1168
  %v2169 = vpop.f32.mrf.mxu0
  %v2170 = vadd.f32 %v292, %v2169
  %v2171 = vpop.f32.mrf.mxu0
  %v2172 = vadd.f32 %v292, %v2171
  %2173 = vmatmul.bf16.gmra.mxu0 %v1170
  %v2174 = vpop.f32.mrf.mxu0
  %v2175 = vadd.f32 %v292, %v2174
  %v2176 = vpop.f32.mrf.mxu0
  %v2177 = vadd.f32 %v292, %v2176
  %2178 = vmatmul.bf16.gmra.mxu0 %v1172
  %v2179 = vpop.f32.mrf.mxu0
  %v2180 = vadd.f32 %v292, %v2179
  %v2181 = vpop.f32.mrf.mxu0
  %v2182 = vadd.f32 %v292, %v2181
  %2183 = vmatmul.bf16.gmra.mxu0 %v1174
  %v2184 = vpop.f32.mrf.mxu0
  %v2185 = vadd.f32 %v292, %v2184
  %v2186 = vpop.f32.mrf.mxu0
  %v2187 = vadd.f32 %v292, %v2186
  %2188 = vmatmul.bf16.gmra.mxu0 %v1176
  %v2189 = vpop.f32.mrf.mxu0
  %v2190 = vadd.f32 %v292, %v2189
  %v2191 = vpop.f32.mrf.mxu0
  %v2192 = vadd.f32 %v292, %v2191
  %2193 = vmatmul.bf16.gmra.mxu0 %v1178
  %v2194 = vpop.f32.mrf.mxu0
  %v2195 = vadd.f32 %v292, %v2194
  %v2196 = vpop.f32.mrf.mxu0
  %v2197 = vadd.f32 %v292, %v2196
  %2198 = vmatmul.bf16.gmra.mxu0 %v1180
  %v2199 = vpop.f32.mrf.mxu0
  %v2200 = vadd.f32 %v292, %v2199
  %v2201 = vpop.f32.mrf.mxu0
  %v2202 = vadd.f32 %v292, %v2201
  %2203 = vmatmul.bf16.gmra.mxu0 %v1182
  %v2204 = vpop.f32.mrf.mxu0
  %v2205 = vadd.f32 %v292, %v2204
  %v2206 = vpop.f32.mrf.mxu0
  %v2207 = vadd.f32 %v292, %v2206
  %2208 = vmatmul.bf16.gmra.mxu0 %v1184
  %v2209 = vpop.f32.mrf.mxu0
  %v2210 = vadd.f32 %v292, %v2209
  %v2211 = vpop.f32.mrf.mxu0
  %v2212 = vadd.f32 %v292, %v2211
  %2213 = vmatmul.bf16.gmra.mxu0 %v1186
  %v2214 = vpop.f32.mrf.mxu0
  %v2215 = vadd.f32 %v292, %v2214
  %v2216 = vpop.f32.mrf.mxu0
  %v2217 = vadd.f32 %v292, %v2216
  %2218 = vmatmul.bf16.gmra.mxu0 %v1188
  %v2219 = vpop.f32.mrf.mxu0
  %v2220 = vadd.f32 %v292, %v2219
  %v2221 = vpop.f32.mrf.mxu0
  %v2222 = vadd.f32 %v292, %v2221
  %2223 = vmatmul.bf16.gmra.mxu0 %v1190
  %v2224 = vpop.f32.mrf.mxu0
  %v2225 = vadd.f32 %v292, %v2224
  %v2226 = vpop.f32.mrf.mxu0
  %v2227 = vadd.f32 %v292, %v2226
  %2228 = vmatmul.bf16.gmra.mxu0 %v1192
  %v2229 = vpop.f32.mrf.mxu0
  %v2230 = vadd.f32 %v292, %v2229
  %v2231 = vpop.f32.mrf.mxu0
  %v2232 = vadd.f32 %v292, %v2231
  %2233 = vmatmul.bf16.gmra.mxu0 %v1194
  %v2234 = vpop.f32.mrf.mxu0
  %v2235 = vadd.f32 %v292, %v2234
  %v2236 = vpop.f32.mrf.mxu0
  %v2237 = vadd.f32 %v292, %v2236
  %2238 = vmatmul.bf16.gmra.mxu0 %v1196
  %v2239 = vpop.f32.mrf.mxu0
  %v2240 = vadd.f32 %v292, %v2239
  %v2241 = vpop.f32.mrf.mxu0
  %v2242 = vadd.f32 %v292, %v2241
  %2243 = vmatmul.bf16.gmra.mxu0 %v1198
  %v2244 = vpop.f32.mrf.mxu0
  %v2245 = vadd.f32 %v292, %v2244
  %v2246 = vpop.f32.mrf.mxu0
  %v2247 = vadd.f32 %v292, %v2246
  %2248 = vmatmul.bf16.gmra.mxu0 %v1200
  %v2249 = vpop.f32.mrf.mxu0
  %v2250 = vadd.f32 %v292, %v2249
  %v2251 = vpop.f32.mrf.mxu0
  %v2252 = vadd.f32 %v292, %v2251
  %2253 = vmatmul.bf16.gmra.mxu0 %v1202
  %v2254 = vpop.f32.mrf.mxu0
  %v2255 = vadd.f32 %v292, %v2254
  %v2256 = vpop.f32.mrf.mxu0
  %v2257 = vadd.f32 %v292, %v2256
  %2258 = vmatmul.bf16.gmra.mxu0 %v1204
  %v2259 = vpop.f32.mrf.mxu0
  %v2260 = vadd.f32 %v292, %v2259
  %v2261 = vpop.f32.mrf.mxu0
  %v2262 = vadd.f32 %v292, %v2261
  %2263 = vmatmul.bf16.gmra.mxu0 %v1206
  %v2264 = vpop.f32.mrf.mxu0
  %v2265 = vadd.f32 %v292, %v2264
  %v2266 = vpop.f32.mrf.mxu0
  %v2267 = vadd.f32 %v292, %v2266
  %2268 = vmatmul.bf16.gmra.mxu0 %v1208
  %v2269 = vpop.f32.mrf.mxu0
  %v2270 = vadd.f32 %v292, %v2269
  %v2271 = vpop.f32.mrf.mxu0
  %v2272 = vadd.f32 %v292, %v2271
  %2273 = vmatmul.bf16.gmra.mxu0 %v1210
  %v2274 = vpop.f32.mrf.mxu0
  %v2275 = vadd.f32 %v292, %v2274
  %v2276 = vpop.f32.mrf.mxu0
  %v2277 = vadd.f32 %v292, %v2276
  %2278 = vmatmul.bf16.gmra.mxu0 %v1212
  %v2279 = vpop.f32.mrf.mxu0
  %v2280 = vadd.f32 %v292, %v2279
  %v2281 = vpop.f32.mrf.mxu0
  %v2282 = vadd.f32 %v292, %v2281
  %2283 = vmatmul.bf16.gmra.mxu0 %v1214
  %v2284 = vpop.f32.mrf.mxu0
  %v2285 = vadd.f32 %v292, %v2284
  %v2286 = vpop.f32.mrf.mxu0
  %v2287 = vadd.f32 %v292, %v2286
  %2288 = vmatmul.bf16.gmra.mxu0 %v1216
  %v2289 = vpop.f32.mrf.mxu0
  %v2290 = vadd.f32 %v292, %v2289
  %v2291 = vpop.f32.mrf.mxu0
  %v2292 = vadd.f32 %v292, %v2291
  %2293 = vmatmul.bf16.gmra.mxu0 %v1218
  %v2294 = vpop.f32.mrf.mxu0
  %v2295 = vadd.f32 %v292, %v2294
  %v2296 = vpop.f32.mrf.mxu0
  %v2297 = vadd.f32 %v292, %v2296
  %2298 = vmatmul.bf16.gmra.mxu0 %v1220
  %v2299 = vpop.f32.mrf.mxu0
  %v2300 = vadd.f32 %v292, %v2299
  %v2301 = vpop.f32.mrf.mxu0
  %v2302 = vadd.f32 %v292, %v2301
  %2303 = vmatmul.bf16.gmra.mxu0 %v1222
  %v2304 = vpop.f32.mrf.mxu0
  %v2305 = vadd.f32 %v292, %v2304
  %v2306 = vpop.f32.mrf.mxu0
  %v2307 = vadd.f32 %v292, %v2306
  %2308 = vmatmul.bf16.gmra.mxu0 %v1224
  %v2309 = vpop.f32.mrf.mxu0
  %v2310 = vadd.f32 %v292, %v2309
  %v2311 = vpop.f32.mrf.mxu0
  %v2312 = vadd.f32 %v292, %v2311
  %2313 = vmatmul.bf16.gmra.mxu0 %v1226
  %v2314 = vpop.f32.mrf.mxu0
  %v2315 = vadd.f32 %v292, %v2314
  %v2316 = vpop.f32.mrf.mxu0
  %v2317 = vadd.f32 %v292, %v2316
  %2318 = vmatmul.bf16.gmra.mxu0 %v1228
  %v2319 = vpop.f32.mrf.mxu0
  %v2320 = vadd.f32 %v292, %v2319
  %v2321 = vpop.f32.mrf.mxu0
  %v2322 = vadd.f32 %v292, %v2321
  %2323 = vmatmul.bf16.gmra.mxu0 %v1230
  %v2324 = vpop.f32.mrf.mxu0
  %v2325 = vadd.f32 %v292, %v2324
  %v2326 = vpop.f32.mrf.mxu0
  %v2327 = vadd.f32 %v292, %v2326
  %2328 = vmatmul.bf16.gmra.mxu0 %v1232
  %v2329 = vpop.f32.mrf.mxu0
  %v2330 = vadd.f32 %v292, %v2329
  %v2331 = vpop.f32.mrf.mxu0
  %v2332 = vadd.f32 %v292, %v2331
  %2333 = vmatmul.bf16.gmra.mxu0 %v1234
  %v2334 = vpop.f32.mrf.mxu0
  %v2335 = vadd.f32 %v292, %v2334
  %v2336 = vpop.f32.mrf.mxu0
  %v2337 = vadd.f32 %v292, %v2336
  %2338 = vmatmul.bf16.gmra.mxu0 %v1236
  %v2339 = vpop.f32.mrf.mxu0
  %v2340 = vadd.f32 %v292, %v2339
  %v2341 = vpop.f32.mrf.mxu0
  %v2342 = vadd.f32 %v292, %v2341
  %2343 = vmatmul.bf16.gmra.mxu0 %v1238
  %v2344 = vpop.f32.mrf.mxu0
  %v2345 = vadd.f32 %v292, %v2344
  %v2346 = vpop.f32.mrf.mxu0
  %v2347 = vadd.f32 %v292, %v2346
  %2348 = vmatmul.bf16.gmra.mxu0 %v1240
  %v2349 = vpop.f32.mrf.mxu0
  %v2350 = vadd.f32 %v292, %v2349
  %v2351 = vpop.f32.mrf.mxu0
  %v2352 = vadd.f32 %v292, %v2351
  %2353 = vmatmul.bf16.gmra.mxu0 %v1242
  %v2354 = vpop.f32.mrf.mxu0
  %v2355 = vadd.f32 %v292, %v2354
  %v2356 = vpop.f32.mrf.mxu0
  %v2357 = vadd.f32 %v292, %v2356
  %2358 = vmatmul.bf16.gmra.mxu0 %v1244
  %v2359 = vpop.f32.mrf.mxu0
  %v2360 = vadd.f32 %v292, %v2359
  %v2361 = vpop.f32.mrf.mxu0
  %v2362 = vadd.f32 %v292, %v2361
  %2363 = vmatmul.bf16.gmra.mxu0 %v1246
  %v2364 = vpop.f32.mrf.mxu0
  %v2365 = vadd.f32 %v292, %v2364
  %v2366 = vpop.f32.mrf.mxu0
  %v2367 = vadd.f32 %v292, %v2366
  %2368 = vmatmul.bf16.gmra.mxu0 %v1248
  %v2369 = vpop.f32.mrf.mxu0
  %v2370 = vadd.f32 %v292, %v2369
  %v2371 = vpop.f32.mrf.mxu0
  %v2372 = vadd.f32 %v292, %v2371
  %2373 = vmatmul.bf16.gmra.mxu0 %v1250
  %v2374 = vpop.f32.mrf.mxu0
  %v2375 = vadd.f32 %v292, %v2374
  %v2376 = vpop.f32.mrf.mxu0
  %v2377 = vadd.f32 %v292, %v2376
  %2378 = vmatmul.bf16.gmra.mxu0 %v1252
  %v2379 = vpop.f32.mrf.mxu0
  %v2380 = vadd.f32 %v292, %v2379
  %v2381 = vpop.f32.mrf.mxu0
  %v2382 = vadd.f32 %v292, %v2381
  %2383 = vmatmul.bf16.gmra.mxu0 %v1254
  %v2384 = vpop.f32.mrf.mxu0
  %v2385 = vadd.f32 %v292, %v2384
  %v2386 = vpop.f32.mrf.mxu0
  %v2387 = vadd.f32 %v292, %v2386
  %2388 = vmatmul.bf16.gmra.mxu0 %v1256
  %v2389 = vpop.f32.mrf.mxu0
  %v2390 = vadd.f32 %v292, %v2389
  %v2391 = vpop.f32.mrf.mxu0
  %v2392 = vadd.f32 %v292, %v2391
  %2393 = vmatmul.bf16.gmra.mxu0 %v1258
  %v2394 = vpop.f32.mrf.mxu0
  %v2395 = vadd.f32 %v292, %v2394
  %v2396 = vpop.f32.mrf.mxu0
  %v2397 = vadd.f32 %v292, %v2396
  %2398 = vmatmul.bf16.gmra.mxu0 %v1260
  %v2399 = vpop.f32.mrf.mxu0
  %v2400 = vadd.f32 %v292, %v2399
  %v2401 = vpop.f32.mrf.mxu0
  %v2402 = vadd.f32 %v292, %v2401
  %2403 = vmatmul.bf16.gmra.mxu0 %v1262
  %v2404 = vpop.f32.mrf.mxu0
  %v2405 = vadd.f32 %v292, %v2404
  %v2406 = vpop.f32.mrf.mxu0
  %v2407 = vadd.f32 %v292, %v2406
  %2408 = vmatmul.bf16.gmra.mxu0 %v1264
  %v2409 = vpop.f32.mrf.mxu0
  %v2410 = vadd.f32 %v292, %v2409
  %v2411 = vpop.f32.mrf.mxu0
  %v2412 = vadd.f32 %v292, %v2411
  %2413 = vmatmul.bf16.gmra.mxu0 %v1266
  %v2414 = vpop.f32.mrf.mxu0
  %v2415 = vadd.f32 %v292, %v2414
  %v2416 = vpop.f32.mrf.mxu0
  %v2417 = vadd.f32 %v292, %v2416
  %2418 = vmatmul.bf16.gmra.mxu0 %v1268
  %v2419 = vpop.f32.mrf.mxu0
  %v2420 = vadd.f32 %v292, %v2419
  %v2421 = vpop.f32.mrf.mxu0
  %v2422 = vadd.f32 %v292, %v2421
  %2423 = vmatmul.bf16.gmra.mxu0 %v1270
  %v2424 = vpop.f32.mrf.mxu0
  %v2425 = vadd.f32 %v292, %v2424
  %v2426 = vpop.f32.mrf.mxu0
  %v2427 = vadd.f32 %v292, %v2426
  %2428 = vmatmul.bf16.gmra.mxu0 %v1272
  %v2429 = vpop.f32.mrf.mxu0
  %v2430 = vadd.f32 %v292, %v2429
  %v2431 = vpop.f32.mrf.mxu0
  %v2432 = vadd.f32 %v292, %v2431
  %2433 = vmatmul.bf16.gmra.mxu0 %v1274
  %v2434 = vpop.f32.mrf.mxu0
  %v2435 = vadd.f32 %v292, %v2434
  %v2436 = vpop.f32.mrf.mxu0
  %v2437 = vadd.f32 %v292, %v2436
  %2438 = vmatmul.bf16.gmra.mxu0 %v1276
  %v2439 = vpop.f32.mrf.mxu0
  %v2440 = vadd.f32 %v292, %v2439
  %v2441 = vpop.f32.mrf.mxu0
  %v2442 = vadd.f32 %v292, %v2441
  %2443 = vmatmul.bf16.gmra.mxu0 %v1278
  %v2444 = vpop.f32.mrf.mxu0
  %v2445 = vadd.f32 %v292, %v2444
  %v2446 = vpop.f32.mrf.mxu0
  %v2447 = vadd.f32 %v292, %v2446
  %2448 = vmatmul.bf16.gmra.mxu0 %v1280
  %v2449 = vpop.f32.mrf.mxu0
  %v2450 = vadd.f32 %v292, %v2449
  %v2451 = vpop.f32.mrf.mxu0
  %v2452 = vadd.f32 %v292, %v2451
  %2453 = vmatmul.bf16.gmra.mxu0 %v1282
  %v2454 = vpop.f32.mrf.mxu0
  %v2455 = vadd.f32 %v292, %v2454
  %v2456 = vpop.f32.mrf.mxu0
  %v2457 = vadd.f32 %v292, %v2456
  %2458 = vmatmul.bf16.gmra.mxu0 %v1284
  %v2459 = vpop.f32.mrf.mxu0
  %v2460 = vadd.f32 %v292, %v2459
  %v2461 = vpop.f32.mrf.mxu0
  %v2462 = vadd.f32 %v292, %v2461
  %2463 = vmatmul.bf16.gmra.mxu0 %v1286
  %v2464 = vpop.f32.mrf.mxu0
  %v2465 = vadd.f32 %v292, %v2464
  %v2466 = vpop.f32.mrf.mxu0
  %v2467 = vadd.f32 %v292, %v2466
  %2468 = vmatmul.bf16.gmra.mxu0 %v1288
  %v2469 = vpop.f32.mrf.mxu0
  %v2470 = vadd.f32 %v292, %v2469
  %v2471 = vpop.f32.mrf.mxu0
  %v2472 = vadd.f32 %v292, %v2471
  %2473 = vmatmul.bf16.gmra.mxu0 %v1290
  %v2474 = vpop.f32.mrf.mxu0
  %v2475 = vadd.f32 %v292, %v2474
  %v2476 = vpop.f32.mrf.mxu0
  %v2477 = vadd.f32 %v292, %v2476
  %2478 = vmatmul.bf16.gmra.mxu0 %v1292
  %v2479 = vpop.f32.mrf.mxu0
  %v2480 = vadd.f32 %v292, %v2479
  %v2481 = vpop.f32.mrf.mxu0
  %v2482 = vadd.f32 %v292, %v2481
  %2483 = vmatmul.bf16.gmra.mxu0 %v1294
  %v2484 = vpop.f32.mrf.mxu0
  %v2485 = vadd.f32 %v292, %v2484
  %v2486 = vpop.f32.mrf.mxu0
  %v2487 = vadd.f32 %v292, %v2486
  %2488 = vmatmul.bf16.gmra.mxu0 %v1296
  %v2489 = vpop.f32.mrf.mxu0
  %v2490 = vadd.f32 %v292, %v2489
  %v2491 = vpop.f32.mrf.mxu0
  %v2492 = vadd.f32 %v292, %v2491
  %2493 = vmatmul.bf16.gmra.mxu0 %v1298
  %v2494 = vpop.f32.mrf.mxu0
  %v2495 = vadd.f32 %v292, %v2494
  %v2496 = vpop.f32.mrf.mxu0
  %v2497 = vadd.f32 %v292, %v2496
  %2498 = vmatmul.bf16.gmra.mxu0 %v1300
  %v2499 = vpop.f32.mrf.mxu0
  %v2500 = vadd.f32 %v292, %v2499
  %v2501 = vpop.f32.mrf.mxu0
  %v2502 = vadd.f32 %v292, %v2501
  %2503 = vmatmul.bf16.gmra.mxu0 %v1302
  %v2504 = vpop.f32.mrf.mxu0
  %v2505 = vadd.f32 %v292, %v2504
  %v2506 = vpop.f32.mrf.mxu0
  %v2507 = vadd.f32 %v292, %v2506
  %2508 = vmatmul.bf16.gmra.mxu0 %v1304
  %v2509 = vpop.f32.mrf.mxu0
  %v2510 = vadd.f32 %v292, %v2509
  %v2511 = vpop.f32.mrf.mxu0
  %v2512 = vadd.f32 %v292, %v2511
  %2513 = vmatmul.bf16.gmra.mxu0 %v1306
  %v2514 = vpop.f32.mrf.mxu0
  %v2515 = vadd.f32 %v292, %v2514
  %v2516 = vpop.f32.mrf.mxu0
  %v2517 = vadd.f32 %v292, %v2516
  %2518 = vmatmul.bf16.gmra.mxu0 %v1308
  %v2519 = vpop.f32.mrf.mxu0
  %v2520 = vadd.f32 %v292, %v2519
  %v2521 = vpop.f32.mrf.mxu0
  %v2522 = vadd.f32 %v292, %v2521
  %2523 = vmatmul.bf16.gmra.mxu0 %v1310
  %v2524 = vpop.f32.mrf.mxu0
  %v2525 = vadd.f32 %v292, %v2524
  %v2526 = vpop.f32.mrf.mxu0
  %v2527 = vadd.f32 %v292, %v2526
  %2528 = vmatmul.bf16.gmra.mxu0 %v1312
  %v2529 = vpop.f32.mrf.mxu0
  %v2530 = vadd.f32 %v292, %v2529
  %v2531 = vpop.f32.mrf.mxu0
  %v2532 = vadd.f32 %v292, %v2531
  %2533 = vmatmul.bf16.gmra.mxu0 %v1314
  %v2534 = vpop.f32.mrf.mxu0
  %v2535 = vadd.f32 %v292, %v2534
  %v2536 = vpop.f32.mrf.mxu0
  %v2537 = vadd.f32 %v292, %v2536
  %2538 = vmatmul.bf16.gmra.mxu0 %v1316
  %v2539 = vpop.f32.mrf.mxu0
  %v2540 = vadd.f32 %v292, %v2539
  %v2541 = vpop.f32.mrf.mxu0
  %v2542 = vadd.f32 %v292, %v2541
  %2543 = vdwg.mxu0
  %2544 = vmatpush.bf16.msra.mxu0 0
  %2545 = vmatpush.bf16.msra.mxu0 0
  %2546 = vmatpush.bf16.msra.mxu0 0
  %2547 = vmatpush.bf16.msra.mxu0 0
  %2548 = vmatpush.bf16.msra.mxu0 0
  %2549 = vmatpush.bf16.msra.mxu0 0
  %2550 = vmatpush.bf16.msra.mxu0 %v1893
  %2551 = vmatpush.bf16.msra.mxu0 %v1492
  %2552 = vmatmul.bf16.gmra.mxu0 %v1505
  %v2553 = vpop.f32.mrf.mxu0
  %v2554 = vadd.f32 %v1905, %v2553
  %v2555 = vpop.f32.mrf.mxu0
  %v2556 = vadd.f32 %v1907, %v2555
  %2557 = vmatmul.bf16.gmra.mxu0 %v1508
  %v2558 = vpop.f32.mrf.mxu0
  %v2559 = vadd.f32 %v1910, %v2558
  %v2560 = vpop.f32.mrf.mxu0
  %v2561 = vadd.f32 %v1912, %v2560
  %2562 = vmatmul.bf16.gmra.mxu0 %v1511
  %v2563 = vpop.f32.mrf.mxu0
  %v2564 = vadd.f32 %v1915, %v2563
  %v2565 = vpop.f32.mrf.mxu0
  %v2566 = vadd.f32 %v1917, %v2565
  %2567 = vmatmul.bf16.gmra.mxu0 %v1514
  %v2568 = vpop.f32.mrf.mxu0
  %v2569 = vadd.f32 %v1920, %v2568
  %v2570 = vpop.f32.mrf.mxu0
  %v2571 = vadd.f32 %v1922, %v2570
  %2572 = vmatmul.bf16.gmra.mxu0 %v1517
  %v2573 = vpop.f32.mrf.mxu0
  %v2574 = vadd.f32 %v1925, %v2573
  %v2575 = vpop.f32.mrf.mxu0
  %v2576 = vadd.f32 %v1927, %v2575
  %2577 = vmatmul.bf16.gmra.mxu0 %v1520
  %v2578 = vpop.f32.mrf.mxu0
  %v2579 = vadd.f32 %v1930, %v2578
  %v2580 = vpop.f32.mrf.mxu0
  %v2581 = vadd.f32 %v1932, %v2580
  %2582 = vmatmul.bf16.gmra.mxu0 %v1523
  %v2583 = vpop.f32.mrf.mxu0
  %v2584 = vadd.f32 %v1935, %v2583
  %v2585 = vpop.f32.mrf.mxu0
  %v2586 = vadd.f32 %v1937, %v2585
  %2587 = vmatmul.bf16.gmra.mxu0 %v1526
  %v2588 = vpop.f32.mrf.mxu0
  %v2589 = vadd.f32 %v1940, %v2588
  %v2590 = vpop.f32.mrf.mxu0
  %v2591 = vadd.f32 %v1942, %v2590
  %2592 = vmatmul.bf16.gmra.mxu0 %v1529
  %v2593 = vpop.f32.mrf.mxu0
  %v2594 = vadd.f32 %v1945, %v2593
  %v2595 = vpop.f32.mrf.mxu0
  %v2596 = vadd.f32 %v1947, %v2595
  %2597 = vmatmul.bf16.gmra.mxu0 %v1532
  %v2598 = vpop.f32.mrf.mxu0
  %v2599 = vadd.f32 %v1950, %v2598
  %v2600 = vpop.f32.mrf.mxu0
  %v2601 = vadd.f32 %v1952, %v2600
  %2602 = vmatmul.bf16.gmra.mxu0 %v1535
  %v2603 = vpop.f32.mrf.mxu0
  %v2604 = vadd.f32 %v1955, %v2603
  %v2605 = vpop.f32.mrf.mxu0
  %v2606 = vadd.f32 %v1957, %v2605
  %2607 = vmatmul.bf16.gmra.mxu0 %v1538
  %v2608 = vpop.f32.mrf.mxu0
  %v2609 = vadd.f32 %v1960, %v2608
  %v2610 = vpop.f32.mrf.mxu0
  %v2611 = vadd.f32 %v1962, %v2610
  %2612 = vmatmul.bf16.gmra.mxu0 %v1541
  %v2613 = vpop.f32.mrf.mxu0
  %v2614 = vadd.f32 %v1965, %v2613
  %v2615 = vpop.f32.mrf.mxu0
  %v2616 = vadd.f32 %v1967, %v2615
  %2617 = vmatmul.bf16.gmra.mxu0 %v1544
  %v2618 = vpop.f32.mrf.mxu0
  %v2619 = vadd.f32 %v1970, %v2618
  %v2620 = vpop.f32.mrf.mxu0
  %v2621 = vadd.f32 %v1972, %v2620
  %2622 = vmatmul.bf16.gmra.mxu0 %v1547
  %v2623 = vpop.f32.mrf.mxu0
  %v2624 = vadd.f32 %v1975, %v2623
  %v2625 = vpop.f32.mrf.mxu0
  %v2626 = vadd.f32 %v1977, %v2625
  %2627 = vmatmul.bf16.gmra.mxu0 %v1550
  %v2628 = vpop.f32.mrf.mxu0
  %v2629 = vadd.f32 %v1980, %v2628
  %v2630 = vpop.f32.mrf.mxu0
  %v2631 = vadd.f32 %v1982, %v2630
  %2632 = vmatmul.bf16.gmra.mxu0 %v1553
  %v2633 = vpop.f32.mrf.mxu0
  %v2634 = vadd.f32 %v1985, %v2633
  %v2635 = vpop.f32.mrf.mxu0
  %v2636 = vadd.f32 %v1987, %v2635
  %2637 = vmatmul.bf16.gmra.mxu0 %v1556
  %v2638 = vpop.f32.mrf.mxu0
  %v2639 = vadd.f32 %v1990, %v2638
  %v2640 = vpop.f32.mrf.mxu0
  %v2641 = vadd.f32 %v1992, %v2640
  %2642 = vmatmul.bf16.gmra.mxu0 %v1559
  %v2643 = vpop.f32.mrf.mxu0
  %v2644 = vadd.f32 %v1995, %v2643
  %v2645 = vpop.f32.mrf.mxu0
  %v2646 = vadd.f32 %v1997, %v2645
  %2647 = vmatmul.bf16.gmra.mxu0 %v1562
  %v2648 = vpop.f32.mrf.mxu0
  %v2649 = vadd.f32 %v2000, %v2648
  %v2650 = vpop.f32.mrf.mxu0
  %v2651 = vadd.f32 %v2002, %v2650
  %2652 = vmatmul.bf16.gmra.mxu0 %v1565
  %v2653 = vpop.f32.mrf.mxu0
  %v2654 = vadd.f32 %v2005, %v2653
  %v2655 = vpop.f32.mrf.mxu0
  %v2656 = vadd.f32 %v2007, %v2655
  %2657 = vmatmul.bf16.gmra.mxu0 %v1568
  %v2658 = vpop.f32.mrf.mxu0
  %v2659 = vadd.f32 %v2010, %v2658
  %v2660 = vpop.f32.mrf.mxu0
  %v2661 = vadd.f32 %v2012, %v2660
  %2662 = vmatmul.bf16.gmra.mxu0 %v1571
  %v2663 = vpop.f32.mrf.mxu0
  %v2664 = vadd.f32 %v2015, %v2663
  %v2665 = vpop.f32.mrf.mxu0
  %v2666 = vadd.f32 %v2017, %v2665
  %2667 = vmatmul.bf16.gmra.mxu0 %v1574
  %v2668 = vpop.f32.mrf.mxu0
  %v2669 = vadd.f32 %v2020, %v2668
  %v2670 = vpop.f32.mrf.mxu0
  %v2671 = vadd.f32 %v2022, %v2670
  %2672 = vmatmul.bf16.gmra.mxu0 %v1577
  %v2673 = vpop.f32.mrf.mxu0
  %v2674 = vadd.f32 %v2025, %v2673
  %v2675 = vpop.f32.mrf.mxu0
  %v2676 = vadd.f32 %v2027, %v2675
  %2677 = vmatmul.bf16.gmra.mxu0 %v1580
  %v2678 = vpop.f32.mrf.mxu0
  %v2679 = vadd.f32 %v2030, %v2678
  %v2680 = vpop.f32.mrf.mxu0
  %v2681 = vadd.f32 %v2032, %v2680
  %2682 = vmatmul.bf16.gmra.mxu0 %v1583
  %v2683 = vpop.f32.mrf.mxu0
  %v2684 = vadd.f32 %v2035, %v2683
  %v2685 = vpop.f32.mrf.mxu0
  %v2686 = vadd.f32 %v2037, %v2685
  %2687 = vmatmul.bf16.gmra.mxu0 %v1586
  %v2688 = vpop.f32.mrf.mxu0
  %v2689 = vadd.f32 %v2040, %v2688
  %v2690 = vpop.f32.mrf.mxu0
  %v2691 = vadd.f32 %v2042, %v2690
  %2692 = vmatmul.bf16.gmra.mxu0 %v1589
  %v2693 = vpop.f32.mrf.mxu0
  %v2694 = vadd.f32 %v2045, %v2693
  %v2695 = vpop.f32.mrf.mxu0
  %v2696 = vadd.f32 %v2047, %v2695
  %2697 = vmatmul.bf16.gmra.mxu0 %v1592
  %v2698 = vpop.f32.mrf.mxu0
  %v2699 = vadd.f32 %v2050, %v2698
  %v2700 = vpop.f32.mrf.mxu0
  %v2701 = vadd.f32 %v2052, %v2700
  %2702 = vmatmul.bf16.gmra.mxu0 %v1595
  %v2703 = vpop.f32.mrf.mxu0
  %v2704 = vadd.f32 %v2055, %v2703
  %v2705 = vpop.f32.mrf.mxu0
  %v2706 = vadd.f32 %v2057, %v2705
  %2707 = vmatmul.bf16.gmra.mxu0 %v1598
  %v2708 = vpop.f32.mrf.mxu0
  %v2709 = vadd.f32 %v2060, %v2708
  %v2710 = vpop.f32.mrf.mxu0
  %v2711 = vadd.f32 %v2062, %v2710
  %2712 = vmatmul.bf16.gmra.mxu0 %v1601
  %v2713 = vpop.f32.mrf.mxu0
  %v2714 = vadd.f32 %v2065, %v2713
  %v2715 = vpop.f32.mrf.mxu0
  %v2716 = vadd.f32 %v2067, %v2715
  %2717 = vmatmul.bf16.gmra.mxu0 %v1604
  %v2718 = vpop.f32.mrf.mxu0
  %v2719 = vadd.f32 %v2070, %v2718
  %v2720 = vpop.f32.mrf.mxu0
  %v2721 = vadd.f32 %v2072, %v2720
  %2722 = vmatmul.bf16.gmra.mxu0 %v1607
  %v2723 = vpop.f32.mrf.mxu0
  %v2724 = vadd.f32 %v2075, %v2723
  %v2725 = vpop.f32.mrf.mxu0
  %v2726 = vadd.f32 %v2077, %v2725
  %2727 = vmatmul.bf16.gmra.mxu0 %v1610
  %v2728 = vpop.f32.mrf.mxu0
  %v2729 = vadd.f32 %v2080, %v2728
  %v2730 = vpop.f32.mrf.mxu0
  %v2731 = vadd.f32 %v2082, %v2730
  %2732 = vmatmul.bf16.gmra.mxu0 %v1613
  %v2733 = vpop.f32.mrf.mxu0
  %v2734 = vadd.f32 %v2085, %v2733
  %v2735 = vpop.f32.mrf.mxu0
  %v2736 = vadd.f32 %v2087, %v2735
  %2737 = vmatmul.bf16.gmra.mxu0 %v1616
  %v2738 = vpop.f32.mrf.mxu0
  %v2739 = vadd.f32 %v2090, %v2738
  %v2740 = vpop.f32.mrf.mxu0
  %v2741 = vadd.f32 %v2092, %v2740
  %2742 = vmatmul.bf16.gmra.mxu0 %v1619
  %v2743 = vpop.f32.mrf.mxu0
  %v2744 = vadd.f32 %v2095, %v2743
  %v2745 = vpop.f32.mrf.mxu0
  %v2746 = vadd.f32 %v2097, %v2745
  %2747 = vmatmul.bf16.gmra.mxu0 %v1622
  %v2748 = vpop.f32.mrf.mxu0
  %v2749 = vadd.f32 %v2100, %v2748
  %v2750 = vpop.f32.mrf.mxu0
  %v2751 = vadd.f32 %v2102, %v2750
  %2752 = vmatmul.bf16.gmra.mxu0 %v1625
  %v2753 = vpop.f32.mrf.mxu0
  %v2754 = vadd.f32 %v2105, %v2753
  %v2755 = vpop.f32.mrf.mxu0
  %v2756 = vadd.f32 %v2107, %v2755
  %2757 = vmatmul.bf16.gmra.mxu0 %v1628
  %v2758 = vpop.f32.mrf.mxu0
  %v2759 = vadd.f32 %v2110, %v2758
  %v2760 = vpop.f32.mrf.mxu0
  %v2761 = vadd.f32 %v2112, %v2760
  %2762 = vmatmul.bf16.gmra.mxu0 %v1631
  %v2763 = vpop.f32.mrf.mxu0
  %v2764 = vadd.f32 %v2115, %v2763
  %v2765 = vpop.f32.mrf.mxu0
  %v2766 = vadd.f32 %v2117, %v2765
  %2767 = vmatmul.bf16.gmra.mxu0 %v1634
  %v2768 = vpop.f32.mrf.mxu0
  %v2769 = vadd.f32 %v2120, %v2768
  %v2770 = vpop.f32.mrf.mxu0
  %v2771 = vadd.f32 %v2122, %v2770
  %2772 = vmatmul.bf16.gmra.mxu0 %v1637
  %v2773 = vpop.f32.mrf.mxu0
  %v2774 = vadd.f32 %v2125, %v2773
  %v2775 = vpop.f32.mrf.mxu0
  %v2776 = vadd.f32 %v2127, %v2775
  %2777 = vmatmul.bf16.gmra.mxu0 %v1640
  %v2778 = vpop.f32.mrf.mxu0
  %v2779 = vadd.f32 %v2130, %v2778
  %v2780 = vpop.f32.mrf.mxu0
  %v2781 = vadd.f32 %v2132, %v2780
  %2782 = vmatmul.bf16.gmra.mxu0 %v1643
  %v2783 = vpop.f32.mrf.mxu0
  %v2784 = vadd.f32 %v2135, %v2783
  %v2785 = vpop.f32.mrf.mxu0
  %v2786 = vadd.f32 %v2137, %v2785
  %2787 = vmatmul.bf16.gmra.mxu0 %v1646
  %v2788 = vpop.f32.mrf.mxu0
  %v2789 = vadd.f32 %v2140, %v2788
  %v2790 = vpop.f32.mrf.mxu0
  %v2791 = vadd.f32 %v2142, %v2790
  %2792 = vmatmul.bf16.gmra.mxu0 %v1649
  %v2793 = vpop.f32.mrf.mxu0
  %v2794 = vadd.f32 %v2145, %v2793
  %v2795 = vpop.f32.mrf.mxu0
  %v2796 = vadd.f32 %v2147, %v2795
  %2797 = vmatmul.bf16.gmra.mxu0 %v1652
  %v2798 = vpop.f32.mrf.mxu0
  %v2799 = vadd.f32 %v2150, %v2798
  %v2800 = vpop.f32.mrf.mxu0
  %v2801 = vadd.f32 %v2152, %v2800
  %2802 = vmatmul.bf16.gmra.mxu0 %v1655
  %v2803 = vpop.f32.mrf.mxu0
  %v2804 = vadd.f32 %v2155, %v2803
  %v2805 = vpop.f32.mrf.mxu0
  %v2806 = vadd.f32 %v2157, %v2805
  %2807 = vmatmul.bf16.gmra.mxu0 %v1658
  %v2808 = vpop.f32.mrf.mxu0
  %v2809 = vadd.f32 %v2160, %v2808
  %v2810 = vpop.f32.mrf.mxu0
  %v2811 = vadd.f32 %v2162, %v2810
  %2812 = vmatmul.bf16.gmra.mxu0 %v1661
  %v2813 = vpop.f32.mrf.mxu0
  %v2814 = vadd.f32 %v2165, %v2813
  %v2815 = vpop.f32.mrf.mxu0
  %v2816 = vadd.f32 %v2167, %v2815
  %2817 = vmatmul.bf16.gmra.mxu0 %v1664
  %v2818 = vpop.f32.mrf.mxu0
  %v2819 = vadd.f32 %v2170, %v2818
  %v2820 = vpop.f32.mrf.mxu0
  %v2821 = vadd.f32 %v2172, %v2820
  %2822 = vmatmul.bf16.gmra.mxu0 %v1667
  %v2823 = vpop.f32.mrf.mxu0
  %v2824 = vadd.f32 %v2175, %v2823
  %v2825 = vpop.f32.mrf.mxu0
  %v2826 = vadd.f32 %v2177, %v2825
  %2827 = vmatmul.bf16.gmra.mxu0 %v1670
  %v2828 = vpop.f32.mrf.mxu0
  %v2829 = vadd.f32 %v2180, %v2828
  %v2830 = vpop.f32.mrf.mxu0
  %v2831 = vadd.f32 %v2182, %v2830
  %2832 = vmatmul.bf16.gmra.mxu0 %v1673
  %v2833 = vpop.f32.mrf.mxu0
  %v2834 = vadd.f32 %v2185, %v2833
  %v2835 = vpop.f32.mrf.mxu0
  %v2836 = vadd.f32 %v2187, %v2835
  %2837 = vmatmul.bf16.gmra.mxu0 %v1676
  %v2838 = vpop.f32.mrf.mxu0
  %v2839 = vadd.f32 %v2190, %v2838
  %v2840 = vpop.f32.mrf.mxu0
  %v2841 = vadd.f32 %v2192, %v2840
  %2842 = vmatmul.bf16.gmra.mxu0 %v1679
  %v2843 = vpop.f32.mrf.mxu0
  %v2844 = vadd.f32 %v2195, %v2843
  %v2845 = vpop.f32.mrf.mxu0
  %v2846 = vadd.f32 %v2197, %v2845
  %2847 = vmatmul.bf16.gmra.mxu0 %v1682
  %v2848 = vpop.f32.mrf.mxu0
  %v2849 = vadd.f32 %v2200, %v2848
  %v2850 = vpop.f32.mrf.mxu0
  %v2851 = vadd.f32 %v2202, %v2850
  %2852 = vmatmul.bf16.gmra.mxu0 %v1685
  %v2853 = vpop.f32.mrf.mxu0
  %v2854 = vadd.f32 %v2205, %v2853
  %v2855 = vpop.f32.mrf.mxu0
  %v2856 = vadd.f32 %v2207, %v2855
  %2857 = vmatmul.bf16.gmra.mxu0 %v1688
  %v2858 = vpop.f32.mrf.mxu0
  %v2859 = vadd.f32 %v2210, %v2858
  %v2860 = vpop.f32.mrf.mxu0
  %v2861 = vadd.f32 %v2212, %v2860
  %2862 = vmatmul.bf16.gmra.mxu0 %v1691
  %v2863 = vpop.f32.mrf.mxu0
  %v2864 = vadd.f32 %v2215, %v2863
  %v2865 = vpop.f32.mrf.mxu0
  %v2866 = vadd.f32 %v2217, %v2865
  %2867 = vmatmul.bf16.gmra.mxu0 %v1694
  %v2868 = vpop.f32.mrf.mxu0
  %v2869 = vadd.f32 %v2220, %v2868
  %v2870 = vpop.f32.mrf.mxu0
  %v2871 = vadd.f32 %v2222, %v2870
  %2872 = vmatmul.bf16.gmra.mxu0 %v1697
  %v2873 = vpop.f32.mrf.mxu0
  %v2874 = vadd.f32 %v2225, %v2873
  %v2875 = vpop.f32.mrf.mxu0
  %v2876 = vadd.f32 %v2227, %v2875
  %2877 = vmatmul.bf16.gmra.mxu0 %v1700
  %v2878 = vpop.f32.mrf.mxu0
  %v2879 = vadd.f32 %v2230, %v2878
  %v2880 = vpop.f32.mrf.mxu0
  %v2881 = vadd.f32 %v2232, %v2880
  %2882 = vmatmul.bf16.gmra.mxu0 %v1703
  %v2883 = vpop.f32.mrf.mxu0
  %v2884 = vadd.f32 %v2235, %v2883
  %v2885 = vpop.f32.mrf.mxu0
  %v2886 = vadd.f32 %v2237, %v2885
  %2887 = vmatmul.bf16.gmra.mxu0 %v1706
  %v2888 = vpop.f32.mrf.mxu0
  %v2889 = vadd.f32 %v2240, %v2888
  %v2890 = vpop.f32.mrf.mxu0
  %v2891 = vadd.f32 %v2242, %v2890
  %2892 = vmatmul.bf16.gmra.mxu0 %v1709
  %v2893 = vpop.f32.mrf.mxu0
  %v2894 = vadd.f32 %v2245, %v2893
  %v2895 = vpop.f32.mrf.mxu0
  %v2896 = vadd.f32 %v2247, %v2895
  %2897 = vmatmul.bf16.gmra.mxu0 %v1712
  %v2898 = vpop.f32.mrf.mxu0
  %v2899 = vadd.f32 %v2250, %v2898
  %v2900 = vpop.f32.mrf.mxu0
  %v2901 = vadd.f32 %v2252, %v2900
  %2902 = vmatmul.bf16.gmra.mxu0 %v1715
  %v2903 = vpop.f32.mrf.mxu0
  %v2904 = vadd.f32 %v2255, %v2903
  %v2905 = vpop.f32.mrf.mxu0
  %v2906 = vadd.f32 %v2257, %v2905
  %2907 = vmatmul.bf16.gmra.mxu0 %v1718
  %v2908 = vpop.f32.mrf.mxu0
  %v2909 = vadd.f32 %v2260, %v2908
  %v2910 = vpop.f32.mrf.mxu0
  %v2911 = vadd.f32 %v2262, %v2910
  %2912 = vmatmul.bf16.gmra.mxu0 %v1721
  %v2913 = vpop.f32.mrf.mxu0
  %v2914 = vadd.f32 %v2265, %v2913
  %v2915 = vpop.f32.mrf.mxu0
  %v2916 = vadd.f32 %v2267, %v2915
  %2917 = vmatmul.bf16.gmra.mxu0 %v1724
  %v2918 = vpop.f32.mrf.mxu0
  %v2919 = vadd.f32 %v2270, %v2918
  %v2920 = vpop.f32.mrf.mxu0
  %v2921 = vadd.f32 %v2272, %v2920
  %2922 = vmatmul.bf16.gmra.mxu0 %v1727
  %v2923 = vpop.f32.mrf.mxu0
  %v2924 = vadd.f32 %v2275, %v2923
  %v2925 = vpop.f32.mrf.mxu0
  %v2926 = vadd.f32 %v2277, %v2925
  %2927 = vmatmul.bf16.gmra.mxu0 %v1730
  %v2928 = vpop.f32.mrf.mxu0
  %v2929 = vadd.f32 %v2280, %v2928
  %v2930 = vpop.f32.mrf.mxu0
  %v2931 = vadd.f32 %v2282, %v2930
  %2932 = vmatmul.bf16.gmra.mxu0 %v1733
  %v2933 = vpop.f32.mrf.mxu0
  %v2934 = vadd.f32 %v2285, %v2933
  %v2935 = vpop.f32.mrf.mxu0
  %v2936 = vadd.f32 %v2287, %v2935
  %2937 = vmatmul.bf16.gmra.mxu0 %v1736
  %v2938 = vpop.f32.mrf.mxu0
  %v2939 = vadd.f32 %v2290, %v2938
  %v2940 = vpop.f32.mrf.mxu0
  %v2941 = vadd.f32 %v2292, %v2940
  %2942 = vmatmul.bf16.gmra.mxu0 %v1739
  %v2943 = vpop.f32.mrf.mxu0
  %v2944 = vadd.f32 %v2295, %v2943
  %v2945 = vpop.f32.mrf.mxu0
  %v2946 = vadd.f32 %v2297, %v2945
  %2947 = vmatmul.bf16.gmra.mxu0 %v1742
  %v2948 = vpop.f32.mrf.mxu0
  %v2949 = vadd.f32 %v2300, %v2948
  %v2950 = vpop.f32.mrf.mxu0
  %v2951 = vadd.f32 %v2302, %v2950
  %2952 = vmatmul.bf16.gmra.mxu0 %v1745
  %v2953 = vpop.f32.mrf.mxu0
  %v2954 = vadd.f32 %v2305, %v2953
  %v2955 = vpop.f32.mrf.mxu0
  %v2956 = vadd.f32 %v2307, %v2955
  %2957 = vmatmul.bf16.gmra.mxu0 %v1748
  %v2958 = vpop.f32.mrf.mxu0
  %v2959 = vadd.f32 %v2310, %v2958
  %v2960 = vpop.f32.mrf.mxu0
  %v2961 = vadd.f32 %v2312, %v2960
  %2962 = vmatmul.bf16.gmra.mxu0 %v1751
  %v2963 = vpop.f32.mrf.mxu0
  %v2964 = vadd.f32 %v2315, %v2963
  %v2965 = vpop.f32.mrf.mxu0
  %v2966 = vadd.f32 %v2317, %v2965
  %2967 = vmatmul.bf16.gmra.mxu0 %v1754
  %v2968 = vpop.f32.mrf.mxu0
  %v2969 = vadd.f32 %v2320, %v2968
  %v2970 = vpop.f32.mrf.mxu0
  %v2971 = vadd.f32 %v2322, %v2970
  %2972 = vmatmul.bf16.gmra.mxu0 %v1757
  %v2973 = vpop.f32.mrf.mxu0
  %v2974 = vadd.f32 %v2325, %v2973
  %v2975 = vpop.f32.mrf.mxu0
  %v2976 = vadd.f32 %v2327, %v2975
  %2977 = vmatmul.bf16.gmra.mxu0 %v1760
  %v2978 = vpop.f32.mrf.mxu0
  %v2979 = vadd.f32 %v2330, %v2978
  %v2980 = vpop.f32.mrf.mxu0
  %v2981 = vadd.f32 %v2332, %v2980
  %2982 = vmatmul.bf16.gmra.mxu0 %v1763
  %v2983 = vpop.f32.mrf.mxu0
  %v2984 = vadd.f32 %v2335, %v2983
  %v2985 = vpop.f32.mrf.mxu0
  %v2986 = vadd.f32 %v2337, %v2985
  %2987 = vmatmul.bf16.gmra.mxu0 %v1766
  %v2988 = vpop.f32.mrf.mxu0
  %v2989 = vadd.f32 %v2340, %v2988
  %v2990 = vpop.f32.mrf.mxu0
  %v2991 = vadd.f32 %v2342, %v2990
  %2992 = vmatmul.bf16.gmra.mxu0 %v1769
  %v2993 = vpop.f32.mrf.mxu0
  %v2994 = vadd.f32 %v2345, %v2993
  %v2995 = vpop.f32.mrf.mxu0
  %v2996 = vadd.f32 %v2347, %v2995
  %2997 = vmatmul.bf16.gmra.mxu0 %v1772
  %v2998 = vpop.f32.mrf.mxu0
  %v2999 = vadd.f32 %v2350, %v2998
  %v3000 = vpop.f32.mrf.mxu0
  %v3001 = vadd.f32 %v2352, %v3000
  %3002 = vmatmul.bf16.gmra.mxu0 %v1775
  %v3003 = vpop.f32.mrf.mxu0
  %v3004 = vadd.f32 %v2355, %v3003
  %v3005 = vpop.f32.mrf.mxu0
  %v3006 = vadd.f32 %v2357, %v3005
  %3007 = vmatmul.bf16.gmra.mxu0 %v1778
  %v3008 = vpop.f32.mrf.mxu0
  %v3009 = vadd.f32 %v2360, %v3008
  %v3010 = vpop.f32.mrf.mxu0
  %v3011 = vadd.f32 %v2362, %v3010
  %3012 = vmatmul.bf16.gmra.mxu0 %v1781
  %v3013 = vpop.f32.mrf.mxu0
  %v3014 = vadd.f32 %v2365, %v3013
  %v3015 = vpop.f32.mrf.mxu0
  %v3016 = vadd.f32 %v2367, %v3015
  %3017 = vmatmul.bf16.gmra.mxu0 %v1784
  %v3018 = vpop.f32.mrf.mxu0
  %v3019 = vadd.f32 %v2370, %v3018
  %v3020 = vpop.f32.mrf.mxu0
  %v3021 = vadd.f32 %v2372, %v3020
  %3022 = vmatmul.bf16.gmra.mxu0 %v1787
  %v3023 = vpop.f32.mrf.mxu0
  %v3024 = vadd.f32 %v2375, %v3023
  %v3025 = vpop.f32.mrf.mxu0
  %v3026 = vadd.f32 %v2377, %v3025
  %3027 = vmatmul.bf16.gmra.mxu0 %v1790
  %v3028 = vpop.f32.mrf.mxu0
  %v3029 = vadd.f32 %v2380, %v3028
  %v3030 = vpop.f32.mrf.mxu0
  %v3031 = vadd.f32 %v2382, %v3030
  %3032 = vmatmul.bf16.gmra.mxu0 %v1793
  %v3033 = vpop.f32.mrf.mxu0
  %v3034 = vadd.f32 %v2385, %v3033
  %v3035 = vpop.f32.mrf.mxu0
  %v3036 = vadd.f32 %v2387, %v3035
  %3037 = vmatmul.bf16.gmra.mxu0 %v1796
  %v3038 = vpop.f32.mrf.mxu0
  %v3039 = vadd.f32 %v2390, %v3038
  %v3040 = vpop.f32.mrf.mxu0
  %v3041 = vadd.f32 %v2392, %v3040
  %3042 = vmatmul.bf16.gmra.mxu0 %v1799
  %v3043 = vpop.f32.mrf.mxu0
  %v3044 = vadd.f32 %v2395, %v3043
  %v3045 = vpop.f32.mrf.mxu0
  %v3046 = vadd.f32 %v2397, %v3045
  %3047 = vmatmul.bf16.gmra.mxu0 %v1802
  %v3048 = vpop.f32.mrf.mxu0
  %v3049 = vadd.f32 %v2400, %v3048
  %v3050 = vpop.f32.mrf.mxu0
  %v3051 = vadd.f32 %v2402, %v3050
  %3052 = vmatmul.bf16.gmra.mxu0 %v1805
  %v3053 = vpop.f32.mrf.mxu0
  %v3054 = vadd.f32 %v2405, %v3053
  %v3055 = vpop.f32.mrf.mxu0
  %v3056 = vadd.f32 %v2407, %v3055
  %3057 = vmatmul.bf16.gmra.mxu0 %v1808
  %v3058 = vpop.f32.mrf.mxu0
  %v3059 = vadd.f32 %v2410, %v3058
  %v3060 = vpop.f32.mrf.mxu0
  %v3061 = vadd.f32 %v2412, %v3060
  %3062 = vmatmul.bf16.gmra.mxu0 %v1811
  %v3063 = vpop.f32.mrf.mxu0
  %v3064 = vadd.f32 %v2415, %v3063
  %v3065 = vpop.f32.mrf.mxu0
  %v3066 = vadd.f32 %v2417, %v3065
  %3067 = vmatmul.bf16.gmra.mxu0 %v1814
  %v3068 = vpop.f32.mrf.mxu0
  %v3069 = vadd.f32 %v2420, %v3068
  %v3070 = vpop.f32.mrf.mxu0
  %v3071 = vadd.f32 %v2422, %v3070
  %3072 = vmatmul.bf16.gmra.mxu0 %v1817
  %v3073 = vpop.f32.mrf.mxu0
  %v3074 = vadd.f32 %v2425, %v3073
  %v3075 = vpop.f32.mrf.mxu0
  %v3076 = vadd.f32 %v2427, %v3075
  %3077 = vmatmul.bf16.gmra.mxu0 %v1820
  %v3078 = vpop.f32.mrf.mxu0
  %v3079 = vadd.f32 %v2430, %v3078
  %v3080 = vpop.f32.mrf.mxu0
  %v3081 = vadd.f32 %v2432, %v3080
  %3082 = vmatmul.bf16.gmra.mxu0 %v1823
  %v3083 = vpop.f32.mrf.mxu0
  %v3084 = vadd.f32 %v2435, %v3083
  %v3085 = vpop.f32.mrf.mxu0
  %v3086 = vadd.f32 %v2437, %v3085
  %3087 = vmatmul.bf16.gmra.mxu0 %v1826
  %v3088 = vpop.f32.mrf.mxu0
  %v3089 = vadd.f32 %v2440, %v3088
  %v3090 = vpop.f32.mrf.mxu0
  %v3091 = vadd.f32 %v2442, %v3090
  %3092 = vmatmul.bf16.gmra.mxu0 %v1829
  %v3093 = vpop.f32.mrf.mxu0
  %v3094 = vadd.f32 %v2445, %v3093
  %v3095 = vpop.f32.mrf.mxu0
  %v3096 = vadd.f32 %v2447, %v3095
  %3097 = vmatmul.bf16.gmra.mxu0 %v1832
  %v3098 = vpop.f32.mrf.mxu0
  %v3099 = vadd.f32 %v2450, %v3098
  %v3100 = vpop.f32.mrf.mxu0
  %v3101 = vadd.f32 %v2452, %v3100
  %3102 = vmatmul.bf16.gmra.mxu0 %v1835
  %v3103 = vpop.f32.mrf.mxu0
  %v3104 = vadd.f32 %v2455, %v3103
  %v3105 = vpop.f32.mrf.mxu0
  %v3106 = vadd.f32 %v2457, %v3105
  %3107 = vmatmul.bf16.gmra.mxu0 %v1838
  %v3108 = vpop.f32.mrf.mxu0
  %v3109 = vadd.f32 %v2460, %v3108
  %v3110 = vpop.f32.mrf.mxu0
  %v3111 = vadd.f32 %v2462, %v3110
  %3112 = vmatmul.bf16.gmra.mxu0 %v1841
  %v3113 = vpop.f32.mrf.mxu0
  %v3114 = vadd.f32 %v2465, %v3113
  %v3115 = vpop.f32.mrf.mxu0
  %v3116 = vadd.f32 %v2467, %v3115
  %3117 = vmatmul.bf16.gmra.mxu0 %v1844
  %v3118 = vpop.f32.mrf.mxu0
  %v3119 = vadd.f32 %v2470, %v3118
  %v3120 = vpop.f32.mrf.mxu0
  %v3121 = vadd.f32 %v2472, %v3120
  %3122 = vmatmul.bf16.gmra.mxu0 %v1847
  %v3123 = vpop.f32.mrf.mxu0
  %v3124 = vadd.f32 %v2475, %v3123
  %v3125 = vpop.f32.mrf.mxu0
  %v3126 = vadd.f32 %v2477, %v3125
  %3127 = vmatmul.bf16.gmra.mxu0 %v1850
  %v3128 = vpop.f32.mrf.mxu0
  %v3129 = vadd.f32 %v2480, %v3128
  %v3130 = vpop.f32.mrf.mxu0
  %v3131 = vadd.f32 %v2482, %v3130
  %3132 = vmatmul.bf16.gmra.mxu0 %v1853
  %v3133 = vpop.f32.mrf.mxu0
  %v3134 = vadd.f32 %v2485, %v3133
  %v3135 = vpop.f32.mrf.mxu0
  %v3136 = vadd.f32 %v2487, %v3135
  %3137 = vmatmul.bf16.gmra.mxu0 %v1856
  %v3138 = vpop.f32.mrf.mxu0
  %v3139 = vadd.f32 %v2490, %v3138
  %v3140 = vpop.f32.mrf.mxu0
  %v3141 = vadd.f32 %v2492, %v3140
  %3142 = vmatmul.bf16.gmra.mxu0 %v1859
  %v3143 = vpop.f32.mrf.mxu0
  %v3144 = vadd.f32 %v2495, %v3143
  %v3145 = vpop.f32.mrf.mxu0
  %v3146 = vadd.f32 %v2497, %v3145
  %3147 = vmatmul.bf16.gmra.mxu0 %v1862
  %v3148 = vpop.f32.mrf.mxu0
  %v3149 = vadd.f32 %v2500, %v3148
  %v3150 = vpop.f32.mrf.mxu0
  %v3151 = vadd.f32 %v2502, %v3150
  %3152 = vmatmul.bf16.gmra.mxu0 %v1865
  %v3153 = vpop.f32.mrf.mxu0
  %v3154 = vadd.f32 %v2505, %v3153
  %v3155 = vpop.f32.mrf.mxu0
  %v3156 = vadd.f32 %v2507, %v3155
  %3157 = vmatmul.bf16.gmra.mxu0 %v1868
  %v3158 = vpop.f32.mrf.mxu0
  %v3159 = vadd.f32 %v2510, %v3158
  %v3160 = vpop.f32.mrf.mxu0
  %v3161 = vadd.f32 %v2512, %v3160
  %3162 = vmatmul.bf16.gmra.mxu0 %v1871
  %v3163 = vpop.f32.mrf.mxu0
  %v3164 = vadd.f32 %v2515, %v3163
  %v3165 = vpop.f32.mrf.mxu0
  %v3166 = vadd.f32 %v2517, %v3165
  %3167 = vmatmul.bf16.gmra.mxu0 %v1874
  %v3168 = vpop.f32.mrf.mxu0
  %v3169 = vadd.f32 %v2520, %v3168
  %v3170 = vpop.f32.mrf.mxu0
  %v3171 = vadd.f32 %v2522, %v3170
  %3172 = vmatmul.bf16.gmra.mxu0 %v1877
  %v3173 = vpop.f32.mrf.mxu0
  %v3174 = vadd.f32 %v2525, %v3173
  %v3175 = vpop.f32.mrf.mxu0
  %v3176 = vadd.f32 %v2527, %v3175
  %3177 = vmatmul.bf16.gmra.mxu0 %v1880
  %v3178 = vpop.f32.mrf.mxu0
  %v3179 = vadd.f32 %v2530, %v3178
  %v3180 = vpop.f32.mrf.mxu0
  %v3181 = vadd.f32 %v2532, %v3180
  %3182 = vmatmul.bf16.gmra.mxu0 %v1883
  %v3183 = vpop.f32.mrf.mxu0
  %v3184 = vadd.f32 %v2535, %v3183
  %v3185 = vpop.f32.mrf.mxu0
  %v3186 = vadd.f32 %v2537, %v3185
  %3187 = vmatmul.bf16.gmra.mxu0 %v1886
  %v3188 = vpop.f32.mrf.mxu0
  %v3189 = vadd.f32 %v2540, %v3188
  %v3190 = vpop.f32.mrf.mxu0
  %v3191 = vadd.f32 %v2542, %v3190
  %3192 = vdwg.mxu0
  %v3193 = vmax.f32 %v2554, 0.0
  %v3194 = vmax.f32 %v2556, 0.0
  %v3195 = vmax.f32 %v2559, 0.0
  %v3196 = vmax.f32 %v2561, 0.0
  %v3197 = vmax.f32 %v2564, 0.0
  %v3198 = vmax.f32 %v2566, 0.0
  %v3199 = vmax.f32 %v2569, 0.0
  %v3200 = vmax.f32 %v2571, 0.0
  %v3201 = vmax.f32 %v2574, 0.0
  %v3202 = vmax.f32 %v2576, 0.0
  %v3203 = vmax.f32 %v2579, 0.0
  %v3204 = vmax.f32 %v2581, 0.0
  %v3205 = vmax.f32 %v2584, 0.0
  %v3206 = vmax.f32 %v2586, 0.0
  %v3207 = vmax.f32 %v2589, 0.0
  %v3208 = vmax.f32 %v2591, 0.0
  %v3209 = vmax.f32 %v2594, 0.0
  %v3210 = vmax.f32 %v2596, 0.0
  %v3211 = vmax.f32 %v2599, 0.0
  %v3212 = vmax.f32 %v2601, 0.0
  %v3213 = vmax.f32 %v2604, 0.0
  %v3214 = vmax.f32 %v2606, 0.0
  %v3215 = vmax.f32 %v2609, 0.0
  %v3216 = vmax.f32 %v2611, 0.0
  %v3217 = vmax.f32 %v2614, 0.0
  %v3218 = vmax.f32 %v2616, 0.0
  %v3219 = vmax.f32 %v2619, 0.0
  %v3220 = vmax.f32 %v2621, 0.0
  %v3221 = vmax.f32 %v2624, 0.0
  %v3222 = vmax.f32 %v2626, 0.0
  %v3223 = vmax.f32 %v2629, 0.0
  %v3224 = vmax.f32 %v2631, 0.0
  %v3225 = vmax.f32 %v2634, 0.0
  %v3226 = vmax.f32 %v2636, 0.0
  %v3227 = vmax.f32 %v2639, 0.0
  %v3228 = vmax.f32 %v2641, 0.0
  %v3229 = vmax.f32 %v2644, 0.0
  %v3230 = vmax.f32 %v2646, 0.0
  %v3231 = vmax.f32 %v2649, 0.0
  %v3232 = vmax.f32 %v2651, 0.0
  %v3233 = vmax.f32 %v2654, 0.0
  %v3234 = vmax.f32 %v2656, 0.0
  %v3235 = vmax.f32 %v2659, 0.0
  %v3236 = vmax.f32 %v2661, 0.0
  %v3237 = vmax.f32 %v2664, 0.0
  %v3238 = vmax.f32 %v2666, 0.0
  %v3239 = vmax.f32 %v2669, 0.0
  %v3240 = vmax.f32 %v2671, 0.0
  %v3241 = vmax.f32 %v2674, 0.0
  %v3242 = vmax.f32 %v2676, 0.0
  %v3243 = vmax.f32 %v2679, 0.0
  %v3244 = vmax.f32 %v2681, 0.0
  %v3245 = vmax.f32 %v2684, 0.0
  %v3246 = vmax.f32 %v2686, 0.0
  %v3247 = vmax.f32 %v2689, 0.0
  %v3248 = vmax.f32 %v2691, 0.0
  %v3249 = vmax.f32 %v2694, 0.0
  %v3250 = vmax.f32 %v2696, 0.0
  %v3251 = vmax.f32 %v2699, 0.0
  %v3252 = vmax.f32 %v2701, 0.0
  %v3253 = vmax.f32 %v2704, 0.0
  %v3254 = vmax.f32 %v2706, 0.0
  %v3255 = vmax.f32 %v2709, 0.0
  %v3256 = vmax.f32 %v2711, 0.0
  %v3257 = vmax.f32 %v2714, 0.0
  %v3258 = vmax.f32 %v2716, 0.0
  %v3259 = vmax.f32 %v2719, 0.0
  %v3260 = vmax.f32 %v2721, 0.0
  %v3261 = vmax.f32 %v2724, 0.0
  %v3262 = vmax.f32 %v2726, 0.0
  %v3263 = vmax.f32 %v2729, 0.0
  %v3264 = vmax.f32 %v2731, 0.0
  %v3265 = vmax.f32 %v2734, 0.0
  %v3266 = vmax.f32 %v2736, 0.0
  %v3267 = vmax.f32 %v2739, 0.0
  %v3268 = vmax.f32 %v2741, 0.0
  %v3269 = vmax.f32 %v2744, 0.0
  %v3270 = vmax.f32 %v2746, 0.0
  %v3271 = vmax.f32 %v2749, 0.0
  %v3272 = vmax.f32 %v2751, 0.0
  %v3273 = vmax.f32 %v2754, 0.0
  %v3274 = vmax.f32 %v2756, 0.0
  %v3275 = vmax.f32 %v2759, 0.0
  %v3276 = vmax.f32 %v2761, 0.0
  %v3277 = vmax.f32 %v2764, 0.0
  %v3278 = vmax.f32 %v2766, 0.0
  %v3279 = vmax.f32 %v2769, 0.0
  %v3280 = vmax.f32 %v2771, 0.0
  %v3281 = vmax.f32 %v2774, 0.0
  %v3282 = vmax.f32 %v2776, 0.0
  %v3283 = vmax.f32 %v2779, 0.0
  %v3284 = vmax.f32 %v2781, 0.0
  %v3285 = vmax.f32 %v2784, 0.0
  %v3286 = vmax.f32 %v2786, 0.0
  %v3287 = vmax.f32 %v2789, 0.0
  %v3288 = vmax.f32 %v2791, 0.0
  %v3289 = vmax.f32 %v2794, 0.0
  %v3290 = vmax.f32 %v2796, 0.0
  %v3291 = vmax.f32 %v2799, 0.0
  %v3292 = vmax.f32 %v2801, 0.0
  %v3293 = vmax.f32 %v2804, 0.0
  %v3294 = vmax.f32 %v2806, 0.0
  %v3295 = vmax.f32 %v2809, 0.0
  %v3296 = vmax.f32 %v2811, 0.0
  %v3297 = vmax.f32 %v2814, 0.0
  %v3298 = vmax.f32 %v2816, 0.0
  %v3299 = vmax.f32 %v2819, 0.0
  %v3300 = vmax.f32 %v2821, 0.0
  %v3301 = vmax.f32 %v2824, 0.0
  %v3302 = vmax.f32 %v2826, 0.0
  %v3303 = vmax.f32 %v2829, 0.0
  %v3304 = vmax.f32 %v2831, 0.0
  %v3305 = vmax.f32 %v2834, 0.0
  %v3306 = vmax.f32 %v2836, 0.0
  %v3307 = vmax.f32 %v2839, 0.0
  %v3308 = vmax.f32 %v2841, 0.0
  %v3309 = vmax.f32 %v2844, 0.0
  %v3310 = vmax.f32 %v2846, 0.0
  %v3311 = vmax.f32 %v2849, 0.0
  %v3312 = vmax.f32 %v2851, 0.0
  %v3313 = vmax.f32 %v2854, 0.0
  %v3314 = vmax.f32 %v2856, 0.0
  %v3315 = vmax.f32 %v2859, 0.0
  %v3316 = vmax.f32 %v2861, 0.0
  %v3317 = vmax.f32 %v2864, 0.0
  %v3318 = vmax.f32 %v2866, 0.0
  %v3319 = vmax.f32 %v2869, 0.0
  %v3320 = vmax.f32 %v2871, 0.0
  %v3321 = vmax.f32 %v2874, 0.0
  %v3322 = vmax.f32 %v2876, 0.0
  %v3323 = vmax.f32 %v2879, 0.0
  %v3324 = vmax.f32 %v2881, 0.0
  %v3325 = vmax.f32 %v2884, 0.0
  %v3326 = vmax.f32 %v2886, 0.0
  %v3327 = vmax.f32 %v2889, 0.0
  %v3328 = vmax.f32 %v2891, 0.0
  %v3329 = vmax.f32 %v2894, 0.0
  %v3330 = vmax.f32 %v2896, 0.0
  %v3331 = vmax.f32 %v2899, 0.0
  %v3332 = vmax.f32 %v2901, 0.0
  %v3333 = vmax.f32 %v2904, 0.0
  %v3334 = vmax.f32 %v2906, 0.0
  %v3335 = vmax.f32 %v2909, 0.0
  %v3336 = vmax.f32 %v2911, 0.0
  %v3337 = vmax.f32 %v2914, 0.0
  %v3338 = vmax.f32 %v2916, 0.0
  %v3339 = vmax.f32 %v2919, 0.0
  %v3340 = vmax.f32 %v2921, 0.0
  %v3341 = vmax.f32 %v2924, 0.0
  %v3342 = vmax.f32 %v2926, 0.0
  %v3343 = vmax.f32 %v2929, 0.0
  %v3344 = vmax.f32 %v2931, 0.0
  %v3345 = vmax.f32 %v2934, 0.0
  %v3346 = vmax.f32 %v2936, 0.0
  %v3347 = vmax.f32 %v2939, 0.0
  %v3348 = vmax.f32 %v2941, 0.0
  %v3349 = vmax.f32 %v2944, 0.0
  %v3350 = vmax.f32 %v2946, 0.0
  %v3351 = vmax.f32 %v2949, 0.0
  %v3352 = vmax.f32 %v2951, 0.0
  %v3353 = vmax.f32 %v2954, 0.0
  %v3354 = vmax.f32 %v2956, 0.0
  %v3355 = vmax.f32 %v2959, 0.0
  %v3356 = vmax.f32 %v2961, 0.0
  %v3357 = vmax.f32 %v2964, 0.0
  %v3358 = vmax.f32 %v2966, 0.0
  %v3359 = vmax.f32 %v2969, 0.0
  %v3360 = vmax.f32 %v2971, 0.0
  %v3361 = vmax.f32 %v2974, 0.0
  %v3362 = vmax.f32 %v2976, 0.0
  %v3363 = vmax.f32 %v2979, 0.0
  %v3364 = vmax.f32 %v2981, 0.0
  %v3365 = vmax.f32 %v2984, 0.0
  %v3366 = vmax.f32 %v2986, 0.0
  %v3367 = vmax.f32 %v2989, 0.0
  %v3368 = vmax.f32 %v2991, 0.0
  %v3369 = vmax.f32 %v2994, 0.0
  %v3370 = vmax.f32 %v2996, 0.0
  %v3371 = vmax.f32 %v2999, 0.0
  %v3372 = vmax.f32 %v3001, 0.0
  %v3373 = vmax.f32 %v3004, 0.0
  %v3374 = vmax.f32 %v3006, 0.0
  %v3375 = vmax.f32 %v3009, 0.0
  %v3376 = vmax.f32 %v3011, 0.0
  %v3377 = vmax.f32 %v3014, 0.0
  %v3378 = vmax.f32 %v3016, 0.0
  %v3379 = vmax.f32 %v3019, 0.0
  %v3380 = vmax.f32 %v3021, 0.0
  %v3381 = vmax.f32 %v3024, 0.0
  %v3382 = vmax.f32 %v3026, 0.0
  %v3383 = vmax.f32 %v3029, 0.0
  %v3384 = vmax.f32 %v3031, 0.0
  %v3385 = vmax.f32 %v3034, 0.0
  %v3386 = vmax.f32 %v3036, 0.0
  %v3387 = vmax.f32 %v3039, 0.0
  %v3388 = vmax.f32 %v3041, 0.0
  %v3389 = vmax.f32 %v3044, 0.0
  %v3390 = vmax.f32 %v3046, 0.0
  %v3391 = vmax.f32 %v3049, 0.0
  %v3392 = vmax.f32 %v3051, 0.0
  %v3393 = vmax.f32 %v3054, 0.0
  %v3394 = vmax.f32 %v3056, 0.0
  %v3395 = vmax.f32 %v3059, 0.0
  %v3396 = vmax.f32 %v3061, 0.0
  %v3397 = vmax.f32 %v3064, 0.0
  %v3398 = vmax.f32 %v3066, 0.0
  %v3399 = vmax.f32 %v3069, 0.0
  %v3400 = vmax.f32 %v3071, 0.0
  %v3401 = vmax.f32 %v3074, 0.0
  %v3402 = vmax.f32 %v3076, 0.0
  %v3403 = vmax.f32 %v3079, 0.0
  %v3404 = vmax.f32 %v3081, 0.0
  %v3405 = vmax.f32 %v3084, 0.0
  %v3406 = vmax.f32 %v3086, 0.0
  %v3407 = vmax.f32 %v3089, 0.0
  %v3408 = vmax.f32 %v3091, 0.0
  %v3409 = vmax.f32 %v3094, 0.0
  %v3410 = vmax.f32 %v3096, 0.0
  %v3411 = vmax.f32 %v3099, 0.0
  %v3412 = vmax.f32 %v3101, 0.0
  %v3413 = vmax.f32 %v3104, 0.0
  %v3414 = vmax.f32 %v3106, 0.0
  %v3415 = vmax.f32 %v3109, 0.0
  %v3416 = vmax.f32 %v3111, 0.0
  %v3417 = vmax.f32 %v3114, 0.0
  %v3418 = vmax.f32 %v3116, 0.0
  %v3419 = vmax.f32 %v3119, 0.0
  %v3420 = vmax.f32 %v3121, 0.0
  %v3421 = vmax.f32 %v3124, 0.0
  %v3422 = vmax.f32 %v3126, 0.0
  %v3423 = vmax.f32 %v3129, 0.0
  %v3424 = vmax.f32 %v3131, 0.0
  %v3425 = vmax.f32 %v3134, 0.0
  %v3426 = vmax.f32 %v3136, 0.0
  %v3427 = vmax.f32 %v3139, 0.0
  %v3428 = vmax.f32 %v3141, 0.0
  %v3429 = vmax.f32 %v3144, 0.0
  %v3430 = vmax.f32 %v3146, 0.0
  %v3431 = vmax.f32 %v3149, 0.0
  %v3432 = vmax.f32 %v3151, 0.0
  %v3433 = vmax.f32 %v3154, 0.0
  %v3434 = vmax.f32 %v3156, 0.0
  %v3435 = vmax.f32 %v3159, 0.0
  %v3436 = vmax.f32 %v3161, 0.0
  %v3437 = vmax.f32 %v3164, 0.0
  %v3438 = vmax.f32 %v3166, 0.0
  %v3439 = vmax.f32 %v3169, 0.0
  %v3440 = vmax.f32 %v3171, 0.0
  %v3441 = vmax.f32 %v3174, 0.0
  %v3442 = vmax.f32 %v3176, 0.0
  %v3443 = vmax.f32 %v3179, 0.0
  %v3444 = vmax.f32 %v3181, 0.0
  %v3445 = vmax.f32 %v3184, 0.0
  %v3446 = vmax.f32 %v3186, 0.0
  %v3447 = vmax.f32 %v3189, 0.0
  %v3448 = vmax.f32 %v3191, 0.0
  %v3449 = vpack.c.bf16 %v3193, %v3193
  %v3450 = vpack.c.bf16 %v3194, %v3194
  %v3451 = vpack.c.bf16 %v3195, %v3195
  %v3452 = vpack.c.bf16 %v3196, %v3196
  %v3453 = vpack.c.bf16 %v3197, %v3197
  %v3454 = vpack.c.bf16 %v3198, %v3198
  %v3455 = vpack.c.bf16 %v3199, %v3199
  %v3456 = vpack.c.bf16 %v3200, %v3200
  %v3457 = vpack.c.bf16 %v3201, %v3201
  %v3458 = vpack.c.bf16 %v3202, %v3202
  %v3459 = vpack.c.bf16 %v3203, %v3203
  %v3460 = vpack.c.bf16 %v3204, %v3204
  %v3461 = vpack.c.bf16 %v3205, %v3205
  %v3462 = vpack.c.bf16 %v3206, %v3206
  %v3463 = vpack.c.bf16 %v3207, %v3207
  %v3464 = vpack.c.bf16 %v3208, %v3208
  %v3465 = vpack.c.bf16 %v3209, %v3209
  %v3466 = vpack.c.bf16 %v3210, %v3210
  %v3467 = vpack.c.bf16 %v3211, %v3211
  %v3468 = vpack.c.bf16 %v3212, %v3212
  %v3469 = vpack.c.bf16 %v3213, %v3213
  %v3470 = vpack.c.bf16 %v3214, %v3214
  %v3471 = vpack.c.bf16 %v3215, %v3215
  %v3472 = vpack.c.bf16 %v3216, %v3216
  %v3473 = vpack.c.bf16 %v3217, %v3217
  %v3474 = vpack.c.bf16 %v3218, %v3218
  %v3475 = vpack.c.bf16 %v3219, %v3219
  %v3476 = vpack.c.bf16 %v3220, %v3220
  %v3477 = vpack.c.bf16 %v3221, %v3221
  %v3478 = vpack.c.bf16 %v3222, %v3222
  %v3479 = vpack.c.bf16 %v3223, %v3223
  %v3480 = vpack.c.bf16 %v3224, %v3224
  %v3481 = vpack.c.bf16 %v3225, %v3225
  %v3482 = vpack.c.bf16 %v3226, %v3226
  %v3483 = vpack.c.bf16 %v3227, %v3227
  %v3484 = vpack.c.bf16 %v3228, %v3228
  %v3485 = vpack.c.bf16 %v3229, %v3229
  %v3486 = vpack.c.bf16 %v3230, %v3230
  %v3487 = vpack.c.bf16 %v3231, %v3231
  %v3488 = vpack.c.bf16 %v3232, %v3232
  %v3489 = vpack.c.bf16 %v3233, %v3233
  %v3490 = vpack.c.bf16 %v3234, %v3234
  %v3491 = vpack.c.bf16 %v3235, %v3235
  %v3492 = vpack.c.bf16 %v3236, %v3236
  %v3493 = vpack.c.bf16 %v3237, %v3237
  %v3494 = vpack.c.bf16 %v3238, %v3238
  %v3495 = vpack.c.bf16 %v3239, %v3239
  %v3496 = vpack.c.bf16 %v3240, %v3240
  %v3497 = vpack.c.bf16 %v3241, %v3241
  %v3498 = vpack.c.bf16 %v3242, %v3242
  %v3499 = vpack.c.bf16 %v3243, %v3243
  %v3500 = vpack.c.bf16 %v3244, %v3244
  %v3501 = vpack.c.bf16 %v3245, %v3245
  %v3502 = vpack.c.bf16 %v3246, %v3246
  %v3503 = vpack.c.bf16 %v3247, %v3247
  %v3504 = vpack.c.bf16 %v3248, %v3248
  %v3505 = vpack.c.bf16 %v3249, %v3249
  %v3506 = vpack.c.bf16 %v3250, %v3250
  %v3507 = vpack.c.bf16 %v3251, %v3251
  %v3508 = vpack.c.bf16 %v3252, %v3252
  %v3509 = vpack.c.bf16 %v3253, %v3253
  %v3510 = vpack.c.bf16 %v3254, %v3254
  %v3511 = vpack.c.bf16 %v3255, %v3255
  %v3512 = vpack.c.bf16 %v3256, %v3256
  %v3513 = vpack.c.bf16 %v3257, %v3257
  %v3514 = vpack.c.bf16 %v3258, %v3258
  %v3515 = vpack.c.bf16 %v3259, %v3259
  %v3516 = vpack.c.bf16 %v3260, %v3260
  %v3517 = vpack.c.bf16 %v3261, %v3261
  %v3518 = vpack.c.bf16 %v3262, %v3262
  %v3519 = vpack.c.bf16 %v3263, %v3263
  %v3520 = vpack.c.bf16 %v3264, %v3264
  %v3521 = vpack.c.bf16 %v3265, %v3265
  %v3522 = vpack.c.bf16 %v3266, %v3266
  %v3523 = vpack.c.bf16 %v3267, %v3267
  %v3524 = vpack.c.bf16 %v3268, %v3268
  %v3525 = vpack.c.bf16 %v3269, %v3269
  %v3526 = vpack.c.bf16 %v3270, %v3270
  %v3527 = vpack.c.bf16 %v3271, %v3271
  %v3528 = vpack.c.bf16 %v3272, %v3272
  %v3529 = vpack.c.bf16 %v3273, %v3273
  %v3530 = vpack.c.bf16 %v3274, %v3274
  %v3531 = vpack.c.bf16 %v3275, %v3275
  %v3532 = vpack.c.bf16 %v3276, %v3276
  %v3533 = vpack.c.bf16 %v3277, %v3277
  %v3534 = vpack.c.bf16 %v3278, %v3278
  %v3535 = vpack.c.bf16 %v3279, %v3279
  %v3536 = vpack.c.bf16 %v3280, %v3280
  %v3537 = vpack.c.bf16 %v3281, %v3281
  %v3538 = vpack.c.bf16 %v3282, %v3282
  %v3539 = vpack.c.bf16 %v3283, %v3283
  %v3540 = vpack.c.bf16 %v3284, %v3284
  %v3541 = vpack.c.bf16 %v3285, %v3285
  %v3542 = vpack.c.bf16 %v3286, %v3286
  %v3543 = vpack.c.bf16 %v3287, %v3287
  %v3544 = vpack.c.bf16 %v3288, %v3288
  %v3545 = vpack.c.bf16 %v3289, %v3289
  %v3546 = vpack.c.bf16 %v3290, %v3290
  %v3547 = vpack.c.bf16 %v3291, %v3291
  %v3548 = vpack.c.bf16 %v3292, %v3292
  %v3549 = vpack.c.bf16 %v3293, %v3293
  %v3550 = vpack.c.bf16 %v3294, %v3294
  %v3551 = vpack.c.bf16 %v3295, %v3295
  %v3552 = vpack.c.bf16 %v3296, %v3296
  %v3553 = vpack.c.bf16 %v3297, %v3297
  %v3554 = vpack.c.bf16 %v3298, %v3298
  %v3555 = vpack.c.bf16 %v3299, %v3299
  %v3556 = vpack.c.bf16 %v3300, %v3300
  %v3557 = vpack.c.bf16 %v3301, %v3301
  %v3558 = vpack.c.bf16 %v3302, %v3302
  %v3559 = vpack.c.bf16 %v3303, %v3303
  %v3560 = vpack.c.bf16 %v3304, %v3304
  %v3561 = vpack.c.bf16 %v3305, %v3305
  %v3562 = vpack.c.bf16 %v3306, %v3306
  %v3563 = vpack.c.bf16 %v3307, %v3307
  %v3564 = vpack.c.bf16 %v3308, %v3308
  %v3565 = vpack.c.bf16 %v3309, %v3309
  %v3566 = vpack.c.bf16 %v3310, %v3310
  %v3567 = vpack.c.bf16 %v3311, %v3311
  %v3568 = vpack.c.bf16 %v3312, %v3312
  %v3569 = vpack.c.bf16 %v3313, %v3313
  %v3570 = vpack.c.bf16 %v3314, %v3314
  %v3571 = vpack.c.bf16 %v3315, %v3315
  %v3572 = vpack.c.bf16 %v3316, %v3316
  %v3573 = vpack.c.bf16 %v3317, %v3317
  %v3574 = vpack.c.bf16 %v3318, %v3318
  %v3575 = vpack.c.bf16 %v3319, %v3319
  %v3576 = vpack.c.bf16 %v3320, %v3320
  %v3577 = vpack.c.bf16 %v3321, %v3321
  %v3578 = vpack.c.bf16 %v3322, %v3322
  %v3579 = vpack.c.bf16 %v3323, %v3323
  %v3580 = vpack.c.bf16 %v3324, %v3324
  %v3581 = vpack.c.bf16 %v3325, %v3325
  %v3582 = vpack.c.bf16 %v3326, %v3326
  %v3583 = vpack.c.bf16 %v3327, %v3327
  %v3584 = vpack.c.bf16 %v3328, %v3328
  %v3585 = vpack.c.bf16 %v3329, %v3329
  %v3586 = vpack.c.bf16 %v3330, %v3330
  %v3587 = vpack.c.bf16 %v3331, %v3331
  %v3588 = vpack.c.bf16 %v3332, %v3332
  %v3589 = vpack.c.bf16 %v3333, %v3333
  %v3590 = vpack.c.bf16 %v3334, %v3334
  %v3591 = vpack.c.bf16 %v3335, %v3335
  %v3592 = vpack.c.bf16 %v3336, %v3336
  %v3593 = vpack.c.bf16 %v3337, %v3337
  %v3594 = vpack.c.bf16 %v3338, %v3338
  %v3595 = vpack.c.bf16 %v3339, %v3339
  %v3596 = vpack.c.bf16 %v3340, %v3340
  %v3597 = vpack.c.bf16 %v3341, %v3341
  %v3598 = vpack.c.bf16 %v3342, %v3342
  %v3599 = vpack.c.bf16 %v3343, %v3343
  %v3600 = vpack.c.bf16 %v3344, %v3344
  %v3601 = vpack.c.bf16 %v3345, %v3345
  %v3602 = vpack.c.bf16 %v3346, %v3346
  %v3603 = vpack.c.bf16 %v3347, %v3347
  %v3604 = vpack.c.bf16 %v3348, %v3348
  %v3605 = vpack.c.bf16 %v3349, %v3349
  %v3606 = vpack.c.bf16 %v3350, %v3350
  %v3607 = vpack.c.bf16 %v3351, %v3351
  %v3608 = vpack.c.bf16 %v3352, %v3352
  %v3609 = vpack.c.bf16 %v3353, %v3353
  %v3610 = vpack.c.bf16 %v3354, %v3354
  %v3611 = vpack.c.bf16 %v3355, %v3355
  %v3612 = vpack.c.bf16 %v3356, %v3356
  %v3613 = vpack.c.bf16 %v3357, %v3357
  %v3614 = vpack.c.bf16 %v3358, %v3358
  %v3615 = vpack.c.bf16 %v3359, %v3359
  %v3616 = vpack.c.bf16 %v3360, %v3360
  %v3617 = vpack.c.bf16 %v3361, %v3361
  %v3618 = vpack.c.bf16 %v3362, %v3362
  %v3619 = vpack.c.bf16 %v3363, %v3363
  %v3620 = vpack.c.bf16 %v3364, %v3364
  %v3621 = vpack.c.bf16 %v3365, %v3365
  %v3622 = vpack.c.bf16 %v3366, %v3366
  %v3623 = vpack.c.bf16 %v3367, %v3367
  %v3624 = vpack.c.bf16 %v3368, %v3368
  %v3625 = vpack.c.bf16 %v3369, %v3369
  %v3626 = vpack.c.bf16 %v3370, %v3370
  %v3627 = vpack.c.bf16 %v3371, %v3371
  %v3628 = vpack.c.bf16 %v3372, %v3372
  %v3629 = vpack.c.bf16 %v3373, %v3373
  %v3630 = vpack.c.bf16 %v3374, %v3374
  %v3631 = vpack.c.bf16 %v3375, %v3375
  %v3632 = vpack.c.bf16 %v3376, %v3376
  %v3633 = vpack.c.bf16 %v3377, %v3377
  %v3634 = vpack.c.bf16 %v3378, %v3378
  %v3635 = vpack.c.bf16 %v3379, %v3379
  %v3636 = vpack.c.bf16 %v3380, %v3380
  %v3637 = vpack.c.bf16 %v3381, %v3381
  %v3638 = vpack.c.bf16 %v3382, %v3382
  %v3639 = vpack.c.bf16 %v3383, %v3383
  %v3640 = vpack.c.bf16 %v3384, %v3384
  %v3641 = vpack.c.bf16 %v3385, %v3385
  %v3642 = vpack.c.bf16 %v3386, %v3386
  %v3643 = vpack.c.bf16 %v3387, %v3387
  %v3644 = vpack.c.bf16 %v3388, %v3388
  %v3645 = vpack.c.bf16 %v3389, %v3389
  %v3646 = vpack.c.bf16 %v3390, %v3390
  %v3647 = vpack.c.bf16 %v3391, %v3391
  %v3648 = vpack.c.bf16 %v3392, %v3392
  %v3649 = vpack.c.bf16 %v3393, %v3393
  %v3650 = vpack.c.bf16 %v3394, %v3394
  %v3651 = vpack.c.bf16 %v3395, %v3395
  %v3652 = vpack.c.bf16 %v3396, %v3396
  %v3653 = vpack.c.bf16 %v3397, %v3397
  %v3654 = vpack.c.bf16 %v3398, %v3398
  %v3655 = vpack.c.bf16 %v3399, %v3399
  %v3656 = vpack.c.bf16 %v3400, %v3400
  %v3657 = vpack.c.bf16 %v3401, %v3401
  %v3658 = vpack.c.bf16 %v3402, %v3402
  %v3659 = vpack.c.bf16 %v3403, %v3403
  %v3660 = vpack.c.bf16 %v3404, %v3404
  %v3661 = vpack.c.bf16 %v3405, %v3405
  %v3662 = vpack.c.bf16 %v3406, %v3406
  %v3663 = vpack.c.bf16 %v3407, %v3407
  %v3664 = vpack.c.bf16 %v3408, %v3408
  %v3665 = vpack.c.bf16 %v3409, %v3409
  %v3666 = vpack.c.bf16 %v3410, %v3410
  %v3667 = vpack.c.bf16 %v3411, %v3411
  %v3668 = vpack.c.bf16 %v3412, %v3412
  %v3669 = vpack.c.bf16 %v3413, %v3413
  %v3670 = vpack.c.bf16 %v3414, %v3414
  %v3671 = vpack.c.bf16 %v3415, %v3415
  %v3672 = vpack.c.bf16 %v3416, %v3416
  %v3673 = vpack.c.bf16 %v3417, %v3417
  %v3674 = vpack.c.bf16 %v3418, %v3418
  %v3675 = vpack.c.bf16 %v3419, %v3419
  %v3676 = vpack.c.bf16 %v3420, %v3420
  %v3677 = vpack.c.bf16 %v3421, %v3421
  %v3678 = vpack.c.bf16 %v3422, %v3422
  %v3679 = vpack.c.bf16 %v3423, %v3423
  %v3680 = vpack.c.bf16 %v3424, %v3424
  %v3681 = vpack.c.bf16 %v3425, %v3425
  %v3682 = vpack.c.bf16 %v3426, %v3426
  %v3683 = vpack.c.bf16 %v3427, %v3427
  %v3684 = vpack.c.bf16 %v3428, %v3428
  %v3685 = vpack.c.bf16 %v3429, %v3429
  %v3686 = vpack.c.bf16 %v3430, %v3430
  %v3687 = vpack.c.bf16 %v3431, %v3431
  %v3688 = vpack.c.bf16 %v3432, %v3432
  %v3689 = vpack.c.bf16 %v3433, %v3433
  %v3690 = vpack.c.bf16 %v3434, %v3434
  %v3691 = vpack.c.bf16 %v3435, %v3435
  %v3692 = vpack.c.bf16 %v3436, %v3436
  %v3693 = vpack.c.bf16 %v3437, %v3437
  %v3694 = vpack.c.bf16 %v3438, %v3438
  %v3695 = vpack.c.bf16 %v3439, %v3439
  %v3696 = vpack.c.bf16 %v3440, %v3440
  %v3697 = vpack.c.bf16 %v3441, %v3441
  %v3698 = vpack.c.bf16 %v3442, %v3442
  %v3699 = vpack.c.bf16 %v3443, %v3443
  %v3700 = vpack.c.bf16 %v3444, %v3444
  %v3701 = vpack.c.bf16 %v3445, %v3445
  %v3702 = vpack.c.bf16 %v3446, %v3446
  %v3703 = vpack.c.bf16 %v3447, %v3447
  %v3704 = vpack.c.bf16 %v3448, %v3448
  %3705 = vst [vmem:[%s3] sm:$0xf] %v3449
  %3706 = vst [vmem:[%s3 + $0x4] sm:$0xf] %v3450
  %3707 = vst [vmem:[%s3 + $0x8] sm:$0xf] %v3451
  %3708 = vst [vmem:[%s3 + $0xc] sm:$0xf] %v3452
  %3709 = vst [vmem:[%s3 + $0x10] sm:$0xf] %v3453
  %3710 = vst [vmem:[%s3 + $0x14] sm:$0xf] %v3454
  %3711 = vst [vmem:[%s3 + $0x18] sm:$0xf] %v3455
  %3712 = vst [vmem:[%s3 + $0x1c] sm:$0xf] %v3456
  %3713 = vst [vmem:[%s3 + $0x20] sm:$0xf] %v3457
  %3714 = vst [vmem:[%s3 + $0x24] sm:$0xf] %v3458
  %3715 = vst [vmem:[%s3 + $0x28] sm:$0xf] %v3459
  %3716 = vst [vmem:[%s3 + $0x2c] sm:$0xf] %v3460
  %3717 = vst [vmem:[%s3 + $0x30] sm:$0xf] %v3461
  %3718 = vst [vmem:[%s3 + $0x34] sm:$0xf] %v3462
  %3719 = vst [vmem:[%s3 + $0x38] sm:$0xf] %v3463
  %3720 = vst [vmem:[%s3 + $0x3c] sm:$0xf] %v3464
  %3721 = vst [vmem:[%s3 + $0x40] sm:$0xf] %v3465
  %3722 = vst [vmem:[%s3 + $0x44] sm:$0xf] %v3466
  %3723 = vst [vmem:[%s3 + $0x48] sm:$0xf] %v3467
  %3724 = vst [vmem:[%s3 + $0x4c] sm:$0xf] %v3468
  %3725 = vst [vmem:[%s3 + $0x50] sm:$0xf] %v3469
  %3726 = vst [vmem:[%s3 + $0x54] sm:$0xf] %v3470
  %3727 = vst [vmem:[%s3 + $0x58] sm:$0xf] %v3471
  %3728 = vst [vmem:[%s3 + $0x5c] sm:$0xf] %v3472
  %3729 = vst [vmem:[%s3 + $0x60] sm:$0xf] %v3473
  %3730 = vst [vmem:[%s3 + $0x64] sm:$0xf] %v3474
  %3731 = vst [vmem:[%s3 + $0x68] sm:$0xf] %v3475
  %3732 = vst [vmem:[%s3 + $0x6c] sm:$0xf] %v3476
  %3733 = vst [vmem:[%s3 + $0x70] sm:$0xf] %v3477
  %3734 = vst [vmem:[%s3 + $0x74] sm:$0xf] %v3478
  %3735 = vst [vmem:[%s3 + $0x78] sm:$0xf] %v3479
  %3736 = vst [vmem:[%s3 + $0x7c] sm:$0xf] %v3480
  %3737 = vst [vmem:[%s3 + $0x80] sm:$0xf] %v3481
  %3738 = vst [vmem:[%s3 + $0x84] sm:$0xf] %v3482
  %3739 = vst [vmem:[%s3 + $0x88] sm:$0xf] %v3483
  %3740 = vst [vmem:[%s3 + $0x8c] sm:$0xf] %v3484
  %3741 = vst [vmem:[%s3 + $0x90] sm:$0xf] %v3485
  %3742 = vst [vmem:[%s3 + $0x94] sm:$0xf] %v3486
  %3743 = vst [vmem:[%s3 + $0x98] sm:$0xf] %v3487
  %3744 = vst [vmem:[%s3 + $0x9c] sm:$0xf] %v3488
  %3745 = vst [vmem:[%s3 + $0xa0] sm:$0xf] %v3489
  %3746 = vst [vmem:[%s3 + $0xa4] sm:$0xf] %v3490
  %3747 = vst [vmem:[%s3 + $0xa8] sm:$0xf] %v3491
  %3748 = vst [vmem:[%s3 + $0xac] sm:$0xf] %v3492
  %3749 = vst [vmem:[%s3 + $0xb0] sm:$0xf] %v3493
  %3750 = vst [vmem:[%s3 + $0xb4] sm:$0xf] %v3494
  %3751 = vst [vmem:[%s3 + $0xb8] sm:$0xf] %v3495
  %3752 = vst [vmem:[%s3 + $0xbc] sm:$0xf] %v3496
  %3753 = vst [vmem:[%s3 + $0xc0] sm:$0xf] %v3497
  %3754 = vst [vmem:[%s3 + $0xc4] sm:$0xf] %v3498
  %3755 = vst [vmem:[%s3 + $0xc8] sm:$0xf] %v3499
  %3756 = vst [vmem:[%s3 + $0xcc] sm:$0xf] %v3500
  %3757 = vst [vmem:[%s3 + $0xd0] sm:$0xf] %v3501
  %3758 = vst [vmem:[%s3 + $0xd4] sm:$0xf] %v3502
  %3759 = vst [vmem:[%s3 + $0xd8] sm:$0xf] %v3503
  %3760 = vst [vmem:[%s3 + $0xdc] sm:$0xf] %v3504
  %3761 = vst [vmem:[%s3 + $0xe0] sm:$0xf] %v3505
  %3762 = vst [vmem:[%s3 + $0xe4] sm:$0xf] %v3506
  %3763 = vst [vmem:[%s3 + $0xe8] sm:$0xf] %v3507
  %3764 = vst [vmem:[%s3 + $0xec] sm:$0xf] %v3508
  %3765 = vst [vmem:[%s3 + $0xf0] sm:$0xf] %v3509
  %3766 = vst [vmem:[%s3 + $0xf4] sm:$0xf] %v3510
  %3767 = vst [vmem:[%s3 + $0xf8] sm:$0xf] %v3511
  %3768 = vst [vmem:[%s3 + $0xfc] sm:$0xf] %v3512
  %3769 = vst [vmem:[%s3 + $0x100] sm:$0xf] %v3513
  %3770 = vst [vmem:[%s3 + $0x104] sm:$0xf] %v3514
  %3771 = vst [vmem:[%s3 + $0x108] sm:$0xf] %v3515
  %3772 = vst [vmem:[%s3 + $0x10c] sm:$0xf] %v3516
  %3773 = vst [vmem:[%s3 + $0x110] sm:$0xf] %v3517
  %3774 = vst [vmem:[%s3 + $0x114] sm:$0xf] %v3518
  %3775 = vst [vmem:[%s3 + $0x118] sm:$0xf] %v3519
  %3776 = vst [vmem:[%s3 + $0x11c] sm:$0xf] %v3520
  %3777 = vst [vmem:[%s3 + $0x120] sm:$0xf] %v3521
  %3778 = vst [vmem:[%s3 + $0x124] sm:$0xf] %v3522
  %3779 = vst [vmem:[%s3 + $0x128] sm:$0xf] %v3523
  %3780 = vst [vmem:[%s3 + $0x12c] sm:$0xf] %v3524
  %3781 = vst [vmem:[%s3 + $0x130] sm:$0xf] %v3525
  %3782 = vst [vmem:[%s3 + $0x134] sm:$0xf] %v3526
  %3783 = vst [vmem:[%s3 + $0x138] sm:$0xf] %v3527
  %3784 = vst [vmem:[%s3 + $0x13c] sm:$0xf] %v3528
  %3785 = vst [vmem:[%s3 + $0x140] sm:$0xf] %v3529
  %3786 = vst [vmem:[%s3 + $0x144] sm:$0xf] %v3530
  %3787 = vst [vmem:[%s3 + $0x148] sm:$0xf] %v3531
  %3788 = vst [vmem:[%s3 + $0x14c] sm:$0xf] %v3532
  %3789 = vst [vmem:[%s3 + $0x150] sm:$0xf] %v3533
  %3790 = vst [vmem:[%s3 + $0x154] sm:$0xf] %v3534
  %3791 = vst [vmem:[%s3 + $0x158] sm:$0xf] %v3535
  %3792 = vst [vmem:[%s3 + $0x15c] sm:$0xf] %v3536
  %3793 = vst [vmem:[%s3 + $0x160] sm:$0xf] %v3537
  %3794 = vst [vmem:[%s3 + $0x164] sm:$0xf] %v3538
  %3795 = vst [vmem:[%s3 + $0x168] sm:$0xf] %v3539
  %3796 = vst [vmem:[%s3 + $0x16c] sm:$0xf] %v3540
  %3797 = vst [vmem:[%s3 + $0x170] sm:$0xf] %v3541
  %3798 = vst [vmem:[%s3 + $0x174] sm:$0xf] %v3542
  %3799 = vst [vmem:[%s3 + $0x178] sm:$0xf] %v3543
  %3800 = vst [vmem:[%s3 + $0x17c] sm:$0xf] %v3544
  %3801 = vst [vmem:[%s3 + $0x180] sm:$0xf] %v3545
  %3802 = vst [vmem:[%s3 + $0x184] sm:$0xf] %v3546
  %3803 = vst [vmem:[%s3 + $0x188] sm:$0xf] %v3547
  %3804 = vst [vmem:[%s3 + $0x18c] sm:$0xf] %v3548
  %3805 = vst [vmem:[%s3 + $0x190] sm:$0xf] %v3549
  %3806 = vst [vmem:[%s3 + $0x194] sm:$0xf] %v3550
  %3807 = vst [vmem:[%s3 + $0x198] sm:$0xf] %v3551
  %3808 = vst [vmem:[%s3 + $0x19c] sm:$0xf] %v3552
  %3809 = vst [vmem:[%s3 + $0x1a0] sm:$0xf] %v3553
  %3810 = vst [vmem:[%s3 + $0x1a4] sm:$0xf] %v3554
  %3811 = vst [vmem:[%s3 + $0x1a8] sm:$0xf] %v3555
  %3812 = vst [vmem:[%s3 + $0x1ac] sm:$0xf] %v3556
  %3813 = vst [vmem:[%s3 + $0x1b0] sm:$0xf] %v3557
  %3814 = vst [vmem:[%s3 + $0x1b4] sm:$0xf] %v3558
  %3815 = vst [vmem:[%s3 + $0x1b8] sm:$0xf] %v3559
  %3816 = vst [vmem:[%s3 + $0x1bc] sm:$0xf] %v3560
  %3817 = vst [vmem:[%s3 + $0x1c0] sm:$0xf] %v3561
  %3818 = vst [vmem:[%s3 + $0x1c4] sm:$0xf] %v3562
  %3819 = vst [vmem:[%s3 + $0x1c8] sm:$0xf] %v3563
  %3820 = vst [vmem:[%s3 + $0x1cc] sm:$0xf] %v3564
  %3821 = vst [vmem:[%s3 + $0x1d0] sm:$0xf] %v3565
  %3822 = vst [vmem:[%s3 + $0x1d4] sm:$0xf] %v3566
  %3823 = vst [vmem:[%s3 + $0x1d8] sm:$0xf] %v3567
  %3824 = vst [vmem:[%s3 + $0x1dc] sm:$0xf] %v3568
  %3825 = vst [vmem:[%s3 + $0x1e0] sm:$0xf] %v3569
  %3826 = vst [vmem:[%s3 + $0x1e4] sm:$0xf] %v3570
  %3827 = vst [vmem:[%s3 + $0x1e8] sm:$0xf] %v3571
  %3828 = vst [vmem:[%s3 + $0x1ec] sm:$0xf] %v3572
  %3829 = vst [vmem:[%s3 + $0x1f0] sm:$0xf] %v3573
  %3830 = vst [vmem:[%s3 + $0x1f4] sm:$0xf] %v3574
  %3831 = vst [vmem:[%s3 + $0x1f8] sm:$0xf] %v3575
  %3832 = vst [vmem:[%s3 + $0x1fc] sm:$0xf] %v3576
  %3833 = vst [vmem:[%s3 + $0x200] sm:$0xf] %v3577
  %3834 = vst [vmem:[%s3 + $0x204] sm:$0xf] %v3578
  %3835 = vst [vmem:[%s3 + $0x208] sm:$0xf] %v3579
  %3836 = vst [vmem:[%s3 + $0x20c] sm:$0xf] %v3580
  %3837 = vst [vmem:[%s3 + $0x210] sm:$0xf] %v3581
  %3838 = vst [vmem:[%s3 + $0x214] sm:$0xf] %v3582
  %3839 = vst [vmem:[%s3 + $0x218] sm:$0xf] %v3583
  %3840 = vst [vmem:[%s3 + $0x21c] sm:$0xf] %v3584
  %3841 = vst [vmem:[%s3 + $0x220] sm:$0xf] %v3585
  %3842 = vst [vmem:[%s3 + $0x224] sm:$0xf] %v3586
  %3843 = vst [vmem:[%s3 + $0x228] sm:$0xf] %v3587
  %3844 = vst [vmem:[%s3 + $0x22c] sm:$0xf] %v3588
  %3845 = vst [vmem:[%s3 + $0x230] sm:$0xf] %v3589
  %3846 = vst [vmem:[%s3 + $0x234] sm:$0xf] %v3590
  %3847 = vst [vmem:[%s3 + $0x238] sm:$0xf] %v3591
  %3848 = vst [vmem:[%s3 + $0x23c] sm:$0xf] %v3592
  %3849 = vst [vmem:[%s3 + $0x240] sm:$0xf] %v3593
  %3850 = vst [vmem:[%s3 + $0x244] sm:$0xf] %v3594
  %3851 = vst [vmem:[%s3 + $0x248] sm:$0xf] %v3595
  %3852 = vst [vmem:[%s3 + $0x24c] sm:$0xf] %v3596
  %3853 = vst [vmem:[%s3 + $0x250] sm:$0xf] %v3597
  %3854 = vst [vmem:[%s3 + $0x254] sm:$0xf] %v3598
  %3855 = vst [vmem:[%s3 + $0x258] sm:$0xf] %v3599
  %3856 = vst [vmem:[%s3 + $0x25c] sm:$0xf] %v3600
  %3857 = vst [vmem:[%s3 + $0x260] sm:$0xf] %v3601
  %3858 = vst [vmem:[%s3 + $0x264] sm:$0xf] %v3602
  %3859 = vst [vmem:[%s3 + $0x268] sm:$0xf] %v3603
  %3860 = vst [vmem:[%s3 + $0x26c] sm:$0xf] %v3604
  %3861 = vst [vmem:[%s3 + $0x270] sm:$0xf] %v3605
  %3862 = vst [vmem:[%s3 + $0x274] sm:$0xf] %v3606
  %3863 = vst [vmem:[%s3 + $0x278] sm:$0xf] %v3607
  %3864 = vst [vmem:[%s3 + $0x27c] sm:$0xf] %v3608
  %3865 = vst [vmem:[%s3 + $0x280] sm:$0xf] %v3609
  %3866 = vst [vmem:[%s3 + $0x284] sm:$0xf] %v3610
  %3867 = vst [vmem:[%s3 + $0x288] sm:$0xf] %v3611
  %3868 = vst [vmem:[%s3 + $0x28c] sm:$0xf] %v3612
  %3869 = vst [vmem:[%s3 + $0x290] sm:$0xf] %v3613
  %3870 = vst [vmem:[%s3 + $0x294] sm:$0xf] %v3614
  %3871 = vst [vmem:[%s3 + $0x298] sm:$0xf] %v3615
  %3872 = vst [vmem:[%s3 + $0x29c] sm:$0xf] %v3616
  %3873 = vst [vmem:[%s3 + $0x2a0] sm:$0xf] %v3617
  %3874 = vst [vmem:[%s3 + $0x2a4] sm:$0xf] %v3618
  %3875 = vst [vmem:[%s3 + $0x2a8] sm:$0xf] %v3619
  %3876 = vst [vmem:[%s3 + $0x2ac] sm:$0xf] %v3620
  %3877 = vst [vmem:[%s3 + $0x2b0] sm:$0xf] %v3621
  %3878 = vst [vmem:[%s3 + $0x2b4] sm:$0xf] %v3622
  %3879 = vst [vmem:[%s3 + $0x2b8] sm:$0xf] %v3623
  %3880 = vst [vmem:[%s3 + $0x2bc] sm:$0xf] %v3624
  %3881 = vst [vmem:[%s3 + $0x2c0] sm:$0xf] %v3625
  %3882 = vst [vmem:[%s3 + $0x2c4] sm:$0xf] %v3626
  %3883 = vst [vmem:[%s3 + $0x2c8] sm:$0xf] %v3627
  %3884 = vst [vmem:[%s3 + $0x2cc] sm:$0xf] %v3628
  %3885 = vst [vmem:[%s3 + $0x2d0] sm:$0xf] %v3629
  %3886 = vst [vmem:[%s3 + $0x2d4] sm:$0xf] %v3630
  %3887 = vst [vmem:[%s3 + $0x2d8] sm:$0xf] %v3631
  %3888 = vst [vmem:[%s3 + $0x2dc] sm:$0xf] %v3632
  %3889 = vst [vmem:[%s3 + $0x2e0] sm:$0xf] %v3633
  %3890 = vst [vmem:[%s3 + $0x2e4] sm:$0xf] %v3634
  %3891 = vst [vmem:[%s3 + $0x2e8] sm:$0xf] %v3635
  %3892 = vst [vmem:[%s3 + $0x2ec] sm:$0xf] %v3636
  %3893 = vst [vmem:[%s3 + $0x2f0] sm:$0xf] %v3637
  %3894 = vst [vmem:[%s3 + $0x2f4] sm:$0xf] %v3638
  %3895 = vst [vmem:[%s3 + $0x2f8] sm:$0xf] %v3639
  %3896 = vst [vmem:[%s3 + $0x2fc] sm:$0xf] %v3640
  %3897 = vst [vmem:[%s3 + $0x300] sm:$0xf] %v3641
  %3898 = vst [vmem:[%s3 + $0x304] sm:$0xf] %v3642
  %3899 = vst [vmem:[%s3 + $0x308] sm:$0xf] %v3643
  %3900 = vst [vmem:[%s3 + $0x30c] sm:$0xf] %v3644
  %3901 = vst [vmem:[%s3 + $0x310] sm:$0xf] %v3645
  %3902 = vst [vmem:[%s3 + $0x314] sm:$0xf] %v3646
  %3903 = vst [vmem:[%s3 + $0x318] sm:$0xf] %v3647
  %3904 = vst [vmem:[%s3 + $0x31c] sm:$0xf] %v3648
  %3905 = vst [vmem:[%s3 + $0x320] sm:$0xf] %v3649
  %3906 = vst [vmem:[%s3 + $0x324] sm:$0xf] %v3650
  %3907 = vst [vmem:[%s3 + $0x328] sm:$0xf] %v3651
  %3908 = vst [vmem:[%s3 + $0x32c] sm:$0xf] %v3652
  %3909 = vst [vmem:[%s3 + $0x330] sm:$0xf] %v3653
  %3910 = vst [vmem:[%s3 + $0x334] sm:$0xf] %v3654
  %3911 = vst [vmem:[%s3 + $0x338] sm:$0xf] %v3655
  %3912 = vst [vmem:[%s3 + $0x33c] sm:$0xf] %v3656
  %3913 = vst [vmem:[%s3 + $0x340] sm:$0xf] %v3657
  %3914 = vst [vmem:[%s3 + $0x344] sm:$0xf] %v3658
  %3915 = vst [vmem:[%s3 + $0x348] sm:$0xf] %v3659
  %3916 = vst [vmem:[%s3 + $0x34c] sm:$0xf] %v3660
  %3917 = vst [vmem:[%s3 + $0x350] sm:$0xf] %v3661
  %3918 = vst [vmem:[%s3 + $0x354] sm:$0xf] %v3662
  %3919 = vst [vmem:[%s3 + $0x358] sm:$0xf] %v3663
  %3920 = vst [vmem:[%s3 + $0x35c] sm:$0xf] %v3664
  %3921 = vst [vmem:[%s3 + $0x360] sm:$0xf] %v3665
  %3922 = vst [vmem:[%s3 + $0x364] sm:$0xf] %v3666
  %3923 = vst [vmem:[%s3 + $0x368] sm:$0xf] %v3667
  %3924 = vst [vmem:[%s3 + $0x36c] sm:$0xf] %v3668
  %3925 = vst [vmem:[%s3 + $0x370] sm:$0xf] %v3669
  %3926 = vst [vmem:[%s3 + $0x374] sm:$0xf] %v3670
  %3927 = vst [vmem:[%s3 + $0x378] sm:$0xf] %v3671
  %3928 = vst [vmem:[%s3 + $0x37c] sm:$0xf] %v3672
  %3929 = vst [vmem:[%s3 + $0x380] sm:$0xf] %v3673
  %3930 = vst [vmem:[%s3 + $0x384] sm:$0xf] %v3674
  %3931 = vst [vmem:[%s3 + $0x388] sm:$0xf] %v3675
  %3932 = vst [vmem:[%s3 + $0x38c] sm:$0xf] %v3676
  %3933 = vst [vmem:[%s3 + $0x390] sm:$0xf] %v3677
  %3934 = vst [vmem:[%s3 + $0x394] sm:$0xf] %v3678
  %3935 = vst [vmem:[%s3 + $0x398] sm:$0xf] %v3679
  %3936 = vst [vmem:[%s3 + $0x39c] sm:$0xf] %v3680
  %3937 = vst [vmem:[%s3 + $0x3a0] sm:$0xf] %v3681
  %3938 = vst [vmem:[%s3 + $0x3a4] sm:$0xf] %v3682
  %3939 = vst [vmem:[%s3 + $0x3a8] sm:$0xf] %v3683
  %3940 = vst [vmem:[%s3 + $0x3ac] sm:$0xf] %v3684
  %3941 = vst [vmem:[%s3 + $0x3b0] sm:$0xf] %v3685
  %3942 = vst [vmem:[%s3 + $0x3b4] sm:$0xf] %v3686
  %3943 = vst [vmem:[%s3 + $0x3b8] sm:$0xf] %v3687
  %3944 = vst [vmem:[%s3 + $0x3bc] sm:$0xf] %v3688
  %3945 = vst [vmem:[%s3 + $0x3c0] sm:$0xf] %v3689
  %3946 = vst [vmem:[%s3 + $0x3c4] sm:$0xf] %v3690
  %3947 = vst [vmem:[%s3 + $0x3c8] sm:$0xf] %v3691
  %3948 = vst [vmem:[%s3 + $0x3cc] sm:$0xf] %v3692
  %3949 = vst [vmem:[%s3 + $0x3d0] sm:$0xf] %v3693
  %3950 = vst [vmem:[%s3 + $0x3d4] sm:$0xf] %v3694
  %3951 = vst [vmem:[%s3 + $0x3d8] sm:$0xf] %v3695
  %3952 = vst [vmem:[%s3 + $0x3dc] sm:$0xf] %v3696
  %3953 = vst [vmem:[%s3 + $0x3e0] sm:$0xf] %v3697
  %3954 = vst [vmem:[%s3 + $0x3e4] sm:$0xf] %v3698
  %3955 = vst [vmem:[%s3 + $0x3e8] sm:$0xf] %v3699
  %3956 = vst [vmem:[%s3 + $0x3ec] sm:$0xf] %v3700
  %3957 = vst [vmem:[%s3 + $0x3f0] sm:$0xf] %v3701
  %3958 = vst [vmem:[%s3 + $0x3f4] sm:$0xf] %v3702
  %3959 = vst [vmem:[%s3 + $0x3f8] sm:$0xf] %v3703
  %3960 = vst [vmem:[%s3 + $0x3fc] sm:$0xf] %v3704
  // Predicated region
  $region14: #{forward.6} parent=0 // pred_check
    _
  $region15: #{forward.6} parent=0 // pred_check_branch
    %3962 = sbr.rel (0) target = $region17
  $region16: #{forward.6} parent=0 // pred_region
    _
  $region17: #{forward.6} parent=0 // pred_fallthru
    _
  // Predicated region
  $region18: #{forward.6} parent=0 // pred_check
    _
  $region19: #{forward.6} parent=0 // pred_check_branch
    %3964 = sbr.rel (0) target = $region21
  $region20: #{forward.6} parent=0 // pred_region
    _
  $region21: #{forward.6} parent=0 // pred_fallthru
    _

// kernel: forward.7
$region0: #{forward.7}
  #allocation0 [shape = 'u32[]', space=smem, size = 0x4, offset = 0x4, fixed_abs, tag = 'smem constant byte address 0x4 - core index']
  #allocation1 [shape = 'u32[72,128]{1,0:T(1,128)}', space=vmem, size = 0x9000, scoped, tag = 'internal scratch']
  %s0 = inlined_call_operand.vmem [shape: bf16[9,512,128], index: 0, kind: input, shape index: {}]
  %s1 = inlined_call_operand.vmem [shape: bf16[128,128], index: 1, kind: input, shape index: {}]
  %s2 = inlined_call_operand.vmem [shape: f32[1,128], index: 2, kind: input, shape index: {}]
  %s3 = inlined_call_operand.vmem [shape: bf16[512,128], index: 3, kind: output, shape index: {0}]
  %s4 = inlined_call_operand.vmem [shape: bf16[512,128], index: 4, kind: output, shape index: {1}]
  %5 = xla_tuple %s3, %s4
  %s6 = sld [smem:[#allocation0]]
  $region30: #{forward.7} parent=0
    _
  %s8 = ssub.s32 1, %s6
  %s9 = scalar_select 0, %s8, %s6
  // Predicated region
  $region2: #{forward.7} parent=0 // pred_check
    _
  $region3: #{forward.7} parent=0 // pred_check_branch
    %11 = sbr.rel (0) target = $region5
  $region4: #{forward.7} parent=0 // pred_region
    _
  $region5: #{forward.7} parent=0 // pred_fallthru
    _
  // Predicated region
  $region6: #{forward.7} parent=0 // pred_check
    _
  $region7: #{forward.7} parent=0 // pred_check_branch
    %13 = sbr.rel (0) target = $region9
  $region8: #{forward.7} parent=0 // pred_region
    _
  $region9: #{forward.7} parent=0 // pred_fallthru
    _
  // Predicated region
  $region10: #{forward.7} parent=0 // pred_check
    _
  $region11: #{forward.7} parent=0 // pred_check_branch
    %15 = sbr.rel (0) target = $region13
  $region12: #{forward.7} parent=0 // pred_region
    _
  $region13: #{forward.7} parent=0 // pred_fallthru
    _
  %v16 = vld [vmem:[%s0] sm:$0xf]
  %v17 = vld [vmem:[%s0 + $0x4] sm:$0xf]
  %v18 = vld [vmem:[%s0 + $0x8] sm:$0xf]
  %v19 = vld [vmem:[%s0 + $0xc] sm:$0xf]
  %v20 = vld [vmem:[%s0 + $0x10] sm:$0xf]
  %v21 = vld [vmem:[%s0 + $0x14] sm:$0xf]
  %v22 = vld [vmem:[%s0 + $0x18] sm:$0xf]
  %v23 = vld [vmem:[%s0 + $0x1c] sm:$0xf]
  %v24 = vld [vmem:[%s0 + $0x20] sm:$0xf]
  %v25 = vld [vmem:[%s0 + $0x24] sm:$0xf]
  %v26 = vld [vmem:[%s0 + $0x28] sm:$0xf]
  %v27 = vld [vmem:[%s0 + $0x2c] sm:$0xf]
  %v28 = vld [vmem:[%s0 + $0x30] sm:$0xf]
  %v29 = vld [vmem:[%s0 + $0x34] sm:$0xf]
  %v30 = vld [vmem:[%s0 + $0x38] sm:$0xf]
  %v31 = vld [vmem:[%s0 + $0x3c] sm:$0xf]
  %v32 = vld [vmem:[%s0 + $0x40] sm:$0xf]
  %v33 = vld [vmem:[%s0 + $0x44] sm:$0xf]
  %v34 = vld [vmem:[%s0 + $0x48] sm:$0xf]
  %v35 = vld [vmem:[%s0 + $0x4c] sm:$0xf]
  %v36 = vld [vmem:[%s0 + $0x50] sm:$0xf]
  %v37 = vld [vmem:[%s0 + $0x54] sm:$0xf]
  %v38 = vld [vmem:[%s0 + $0x58] sm:$0xf]
  %v39 = vld [vmem:[%s0 + $0x5c] sm:$0xf]
  %v40 = vld [vmem:[%s0 + $0x60] sm:$0xf]
  %v41 = vld [vmem:[%s0 + $0x64] sm:$0xf]
  %v42 = vld [vmem:[%s0 + $0x68] sm:$0xf]
  %v43 = vld [vmem:[%s0 + $0x6c] sm:$0xf]
  %v44 = vld [vmem:[%s0 + $0x70] sm:$0xf]
  %v45 = vld [vmem:[%s0 + $0x74] sm:$0xf]
  %v46 = vld [vmem:[%s0 + $0x78] sm:$0xf]
  %v47 = vld [vmem:[%s0 + $0x7c] sm:$0xf]
  %v48 = vld [vmem:[%s0 + $0x80] sm:$0xf]
  %v49 = vld [vmem:[%s0 + $0x84] sm:$0xf]
  %v50 = vld [vmem:[%s0 + $0x88] sm:$0xf]
  %v51 = vld [vmem:[%s0 + $0x8c] sm:$0xf]
  %v52 = vld [vmem:[%s0 + $0x90] sm:$0xf]
  %v53 = vld [vmem:[%s0 + $0x94] sm:$0xf]
  %v54 = vld [vmem:[%s0 + $0x98] sm:$0xf]
  %v55 = vld [vmem:[%s0 + $0x9c] sm:$0xf]
  %v56 = vld [vmem:[%s0 + $0xa0] sm:$0xf]
  %v57 = vld [vmem:[%s0 + $0xa4] sm:$0xf]
  %v58 = vld [vmem:[%s0 + $0xa8] sm:$0xf]
  %v59 = vld [vmem:[%s0 + $0xac] sm:$0xf]
  %v60 = vld [vmem:[%s0 + $0xb0] sm:$0xf]
  %v61 = vld [vmem:[%s0 + $0xb4] sm:$0xf]
  %v62 = vld [vmem:[%s0 + $0xb8] sm:$0xf]
  %v63 = vld [vmem:[%s0 + $0xbc] sm:$0xf]
  %v64 = vld [vmem:[%s0 + $0xc0] sm:$0xf]
  %v65 = vld [vmem:[%s0 + $0xc4] sm:$0xf]
  %v66 = vld [vmem:[%s0 + $0xc8] sm:$0xf]
  %v67 = vld [vmem:[%s0 + $0xcc] sm:$0xf]
  %v68 = vld [vmem:[%s0 + $0xd0] sm:$0xf]
  %v69 = vld [vmem:[%s0 + $0xd4] sm:$0xf]
  %v70 = vld [vmem:[%s0 + $0xd8] sm:$0xf]
  %v71 = vld [vmem:[%s0 + $0xdc] sm:$0xf]
  %v72 = vld [vmem:[%s0 + $0xe0] sm:$0xf]
  %v73 = vld [vmem:[%s0 + $0xe4] sm:$0xf]
  %v74 = vld [vmem:[%s0 + $0xe8] sm:$0xf]
  %v75 = vld [vmem:[%s0 + $0xec] sm:$0xf]
  %v76 = vld [vmem:[%s0 + $0xf0] sm:$0xf]
  %v77 = vld [vmem:[%s0 + $0xf4] sm:$0xf]
  %v78 = vld [vmem:[%s0 + $0xf8] sm:$0xf]
  %v79 = vld [vmem:[%s0 + $0xfc] sm:$0xf]
  %v80 = vld [vmem:[%s0 + $0x100] sm:$0xf]
  %v81 = vld [vmem:[%s0 + $0x104] sm:$0xf]
  %v82 = vld [vmem:[%s0 + $0x108] sm:$0xf]
  %v83 = vld [vmem:[%s0 + $0x10c] sm:$0xf]
  %v84 = vld [vmem:[%s0 + $0x110] sm:$0xf]
  %v85 = vld [vmem:[%s0 + $0x114] sm:$0xf]
  %v86 = vld [vmem:[%s0 + $0x118] sm:$0xf]
  %v87 = vld [vmem:[%s0 + $0x11c] sm:$0xf]
  %v88 = vld [vmem:[%s0 + $0x120] sm:$0xf]
  %v89 = vld [vmem:[%s0 + $0x124] sm:$0xf]
  %v90 = vld [vmem:[%s0 + $0x128] sm:$0xf]
  %v91 = vld [vmem:[%s0 + $0x12c] sm:$0xf]
  %v92 = vld [vmem:[%s0 + $0x130] sm:$0xf]
  %v93 = vld [vmem:[%s0 + $0x134] sm:$0xf]
  %v94 = vld [vmem:[%s0 + $0x138] sm:$0xf]
  %v95 = vld [vmem:[%s0 + $0x13c] sm:$0xf]
  %v96 = vld [vmem:[%s0 + $0x140] sm:$0xf]
  %v97 = vld [vmem:[%s0 + $0x144] sm:$0xf]
  %v98 = vld [vmem:[%s0 + $0x148] sm:$0xf]
  %v99 = vld [vmem:[%s0 + $0x14c] sm:$0xf]
  %v100 = vld [vmem:[%s0 + $0x150] sm:$0xf]
  %v101 = vld [vmem:[%s0 + $0x154] sm:$0xf]
  %v102 = vld [vmem:[%s0 + $0x158] sm:$0xf]
  %v103 = vld [vmem:[%s0 + $0x15c] sm:$0xf]
  %v104 = vld [vmem:[%s0 + $0x160] sm:$0xf]
  %v105 = vld [vmem:[%s0 + $0x164] sm:$0xf]
  %v106 = vld [vmem:[%s0 + $0x168] sm:$0xf]
  %v107 = vld [vmem:[%s0 + $0x16c] sm:$0xf]
  %v108 = vld [vmem:[%s0 + $0x170] sm:$0xf]
  %v109 = vld [vmem:[%s0 + $0x174] sm:$0xf]
  %v110 = vld [vmem:[%s0 + $0x178] sm:$0xf]
  %v111 = vld [vmem:[%s0 + $0x17c] sm:$0xf]
  %v112 = vld [vmem:[%s0 + $0x180] sm:$0xf]
  %v113 = vld [vmem:[%s0 + $0x184] sm:$0xf]
  %v114 = vld [vmem:[%s0 + $0x188] sm:$0xf]
  %v115 = vld [vmem:[%s0 + $0x18c] sm:$0xf]
  %v116 = vld [vmem:[%s0 + $0x190] sm:$0xf]
  %v117 = vld [vmem:[%s0 + $0x194] sm:$0xf]
  %v118 = vld [vmem:[%s0 + $0x198] sm:$0xf]
  %v119 = vld [vmem:[%s0 + $0x19c] sm:$0xf]
  %v120 = vld [vmem:[%s0 + $0x1a0] sm:$0xf]
  %v121 = vld [vmem:[%s0 + $0x1a4] sm:$0xf]
  %v122 = vld [vmem:[%s0 + $0x1a8] sm:$0xf]
  %v123 = vld [vmem:[%s0 + $0x1ac] sm:$0xf]
  %v124 = vld [vmem:[%s0 + $0x1b0] sm:$0xf]
  %v125 = vld [vmem:[%s0 + $0x1b4] sm:$0xf]
  %v126 = vld [vmem:[%s0 + $0x1b8] sm:$0xf]
  %v127 = vld [vmem:[%s0 + $0x1bc] sm:$0xf]
  %v128 = vld [vmem:[%s0 + $0x1c0] sm:$0xf]
  %v129 = vld [vmem:[%s0 + $0x1c4] sm:$0xf]
  %v130 = vld [vmem:[%s0 + $0x1c8] sm:$0xf]
  %v131 = vld [vmem:[%s0 + $0x1cc] sm:$0xf]
  %v132 = vld [vmem:[%s0 + $0x1d0] sm:$0xf]
  %v133 = vld [vmem:[%s0 + $0x1d4] sm:$0xf]
  %v134 = vld [vmem:[%s0 + $0x1d8] sm:$0xf]
  %v135 = vld [vmem:[%s0 + $0x1dc] sm:$0xf]
  %v136 = vld [vmem:[%s0 + $0x1e0] sm:$0xf]
  %v137 = vld [vmem:[%s0 + $0x1e4] sm:$0xf]
  %v138 = vld [vmem:[%s0 + $0x1e8] sm:$0xf]
  %v139 = vld [vmem:[%s0 + $0x1ec] sm:$0xf]
  %v140 = vld [vmem:[%s0 + $0x1f0] sm:$0xf]
  %v141 = vld [vmem:[%s0 + $0x1f4] sm:$0xf]
  %v142 = vld [vmem:[%s0 + $0x1f8] sm:$0xf]
  %v143 = vld [vmem:[%s0 + $0x1fc] sm:$0xf]
  %v144 = vld [vmem:[%s0 + $0x200] sm:$0xf]
  %v145 = vld [vmem:[%s0 + $0x204] sm:$0xf]
  %v146 = vld [vmem:[%s0 + $0x208] sm:$0xf]
  %v147 = vld [vmem:[%s0 + $0x20c] sm:$0xf]
  %v148 = vld [vmem:[%s0 + $0x210] sm:$0xf]
  %v149 = vld [vmem:[%s0 + $0x214] sm:$0xf]
  %v150 = vld [vmem:[%s0 + $0x218] sm:$0xf]
  %v151 = vld [vmem:[%s0 + $0x21c] sm:$0xf]
  %v152 = vld [vmem:[%s0 + $0x220] sm:$0xf]
  %v153 = vld [vmem:[%s0 + $0x224] sm:$0xf]
  %v154 = vld [vmem:[%s0 + $0x228] sm:$0xf]
  %v155 = vld [vmem:[%s0 + $0x22c] sm:$0xf]
  %v156 = vld [vmem:[%s0 + $0x230] sm:$0xf]
  %v157 = vld [vmem:[%s0 + $0x234] sm:$0xf]
  %v158 = vld [vmem:[%s0 + $0x238] sm:$0xf]
  %v159 = vld [vmem:[%s0 + $0x23c] sm:$0xf]
  %v160 = vld [vmem:[%s0 + $0x240] sm:$0xf]
  %v161 = vld [vmem:[%s0 + $0x244] sm:$0xf]
  %v162 = vld [vmem:[%s0 + $0x248] sm:$0xf]
  %v163 = vld [vmem:[%s0 + $0x24c] sm:$0xf]
  %v164 = vld [vmem:[%s0 + $0x250] sm:$0xf]
  %v165 = vld [vmem:[%s0 + $0x254] sm:$0xf]
  %v166 = vld [vmem:[%s0 + $0x258] sm:$0xf]
  %v167 = vld [vmem:[%s0 + $0x25c] sm:$0xf]
  %v168 = vld [vmem:[%s0 + $0x260] sm:$0xf]
  %v169 = vld [vmem:[%s0 + $0x264] sm:$0xf]
  %v170 = vld [vmem:[%s0 + $0x268] sm:$0xf]
  %v171 = vld [vmem:[%s0 + $0x26c] sm:$0xf]
  %v172 = vld [vmem:[%s0 + $0x270] sm:$0xf]
  %v173 = vld [vmem:[%s0 + $0x274] sm:$0xf]
  %v174 = vld [vmem:[%s0 + $0x278] sm:$0xf]
  %v175 = vld [vmem:[%s0 + $0x27c] sm:$0xf]
  %v176 = vld [vmem:[%s0 + $0x280] sm:$0xf]
  %v177 = vld [vmem:[%s0 + $0x284] sm:$0xf]
  %v178 = vld [vmem:[%s0 + $0x288] sm:$0xf]
  %v179 = vld [vmem:[%s0 + $0x28c] sm:$0xf]
  %v180 = vld [vmem:[%s0 + $0x290] sm:$0xf]
  %v181 = vld [vmem:[%s0 + $0x294] sm:$0xf]
  %v182 = vld [vmem:[%s0 + $0x298] sm:$0xf]
  %v183 = vld [vmem:[%s0 + $0x29c] sm:$0xf]
  %v184 = vld [vmem:[%s0 + $0x2a0] sm:$0xf]
  %v185 = vld [vmem:[%s0 + $0x2a4] sm:$0xf]
  %v186 = vld [vmem:[%s0 + $0x2a8] sm:$0xf]
  %v187 = vld [vmem:[%s0 + $0x2ac] sm:$0xf]
  %v188 = vld [vmem:[%s0 + $0x2b0] sm:$0xf]
  %v189 = vld [vmem:[%s0 + $0x2b4] sm:$0xf]
  %v190 = vld [vmem:[%s0 + $0x2b8] sm:$0xf]
  %v191 = vld [vmem:[%s0 + $0x2bc] sm:$0xf]
  %v192 = vld [vmem:[%s0 + $0x2c0] sm:$0xf]
  %v193 = vld [vmem:[%s0 + $0x2c4] sm:$0xf]
  %v194 = vld [vmem:[%s0 + $0x2c8] sm:$0xf]
  %v195 = vld [vmem:[%s0 + $0x2cc] sm:$0xf]
  %v196 = vld [vmem:[%s0 + $0x2d0] sm:$0xf]
  %v197 = vld [vmem:[%s0 + $0x2d4] sm:$0xf]
  %v198 = vld [vmem:[%s0 + $0x2d8] sm:$0xf]
  %v199 = vld [vmem:[%s0 + $0x2dc] sm:$0xf]
  %v200 = vld [vmem:[%s0 + $0x2e0] sm:$0xf]
  %v201 = vld [vmem:[%s0 + $0x2e4] sm:$0xf]
  %v202 = vld [vmem:[%s0 + $0x2e8] sm:$0xf]
  %v203 = vld [vmem:[%s0 + $0x2ec] sm:$0xf]
  %v204 = vld [vmem:[%s0 + $0x2f0] sm:$0xf]
  %v205 = vld [vmem:[%s0 + $0x2f4] sm:$0xf]
  %v206 = vld [vmem:[%s0 + $0x2f8] sm:$0xf]
  %v207 = vld [vmem:[%s0 + $0x2fc] sm:$0xf]
  %v208 = vld [vmem:[%s0 + $0x300] sm:$0xf]
  %v209 = vld [vmem:[%s0 + $0x304] sm:$0xf]
  %v210 = vld [vmem:[%s0 + $0x308] sm:$0xf]
  %v211 = vld [vmem:[%s0 + $0x30c] sm:$0xf]
  %v212 = vld [vmem:[%s0 + $0x310] sm:$0xf]
  %v213 = vld [vmem:[%s0 + $0x314] sm:$0xf]
  %v214 = vld [vmem:[%s0 + $0x318] sm:$0xf]
  %v215 = vld [vmem:[%s0 + $0x31c] sm:$0xf]
  %v216 = vld [vmem:[%s0 + $0x320] sm:$0xf]
  %v217 = vld [vmem:[%s0 + $0x324] sm:$0xf]
  %v218 = vld [vmem:[%s0 + $0x328] sm:$0xf]
  %v219 = vld [vmem:[%s0 + $0x32c] sm:$0xf]
  %v220 = vld [vmem:[%s0 + $0x330] sm:$0xf]
  %v221 = vld [vmem:[%s0 + $0x334] sm:$0xf]
  %v222 = vld [vmem:[%s0 + $0x338] sm:$0xf]
  %v223 = vld [vmem:[%s0 + $0x33c] sm:$0xf]
  %v224 = vld [vmem:[%s0 + $0x340] sm:$0xf]
  %v225 = vld [vmem:[%s0 + $0x344] sm:$0xf]
  %v226 = vld [vmem:[%s0 + $0x348] sm:$0xf]
  %v227 = vld [vmem:[%s0 + $0x34c] sm:$0xf]
  %v228 = vld [vmem:[%s0 + $0x350] sm:$0xf]
  %v229 = vld [vmem:[%s0 + $0x354] sm:$0xf]
  %v230 = vld [vmem:[%s0 + $0x358] sm:$0xf]
  %v231 = vld [vmem:[%s0 + $0x35c] sm:$0xf]
  %v232 = vld [vmem:[%s0 + $0x360] sm:$0xf]
  %v233 = vld [vmem:[%s0 + $0x364] sm:$0xf]
  %v234 = vld [vmem:[%s0 + $0x368] sm:$0xf]
  %v235 = vld [vmem:[%s0 + $0x36c] sm:$0xf]
  %v236 = vld [vmem:[%s0 + $0x370] sm:$0xf]
  %v237 = vld [vmem:[%s0 + $0x374] sm:$0xf]
  %v238 = vld [vmem:[%s0 + $0x378] sm:$0xf]
  %v239 = vld [vmem:[%s0 + $0x37c] sm:$0xf]
  %v240 = vld [vmem:[%s0 + $0x380] sm:$0xf]
  %v241 = vld [vmem:[%s0 + $0x384] sm:$0xf]
  %v242 = vld [vmem:[%s0 + $0x388] sm:$0xf]
  %v243 = vld [vmem:[%s0 + $0x38c] sm:$0xf]
  %v244 = vld [vmem:[%s0 + $0x390] sm:$0xf]
  %v245 = vld [vmem:[%s0 + $0x394] sm:$0xf]
  %v246 = vld [vmem:[%s0 + $0x398] sm:$0xf]
  %v247 = vld [vmem:[%s0 + $0x39c] sm:$0xf]
  %v248 = vld [vmem:[%s0 + $0x3a0] sm:$0xf]
  %v249 = vld [vmem:[%s0 + $0x3a4] sm:$0xf]
  %v250 = vld [vmem:[%s0 + $0x3a8] sm:$0xf]
  %v251 = vld [vmem:[%s0 + $0x3ac] sm:$0xf]
  %v252 = vld [vmem:[%s0 + $0x3b0] sm:$0xf]
  %v253 = vld [vmem:[%s0 + $0x3b4] sm:$0xf]
  %v254 = vld [vmem:[%s0 + $0x3b8] sm:$0xf]
  %v255 = vld [vmem:[%s0 + $0x3bc] sm:$0xf]
  %v256 = vld [vmem:[%s0 + $0x3c0] sm:$0xf]
  %v257 = vld [vmem:[%s0 + $0x3c4] sm:$0xf]
  %v258 = vld [vmem:[%s0 + $0x3c8] sm:$0xf]
  %v259 = vld [vmem:[%s0 + $0x3cc] sm:$0xf]
  %v260 = vld [vmem:[%s0 + $0x3d0] sm:$0xf]
  %v261 = vld [vmem:[%s0 + $0x3d4] sm:$0xf]
  %v262 = vld [vmem:[%s0 + $0x3d8] sm:$0xf]
  %v263 = vld [vmem:[%s0 + $0x3dc] sm:$0xf]
  %v264 = vld [vmem:[%s0 + $0x3e0] sm:$0xf]
  %v265 = vld [vmem:[%s0 + $0x3e4] sm:$0xf]
  %v266 = vld [vmem:[%s0 + $0x3e8] sm:$0xf]
  %v267 = vld [vmem:[%s0 + $0x3ec] sm:$0xf]
  %v268 = vld [vmem:[%s0 + $0x3f0] sm:$0xf]
  %v269 = vld [vmem:[%s0 + $0x3f4] sm:$0xf]
  %v270 = vld [vmem:[%s0 + $0x3f8] sm:$0xf]
  %v271 = vld [vmem:[%s0 + $0x3fc] sm:$0xf]
  %v272 = vld [vmem:[%s0 + $0x400] sm:$0xf]
  %v273 = vld [vmem:[%s0 + $0x404] sm:$0xf]
  %v274 = vld [vmem:[%s0 + $0x408] sm:$0xf]
  %v275 = vld [vmem:[%s0 + $0x40c] sm:$0xf]
  %v276 = vld [vmem:[%s0 + $0x410] sm:$0xf]
  %v277 = vld [vmem:[%s0 + $0x414] sm:$0xf]
  %v278 = vld [vmem:[%s0 + $0x418] sm:$0xf]
  %v279 = vld [vmem:[%s0 + $0x41c] sm:$0xf]
  %v280 = vld [vmem:[%s0 + $0x420] sm:$0xf]
  %v281 = vld [vmem:[%s0 + $0x424] sm:$0xf]
  %v282 = vld [vmem:[%s0 + $0x428] sm:$0xf]
  %v283 = vld [vmem:[%s0 + $0x42c] sm:$0xf]
  %v284 = vld [vmem:[%s0 + $0x430] sm:$0xf]
  %v285 = vld [vmem:[%s0 + $0x434] sm:$0xf]
  %v286 = vld [vmem:[%s0 + $0x438] sm:$0xf]
  %v287 = vld [vmem:[%s0 + $0x43c] sm:$0xf]
  %v288 = vld [vmem:[%s0 + $0x440] sm:$0xf]
  %v289 = vld [vmem:[%s0 + $0x444] sm:$0xf]
  %v290 = vld [vmem:[%s0 + $0x448] sm:$0xf]
  %v291 = vld [vmem:[%s0 + $0x44c] sm:$0xf]
  %v292 = vld [vmem:[%s0 + $0x450] sm:$0xf]
  %v293 = vld [vmem:[%s0 + $0x454] sm:$0xf]
  %v294 = vld [vmem:[%s0 + $0x458] sm:$0xf]
  %v295 = vld [vmem:[%s0 + $0x45c] sm:$0xf]
  %v296 = vld [vmem:[%s0 + $0x460] sm:$0xf]
  %v297 = vld [vmem:[%s0 + $0x464] sm:$0xf]
  %v298 = vld [vmem:[%s0 + $0x468] sm:$0xf]
  %v299 = vld [vmem:[%s0 + $0x46c] sm:$0xf]
  %v300 = vld [vmem:[%s0 + $0x470] sm:$0xf]
  %v301 = vld [vmem:[%s0 + $0x474] sm:$0xf]
  %v302 = vld [vmem:[%s0 + $0x478] sm:$0xf]
  %v303 = vld [vmem:[%s0 + $0x47c] sm:$0xf]
  %v304 = vld [vmem:[%s0 + $0x480] sm:$0xf]
  %v305 = vld [vmem:[%s0 + $0x484] sm:$0xf]
  %v306 = vld [vmem:[%s0 + $0x488] sm:$0xf]
  %v307 = vld [vmem:[%s0 + $0x48c] sm:$0xf]
  %v308 = vld [vmem:[%s0 + $0x490] sm:$0xf]
  %v309 = vld [vmem:[%s0 + $0x494] sm:$0xf]
  %v310 = vld [vmem:[%s0 + $0x498] sm:$0xf]
  %v311 = vld [vmem:[%s0 + $0x49c] sm:$0xf]
  %v312 = vld [vmem:[%s0 + $0x4a0] sm:$0xf]
  %v313 = vld [vmem:[%s0 + $0x4a4] sm:$0xf]
  %v314 = vld [vmem:[%s0 + $0x4a8] sm:$0xf]
  %v315 = vld [vmem:[%s0 + $0x4ac] sm:$0xf]
  %v316 = vld [vmem:[%s0 + $0x4b0] sm:$0xf]
  %v317 = vld [vmem:[%s0 + $0x4b4] sm:$0xf]
  %v318 = vld [vmem:[%s0 + $0x4b8] sm:$0xf]
  %v319 = vld [vmem:[%s0 + $0x4bc] sm:$0xf]
  %v320 = vld [vmem:[%s0 + $0x4c0] sm:$0xf]
  %v321 = vld [vmem:[%s0 + $0x4c4] sm:$0xf]
  %v322 = vld [vmem:[%s0 + $0x4c8] sm:$0xf]
  %v323 = vld [vmem:[%s0 + $0x4cc] sm:$0xf]
  %v324 = vld [vmem:[%s0 + $0x4d0] sm:$0xf]
  %v325 = vld [vmem:[%s0 + $0x4d4] sm:$0xf]
  %v326 = vld [vmem:[%s0 + $0x4d8] sm:$0xf]
  %v327 = vld [vmem:[%s0 + $0x4dc] sm:$0xf]
  %v328 = vld [vmem:[%s0 + $0x4e0] sm:$0xf]
  %v329 = vld [vmem:[%s0 + $0x4e4] sm:$0xf]
  %v330 = vld [vmem:[%s0 + $0x4e8] sm:$0xf]
  %v331 = vld [vmem:[%s0 + $0x4ec] sm:$0xf]
  %v332 = vld [vmem:[%s0 + $0x4f0] sm:$0xf]
  %v333 = vld [vmem:[%s0 + $0x4f4] sm:$0xf]
  %v334 = vld [vmem:[%s0 + $0x4f8] sm:$0xf]
  %v335 = vld [vmem:[%s0 + $0x4fc] sm:$0xf]
  %v336 = vld [vmem:[%s0 + $0x500] sm:$0xf]
  %v337 = vld [vmem:[%s0 + $0x504] sm:$0xf]
  %v338 = vld [vmem:[%s0 + $0x508] sm:$0xf]
  %v339 = vld [vmem:[%s0 + $0x50c] sm:$0xf]
  %v340 = vld [vmem:[%s0 + $0x510] sm:$0xf]
  %v341 = vld [vmem:[%s0 + $0x514] sm:$0xf]
  %v342 = vld [vmem:[%s0 + $0x518] sm:$0xf]
  %v343 = vld [vmem:[%s0 + $0x51c] sm:$0xf]
  %v344 = vld [vmem:[%s0 + $0x520] sm:$0xf]
  %v345 = vld [vmem:[%s0 + $0x524] sm:$0xf]
  %v346 = vld [vmem:[%s0 + $0x528] sm:$0xf]
  %v347 = vld [vmem:[%s0 + $0x52c] sm:$0xf]
  %v348 = vld [vmem:[%s0 + $0x530] sm:$0xf]
  %v349 = vld [vmem:[%s0 + $0x534] sm:$0xf]
  %v350 = vld [vmem:[%s0 + $0x538] sm:$0xf]
  %v351 = vld [vmem:[%s0 + $0x53c] sm:$0xf]
  %v352 = vld [vmem:[%s0 + $0x540] sm:$0xf]
  %v353 = vld [vmem:[%s0 + $0x544] sm:$0xf]
  %v354 = vld [vmem:[%s0 + $0x548] sm:$0xf]
  %v355 = vld [vmem:[%s0 + $0x54c] sm:$0xf]
  %v356 = vld [vmem:[%s0 + $0x550] sm:$0xf]
  %v357 = vld [vmem:[%s0 + $0x554] sm:$0xf]
  %v358 = vld [vmem:[%s0 + $0x558] sm:$0xf]
  %v359 = vld [vmem:[%s0 + $0x55c] sm:$0xf]
  %v360 = vld [vmem:[%s0 + $0x560] sm:$0xf]
  %v361 = vld [vmem:[%s0 + $0x564] sm:$0xf]
  %v362 = vld [vmem:[%s0 + $0x568] sm:$0xf]
  %v363 = vld [vmem:[%s0 + $0x56c] sm:$0xf]
  %v364 = vld [vmem:[%s0 + $0x570] sm:$0xf]
  %v365 = vld [vmem:[%s0 + $0x574] sm:$0xf]
  %v366 = vld [vmem:[%s0 + $0x578] sm:$0xf]
  %v367 = vld [vmem:[%s0 + $0x57c] sm:$0xf]
  %v368 = vld [vmem:[%s0 + $0x580] sm:$0xf]
  %v369 = vld [vmem:[%s0 + $0x584] sm:$0xf]
  %v370 = vld [vmem:[%s0 + $0x588] sm:$0xf]
  %v371 = vld [vmem:[%s0 + $0x58c] sm:$0xf]
  %v372 = vld [vmem:[%s0 + $0x590] sm:$0xf]
  %v373 = vld [vmem:[%s0 + $0x594] sm:$0xf]
  %v374 = vld [vmem:[%s0 + $0x598] sm:$0xf]
  %v375 = vld [vmem:[%s0 + $0x59c] sm:$0xf]
  %v376 = vld [vmem:[%s0 + $0x5a0] sm:$0xf]
  %v377 = vld [vmem:[%s0 + $0x5a4] sm:$0xf]
  %v378 = vld [vmem:[%s0 + $0x5a8] sm:$0xf]
  %v379 = vld [vmem:[%s0 + $0x5ac] sm:$0xf]
  %v380 = vld [vmem:[%s0 + $0x5b0] sm:$0xf]
  %v381 = vld [vmem:[%s0 + $0x5b4] sm:$0xf]
  %v382 = vld [vmem:[%s0 + $0x5b8] sm:$0xf]
  %v383 = vld [vmem:[%s0 + $0x5bc] sm:$0xf]
  %v384 = vld [vmem:[%s0 + $0x5c0] sm:$0xf]
  %v385 = vld [vmem:[%s0 + $0x5c4] sm:$0xf]
  %v386 = vld [vmem:[%s0 + $0x5c8] sm:$0xf]
  %v387 = vld [vmem:[%s0 + $0x5cc] sm:$0xf]
  %v388 = vld [vmem:[%s0 + $0x5d0] sm:$0xf]
  %v389 = vld [vmem:[%s0 + $0x5d4] sm:$0xf]
  %v390 = vld [vmem:[%s0 + $0x5d8] sm:$0xf]
  %v391 = vld [vmem:[%s0 + $0x5dc] sm:$0xf]
  %v392 = vld [vmem:[%s0 + $0x5e0] sm:$0xf]
  %v393 = vld [vmem:[%s0 + $0x5e4] sm:$0xf]
  %v394 = vld [vmem:[%s0 + $0x5e8] sm:$0xf]
  %v395 = vld [vmem:[%s0 + $0x5ec] sm:$0xf]
  %v396 = vld [vmem:[%s0 + $0x5f0] sm:$0xf]
  %v397 = vld [vmem:[%s0 + $0x5f4] sm:$0xf]
  %v398 = vld [vmem:[%s0 + $0x5f8] sm:$0xf]
  %v399 = vld [vmem:[%s0 + $0x5fc] sm:$0xf]
  %v400 = vld [vmem:[%s0 + $0x600] sm:$0xf]
  %v401 = vld [vmem:[%s0 + $0x604] sm:$0xf]
  %v402 = vld [vmem:[%s0 + $0x608] sm:$0xf]
  %v403 = vld [vmem:[%s0 + $0x60c] sm:$0xf]
  %v404 = vld [vmem:[%s0 + $0x610] sm:$0xf]
  %v405 = vld [vmem:[%s0 + $0x614] sm:$0xf]
  %v406 = vld [vmem:[%s0 + $0x618] sm:$0xf]
  %v407 = vld [vmem:[%s0 + $0x61c] sm:$0xf]
  %v408 = vld [vmem:[%s0 + $0x620] sm:$0xf]
  %v409 = vld [vmem:[%s0 + $0x624] sm:$0xf]
  %v410 = vld [vmem:[%s0 + $0x628] sm:$0xf]
  %v411 = vld [vmem:[%s0 + $0x62c] sm:$0xf]
  %v412 = vld [vmem:[%s0 + $0x630] sm:$0xf]
  %v413 = vld [vmem:[%s0 + $0x634] sm:$0xf]
  %v414 = vld [vmem:[%s0 + $0x638] sm:$0xf]
  %v415 = vld [vmem:[%s0 + $0x63c] sm:$0xf]
  %v416 = vld [vmem:[%s0 + $0x640] sm:$0xf]
  %v417 = vld [vmem:[%s0 + $0x644] sm:$0xf]
  %v418 = vld [vmem:[%s0 + $0x648] sm:$0xf]
  %v419 = vld [vmem:[%s0 + $0x64c] sm:$0xf]
  %v420 = vld [vmem:[%s0 + $0x650] sm:$0xf]
  %v421 = vld [vmem:[%s0 + $0x654] sm:$0xf]
  %v422 = vld [vmem:[%s0 + $0x658] sm:$0xf]
  %v423 = vld [vmem:[%s0 + $0x65c] sm:$0xf]
  %v424 = vld [vmem:[%s0 + $0x660] sm:$0xf]
  %v425 = vld [vmem:[%s0 + $0x664] sm:$0xf]
  %v426 = vld [vmem:[%s0 + $0x668] sm:$0xf]
  %v427 = vld [vmem:[%s0 + $0x66c] sm:$0xf]
  %v428 = vld [vmem:[%s0 + $0x670] sm:$0xf]
  %v429 = vld [vmem:[%s0 + $0x674] sm:$0xf]
  %v430 = vld [vmem:[%s0 + $0x678] sm:$0xf]
  %v431 = vld [vmem:[%s0 + $0x67c] sm:$0xf]
  %v432 = vld [vmem:[%s0 + $0x680] sm:$0xf]
  %v433 = vld [vmem:[%s0 + $0x684] sm:$0xf]
  %v434 = vld [vmem:[%s0 + $0x688] sm:$0xf]
  %v435 = vld [vmem:[%s0 + $0x68c] sm:$0xf]
  %v436 = vld [vmem:[%s0 + $0x690] sm:$0xf]
  %v437 = vld [vmem:[%s0 + $0x694] sm:$0xf]
  %v438 = vld [vmem:[%s0 + $0x698] sm:$0xf]
  %v439 = vld [vmem:[%s0 + $0x69c] sm:$0xf]
  %v440 = vld [vmem:[%s0 + $0x6a0] sm:$0xf]
  %v441 = vld [vmem:[%s0 + $0x6a4] sm:$0xf]
  %v442 = vld [vmem:[%s0 + $0x6a8] sm:$0xf]
  %v443 = vld [vmem:[%s0 + $0x6ac] sm:$0xf]
  %v444 = vld [vmem:[%s0 + $0x6b0] sm:$0xf]
  %v445 = vld [vmem:[%s0 + $0x6b4] sm:$0xf]
  %v446 = vld [vmem:[%s0 + $0x6b8] sm:$0xf]
  %v447 = vld [vmem:[%s0 + $0x6bc] sm:$0xf]
  %v448 = vld [vmem:[%s0 + $0x6c0] sm:$0xf]
  %v449 = vld [vmem:[%s0 + $0x6c4] sm:$0xf]
  %v450 = vld [vmem:[%s0 + $0x6c8] sm:$0xf]
  %v451 = vld [vmem:[%s0 + $0x6cc] sm:$0xf]
  %v452 = vld [vmem:[%s0 + $0x6d0] sm:$0xf]
  %v453 = vld [vmem:[%s0 + $0x6d4] sm:$0xf]
  %v454 = vld [vmem:[%s0 + $0x6d8] sm:$0xf]
  %v455 = vld [vmem:[%s0 + $0x6dc] sm:$0xf]
  %v456 = vld [vmem:[%s0 + $0x6e0] sm:$0xf]
  %v457 = vld [vmem:[%s0 + $0x6e4] sm:$0xf]
  %v458 = vld [vmem:[%s0 + $0x6e8] sm:$0xf]
  %v459 = vld [vmem:[%s0 + $0x6ec] sm:$0xf]
  %v460 = vld [vmem:[%s0 + $0x6f0] sm:$0xf]
  %v461 = vld [vmem:[%s0 + $0x6f4] sm:$0xf]
  %v462 = vld [vmem:[%s0 + $0x6f8] sm:$0xf]
  %v463 = vld [vmem:[%s0 + $0x6fc] sm:$0xf]
  %v464 = vld [vmem:[%s0 + $0x700] sm:$0xf]
  %v465 = vld [vmem:[%s0 + $0x704] sm:$0xf]
  %v466 = vld [vmem:[%s0 + $0x708] sm:$0xf]
  %v467 = vld [vmem:[%s0 + $0x70c] sm:$0xf]
  %v468 = vld [vmem:[%s0 + $0x710] sm:$0xf]
  %v469 = vld [vmem:[%s0 + $0x714] sm:$0xf]
  %v470 = vld [vmem:[%s0 + $0x718] sm:$0xf]
  %v471 = vld [vmem:[%s0 + $0x71c] sm:$0xf]
  %v472 = vld [vmem:[%s0 + $0x720] sm:$0xf]
  %v473 = vld [vmem:[%s0 + $0x724] sm:$0xf]
  %v474 = vld [vmem:[%s0 + $0x728] sm:$0xf]
  %v475 = vld [vmem:[%s0 + $0x72c] sm:$0xf]
  %v476 = vld [vmem:[%s0 + $0x730] sm:$0xf]
  %v477 = vld [vmem:[%s0 + $0x734] sm:$0xf]
  %v478 = vld [vmem:[%s0 + $0x738] sm:$0xf]
  %v479 = vld [vmem:[%s0 + $0x73c] sm:$0xf]
  %v480 = vld [vmem:[%s0 + $0x740] sm:$0xf]
  %v481 = vld [vmem:[%s0 + $0x744] sm:$0xf]
  %v482 = vld [vmem:[%s0 + $0x748] sm:$0xf]
  %v483 = vld [vmem:[%s0 + $0x74c] sm:$0xf]
  %v484 = vld [vmem:[%s0 + $0x750] sm:$0xf]
  %v485 = vld [vmem:[%s0 + $0x754] sm:$0xf]
  %v486 = vld [vmem:[%s0 + $0x758] sm:$0xf]
  %v487 = vld [vmem:[%s0 + $0x75c] sm:$0xf]
  %v488 = vld [vmem:[%s0 + $0x760] sm:$0xf]
  %v489 = vld [vmem:[%s0 + $0x764] sm:$0xf]
  %v490 = vld [vmem:[%s0 + $0x768] sm:$0xf]
  %v491 = vld [vmem:[%s0 + $0x76c] sm:$0xf]
  %v492 = vld [vmem:[%s0 + $0x770] sm:$0xf]
  %v493 = vld [vmem:[%s0 + $0x774] sm:$0xf]
  %v494 = vld [vmem:[%s0 + $0x778] sm:$0xf]
  %v495 = vld [vmem:[%s0 + $0x77c] sm:$0xf]
  %v496 = vld [vmem:[%s0 + $0x780] sm:$0xf]
  %v497 = vld [vmem:[%s0 + $0x784] sm:$0xf]
  %v498 = vld [vmem:[%s0 + $0x788] sm:$0xf]
  %v499 = vld [vmem:[%s0 + $0x78c] sm:$0xf]
  %v500 = vld [vmem:[%s0 + $0x790] sm:$0xf]
  %v501 = vld [vmem:[%s0 + $0x794] sm:$0xf]
  %v502 = vld [vmem:[%s0 + $0x798] sm:$0xf]
  %v503 = vld [vmem:[%s0 + $0x79c] sm:$0xf]
  %v504 = vld [vmem:[%s0 + $0x7a0] sm:$0xf]
  %v505 = vld [vmem:[%s0 + $0x7a4] sm:$0xf]
  %v506 = vld [vmem:[%s0 + $0x7a8] sm:$0xf]
  %v507 = vld [vmem:[%s0 + $0x7ac] sm:$0xf]
  %v508 = vld [vmem:[%s0 + $0x7b0] sm:$0xf]
  %v509 = vld [vmem:[%s0 + $0x7b4] sm:$0xf]
  %v510 = vld [vmem:[%s0 + $0x7b8] sm:$0xf]
  %v511 = vld [vmem:[%s0 + $0x7bc] sm:$0xf]
  %v512 = vld [vmem:[%s0 + $0x7c0] sm:$0xf]
  %v513 = vld [vmem:[%s0 + $0x7c4] sm:$0xf]
  %v514 = vld [vmem:[%s0 + $0x7c8] sm:$0xf]
  %v515 = vld [vmem:[%s0 + $0x7cc] sm:$0xf]
  %v516 = vld [vmem:[%s0 + $0x7d0] sm:$0xf]
  %v517 = vld [vmem:[%s0 + $0x7d4] sm:$0xf]
  %v518 = vld [vmem:[%s0 + $0x7d8] sm:$0xf]
  %v519 = vld [vmem:[%s0 + $0x7dc] sm:$0xf]
  %v520 = vld [vmem:[%s0 + $0x7e0] sm:$0xf]
  %v521 = vld [vmem:[%s0 + $0x7e4] sm:$0xf]
  %v522 = vld [vmem:[%s0 + $0x7e8] sm:$0xf]
  %v523 = vld [vmem:[%s0 + $0x7ec] sm:$0xf]
  %v524 = vld [vmem:[%s0 + $0x7f0] sm:$0xf]
  %v525 = vld [vmem:[%s0 + $0x7f4] sm:$0xf]
  %v526 = vld [vmem:[%s0 + $0x7f8] sm:$0xf]
  %v527 = vld [vmem:[%s0 + $0x7fc] sm:$0xf]
  %v528 = vld [vmem:[%s0 + $0x800] sm:$0xf]
  %v529 = vld [vmem:[%s0 + $0x804] sm:$0xf]
  %v530 = vld [vmem:[%s0 + $0x808] sm:$0xf]
  %v531 = vld [vmem:[%s0 + $0x80c] sm:$0xf]
  %v532 = vld [vmem:[%s0 + $0x810] sm:$0xf]
  %v533 = vld [vmem:[%s0 + $0x814] sm:$0xf]
  %v534 = vld [vmem:[%s0 + $0x818] sm:$0xf]
  %v535 = vld [vmem:[%s0 + $0x81c] sm:$0xf]
  %v536 = vld [vmem:[%s0 + $0x820] sm:$0xf]
  %v537 = vld [vmem:[%s0 + $0x824] sm:$0xf]
  %v538 = vld [vmem:[%s0 + $0x828] sm:$0xf]
  %v539 = vld [vmem:[%s0 + $0x82c] sm:$0xf]
  %v540 = vld [vmem:[%s0 + $0x830] sm:$0xf]
  %v541 = vld [vmem:[%s0 + $0x834] sm:$0xf]
  %v542 = vld [vmem:[%s0 + $0x838] sm:$0xf]
  %v543 = vld [vmem:[%s0 + $0x83c] sm:$0xf]
  %v544 = vld [vmem:[%s0 + $0x840] sm:$0xf]
  %v545 = vld [vmem:[%s0 + $0x844] sm:$0xf]
  %v546 = vld [vmem:[%s0 + $0x848] sm:$0xf]
  %v547 = vld [vmem:[%s0 + $0x84c] sm:$0xf]
  %v548 = vld [vmem:[%s0 + $0x850] sm:$0xf]
  %v549 = vld [vmem:[%s0 + $0x854] sm:$0xf]
  %v550 = vld [vmem:[%s0 + $0x858] sm:$0xf]
  %v551 = vld [vmem:[%s0 + $0x85c] sm:$0xf]
  %v552 = vld [vmem:[%s0 + $0x860] sm:$0xf]
  %v553 = vld [vmem:[%s0 + $0x864] sm:$0xf]
  %v554 = vld [vmem:[%s0 + $0x868] sm:$0xf]
  %v555 = vld [vmem:[%s0 + $0x86c] sm:$0xf]
  %v556 = vld [vmem:[%s0 + $0x870] sm:$0xf]
  %v557 = vld [vmem:[%s0 + $0x874] sm:$0xf]
  %v558 = vld [vmem:[%s0 + $0x878] sm:$0xf]
  %v559 = vld [vmem:[%s0 + $0x87c] sm:$0xf]
  %v560 = vld [vmem:[%s0 + $0x880] sm:$0xf]
  %v561 = vld [vmem:[%s0 + $0x884] sm:$0xf]
  %v562 = vld [vmem:[%s0 + $0x888] sm:$0xf]
  %v563 = vld [vmem:[%s0 + $0x88c] sm:$0xf]
  %v564 = vld [vmem:[%s0 + $0x890] sm:$0xf]
  %v565 = vld [vmem:[%s0 + $0x894] sm:$0xf]
  %v566 = vld [vmem:[%s0 + $0x898] sm:$0xf]
  %v567 = vld [vmem:[%s0 + $0x89c] sm:$0xf]
  %v568 = vld [vmem:[%s0 + $0x8a0] sm:$0xf]
  %v569 = vld [vmem:[%s0 + $0x8a4] sm:$0xf]
  %v570 = vld [vmem:[%s0 + $0x8a8] sm:$0xf]
  %v571 = vld [vmem:[%s0 + $0x8ac] sm:$0xf]
  %v572 = vld [vmem:[%s0 + $0x8b0] sm:$0xf]
  %v573 = vld [vmem:[%s0 + $0x8b4] sm:$0xf]
  %v574 = vld [vmem:[%s0 + $0x8b8] sm:$0xf]
  %v575 = vld [vmem:[%s0 + $0x8bc] sm:$0xf]
  %v576 = vld [vmem:[%s0 + $0x8c0] sm:$0xf]
  %v577 = vld [vmem:[%s0 + $0x8c4] sm:$0xf]
  %v578 = vld [vmem:[%s0 + $0x8c8] sm:$0xf]
  %v579 = vld [vmem:[%s0 + $0x8cc] sm:$0xf]
  %v580 = vld [vmem:[%s0 + $0x8d0] sm:$0xf]
  %v581 = vld [vmem:[%s0 + $0x8d4] sm:$0xf]
  %v582 = vld [vmem:[%s0 + $0x8d8] sm:$0xf]
  %v583 = vld [vmem:[%s0 + $0x8dc] sm:$0xf]
  %v584 = vld [vmem:[%s0 + $0x8e0] sm:$0xf]
  %v585 = vld [vmem:[%s0 + $0x8e4] sm:$0xf]
  %v586 = vld [vmem:[%s0 + $0x8e8] sm:$0xf]
  %v587 = vld [vmem:[%s0 + $0x8ec] sm:$0xf]
  %v588 = vld [vmem:[%s0 + $0x8f0] sm:$0xf]
  %v589 = vld [vmem:[%s0 + $0x8f4] sm:$0xf]
  %v590 = vld [vmem:[%s0 + $0x8f8] sm:$0xf]
  %v591 = vld [vmem:[%s0 + $0x8fc] sm:$0xf]
  %v592 = vunpack.c.l.bf16 %v16
  %v593 = vunpack.c.l.bf16 %v17
  %v594 = vunpack.c.l.bf16 %v18
  %v595 = vunpack.c.l.bf16 %v19
  %v596 = vunpack.c.l.bf16 %v20
  %v597 = vunpack.c.l.bf16 %v21
  %v598 = vunpack.c.l.bf16 %v22
  %v599 = vunpack.c.l.bf16 %v23
  %v600 = vunpack.c.l.bf16 %v24
  %v601 = vunpack.c.l.bf16 %v25
  %v602 = vunpack.c.l.bf16 %v26
  %v603 = vunpack.c.l.bf16 %v27
  %v604 = vunpack.c.l.bf16 %v28
  %v605 = vunpack.c.l.bf16 %v29
  %v606 = vunpack.c.l.bf16 %v30
  %v607 = vunpack.c.l.bf16 %v31
  %v608 = vunpack.c.l.bf16 %v32
  %v609 = vunpack.c.l.bf16 %v33
  %v610 = vunpack.c.l.bf16 %v34
  %v611 = vunpack.c.l.bf16 %v35
  %v612 = vunpack.c.l.bf16 %v36
  %v613 = vunpack.c.l.bf16 %v37
  %v614 = vunpack.c.l.bf16 %v38
  %v615 = vunpack.c.l.bf16 %v39
  %v616 = vunpack.c.l.bf16 %v40
  %v617 = vunpack.c.l.bf16 %v41
  %v618 = vunpack.c.l.bf16 %v42
  %v619 = vunpack.c.l.bf16 %v43
  %v620 = vunpack.c.l.bf16 %v44
  %v621 = vunpack.c.l.bf16 %v45
  %v622 = vunpack.c.l.bf16 %v46
  %v623 = vunpack.c.l.bf16 %v47
  %v624 = vunpack.c.l.bf16 %v48
  %v625 = vunpack.c.l.bf16 %v49
  %v626 = vunpack.c.l.bf16 %v50
  %v627 = vunpack.c.l.bf16 %v51
  %v628 = vunpack.c.l.bf16 %v52
  %v629 = vunpack.c.l.bf16 %v53
  %v630 = vunpack.c.l.bf16 %v54
  %v631 = vunpack.c.l.bf16 %v55
  %v632 = vunpack.c.l.bf16 %v56
  %v633 = vunpack.c.l.bf16 %v57
  %v634 = vunpack.c.l.bf16 %v58
  %v635 = vunpack.c.l.bf16 %v59
  %v636 = vunpack.c.l.bf16 %v60
  %v637 = vunpack.c.l.bf16 %v61
  %v638 = vunpack.c.l.bf16 %v62
  %v639 = vunpack.c.l.bf16 %v63
  %v640 = vunpack.c.l.bf16 %v64
  %v641 = vunpack.c.l.bf16 %v65
  %v642 = vunpack.c.l.bf16 %v66
  %v643 = vunpack.c.l.bf16 %v67
  %v644 = vunpack.c.l.bf16 %v68
  %v645 = vunpack.c.l.bf16 %v69
  %v646 = vunpack.c.l.bf16 %v70
  %v647 = vunpack.c.l.bf16 %v71
  %v648 = vunpack.c.l.bf16 %v72
  %v649 = vunpack.c.l.bf16 %v73
  %v650 = vunpack.c.l.bf16 %v74
  %v651 = vunpack.c.l.bf16 %v75
  %v652 = vunpack.c.l.bf16 %v76
  %v653 = vunpack.c.l.bf16 %v77
  %v654 = vunpack.c.l.bf16 %v78
  %v655 = vunpack.c.l.bf16 %v79
  %v656 = vunpack.c.l.bf16 %v80
  %v657 = vunpack.c.l.bf16 %v81
  %v658 = vunpack.c.l.bf16 %v82
  %v659 = vunpack.c.l.bf16 %v83
  %v660 = vunpack.c.l.bf16 %v84
  %v661 = vunpack.c.l.bf16 %v85
  %v662 = vunpack.c.l.bf16 %v86
  %v663 = vunpack.c.l.bf16 %v87
  %v664 = vunpack.c.l.bf16 %v88
  %v665 = vunpack.c.l.bf16 %v89
  %v666 = vunpack.c.l.bf16 %v90
  %v667 = vunpack.c.l.bf16 %v91
  %v668 = vunpack.c.l.bf16 %v92
  %v669 = vunpack.c.l.bf16 %v93
  %v670 = vunpack.c.l.bf16 %v94
  %v671 = vunpack.c.l.bf16 %v95
  %v672 = vunpack.c.l.bf16 %v96
  %v673 = vunpack.c.l.bf16 %v97
  %v674 = vunpack.c.l.bf16 %v98
  %v675 = vunpack.c.l.bf16 %v99
  %v676 = vunpack.c.l.bf16 %v100
  %v677 = vunpack.c.l.bf16 %v101
  %v678 = vunpack.c.l.bf16 %v102
  %v679 = vunpack.c.l.bf16 %v103
  %v680 = vunpack.c.l.bf16 %v104
  %v681 = vunpack.c.l.bf16 %v105
  %v682 = vunpack.c.l.bf16 %v106
  %v683 = vunpack.c.l.bf16 %v107
  %v684 = vunpack.c.l.bf16 %v108
  %v685 = vunpack.c.l.bf16 %v109
  %v686 = vunpack.c.l.bf16 %v110
  %v687 = vunpack.c.l.bf16 %v111
  %v688 = vunpack.c.l.bf16 %v112
  %v689 = vunpack.c.l.bf16 %v113
  %v690 = vunpack.c.l.bf16 %v114
  %v691 = vunpack.c.l.bf16 %v115
  %v692 = vunpack.c.l.bf16 %v116
  %v693 = vunpack.c.l.bf16 %v117
  %v694 = vunpack.c.l.bf16 %v118
  %v695 = vunpack.c.l.bf16 %v119
  %v696 = vunpack.c.l.bf16 %v120
  %v697 = vunpack.c.l.bf16 %v121
  %v698 = vunpack.c.l.bf16 %v122
  %v699 = vunpack.c.l.bf16 %v123
  %v700 = vunpack.c.l.bf16 %v124
  %v701 = vunpack.c.l.bf16 %v125
  %v702 = vunpack.c.l.bf16 %v126
  %v703 = vunpack.c.l.bf16 %v127
  %v704 = vunpack.c.l.bf16 %v128
  %v705 = vunpack.c.l.bf16 %v129
  %v706 = vunpack.c.l.bf16 %v130
  %v707 = vunpack.c.l.bf16 %v131
  %v708 = vunpack.c.l.bf16 %v132
  %v709 = vunpack.c.l.bf16 %v133
  %v710 = vunpack.c.l.bf16 %v134
  %v711 = vunpack.c.l.bf16 %v135
  %v712 = vunpack.c.l.bf16 %v136
  %v713 = vunpack.c.l.bf16 %v137
  %v714 = vunpack.c.l.bf16 %v138
  %v715 = vunpack.c.l.bf16 %v139
  %v716 = vunpack.c.l.bf16 %v140
  %v717 = vunpack.c.l.bf16 %v141
  %v718 = vunpack.c.l.bf16 %v142
  %v719 = vunpack.c.l.bf16 %v143
  %v720 = vunpack.c.l.bf16 %v144
  %v721 = vunpack.c.l.bf16 %v145
  %v722 = vunpack.c.l.bf16 %v146
  %v723 = vunpack.c.l.bf16 %v147
  %v724 = vunpack.c.l.bf16 %v148
  %v725 = vunpack.c.l.bf16 %v149
  %v726 = vunpack.c.l.bf16 %v150
  %v727 = vunpack.c.l.bf16 %v151
  %v728 = vunpack.c.l.bf16 %v152
  %v729 = vunpack.c.l.bf16 %v153
  %v730 = vunpack.c.l.bf16 %v154
  %v731 = vunpack.c.l.bf16 %v155
  %v732 = vunpack.c.l.bf16 %v156
  %v733 = vunpack.c.l.bf16 %v157
  %v734 = vunpack.c.l.bf16 %v158
  %v735 = vunpack.c.l.bf16 %v159
  %v736 = vunpack.c.l.bf16 %v160
  %v737 = vunpack.c.l.bf16 %v161
  %v738 = vunpack.c.l.bf16 %v162
  %v739 = vunpack.c.l.bf16 %v163
  %v740 = vunpack.c.l.bf16 %v164
  %v741 = vunpack.c.l.bf16 %v165
  %v742 = vunpack.c.l.bf16 %v166
  %v743 = vunpack.c.l.bf16 %v167
  %v744 = vunpack.c.l.bf16 %v168
  %v745 = vunpack.c.l.bf16 %v169
  %v746 = vunpack.c.l.bf16 %v170
  %v747 = vunpack.c.l.bf16 %v171
  %v748 = vunpack.c.l.bf16 %v172
  %v749 = vunpack.c.l.bf16 %v173
  %v750 = vunpack.c.l.bf16 %v174
  %v751 = vunpack.c.l.bf16 %v175
  %v752 = vunpack.c.l.bf16 %v176
  %v753 = vunpack.c.l.bf16 %v177
  %v754 = vunpack.c.l.bf16 %v178
  %v755 = vunpack.c.l.bf16 %v179
  %v756 = vunpack.c.l.bf16 %v180
  %v757 = vunpack.c.l.bf16 %v181
  %v758 = vunpack.c.l.bf16 %v182
  %v759 = vunpack.c.l.bf16 %v183
  %v760 = vunpack.c.l.bf16 %v184
  %v761 = vunpack.c.l.bf16 %v185
  %v762 = vunpack.c.l.bf16 %v186
  %v763 = vunpack.c.l.bf16 %v187
  %v764 = vunpack.c.l.bf16 %v188
  %v765 = vunpack.c.l.bf16 %v189
  %v766 = vunpack.c.l.bf16 %v190
  %v767 = vunpack.c.l.bf16 %v191
  %v768 = vunpack.c.l.bf16 %v192
  %v769 = vunpack.c.l.bf16 %v193
  %v770 = vunpack.c.l.bf16 %v194
  %v771 = vunpack.c.l.bf16 %v195
  %v772 = vunpack.c.l.bf16 %v196
  %v773 = vunpack.c.l.bf16 %v197
  %v774 = vunpack.c.l.bf16 %v198
  %v775 = vunpack.c.l.bf16 %v199
  %v776 = vunpack.c.l.bf16 %v200
  %v777 = vunpack.c.l.bf16 %v201
  %v778 = vunpack.c.l.bf16 %v202
  %v779 = vunpack.c.l.bf16 %v203
  %v780 = vunpack.c.l.bf16 %v204
  %v781 = vunpack.c.l.bf16 %v205
  %v782 = vunpack.c.l.bf16 %v206
  %v783 = vunpack.c.l.bf16 %v207
  %v784 = vunpack.c.l.bf16 %v208
  %v785 = vunpack.c.l.bf16 %v209
  %v786 = vunpack.c.l.bf16 %v210
  %v787 = vunpack.c.l.bf16 %v211
  %v788 = vunpack.c.l.bf16 %v212
  %v789 = vunpack.c.l.bf16 %v213
  %v790 = vunpack.c.l.bf16 %v214
  %v791 = vunpack.c.l.bf16 %v215
  %v792 = vunpack.c.l.bf16 %v216
  %v793 = vunpack.c.l.bf16 %v217
  %v794 = vunpack.c.l.bf16 %v218
  %v795 = vunpack.c.l.bf16 %v219
  %v796 = vunpack.c.l.bf16 %v220
  %v797 = vunpack.c.l.bf16 %v221
  %v798 = vunpack.c.l.bf16 %v222
  %v799 = vunpack.c.l.bf16 %v223
  %v800 = vunpack.c.l.bf16 %v224
  %v801 = vunpack.c.l.bf16 %v225
  %v802 = vunpack.c.l.bf16 %v226
  %v803 = vunpack.c.l.bf16 %v227
  %v804 = vunpack.c.l.bf16 %v228
  %v805 = vunpack.c.l.bf16 %v229
  %v806 = vunpack.c.l.bf16 %v230
  %v807 = vunpack.c.l.bf16 %v231
  %v808 = vunpack.c.l.bf16 %v232
  %v809 = vunpack.c.l.bf16 %v233
  %v810 = vunpack.c.l.bf16 %v234
  %v811 = vunpack.c.l.bf16 %v235
  %v812 = vunpack.c.l.bf16 %v236
  %v813 = vunpack.c.l.bf16 %v237
  %v814 = vunpack.c.l.bf16 %v238
  %v815 = vunpack.c.l.bf16 %v239
  %v816 = vunpack.c.l.bf16 %v240
  %v817 = vunpack.c.l.bf16 %v241
  %v818 = vunpack.c.l.bf16 %v242
  %v819 = vunpack.c.l.bf16 %v243
  %v820 = vunpack.c.l.bf16 %v244
  %v821 = vunpack.c.l.bf16 %v245
  %v822 = vunpack.c.l.bf16 %v246
  %v823 = vunpack.c.l.bf16 %v247
  %v824 = vunpack.c.l.bf16 %v248
  %v825 = vunpack.c.l.bf16 %v249
  %v826 = vunpack.c.l.bf16 %v250
  %v827 = vunpack.c.l.bf16 %v251
  %v828 = vunpack.c.l.bf16 %v252
  %v829 = vunpack.c.l.bf16 %v253
  %v830 = vunpack.c.l.bf16 %v254
  %v831 = vunpack.c.l.bf16 %v255
  %v832 = vunpack.c.l.bf16 %v256
  %v833 = vunpack.c.l.bf16 %v257
  %v834 = vunpack.c.l.bf16 %v258
  %v835 = vunpack.c.l.bf16 %v259
  %v836 = vunpack.c.l.bf16 %v260
  %v837 = vunpack.c.l.bf16 %v261
  %v838 = vunpack.c.l.bf16 %v262
  %v839 = vunpack.c.l.bf16 %v263
  %v840 = vunpack.c.l.bf16 %v264
  %v841 = vunpack.c.l.bf16 %v265
  %v842 = vunpack.c.l.bf16 %v266
  %v843 = vunpack.c.l.bf16 %v267
  %v844 = vunpack.c.l.bf16 %v268
  %v845 = vunpack.c.l.bf16 %v269
  %v846 = vunpack.c.l.bf16 %v270
  %v847 = vunpack.c.l.bf16 %v271
  %v848 = vunpack.c.l.bf16 %v272
  %v849 = vunpack.c.l.bf16 %v273
  %v850 = vunpack.c.l.bf16 %v274
  %v851 = vunpack.c.l.bf16 %v275
  %v852 = vunpack.c.l.bf16 %v276
  %v853 = vunpack.c.l.bf16 %v277
  %v854 = vunpack.c.l.bf16 %v278
  %v855 = vunpack.c.l.bf16 %v279
  %v856 = vunpack.c.l.bf16 %v280
  %v857 = vunpack.c.l.bf16 %v281
  %v858 = vunpack.c.l.bf16 %v282
  %v859 = vunpack.c.l.bf16 %v283
  %v860 = vunpack.c.l.bf16 %v284
  %v861 = vunpack.c.l.bf16 %v285
  %v862 = vunpack.c.l.bf16 %v286
  %v863 = vunpack.c.l.bf16 %v287
  %v864 = vunpack.c.l.bf16 %v288
  %v865 = vunpack.c.l.bf16 %v289
  %v866 = vunpack.c.l.bf16 %v290
  %v867 = vunpack.c.l.bf16 %v291
  %v868 = vunpack.c.l.bf16 %v292
  %v869 = vunpack.c.l.bf16 %v293
  %v870 = vunpack.c.l.bf16 %v294
  %v871 = vunpack.c.l.bf16 %v295
  %v872 = vunpack.c.l.bf16 %v296
  %v873 = vunpack.c.l.bf16 %v297
  %v874 = vunpack.c.l.bf16 %v298
  %v875 = vunpack.c.l.bf16 %v299
  %v876 = vunpack.c.l.bf16 %v300
  %v877 = vunpack.c.l.bf16 %v301
  %v878 = vunpack.c.l.bf16 %v302
  %v879 = vunpack.c.l.bf16 %v303
  %v880 = vunpack.c.l.bf16 %v304
  %v881 = vunpack.c.l.bf16 %v305
  %v882 = vunpack.c.l.bf16 %v306
  %v883 = vunpack.c.l.bf16 %v307
  %v884 = vunpack.c.l.bf16 %v308
  %v885 = vunpack.c.l.bf16 %v309
  %v886 = vunpack.c.l.bf16 %v310
  %v887 = vunpack.c.l.bf16 %v311
  %v888 = vunpack.c.l.bf16 %v312
  %v889 = vunpack.c.l.bf16 %v313
  %v890 = vunpack.c.l.bf16 %v314
  %v891 = vunpack.c.l.bf16 %v315
  %v892 = vunpack.c.l.bf16 %v316
  %v893 = vunpack.c.l.bf16 %v317
  %v894 = vunpack.c.l.bf16 %v318
  %v895 = vunpack.c.l.bf16 %v319
  %v896 = vunpack.c.l.bf16 %v320
  %v897 = vunpack.c.l.bf16 %v321
  %v898 = vunpack.c.l.bf16 %v322
  %v899 = vunpack.c.l.bf16 %v323
  %v900 = vunpack.c.l.bf16 %v324
  %v901 = vunpack.c.l.bf16 %v325
  %v902 = vunpack.c.l.bf16 %v326
  %v903 = vunpack.c.l.bf16 %v327
  %v904 = vunpack.c.l.bf16 %v328
  %v905 = vunpack.c.l.bf16 %v329
  %v906 = vunpack.c.l.bf16 %v330
  %v907 = vunpack.c.l.bf16 %v331
  %v908 = vunpack.c.l.bf16 %v332
  %v909 = vunpack.c.l.bf16 %v333
  %v910 = vunpack.c.l.bf16 %v334
  %v911 = vunpack.c.l.bf16 %v335
  %v912 = vunpack.c.l.bf16 %v336
  %v913 = vunpack.c.l.bf16 %v337
  %v914 = vunpack.c.l.bf16 %v338
  %v915 = vunpack.c.l.bf16 %v339
  %v916 = vunpack.c.l.bf16 %v340
  %v917 = vunpack.c.l.bf16 %v341
  %v918 = vunpack.c.l.bf16 %v342
  %v919 = vunpack.c.l.bf16 %v343
  %v920 = vunpack.c.l.bf16 %v344
  %v921 = vunpack.c.l.bf16 %v345
  %v922 = vunpack.c.l.bf16 %v346
  %v923 = vunpack.c.l.bf16 %v347
  %v924 = vunpack.c.l.bf16 %v348
  %v925 = vunpack.c.l.bf16 %v349
  %v926 = vunpack.c.l.bf16 %v350
  %v927 = vunpack.c.l.bf16 %v351
  %v928 = vunpack.c.l.bf16 %v352
  %v929 = vunpack.c.l.bf16 %v353
  %v930 = vunpack.c.l.bf16 %v354
  %v931 = vunpack.c.l.bf16 %v355
  %v932 = vunpack.c.l.bf16 %v356
  %v933 = vunpack.c.l.bf16 %v357
  %v934 = vunpack.c.l.bf16 %v358
  %v935 = vunpack.c.l.bf16 %v359
  %v936 = vunpack.c.l.bf16 %v360
  %v937 = vunpack.c.l.bf16 %v361
  %v938 = vunpack.c.l.bf16 %v362
  %v939 = vunpack.c.l.bf16 %v363
  %v940 = vunpack.c.l.bf16 %v364
  %v941 = vunpack.c.l.bf16 %v365
  %v942 = vunpack.c.l.bf16 %v366
  %v943 = vunpack.c.l.bf16 %v367
  %v944 = vunpack.c.l.bf16 %v368
  %v945 = vunpack.c.l.bf16 %v369
  %v946 = vunpack.c.l.bf16 %v370
  %v947 = vunpack.c.l.bf16 %v371
  %v948 = vunpack.c.l.bf16 %v372
  %v949 = vunpack.c.l.bf16 %v373
  %v950 = vunpack.c.l.bf16 %v374
  %v951 = vunpack.c.l.bf16 %v375
  %v952 = vunpack.c.l.bf16 %v376
  %v953 = vunpack.c.l.bf16 %v377
  %v954 = vunpack.c.l.bf16 %v378
  %v955 = vunpack.c.l.bf16 %v379
  %v956 = vunpack.c.l.bf16 %v380
  %v957 = vunpack.c.l.bf16 %v381
  %v958 = vunpack.c.l.bf16 %v382
  %v959 = vunpack.c.l.bf16 %v383
  %v960 = vunpack.c.l.bf16 %v384
  %v961 = vunpack.c.l.bf16 %v385
  %v962 = vunpack.c.l.bf16 %v386
  %v963 = vunpack.c.l.bf16 %v387
  %v964 = vunpack.c.l.bf16 %v388
  %v965 = vunpack.c.l.bf16 %v389
  %v966 = vunpack.c.l.bf16 %v390
  %v967 = vunpack.c.l.bf16 %v391
  %v968 = vunpack.c.l.bf16 %v392
  %v969 = vunpack.c.l.bf16 %v393
  %v970 = vunpack.c.l.bf16 %v394
  %v971 = vunpack.c.l.bf16 %v395
  %v972 = vunpack.c.l.bf16 %v396
  %v973 = vunpack.c.l.bf16 %v397
  %v974 = vunpack.c.l.bf16 %v398
  %v975 = vunpack.c.l.bf16 %v399
  %v976 = vunpack.c.l.bf16 %v400
  %v977 = vunpack.c.l.bf16 %v401
  %v978 = vunpack.c.l.bf16 %v402
  %v979 = vunpack.c.l.bf16 %v403
  %v980 = vunpack.c.l.bf16 %v404
  %v981 = vunpack.c.l.bf16 %v405
  %v982 = vunpack.c.l.bf16 %v406
  %v983 = vunpack.c.l.bf16 %v407
  %v984 = vunpack.c.l.bf16 %v408
  %v985 = vunpack.c.l.bf16 %v409
  %v986 = vunpack.c.l.bf16 %v410
  %v987 = vunpack.c.l.bf16 %v411
  %v988 = vunpack.c.l.bf16 %v412
  %v989 = vunpack.c.l.bf16 %v413
  %v990 = vunpack.c.l.bf16 %v414
  %v991 = vunpack.c.l.bf16 %v415
  %v992 = vunpack.c.l.bf16 %v416
  %v993 = vunpack.c.l.bf16 %v417
  %v994 = vunpack.c.l.bf16 %v418
  %v995 = vunpack.c.l.bf16 %v419
  %v996 = vunpack.c.l.bf16 %v420
  %v997 = vunpack.c.l.bf16 %v421
  %v998 = vunpack.c.l.bf16 %v422
  %v999 = vunpack.c.l.bf16 %v423
  %v1000 = vunpack.c.l.bf16 %v424
  %v1001 = vunpack.c.l.bf16 %v425
  %v1002 = vunpack.c.l.bf16 %v426
  %v1003 = vunpack.c.l.bf16 %v427
  %v1004 = vunpack.c.l.bf16 %v428
  %v1005 = vunpack.c.l.bf16 %v429
  %v1006 = vunpack.c.l.bf16 %v430
  %v1007 = vunpack.c.l.bf16 %v431
  %v1008 = vunpack.c.l.bf16 %v432
  %v1009 = vunpack.c.l.bf16 %v433
  %v1010 = vunpack.c.l.bf16 %v434
  %v1011 = vunpack.c.l.bf16 %v435
  %v1012 = vunpack.c.l.bf16 %v436
  %v1013 = vunpack.c.l.bf16 %v437
  %v1014 = vunpack.c.l.bf16 %v438
  %v1015 = vunpack.c.l.bf16 %v439
  %v1016 = vunpack.c.l.bf16 %v440
  %v1017 = vunpack.c.l.bf16 %v441
  %v1018 = vunpack.c.l.bf16 %v442
  %v1019 = vunpack.c.l.bf16 %v443
  %v1020 = vunpack.c.l.bf16 %v444
  %v1021 = vunpack.c.l.bf16 %v445
  %v1022 = vunpack.c.l.bf16 %v446
  %v1023 = vunpack.c.l.bf16 %v447
  %v1024 = vunpack.c.l.bf16 %v448
  %v1025 = vunpack.c.l.bf16 %v449
  %v1026 = vunpack.c.l.bf16 %v450
  %v1027 = vunpack.c.l.bf16 %v451
  %v1028 = vunpack.c.l.bf16 %v452
  %v1029 = vunpack.c.l.bf16 %v453
  %v1030 = vunpack.c.l.bf16 %v454
  %v1031 = vunpack.c.l.bf16 %v455
  %v1032 = vunpack.c.l.bf16 %v456
  %v1033 = vunpack.c.l.bf16 %v457
  %v1034 = vunpack.c.l.bf16 %v458
  %v1035 = vunpack.c.l.bf16 %v459
  %v1036 = vunpack.c.l.bf16 %v460
  %v1037 = vunpack.c.l.bf16 %v461
  %v1038 = vunpack.c.l.bf16 %v462
  %v1039 = vunpack.c.l.bf16 %v463
  %v1040 = vunpack.c.l.bf16 %v464
  %v1041 = vunpack.c.l.bf16 %v465
  %v1042 = vunpack.c.l.bf16 %v466
  %v1043 = vunpack.c.l.bf16 %v467
  %v1044 = vunpack.c.l.bf16 %v468
  %v1045 = vunpack.c.l.bf16 %v469
  %v1046 = vunpack.c.l.bf16 %v470
  %v1047 = vunpack.c.l.bf16 %v471
  %v1048 = vunpack.c.l.bf16 %v472
  %v1049 = vunpack.c.l.bf16 %v473
  %v1050 = vunpack.c.l.bf16 %v474
  %v1051 = vunpack.c.l.bf16 %v475
  %v1052 = vunpack.c.l.bf16 %v476
  %v1053 = vunpack.c.l.bf16 %v477
  %v1054 = vunpack.c.l.bf16 %v478
  %v1055 = vunpack.c.l.bf16 %v479
  %v1056 = vunpack.c.l.bf16 %v480
  %v1057 = vunpack.c.l.bf16 %v481
  %v1058 = vunpack.c.l.bf16 %v482
  %v1059 = vunpack.c.l.bf16 %v483
  %v1060 = vunpack.c.l.bf16 %v484
  %v1061 = vunpack.c.l.bf16 %v485
  %v1062 = vunpack.c.l.bf16 %v486
  %v1063 = vunpack.c.l.bf16 %v487
  %v1064 = vunpack.c.l.bf16 %v488
  %v1065 = vunpack.c.l.bf16 %v489
  %v1066 = vunpack.c.l.bf16 %v490
  %v1067 = vunpack.c.l.bf16 %v491
  %v1068 = vunpack.c.l.bf16 %v492
  %v1069 = vunpack.c.l.bf16 %v493
  %v1070 = vunpack.c.l.bf16 %v494
  %v1071 = vunpack.c.l.bf16 %v495
  %v1072 = vunpack.c.l.bf16 %v496
  %v1073 = vunpack.c.l.bf16 %v497
  %v1074 = vunpack.c.l.bf16 %v498
  %v1075 = vunpack.c.l.bf16 %v499
  %v1076 = vunpack.c.l.bf16 %v500
  %v1077 = vunpack.c.l.bf16 %v501
  %v1078 = vunpack.c.l.bf16 %v502
  %v1079 = vunpack.c.l.bf16 %v503
  %v1080 = vunpack.c.l.bf16 %v504
  %v1081 = vunpack.c.l.bf16 %v505
  %v1082 = vunpack.c.l.bf16 %v506
  %v1083 = vunpack.c.l.bf16 %v507
  %v1084 = vunpack.c.l.bf16 %v508
  %v1085 = vunpack.c.l.bf16 %v509
  %v1086 = vunpack.c.l.bf16 %v510
  %v1087 = vunpack.c.l.bf16 %v511
  %v1088 = vunpack.c.l.bf16 %v512
  %v1089 = vunpack.c.l.bf16 %v513
  %v1090 = vunpack.c.l.bf16 %v514
  %v1091 = vunpack.c.l.bf16 %v515
  %v1092 = vunpack.c.l.bf16 %v516
  %v1093 = vunpack.c.l.bf16 %v517
  %v1094 = vunpack.c.l.bf16 %v518
  %v1095 = vunpack.c.l.bf16 %v519
  %v1096 = vunpack.c.l.bf16 %v520
  %v1097 = vunpack.c.l.bf16 %v521
  %v1098 = vunpack.c.l.bf16 %v522
  %v1099 = vunpack.c.l.bf16 %v523
  %v1100 = vunpack.c.l.bf16 %v524
  %v1101 = vunpack.c.l.bf16 %v525
  %v1102 = vunpack.c.l.bf16 %v526
  %v1103 = vunpack.c.l.bf16 %v527
  %v1104 = vunpack.c.l.bf16 %v528
  %v1105 = vunpack.c.l.bf16 %v529
  %v1106 = vunpack.c.l.bf16 %v530
  %v1107 = vunpack.c.l.bf16 %v531
  %v1108 = vunpack.c.l.bf16 %v532
  %v1109 = vunpack.c.l.bf16 %v533
  %v1110 = vunpack.c.l.bf16 %v534
  %v1111 = vunpack.c.l.bf16 %v535
  %v1112 = vunpack.c.l.bf16 %v536
  %v1113 = vunpack.c.l.bf16 %v537
  %v1114 = vunpack.c.l.bf16 %v538
  %v1115 = vunpack.c.l.bf16 %v539
  %v1116 = vunpack.c.l.bf16 %v540
  %v1117 = vunpack.c.l.bf16 %v541
  %v1118 = vunpack.c.l.bf16 %v542
  %v1119 = vunpack.c.l.bf16 %v543
  %v1120 = vunpack.c.l.bf16 %v544
  %v1121 = vunpack.c.l.bf16 %v545
  %v1122 = vunpack.c.l.bf16 %v546
  %v1123 = vunpack.c.l.bf16 %v547
  %v1124 = vunpack.c.l.bf16 %v548
  %v1125 = vunpack.c.l.bf16 %v549
  %v1126 = vunpack.c.l.bf16 %v550
  %v1127 = vunpack.c.l.bf16 %v551
  %v1128 = vunpack.c.l.bf16 %v552
  %v1129 = vunpack.c.l.bf16 %v553
  %v1130 = vunpack.c.l.bf16 %v554
  %v1131 = vunpack.c.l.bf16 %v555
  %v1132 = vunpack.c.l.bf16 %v556
  %v1133 = vunpack.c.l.bf16 %v557
  %v1134 = vunpack.c.l.bf16 %v558
  %v1135 = vunpack.c.l.bf16 %v559
  %v1136 = vunpack.c.l.bf16 %v560
  %v1137 = vunpack.c.l.bf16 %v561
  %v1138 = vunpack.c.l.bf16 %v562
  %v1139 = vunpack.c.l.bf16 %v563
  %v1140 = vunpack.c.l.bf16 %v564
  %v1141 = vunpack.c.l.bf16 %v565
  %v1142 = vunpack.c.l.bf16 %v566
  %v1143 = vunpack.c.l.bf16 %v567
  %v1144 = vunpack.c.l.bf16 %v568
  %v1145 = vunpack.c.l.bf16 %v569
  %v1146 = vunpack.c.l.bf16 %v570
  %v1147 = vunpack.c.l.bf16 %v571
  %v1148 = vunpack.c.l.bf16 %v572
  %v1149 = vunpack.c.l.bf16 %v573
  %v1150 = vunpack.c.l.bf16 %v574
  %v1151 = vunpack.c.l.bf16 %v575
  %v1152 = vunpack.c.l.bf16 %v576
  %v1153 = vunpack.c.l.bf16 %v577
  %v1154 = vunpack.c.l.bf16 %v578
  %v1155 = vunpack.c.l.bf16 %v579
  %v1156 = vunpack.c.l.bf16 %v580
  %v1157 = vunpack.c.l.bf16 %v581
  %v1158 = vunpack.c.l.bf16 %v582
  %v1159 = vunpack.c.l.bf16 %v583
  %v1160 = vunpack.c.l.bf16 %v584
  %v1161 = vunpack.c.l.bf16 %v585
  %v1162 = vunpack.c.l.bf16 %v586
  %v1163 = vunpack.c.l.bf16 %v587
  %v1164 = vunpack.c.l.bf16 %v588
  %v1165 = vunpack.c.l.bf16 %v589
  %v1166 = vunpack.c.l.bf16 %v590
  %v1167 = vunpack.c.l.bf16 %v591
  %v1168 = vmax.f32 %v592, %v656
  %v1169 = vmax.f32 %v1168, %v720
  %v1170 = vmax.f32 %v1169, %v784
  %v1171 = vmax.f32 %v1170, %v848
  %v1172 = vmax.f32 %v1171, %v912
  %v1173 = vmax.f32 %v1172, %v976
  %v1174 = vmax.f32 %v1173, %v1040
  %v1175 = vmax.f32 %v1174, %v1104
  %v1176 = vmax.f32 %v593, %v657
  %v1177 = vmax.f32 %v1176, %v721
  %v1178 = vmax.f32 %v1177, %v785
  %v1179 = vmax.f32 %v1178, %v849
  %v1180 = vmax.f32 %v1179, %v913
  %v1181 = vmax.f32 %v1180, %v977
  %v1182 = vmax.f32 %v1181, %v1041
  %v1183 = vmax.f32 %v1182, %v1105
  %v1184 = vmax.f32 %v594, %v658
  %v1185 = vmax.f32 %v1184, %v722
  %v1186 = vmax.f32 %v1185, %v786
  %v1187 = vmax.f32 %v1186, %v850
  %v1188 = vmax.f32 %v1187, %v914
  %v1189 = vmax.f32 %v1188, %v978
  %v1190 = vmax.f32 %v1189, %v1042
  %v1191 = vmax.f32 %v1190, %v1106
  %v1192 = vmax.f32 %v595, %v659
  %v1193 = vmax.f32 %v1192, %v723
  %v1194 = vmax.f32 %v1193, %v787
  %v1195 = vmax.f32 %v1194, %v851
  %v1196 = vmax.f32 %v1195, %v915
  %v1197 = vmax.f32 %v1196, %v979
  %v1198 = vmax.f32 %v1197, %v1043
  %v1199 = vmax.f32 %v1198, %v1107
  %v1200 = vmax.f32 %v596, %v660
  %v1201 = vmax.f32 %v1200, %v724
  %v1202 = vmax.f32 %v1201, %v788
  %v1203 = vmax.f32 %v1202, %v852
  %v1204 = vmax.f32 %v1203, %v916
  %v1205 = vmax.f32 %v1204, %v980
  %v1206 = vmax.f32 %v1205, %v1044
  %v1207 = vmax.f32 %v1206, %v1108
  %v1208 = vmax.f32 %v597, %v661
  %v1209 = vmax.f32 %v1208, %v725
  %v1210 = vmax.f32 %v1209, %v789
  %v1211 = vmax.f32 %v1210, %v853
  %v1212 = vmax.f32 %v1211, %v917
  %v1213 = vmax.f32 %v1212, %v981
  %v1214 = vmax.f32 %v1213, %v1045
  %v1215 = vmax.f32 %v1214, %v1109
  %v1216 = vmax.f32 %v598, %v662
  %v1217 = vmax.f32 %v1216, %v726
  %v1218 = vmax.f32 %v1217, %v790
  %v1219 = vmax.f32 %v1218, %v854
  %v1220 = vmax.f32 %v1219, %v918
  %v1221 = vmax.f32 %v1220, %v982
  %v1222 = vmax.f32 %v1221, %v1046
  %v1223 = vmax.f32 %v1222, %v1110
  %v1224 = vmax.f32 %v599, %v663
  %v1225 = vmax.f32 %v1224, %v727
  %v1226 = vmax.f32 %v1225, %v791
  %v1227 = vmax.f32 %v1226, %v855
  %v1228 = vmax.f32 %v1227, %v919
  %v1229 = vmax.f32 %v1228, %v983
  %v1230 = vmax.f32 %v1229, %v1047
  %v1231 = vmax.f32 %v1230, %v1111
  %v1232 = vmax.f32 %v600, %v664
  %v1233 = vmax.f32 %v1232, %v728
  %v1234 = vmax.f32 %v1233, %v792
  %v1235 = vmax.f32 %v1234, %v856
  %v1236 = vmax.f32 %v1235, %v920
  %v1237 = vmax.f32 %v1236, %v984
  %v1238 = vmax.f32 %v1237, %v1048
  %v1239 = vmax.f32 %v1238, %v1112
  %v1240 = vmax.f32 %v601, %v665
  %v1241 = vmax.f32 %v1240, %v729
  %v1242 = vmax.f32 %v1241, %v793
  %v1243 = vmax.f32 %v1242, %v857
  %v1244 = vmax.f32 %v1243, %v921
  %v1245 = vmax.f32 %v1244, %v985
  %v1246 = vmax.f32 %v1245, %v1049
  %v1247 = vmax.f32 %v1246, %v1113
  %v1248 = vmax.f32 %v602, %v666
  %v1249 = vmax.f32 %v1248, %v730
  %v1250 = vmax.f32 %v1249, %v794
  %v1251 = vmax.f32 %v1250, %v858
  %v1252 = vmax.f32 %v1251, %v922
  %v1253 = vmax.f32 %v1252, %v986
  %v1254 = vmax.f32 %v1253, %v1050
  %v1255 = vmax.f32 %v1254, %v1114
  %v1256 = vmax.f32 %v603, %v667
  %v1257 = vmax.f32 %v1256, %v731
  %v1258 = vmax.f32 %v1257, %v795
  %v1259 = vmax.f32 %v1258, %v859
  %v1260 = vmax.f32 %v1259, %v923
  %v1261 = vmax.f32 %v1260, %v987
  %v1262 = vmax.f32 %v1261, %v1051
  %v1263 = vmax.f32 %v1262, %v1115
  %v1264 = vmax.f32 %v604, %v668
  %v1265 = vmax.f32 %v1264, %v732
  %v1266 = vmax.f32 %v1265, %v796
  %v1267 = vmax.f32 %v1266, %v860
  %v1268 = vmax.f32 %v1267, %v924
  %v1269 = vmax.f32 %v1268, %v988
  %v1270 = vmax.f32 %v1269, %v1052
  %v1271 = vmax.f32 %v1270, %v1116
  %v1272 = vmax.f32 %v605, %v669
  %v1273 = vmax.f32 %v1272, %v733
  %v1274 = vmax.f32 %v1273, %v797
  %v1275 = vmax.f32 %v1274, %v861
  %v1276 = vmax.f32 %v1275, %v925
  %v1277 = vmax.f32 %v1276, %v989
  %v1278 = vmax.f32 %v1277, %v1053
  %v1279 = vmax.f32 %v1278, %v1117
  %v1280 = vmax.f32 %v606, %v670
  %v1281 = vmax.f32 %v1280, %v734
  %v1282 = vmax.f32 %v1281, %v798
  %v1283 = vmax.f32 %v1282, %v862
  %v1284 = vmax.f32 %v1283, %v926
  %v1285 = vmax.f32 %v1284, %v990
  %v1286 = vmax.f32 %v1285, %v1054
  %v1287 = vmax.f32 %v1286, %v1118
  %v1288 = vmax.f32 %v607, %v671
  %v1289 = vmax.f32 %v1288, %v735
  %v1290 = vmax.f32 %v1289, %v799
  %v1291 = vmax.f32 %v1290, %v863
  %v1292 = vmax.f32 %v1291, %v927
  %v1293 = vmax.f32 %v1292, %v991
  %v1294 = vmax.f32 %v1293, %v1055
  %v1295 = vmax.f32 %v1294, %v1119
  %v1296 = vmax.f32 %v608, %v672
  %v1297 = vmax.f32 %v1296, %v736
  %v1298 = vmax.f32 %v1297, %v800
  %v1299 = vmax.f32 %v1298, %v864
  %v1300 = vmax.f32 %v1299, %v928
  %v1301 = vmax.f32 %v1300, %v992
  %v1302 = vmax.f32 %v1301, %v1056
  %v1303 = vmax.f32 %v1302, %v1120
  %v1304 = vmax.f32 %v609, %v673
  %v1305 = vmax.f32 %v1304, %v737
  %v1306 = vmax.f32 %v1305, %v801
  %v1307 = vmax.f32 %v1306, %v865
  %v1308 = vmax.f32 %v1307, %v929
  %v1309 = vmax.f32 %v1308, %v993
  %v1310 = vmax.f32 %v1309, %v1057
  %v1311 = vmax.f32 %v1310, %v1121
  %v1312 = vmax.f32 %v610, %v674
  %v1313 = vmax.f32 %v1312, %v738
  %v1314 = vmax.f32 %v1313, %v802
  %v1315 = vmax.f32 %v1314, %v866
  %v1316 = vmax.f32 %v1315, %v930
  %v1317 = vmax.f32 %v1316, %v994
  %v1318 = vmax.f32 %v1317, %v1058
  %v1319 = vmax.f32 %v1318, %v1122
  %v1320 = vmax.f32 %v611, %v675
  %v1321 = vmax.f32 %v1320, %v739
  %v1322 = vmax.f32 %v1321, %v803
  %v1323 = vmax.f32 %v1322, %v867
  %v1324 = vmax.f32 %v1323, %v931
  %v1325 = vmax.f32 %v1324, %v995
  %v1326 = vmax.f32 %v1325, %v1059
  %v1327 = vmax.f32 %v1326, %v1123
  %v1328 = vmax.f32 %v612, %v676
  %v1329 = vmax.f32 %v1328, %v740
  %v1330 = vmax.f32 %v1329, %v804
  %v1331 = vmax.f32 %v1330, %v868
  %v1332 = vmax.f32 %v1331, %v932
  %v1333 = vmax.f32 %v1332, %v996
  %v1334 = vmax.f32 %v1333, %v1060
  %v1335 = vmax.f32 %v1334, %v1124
  %v1336 = vmax.f32 %v613, %v677
  %v1337 = vmax.f32 %v1336, %v741
  %v1338 = vmax.f32 %v1337, %v805
  %v1339 = vmax.f32 %v1338, %v869
  %v1340 = vmax.f32 %v1339, %v933
  %v1341 = vmax.f32 %v1340, %v997
  %v1342 = vmax.f32 %v1341, %v1061
  %v1343 = vmax.f32 %v1342, %v1125
  %v1344 = vmax.f32 %v614, %v678
  %v1345 = vmax.f32 %v1344, %v742
  %v1346 = vmax.f32 %v1345, %v806
  %v1347 = vmax.f32 %v1346, %v870
  %v1348 = vmax.f32 %v1347, %v934
  %v1349 = vmax.f32 %v1348, %v998
  %v1350 = vmax.f32 %v1349, %v1062
  %v1351 = vmax.f32 %v1350, %v1126
  %v1352 = vmax.f32 %v615, %v679
  %v1353 = vmax.f32 %v1352, %v743
  %v1354 = vmax.f32 %v1353, %v807
  %v1355 = vmax.f32 %v1354, %v871
  %v1356 = vmax.f32 %v1355, %v935
  %v1357 = vmax.f32 %v1356, %v999
  %v1358 = vmax.f32 %v1357, %v1063
  %v1359 = vmax.f32 %v1358, %v1127
  %v1360 = vmax.f32 %v616, %v680
  %v1361 = vmax.f32 %v1360, %v744
  %v1362 = vmax.f32 %v1361, %v808
  %v1363 = vmax.f32 %v1362, %v872
  %v1364 = vmax.f32 %v1363, %v936
  %v1365 = vmax.f32 %v1364, %v1000
  %v1366 = vmax.f32 %v1365, %v1064
  %v1367 = vmax.f32 %v1366, %v1128
  %v1368 = vmax.f32 %v617, %v681
  %v1369 = vmax.f32 %v1368, %v745
  %v1370 = vmax.f32 %v1369, %v809
  %v1371 = vmax.f32 %v1370, %v873
  %v1372 = vmax.f32 %v1371, %v937
  %v1373 = vmax.f32 %v1372, %v1001
  %v1374 = vmax.f32 %v1373, %v1065
  %v1375 = vmax.f32 %v1374, %v1129
  %v1376 = vmax.f32 %v618, %v682
  %v1377 = vmax.f32 %v1376, %v746
  %v1378 = vmax.f32 %v1377, %v810
  %v1379 = vmax.f32 %v1378, %v874
  %v1380 = vmax.f32 %v1379, %v938
  %v1381 = vmax.f32 %v1380, %v1002
  %v1382 = vmax.f32 %v1381, %v1066
  %v1383 = vmax.f32 %v1382, %v1130
  %v1384 = vmax.f32 %v619, %v683
  %v1385 = vmax.f32 %v1384, %v747
  %v1386 = vmax.f32 %v1385, %v811
  %v1387 = vmax.f32 %v1386, %v875
  %v1388 = vmax.f32 %v1387, %v939
  %v1389 = vmax.f32 %v1388, %v1003
  %v1390 = vmax.f32 %v1389, %v1067
  %v1391 = vmax.f32 %v1390, %v1131
  %v1392 = vmax.f32 %v620, %v684
  %v1393 = vmax.f32 %v1392, %v748
  %v1394 = vmax.f32 %v1393, %v812
  %v1395 = vmax.f32 %v1394, %v876
  %v1396 = vmax.f32 %v1395, %v940
  %v1397 = vmax.f32 %v1396, %v1004
  %v1398 = vmax.f32 %v1397, %v1068
  %v1399 = vmax.f32 %v1398, %v1132
  %v1400 = vmax.f32 %v621, %v685
  %v1401 = vmax.f32 %v1400, %v749
  %v1402 = vmax.f32 %v1401, %v813
  %v1403 = vmax.f32 %v1402, %v877
  %v1404 = vmax.f32 %v1403, %v941
  %v1405 = vmax.f32 %v1404, %v1005
  %v1406 = vmax.f32 %v1405, %v1069
  %v1407 = vmax.f32 %v1406, %v1133
  %v1408 = vmax.f32 %v622, %v686
  %v1409 = vmax.f32 %v1408, %v750
  %v1410 = vmax.f32 %v1409, %v814
  %v1411 = vmax.f32 %v1410, %v878
  %v1412 = vmax.f32 %v1411, %v942
  %v1413 = vmax.f32 %v1412, %v1006
  %v1414 = vmax.f32 %v1413, %v1070
  %v1415 = vmax.f32 %v1414, %v1134
  %v1416 = vmax.f32 %v623, %v687
  %v1417 = vmax.f32 %v1416, %v751
  %v1418 = vmax.f32 %v1417, %v815
  %v1419 = vmax.f32 %v1418, %v879
  %v1420 = vmax.f32 %v1419, %v943
  %v1421 = vmax.f32 %v1420, %v1007
  %v1422 = vmax.f32 %v1421, %v1071
  %v1423 = vmax.f32 %v1422, %v1135
  %v1424 = vmax.f32 %v624, %v688
  %v1425 = vmax.f32 %v1424, %v752
  %v1426 = vmax.f32 %v1425, %v816
  %v1427 = vmax.f32 %v1426, %v880
  %v1428 = vmax.f32 %v1427, %v944
  %v1429 = vmax.f32 %v1428, %v1008
  %v1430 = vmax.f32 %v1429, %v1072
  %v1431 = vmax.f32 %v1430, %v1136
  %v1432 = vmax.f32 %v625, %v689
  %v1433 = vmax.f32 %v1432, %v753
  %v1434 = vmax.f32 %v1433, %v817
  %v1435 = vmax.f32 %v1434, %v881
  %v1436 = vmax.f32 %v1435, %v945
  %v1437 = vmax.f32 %v1436, %v1009
  %v1438 = vmax.f32 %v1437, %v1073
  %v1439 = vmax.f32 %v1438, %v1137
  %v1440 = vmax.f32 %v626, %v690
  %v1441 = vmax.f32 %v1440, %v754
  %v1442 = vmax.f32 %v1441, %v818
  %v1443 = vmax.f32 %v1442, %v882
  %v1444 = vmax.f32 %v1443, %v946
  %v1445 = vmax.f32 %v1444, %v1010
  %v1446 = vmax.f32 %v1445, %v1074
  %v1447 = vmax.f32 %v1446, %v1138
  %v1448 = vmax.f32 %v627, %v691
  %v1449 = vmax.f32 %v1448, %v755
  %v1450 = vmax.f32 %v1449, %v819
  %v1451 = vmax.f32 %v1450, %v883
  %v1452 = vmax.f32 %v1451, %v947
  %v1453 = vmax.f32 %v1452, %v1011
  %v1454 = vmax.f32 %v1453, %v1075
  %v1455 = vmax.f32 %v1454, %v1139
  %v1456 = vmax.f32 %v628, %v692
  %v1457 = vmax.f32 %v1456, %v756
  %v1458 = vmax.f32 %v1457, %v820
  %v1459 = vmax.f32 %v1458, %v884
  %v1460 = vmax.f32 %v1459, %v948
  %v1461 = vmax.f32 %v1460, %v1012
  %v1462 = vmax.f32 %v1461, %v1076
  %v1463 = vmax.f32 %v1462, %v1140
  %v1464 = vmax.f32 %v629, %v693
  %v1465 = vmax.f32 %v1464, %v757
  %v1466 = vmax.f32 %v1465, %v821
  %v1467 = vmax.f32 %v1466, %v885
  %v1468 = vmax.f32 %v1467, %v949
  %v1469 = vmax.f32 %v1468, %v1013
  %v1470 = vmax.f32 %v1469, %v1077
  %v1471 = vmax.f32 %v1470, %v1141
  %v1472 = vmax.f32 %v630, %v694
  %v1473 = vmax.f32 %v1472, %v758
  %v1474 = vmax.f32 %v1473, %v822
  %v1475 = vmax.f32 %v1474, %v886
  %v1476 = vmax.f32 %v1475, %v950
  %v1477 = vmax.f32 %v1476, %v1014
  %v1478 = vmax.f32 %v1477, %v1078
  %v1479 = vmax.f32 %v1478, %v1142
  %v1480 = vmax.f32 %v631, %v695
  %v1481 = vmax.f32 %v1480, %v759
  %v1482 = vmax.f32 %v1481, %v823
  %v1483 = vmax.f32 %v1482, %v887
  %v1484 = vmax.f32 %v1483, %v951
  %v1485 = vmax.f32 %v1484, %v1015
  %v1486 = vmax.f32 %v1485, %v1079
  %v1487 = vmax.f32 %v1486, %v1143
  %v1488 = vmax.f32 %v632, %v696
  %v1489 = vmax.f32 %v1488, %v760
  %v1490 = vmax.f32 %v1489, %v824
  %v1491 = vmax.f32 %v1490, %v888
  %v1492 = vmax.f32 %v1491, %v952
  %v1493 = vmax.f32 %v1492, %v1016
  %v1494 = vmax.f32 %v1493, %v1080
  %v1495 = vmax.f32 %v1494, %v1144
  %v1496 = vmax.f32 %v633, %v697
  %v1497 = vmax.f32 %v1496, %v761
  %v1498 = vmax.f32 %v1497, %v825
  %v1499 = vmax.f32 %v1498, %v889
  %v1500 = vmax.f32 %v1499, %v953
  %v1501 = vmax.f32 %v1500, %v1017
  %v1502 = vmax.f32 %v1501, %v1081
  %v1503 = vmax.f32 %v1502, %v1145
  %v1504 = vmax.f32 %v634, %v698
  %v1505 = vmax.f32 %v1504, %v762
  %v1506 = vmax.f32 %v1505, %v826
  %v1507 = vmax.f32 %v1506, %v890
  %v1508 = vmax.f32 %v1507, %v954
  %v1509 = vmax.f32 %v1508, %v1018
  %v1510 = vmax.f32 %v1509, %v1082
  %v1511 = vmax.f32 %v1510, %v1146
  %v1512 = vmax.f32 %v635, %v699
  %v1513 = vmax.f32 %v1512, %v763
  %v1514 = vmax.f32 %v1513, %v827
  %v1515 = vmax.f32 %v1514, %v891
  %v1516 = vmax.f32 %v1515, %v955
  %v1517 = vmax.f32 %v1516, %v1019
  %v1518 = vmax.f32 %v1517, %v1083
  %v1519 = vmax.f32 %v1518, %v1147
  %v1520 = vmax.f32 %v636, %v700
  %v1521 = vmax.f32 %v1520, %v764
  %v1522 = vmax.f32 %v1521, %v828
  %v1523 = vmax.f32 %v1522, %v892
  %v1524 = vmax.f32 %v1523, %v956
  %v1525 = vmax.f32 %v1524, %v1020
  %v1526 = vmax.f32 %v1525, %v1084
  %v1527 = vmax.f32 %v1526, %v1148
  %v1528 = vmax.f32 %v637, %v701
  %v1529 = vmax.f32 %v1528, %v765
  %v1530 = vmax.f32 %v1529, %v829
  %v1531 = vmax.f32 %v1530, %v893
  %v1532 = vmax.f32 %v1531, %v957
  %v1533 = vmax.f32 %v1532, %v1021
  %v1534 = vmax.f32 %v1533, %v1085
  %v1535 = vmax.f32 %v1534, %v1149
  %v1536 = vmax.f32 %v638, %v702
  %v1537 = vmax.f32 %v1536, %v766
  %v1538 = vmax.f32 %v1537, %v830
  %v1539 = vmax.f32 %v1538, %v894
  %v1540 = vmax.f32 %v1539, %v958
  %v1541 = vmax.f32 %v1540, %v1022
  %v1542 = vmax.f32 %v1541, %v1086
  %v1543 = vmax.f32 %v1542, %v1150
  %v1544 = vmax.f32 %v639, %v703
  %v1545 = vmax.f32 %v1544, %v767
  %v1546 = vmax.f32 %v1545, %v831
  %v1547 = vmax.f32 %v1546, %v895
  %v1548 = vmax.f32 %v1547, %v959
  %v1549 = vmax.f32 %v1548, %v1023
  %v1550 = vmax.f32 %v1549, %v1087
  %v1551 = vmax.f32 %v1550, %v1151
  %v1552 = vmax.f32 %v640, %v704
  %v1553 = vmax.f32 %v1552, %v768
  %v1554 = vmax.f32 %v1553, %v832
  %v1555 = vmax.f32 %v1554, %v896
  %v1556 = vmax.f32 %v1555, %v960
  %v1557 = vmax.f32 %v1556, %v1024
  %v1558 = vmax.f32 %v1557, %v1088
  %v1559 = vmax.f32 %v1558, %v1152
  %v1560 = vmax.f32 %v641, %v705
  %v1561 = vmax.f32 %v1560, %v769
  %v1562 = vmax.f32 %v1561, %v833
  %v1563 = vmax.f32 %v1562, %v897
  %v1564 = vmax.f32 %v1563, %v961
  %v1565 = vmax.f32 %v1564, %v1025
  %v1566 = vmax.f32 %v1565, %v1089
  %v1567 = vmax.f32 %v1566, %v1153
  %v1568 = vmax.f32 %v642, %v706
  %v1569 = vmax.f32 %v1568, %v770
  %v1570 = vmax.f32 %v1569, %v834
  %v1571 = vmax.f32 %v1570, %v898
  %v1572 = vmax.f32 %v1571, %v962
  %v1573 = vmax.f32 %v1572, %v1026
  %v1574 = vmax.f32 %v1573, %v1090
  %v1575 = vmax.f32 %v1574, %v1154
  %v1576 = vmax.f32 %v643, %v707
  %v1577 = vmax.f32 %v1576, %v771
  %v1578 = vmax.f32 %v1577, %v835
  %v1579 = vmax.f32 %v1578, %v899
  %v1580 = vmax.f32 %v1579, %v963
  %v1581 = vmax.f32 %v1580, %v1027
  %v1582 = vmax.f32 %v1581, %v1091
  %v1583 = vmax.f32 %v1582, %v1155
  %v1584 = vmax.f32 %v644, %v708
  %v1585 = vmax.f32 %v1584, %v772
  %v1586 = vmax.f32 %v1585, %v836
  %v1587 = vmax.f32 %v1586, %v900
  %v1588 = vmax.f32 %v1587, %v964
  %v1589 = vmax.f32 %v1588, %v1028
  %v1590 = vmax.f32 %v1589, %v1092
  %v1591 = vmax.f32 %v1590, %v1156
  %v1592 = vmax.f32 %v645, %v709
  %v1593 = vmax.f32 %v1592, %v773
  %v1594 = vmax.f32 %v1593, %v837
  %v1595 = vmax.f32 %v1594, %v901
  %v1596 = vmax.f32 %v1595, %v965
  %v1597 = vmax.f32 %v1596, %v1029
  %v1598 = vmax.f32 %v1597, %v1093
  %v1599 = vmax.f32 %v1598, %v1157
  %v1600 = vmax.f32 %v646, %v710
  %v1601 = vmax.f32 %v1600, %v774
  %v1602 = vmax.f32 %v1601, %v838
  %v1603 = vmax.f32 %v1602, %v902
  %v1604 = vmax.f32 %v1603, %v966
  %v1605 = vmax.f32 %v1604, %v1030
  %v1606 = vmax.f32 %v1605, %v1094
  %v1607 = vmax.f32 %v1606, %v1158
  %v1608 = vmax.f32 %v647, %v711
  %v1609 = vmax.f32 %v1608, %v775
  %v1610 = vmax.f32 %v1609, %v839
  %v1611 = vmax.f32 %v1610, %v903
  %v1612 = vmax.f32 %v1611, %v967
  %v1613 = vmax.f32 %v1612, %v1031
  %v1614 = vmax.f32 %v1613, %v1095
  %v1615 = vmax.f32 %v1614, %v1159
  %v1616 = vmax.f32 %v648, %v712
  %v1617 = vmax.f32 %v1616, %v776
  %v1618 = vmax.f32 %v1617, %v840
  %v1619 = vmax.f32 %v1618, %v904
  %v1620 = vmax.f32 %v1619, %v968
  %v1621 = vmax.f32 %v1620, %v1032
  %v1622 = vmax.f32 %v1621, %v1096
  %v1623 = vmax.f32 %v1622, %v1160
  %v1624 = vmax.f32 %v649, %v713
  %v1625 = vmax.f32 %v1624, %v777
  %v1626 = vmax.f32 %v1625, %v841
  %v1627 = vmax.f32 %v1626, %v905
  %v1628 = vmax.f32 %v1627, %v969
  %v1629 = vmax.f32 %v1628, %v1033
  %v1630 = vmax.f32 %v1629, %v1097
  %v1631 = vmax.f32 %v1630, %v1161
  %v1632 = vmax.f32 %v650, %v714
  %v1633 = vmax.f32 %v1632, %v778
  %v1634 = vmax.f32 %v1633, %v842
  %v1635 = vmax.f32 %v1634, %v906
  %v1636 = vmax.f32 %v1635, %v970
  %v1637 = vmax.f32 %v1636, %v1034
  %v1638 = vmax.f32 %v1637, %v1098
  %v1639 = vmax.f32 %v1638, %v1162
  %v1640 = vmax.f32 %v651, %v715
  %v1641 = vmax.f32 %v1640, %v779
  %v1642 = vmax.f32 %v1641, %v843
  %v1643 = vmax.f32 %v1642, %v907
  %v1644 = vmax.f32 %v1643, %v971
  %v1645 = vmax.f32 %v1644, %v1035
  %v1646 = vmax.f32 %v1645, %v1099
  %v1647 = vmax.f32 %v1646, %v1163
  %v1648 = vmax.f32 %v652, %v716
  %v1649 = vmax.f32 %v1648, %v780
  %v1650 = vmax.f32 %v1649, %v844
  %v1651 = vmax.f32 %v1650, %v908
  %v1652 = vmax.f32 %v1651, %v972
  %v1653 = vmax.f32 %v1652, %v1036
  %v1654 = vmax.f32 %v1653, %v1100
  %v1655 = vmax.f32 %v1654, %v1164
  %v1656 = vmax.f32 %v653, %v717
  %v1657 = vmax.f32 %v1656, %v781
  %v1658 = vmax.f32 %v1657, %v845
  %v1659 = vmax.f32 %v1658, %v909
  %v1660 = vmax.f32 %v1659, %v973
  %v1661 = vmax.f32 %v1660, %v1037
  %v1662 = vmax.f32 %v1661, %v1101
  %v1663 = vmax.f32 %v1662, %v1165
  %v1664 = vmax.f32 %v654, %v718
  %v1665 = vmax.f32 %v1664, %v782
  %v1666 = vmax.f32 %v1665, %v846
  %v1667 = vmax.f32 %v1666, %v910
  %v1668 = vmax.f32 %v1667, %v974
  %v1669 = vmax.f32 %v1668, %v1038
  %v1670 = vmax.f32 %v1669, %v1102
  %v1671 = vmax.f32 %v1670, %v1166
  %v1672 = vmax.f32 %v655, %v719
  %v1673 = vmax.f32 %v1672, %v783
  %v1674 = vmax.f32 %v1673, %v847
  %v1675 = vmax.f32 %v1674, %v911
  %v1676 = vmax.f32 %v1675, %v975
  %v1677 = vmax.f32 %v1676, %v1039
  %v1678 = vmax.f32 %v1677, %v1103
  %v1679 = vmax.f32 %v1678, %v1167
  %v1680 = vpack.c.bf16 %v1175, %v1175
  %v1681 = vpack.c.bf16 %v1183, %v1183
  %v1682 = vpack.c.bf16 %v1191, %v1191
  %v1683 = vpack.c.bf16 %v1199, %v1199
  %v1684 = vpack.c.bf16 %v1207, %v1207
  %v1685 = vpack.c.bf16 %v1215, %v1215
  %v1686 = vpack.c.bf16 %v1223, %v1223
  %v1687 = vpack.c.bf16 %v1231, %v1231
  %v1688 = vpack.c.bf16 %v1239, %v1239
  %v1689 = vpack.c.bf16 %v1247, %v1247
  %v1690 = vpack.c.bf16 %v1255, %v1255
  %v1691 = vpack.c.bf16 %v1263, %v1263
  %v1692 = vpack.c.bf16 %v1271, %v1271
  %v1693 = vpack.c.bf16 %v1279, %v1279
  %v1694 = vpack.c.bf16 %v1287, %v1287
  %v1695 = vpack.c.bf16 %v1295, %v1295
  %v1696 = vpack.c.bf16 %v1303, %v1303
  %v1697 = vpack.c.bf16 %v1311, %v1311
  %v1698 = vpack.c.bf16 %v1319, %v1319
  %v1699 = vpack.c.bf16 %v1327, %v1327
  %v1700 = vpack.c.bf16 %v1335, %v1335
  %v1701 = vpack.c.bf16 %v1343, %v1343
  %v1702 = vpack.c.bf16 %v1351, %v1351
  %v1703 = vpack.c.bf16 %v1359, %v1359
  %v1704 = vpack.c.bf16 %v1367, %v1367
  %v1705 = vpack.c.bf16 %v1375, %v1375
  %v1706 = vpack.c.bf16 %v1383, %v1383
  %v1707 = vpack.c.bf16 %v1391, %v1391
  %v1708 = vpack.c.bf16 %v1399, %v1399
  %v1709 = vpack.c.bf16 %v1407, %v1407
  %v1710 = vpack.c.bf16 %v1415, %v1415
  %v1711 = vpack.c.bf16 %v1423, %v1423
  %v1712 = vpack.c.bf16 %v1431, %v1431
  %v1713 = vpack.c.bf16 %v1439, %v1439
  %v1714 = vpack.c.bf16 %v1447, %v1447
  %v1715 = vpack.c.bf16 %v1455, %v1455
  %v1716 = vpack.c.bf16 %v1463, %v1463
  %v1717 = vpack.c.bf16 %v1471, %v1471
  %v1718 = vpack.c.bf16 %v1479, %v1479
  %v1719 = vpack.c.bf16 %v1487, %v1487
  %v1720 = vpack.c.bf16 %v1495, %v1495
  %v1721 = vpack.c.bf16 %v1503, %v1503
  %v1722 = vpack.c.bf16 %v1511, %v1511
  %v1723 = vpack.c.bf16 %v1519, %v1519
  %v1724 = vpack.c.bf16 %v1527, %v1527
  %v1725 = vpack.c.bf16 %v1535, %v1535
  %v1726 = vpack.c.bf16 %v1543, %v1543
  %v1727 = vpack.c.bf16 %v1551, %v1551
  %v1728 = vpack.c.bf16 %v1559, %v1559
  %v1729 = vpack.c.bf16 %v1567, %v1567
  %v1730 = vpack.c.bf16 %v1575, %v1575
  %v1731 = vpack.c.bf16 %v1583, %v1583
  %v1732 = vpack.c.bf16 %v1591, %v1591
  %v1733 = vpack.c.bf16 %v1599, %v1599
  %v1734 = vpack.c.bf16 %v1607, %v1607
  %v1735 = vpack.c.bf16 %v1615, %v1615
  %v1736 = vpack.c.bf16 %v1623, %v1623
  %v1737 = vpack.c.bf16 %v1631, %v1631
  %v1738 = vpack.c.bf16 %v1639, %v1639
  %v1739 = vpack.c.bf16 %v1647, %v1647
  %v1740 = vpack.c.bf16 %v1655, %v1655
  %v1741 = vpack.c.bf16 %v1663, %v1663
  %v1742 = vpack.c.bf16 %v1671, %v1671
  %v1743 = vpack.c.bf16 %v1679, %v1679
  %1744 = vst [vmem:[%s4] sm:$0xf] %v1680
  %1745 = vst [vmem:[%s4 + $0x4] sm:$0xf] %v1681
  %1746 = vst [vmem:[%s4 + $0x8] sm:$0xf] %v1682
  %1747 = vst [vmem:[%s4 + $0xc] sm:$0xf] %v1683
  %1748 = vst [vmem:[%s4 + $0x10] sm:$0xf] %v1684
  %1749 = vst [vmem:[%s4 + $0x14] sm:$0xf] %v1685
  %1750 = vst [vmem:[%s4 + $0x18] sm:$0xf] %v1686
  %1751 = vst [vmem:[%s4 + $0x1c] sm:$0xf] %v1687
  %1752 = vst [vmem:[%s4 + $0x20] sm:$0xf] %v1688
  %1753 = vst [vmem:[%s4 + $0x24] sm:$0xf] %v1689
  %1754 = vst [vmem:[%s4 + $0x28] sm:$0xf] %v1690
  %1755 = vst [vmem:[%s4 + $0x2c] sm:$0xf] %v1691
  %1756 = vst [vmem:[%s4 + $0x30] sm:$0xf] %v1692
  %1757 = vst [vmem:[%s4 + $0x34] sm:$0xf] %v1693
  %1758 = vst [vmem:[%s4 + $0x38] sm:$0xf] %v1694
  %1759 = vst [vmem:[%s4 + $0x3c] sm:$0xf] %v1695
  %1760 = vst [vmem:[%s4 + $0x40] sm:$0xf] %v1696
  %1761 = vst [vmem:[%s4 + $0x44] sm:$0xf] %v1697
  %1762 = vst [vmem:[%s4 + $0x48] sm:$0xf] %v1698
  %1763 = vst [vmem:[%s4 + $0x4c] sm:$0xf] %v1699
  %1764 = vst [vmem:[%s4 + $0x50] sm:$0xf] %v1700
  %1765 = vst [vmem:[%s4 + $0x54] sm:$0xf] %v1701
  %1766 = vst [vmem:[%s4 + $0x58] sm:$0xf] %v1702
  %1767 = vst [vmem:[%s4 + $0x5c] sm:$0xf] %v1703
  %1768 = vst [vmem:[%s4 + $0x60] sm:$0xf] %v1704
  %1769 = vst [vmem:[%s4 + $0x64] sm:$0xf] %v1705
  %1770 = vst [vmem:[%s4 + $0x68] sm:$0xf] %v1706
  %1771 = vst [vmem:[%s4 + $0x6c] sm:$0xf] %v1707
  %1772 = vst [vmem:[%s4 + $0x70] sm:$0xf] %v1708
  %1773 = vst [vmem:[%s4 + $0x74] sm:$0xf] %v1709
  %1774 = vst [vmem:[%s4 + $0x78] sm:$0xf] %v1710
  %1775 = vst [vmem:[%s4 + $0x7c] sm:$0xf] %v1711
  %1776 = vst [vmem:[%s4 + $0x80] sm:$0xf] %v1712
  %1777 = vst [vmem:[%s4 + $0x84] sm:$0xf] %v1713
  %1778 = vst [vmem:[%s4 + $0x88] sm:$0xf] %v1714
  %1779 = vst [vmem:[%s4 + $0x8c] sm:$0xf] %v1715
  %1780 = vst [vmem:[%s4 + $0x90] sm:$0xf] %v1716
  %1781 = vst [vmem:[%s4 + $0x94] sm:$0xf] %v1717
  %1782 = vst [vmem:[%s4 + $0x98] sm:$0xf] %v1718
  %1783 = vst [vmem:[%s4 + $0x9c] sm:$0xf] %v1719
  %1784 = vst [vmem:[%s4 + $0xa0] sm:$0xf] %v1720
  %1785 = vst [vmem:[%s4 + $0xa4] sm:$0xf] %v1721
  %1786 = vst [vmem:[%s4 + $0xa8] sm:$0xf] %v1722
  %1787 = vst [vmem:[%s4 + $0xac] sm:$0xf] %v1723
  %1788 = vst [vmem:[%s4 + $0xb0] sm:$0xf] %v1724
  %1789 = vst [vmem:[%s4 + $0xb4] sm:$0xf] %v1725
  %1790 = vst [vmem:[%s4 + $0xb8] sm:$0xf] %v1726
  %1791 = vst [vmem:[%s4 + $0xbc] sm:$0xf] %v1727
  %1792 = vst [vmem:[%s4 + $0xc0] sm:$0xf] %v1728
  %1793 = vst [vmem:[%s4 + $0xc4] sm:$0xf] %v1729
  %1794 = vst [vmem:[%s4 + $0xc8] sm:$0xf] %v1730
  %1795 = vst [vmem:[%s4 + $0xcc] sm:$0xf] %v1731
  %1796 = vst [vmem:[%s4 + $0xd0] sm:$0xf] %v1732
  %1797 = vst [vmem:[%s4 + $0xd4] sm:$0xf] %v1733
  %1798 = vst [vmem:[%s4 + $0xd8] sm:$0xf] %v1734
  %1799 = vst [vmem:[%s4 + $0xdc] sm:$0xf] %v1735
  %1800 = vst [vmem:[%s4 + $0xe0] sm:$0xf] %v1736
  %1801 = vst [vmem:[%s4 + $0xe4] sm:$0xf] %v1737
  %1802 = vst [vmem:[%s4 + $0xe8] sm:$0xf] %v1738
  %1803 = vst [vmem:[%s4 + $0xec] sm:$0xf] %v1739
  %1804 = vst [vmem:[%s4 + $0xf0] sm:$0xf] %v1740
  %1805 = vst [vmem:[%s4 + $0xf4] sm:$0xf] %v1741
  %1806 = vst [vmem:[%s4 + $0xf8] sm:$0xf] %v1742
  %1807 = vst [vmem:[%s4 + $0xfc] sm:$0xf] %v1743
  %v1808 = vld [vmem:[%s1] sm:$0xf]
  %v1809 = vld [vmem:[%s1 + $0x4] sm:$0xf]
  %v1810 = vld [vmem:[%s1 + $0x8] sm:$0xf]
  %v1811 = vld [vmem:[%s1 + $0xc] sm:$0xf]
  %v1812 = vld [vmem:[%s1 + $0x10] sm:$0xf]
  %v1813 = vld [vmem:[%s1 + $0x14] sm:$0xf]
  %v1814 = vld [vmem:[%s1 + $0x18] sm:$0xf]
  %v1815 = vld [vmem:[%s1 + $0x1c] sm:$0xf]
  %v1816 = vld [vmem:[%s1 + $0x20] sm:$0xf]
  %v1817 = vld [vmem:[%s1 + $0x24] sm:$0xf]
  %v1818 = vld [vmem:[%s1 + $0x28] sm:$0xf]
  %v1819 = vld [vmem:[%s1 + $0x2c] sm:$0xf]
  %v1820 = vld [vmem:[%s1 + $0x30] sm:$0xf]
  %v1821 = vld [vmem:[%s1 + $0x34] sm:$0xf]
  %v1822 = vld [vmem:[%s1 + $0x38] sm:$0xf]
  %v1823 = vld [vmem:[%s1 + $0x3c] sm:$0xf]
  %v1824 = vld [vmem:[%s2] sm:$0x1]
  %v1826 = vperm.slane %v1824, 0
  %v1892 = vunpack.c.l.b16 %v1680
  %v1893 = vunpack.c.l.b16 %v1681
  %v1894 = vunpack.c.l.b16 %v1682
  %v1895 = vunpack.c.l.b16 %v1683
  %v1896 = vunpack.c.l.b16 %v1684
  %v1897 = vunpack.c.l.b16 %v1685
  %v1898 = vunpack.c.l.b16 %v1686
  %v1899 = vunpack.c.l.b16 %v1687
  %v1900 = vunpack.c.l.b16 %v1688
  %v1901 = vunpack.c.l.b16 %v1689
  %v1902 = vunpack.c.l.b16 %v1690
  %v1903 = vunpack.c.l.b16 %v1691
  %v1904 = vunpack.c.l.b16 %v1692
  %v1905 = vunpack.c.l.b16 %v1693
  %v1906 = vunpack.c.l.b16 %v1694
  %v1907 = vunpack.c.l.b16 %v1695
  %v1908 = vunpack.c.l.b16 %v1696
  %v1909 = vunpack.c.l.b16 %v1697
  %v1910 = vunpack.c.l.b16 %v1698
  %v1911 = vunpack.c.l.b16 %v1699
  %v1912 = vunpack.c.l.b16 %v1700
  %v1913 = vunpack.c.l.b16 %v1701
  %v1914 = vunpack.c.l.b16 %v1702
  %v1915 = vunpack.c.l.b16 %v1703
  %v1916 = vunpack.c.l.b16 %v1704
  %v1917 = vunpack.c.l.b16 %v1705
  %v1918 = vunpack.c.l.b16 %v1706
  %v1919 = vunpack.c.l.b16 %v1707
  %v1920 = vunpack.c.l.b16 %v1708
  %v1921 = vunpack.c.l.b16 %v1709
  %v1922 = vunpack.c.l.b16 %v1710
  %v1923 = vunpack.c.l.b16 %v1711
  %v1924 = vunpack.c.l.b16 %v1712
  %v1925 = vunpack.c.l.b16 %v1713
  %v1926 = vunpack.c.l.b16 %v1714
  %v1927 = vunpack.c.l.b16 %v1715
  %v1928 = vunpack.c.l.b16 %v1716
  %v1929 = vunpack.c.l.b16 %v1717
  %v1930 = vunpack.c.l.b16 %v1718
  %v1931 = vunpack.c.l.b16 %v1719
  %v1932 = vunpack.c.l.b16 %v1720
  %v1933 = vunpack.c.l.b16 %v1721
  %v1934 = vunpack.c.l.b16 %v1722
  %v1935 = vunpack.c.l.b16 %v1723
  %v1936 = vunpack.c.l.b16 %v1724
  %v1937 = vunpack.c.l.b16 %v1725
  %v1938 = vunpack.c.l.b16 %v1726
  %v1939 = vunpack.c.l.b16 %v1727
  %v1940 = vunpack.c.l.b16 %v1728
  %v1941 = vunpack.c.l.b16 %v1729
  %v1942 = vunpack.c.l.b16 %v1730
  %v1943 = vunpack.c.l.b16 %v1731
  %v1944 = vunpack.c.l.b16 %v1732
  %v1945 = vunpack.c.l.b16 %v1733
  %v1946 = vunpack.c.l.b16 %v1734
  %v1947 = vunpack.c.l.b16 %v1735
  %v1948 = vunpack.c.l.b16 %v1736
  %v1949 = vunpack.c.l.b16 %v1737
  %v1950 = vunpack.c.l.b16 %v1738
  %v1951 = vunpack.c.l.b16 %v1739
  %v1952 = vunpack.c.l.b16 %v1740
  %v1953 = vunpack.c.l.b16 %v1741
  %v1954 = vunpack.c.l.b16 %v1742
  %v1955 = vunpack.c.l.b16 %v1743
  %v1956 = vpack.c.b16 %v1893, %v1892
  %v1957 = vpack.c.b16 %v1895, %v1894
  %v1958 = vpack.c.b16 %v1897, %v1896
  %v1959 = vpack.c.b16 %v1899, %v1898
  %v1960 = vpack.c.b16 %v1901, %v1900
  %v1961 = vpack.c.b16 %v1903, %v1902
  %v1962 = vpack.c.b16 %v1905, %v1904
  %v1963 = vpack.c.b16 %v1907, %v1906
  %v1964 = vpack.c.b16 %v1909, %v1908
  %v1965 = vpack.c.b16 %v1911, %v1910
  %v1966 = vpack.c.b16 %v1913, %v1912
  %v1967 = vpack.c.b16 %v1915, %v1914
  %v1968 = vpack.c.b16 %v1917, %v1916
  %v1969 = vpack.c.b16 %v1919, %v1918
  %v1970 = vpack.c.b16 %v1921, %v1920
  %v1971 = vpack.c.b16 %v1923, %v1922
  %v1972 = vpack.c.b16 %v1925, %v1924
  %v1973 = vpack.c.b16 %v1927, %v1926
  %v1974 = vpack.c.b16 %v1929, %v1928
  %v1975 = vpack.c.b16 %v1931, %v1930
  %v1976 = vpack.c.b16 %v1933, %v1932
  %v1977 = vpack.c.b16 %v1935, %v1934
  %v1978 = vpack.c.b16 %v1937, %v1936
  %v1979 = vpack.c.b16 %v1939, %v1938
  %v1980 = vpack.c.b16 %v1941, %v1940
  %v1981 = vpack.c.b16 %v1943, %v1942
  %v1982 = vpack.c.b16 %v1945, %v1944
  %v1983 = vpack.c.b16 %v1947, %v1946
  %v1984 = vpack.c.b16 %v1949, %v1948
  %v1985 = vpack.c.b16 %v1951, %v1950
  %v1986 = vpack.c.b16 %v1953, %v1952
  %v1987 = vpack.c.b16 %v1955, %v1954
  %v2036 = vunpack.c.l.b16 %v1808
  %v2037 = vunpack.c.l.b16 %v1809
  %v2038 = vunpack.c.l.b16 %v1810
  %v2039 = vunpack.c.l.b16 %v1811
  %v2040 = vunpack.c.l.b16 %v1812
  %v2041 = vunpack.c.l.b16 %v1813
  %v2042 = vunpack.c.l.b16 %v1814
  %v2043 = vunpack.c.l.b16 %v1815
  %v2044 = vunpack.c.l.b16 %v1816
  %v2045 = vunpack.c.l.b16 %v1817
  %v2046 = vunpack.c.l.b16 %v1818
  %v2047 = vunpack.c.l.b16 %v1819
  %v2048 = vunpack.c.l.b16 %v1820
  %v2049 = vunpack.c.l.b16 %v1821
  %v2050 = vunpack.c.l.b16 %v1822
  %v2051 = vunpack.c.l.b16 %v1823
  %v2052 = vpack.c.b16 %v2037, %v2036
  %v2053 = vpack.c.b16 %v2039, %v2038
  %v2054 = vpack.c.b16 %v2041, %v2040
  %v2055 = vpack.c.b16 %v2043, %v2042
  %v2056 = vpack.c.b16 %v2045, %v2044
  %v2057 = vpack.c.b16 %v2047, %v2046
  %v2058 = vpack.c.b16 %v2049, %v2048
  %v2059 = vpack.c.b16 %v2051, %v2050
  %2068 = vmatpush.bf16.msra.mxu0 %v2059
  %2069 = vmatpush.bf16.msra.mxu0 %v2058
  %2070 = vmatpush.bf16.msra.mxu0 %v2057
  %2071 = vmatpush.bf16.msra.mxu0 %v2056
  %2072 = vmatpush.bf16.msra.mxu0 %v2055
  %2073 = vmatpush.bf16.msra.mxu0 %v2054
  %2074 = vmatpush.bf16.msra.mxu0 %v2053
  %2075 = vmatpush.bf16.msra.mxu0 %v2052
  %2076 = vmatmul.bf16.gmra.mxu0 %v1956
  %v2077 = vpop.f32.mrf.mxu0
  %v2078 = vadd.f32 %v1826, %v2077
  %v2079 = vpop.f32.mrf.mxu0
  %v2080 = vadd.f32 %v1826, %v2079
  %2081 = vmatmul.bf16.gmra.mxu0 %v1957
  %v2082 = vpop.f32.mrf.mxu0
  %v2083 = vadd.f32 %v1826, %v2082
  %v2084 = vpop.f32.mrf.mxu0
  %v2085 = vadd.f32 %v1826, %v2084
  %2086 = vmatmul.bf16.gmra.mxu0 %v1958
  %v2087 = vpop.f32.mrf.mxu0
  %v2088 = vadd.f32 %v1826, %v2087
  %v2089 = vpop.f32.mrf.mxu0
  %v2090 = vadd.f32 %v1826, %v2089
  %2091 = vmatmul.bf16.gmra.mxu0 %v1959
  %v2092 = vpop.f32.mrf.mxu0
  %v2093 = vadd.f32 %v1826, %v2092
  %v2094 = vpop.f32.mrf.mxu0
  %v2095 = vadd.f32 %v1826, %v2094
  %2096 = vmatmul.bf16.gmra.mxu0 %v1960
  %v2097 = vpop.f32.mrf.mxu0
  %v2098 = vadd.f32 %v1826, %v2097
  %v2099 = vpop.f32.mrf.mxu0
  %v2100 = vadd.f32 %v1826, %v2099
  %2101 = vmatmul.bf16.gmra.mxu0 %v1961
  %v2102 = vpop.f32.mrf.mxu0
  %v2103 = vadd.f32 %v1826, %v2102
  %v2104 = vpop.f32.mrf.mxu0
  %v2105 = vadd.f32 %v1826, %v2104
  %2106 = vmatmul.bf16.gmra.mxu0 %v1962
  %v2107 = vpop.f32.mrf.mxu0
  %v2108 = vadd.f32 %v1826, %v2107
  %v2109 = vpop.f32.mrf.mxu0
  %v2110 = vadd.f32 %v1826, %v2109
  %2111 = vmatmul.bf16.gmra.mxu0 %v1963
  %v2112 = vpop.f32.mrf.mxu0
  %v2113 = vadd.f32 %v1826, %v2112
  %v2114 = vpop.f32.mrf.mxu0
  %v2115 = vadd.f32 %v1826, %v2114
  %2116 = vmatmul.bf16.gmra.mxu0 %v1964
  %v2117 = vpop.f32.mrf.mxu0
  %v2118 = vadd.f32 %v1826, %v2117
  %v2119 = vpop.f32.mrf.mxu0
  %v2120 = vadd.f32 %v1826, %v2119
  %2121 = vmatmul.bf16.gmra.mxu0 %v1965
  %v2122 = vpop.f32.mrf.mxu0
  %v2123 = vadd.f32 %v1826, %v2122
  %v2124 = vpop.f32.mrf.mxu0
  %v2125 = vadd.f32 %v1826, %v2124
  %2126 = vmatmul.bf16.gmra.mxu0 %v1966
  %v2127 = vpop.f32.mrf.mxu0
  %v2128 = vadd.f32 %v1826, %v2127
  %v2129 = vpop.f32.mrf.mxu0
  %v2130 = vadd.f32 %v1826, %v2129
  %2131 = vmatmul.bf16.gmra.mxu0 %v1967
  %v2132 = vpop.f32.mrf.mxu0
  %v2133 = vadd.f32 %v1826, %v2132
  %v2134 = vpop.f32.mrf.mxu0
  %v2135 = vadd.f32 %v1826, %v2134
  %2136 = vmatmul.bf16.gmra.mxu0 %v1968
  %v2137 = vpop.f32.mrf.mxu0
  %v2138 = vadd.f32 %v1826, %v2137
  %v2139 = vpop.f32.mrf.mxu0
  %v2140 = vadd.f32 %v1826, %v2139
  %2141 = vmatmul.bf16.gmra.mxu0 %v1969
  %v2142 = vpop.f32.mrf.mxu0
  %v2143 = vadd.f32 %v1826, %v2142
  %v2144 = vpop.f32.mrf.mxu0
  %v2145 = vadd.f32 %v1826, %v2144
  %2146 = vmatmul.bf16.gmra.mxu0 %v1970
  %v2147 = vpop.f32.mrf.mxu0
  %v2148 = vadd.f32 %v1826, %v2147
  %v2149 = vpop.f32.mrf.mxu0
  %v2150 = vadd.f32 %v1826, %v2149
  %2151 = vmatmul.bf16.gmra.mxu0 %v1971
  %v2152 = vpop.f32.mrf.mxu0
  %v2153 = vadd.f32 %v1826, %v2152
  %v2154 = vpop.f32.mrf.mxu0
  %v2155 = vadd.f32 %v1826, %v2154
  %2156 = vmatmul.bf16.gmra.mxu0 %v1972
  %v2157 = vpop.f32.mrf.mxu0
  %v2158 = vadd.f32 %v1826, %v2157
  %v2159 = vpop.f32.mrf.mxu0
  %v2160 = vadd.f32 %v1826, %v2159
  %2161 = vmatmul.bf16.gmra.mxu0 %v1973
  %v2162 = vpop.f32.mrf.mxu0
  %v2163 = vadd.f32 %v1826, %v2162
  %v2164 = vpop.f32.mrf.mxu0
  %v2165 = vadd.f32 %v1826, %v2164
  %2166 = vmatmul.bf16.gmra.mxu0 %v1974
  %v2167 = vpop.f32.mrf.mxu0
  %v2168 = vadd.f32 %v1826, %v2167
  %v2169 = vpop.f32.mrf.mxu0
  %v2170 = vadd.f32 %v1826, %v2169
  %2171 = vmatmul.bf16.gmra.mxu0 %v1975
  %v2172 = vpop.f32.mrf.mxu0
  %v2173 = vadd.f32 %v1826, %v2172
  %v2174 = vpop.f32.mrf.mxu0
  %v2175 = vadd.f32 %v1826, %v2174
  %2176 = vmatmul.bf16.gmra.mxu0 %v1976
  %v2177 = vpop.f32.mrf.mxu0
  %v2178 = vadd.f32 %v1826, %v2177
  %v2179 = vpop.f32.mrf.mxu0
  %v2180 = vadd.f32 %v1826, %v2179
  %2181 = vmatmul.bf16.gmra.mxu0 %v1977
  %v2182 = vpop.f32.mrf.mxu0
  %v2183 = vadd.f32 %v1826, %v2182
  %v2184 = vpop.f32.mrf.mxu0
  %v2185 = vadd.f32 %v1826, %v2184
  %2186 = vmatmul.bf16.gmra.mxu0 %v1978
  %v2187 = vpop.f32.mrf.mxu0
  %v2188 = vadd.f32 %v1826, %v2187
  %v2189 = vpop.f32.mrf.mxu0
  %v2190 = vadd.f32 %v1826, %v2189
  %2191 = vmatmul.bf16.gmra.mxu0 %v1979
  %v2192 = vpop.f32.mrf.mxu0
  %v2193 = vadd.f32 %v1826, %v2192
  %v2194 = vpop.f32.mrf.mxu0
  %v2195 = vadd.f32 %v1826, %v2194
  %2196 = vmatmul.bf16.gmra.mxu0 %v1980
  %v2197 = vpop.f32.mrf.mxu0
  %v2198 = vadd.f32 %v1826, %v2197
  %v2199 = vpop.f32.mrf.mxu0
  %v2200 = vadd.f32 %v1826, %v2199
  %2201 = vmatmul.bf16.gmra.mxu0 %v1981
  %v2202 = vpop.f32.mrf.mxu0
  %v2203 = vadd.f32 %v1826, %v2202
  %v2204 = vpop.f32.mrf.mxu0
  %v2205 = vadd.f32 %v1826, %v2204
  %2206 = vmatmul.bf16.gmra.mxu0 %v1982
  %v2207 = vpop.f32.mrf.mxu0
  %v2208 = vadd.f32 %v1826, %v2207
  %v2209 = vpop.f32.mrf.mxu0
  %v2210 = vadd.f32 %v1826, %v2209
  %2211 = vmatmul.bf16.gmra.mxu0 %v1983
  %v2212 = vpop.f32.mrf.mxu0
  %v2213 = vadd.f32 %v1826, %v2212
  %v2214 = vpop.f32.mrf.mxu0
  %v2215 = vadd.f32 %v1826, %v2214
  %2216 = vmatmul.bf16.gmra.mxu0 %v1984
  %v2217 = vpop.f32.mrf.mxu0
  %v2218 = vadd.f32 %v1826, %v2217
  %v2219 = vpop.f32.mrf.mxu0
  %v2220 = vadd.f32 %v1826, %v2219
  %2221 = vmatmul.bf16.gmra.mxu0 %v1985
  %v2222 = vpop.f32.mrf.mxu0
  %v2223 = vadd.f32 %v1826, %v2222
  %v2224 = vpop.f32.mrf.mxu0
  %v2225 = vadd.f32 %v1826, %v2224
  %2226 = vmatmul.bf16.gmra.mxu0 %v1986
  %v2227 = vpop.f32.mrf.mxu0
  %v2228 = vadd.f32 %v1826, %v2227
  %v2229 = vpop.f32.mrf.mxu0
  %v2230 = vadd.f32 %v1826, %v2229
  %2231 = vmatmul.bf16.gmra.mxu0 %v1987
  %v2232 = vpop.f32.mrf.mxu0
  %v2233 = vadd.f32 %v1826, %v2232
  %v2234 = vpop.f32.mrf.mxu0
  %v2235 = vadd.f32 %v1826, %v2234
  %2236 = vdwg.mxu0
  %v2237 = vmax.f32 %v2078, 0.0
  %v2238 = vmax.f32 %v2080, 0.0
  %v2239 = vmax.f32 %v2083, 0.0
  %v2240 = vmax.f32 %v2085, 0.0
  %v2241 = vmax.f32 %v2088, 0.0
  %v2242 = vmax.f32 %v2090, 0.0
  %v2243 = vmax.f32 %v2093, 0.0
  %v2244 = vmax.f32 %v2095, 0.0
  %v2245 = vmax.f32 %v2098, 0.0
  %v2246 = vmax.f32 %v2100, 0.0
  %v2247 = vmax.f32 %v2103, 0.0
  %v2248 = vmax.f32 %v2105, 0.0
  %v2249 = vmax.f32 %v2108, 0.0
  %v2250 = vmax.f32 %v2110, 0.0
  %v2251 = vmax.f32 %v2113, 0.0
  %v2252 = vmax.f32 %v2115, 0.0
  %v2253 = vmax.f32 %v2118, 0.0
  %v2254 = vmax.f32 %v2120, 0.0
  %v2255 = vmax.f32 %v2123, 0.0
  %v2256 = vmax.f32 %v2125, 0.0
  %v2257 = vmax.f32 %v2128, 0.0
  %v2258 = vmax.f32 %v2130, 0.0
  %v2259 = vmax.f32 %v2133, 0.0
  %v2260 = vmax.f32 %v2135, 0.0
  %v2261 = vmax.f32 %v2138, 0.0
  %v2262 = vmax.f32 %v2140, 0.0
  %v2263 = vmax.f32 %v2143, 0.0
  %v2264 = vmax.f32 %v2145, 0.0
  %v2265 = vmax.f32 %v2148, 0.0
  %v2266 = vmax.f32 %v2150, 0.0
  %v2267 = vmax.f32 %v2153, 0.0
  %v2268 = vmax.f32 %v2155, 0.0
  %v2269 = vmax.f32 %v2158, 0.0
  %v2270 = vmax.f32 %v2160, 0.0
  %v2271 = vmax.f32 %v2163, 0.0
  %v2272 = vmax.f32 %v2165, 0.0
  %v2273 = vmax.f32 %v2168, 0.0
  %v2274 = vmax.f32 %v2170, 0.0
  %v2275 = vmax.f32 %v2173, 0.0
  %v2276 = vmax.f32 %v2175, 0.0
  %v2277 = vmax.f32 %v2178, 0.0
  %v2278 = vmax.f32 %v2180, 0.0
  %v2279 = vmax.f32 %v2183, 0.0
  %v2280 = vmax.f32 %v2185, 0.0
  %v2281 = vmax.f32 %v2188, 0.0
  %v2282 = vmax.f32 %v2190, 0.0
  %v2283 = vmax.f32 %v2193, 0.0
  %v2284 = vmax.f32 %v2195, 0.0
  %v2285 = vmax.f32 %v2198, 0.0
  %v2286 = vmax.f32 %v2200, 0.0
  %v2287 = vmax.f32 %v2203, 0.0
  %v2288 = vmax.f32 %v2205, 0.0
  %v2289 = vmax.f32 %v2208, 0.0
  %v2290 = vmax.f32 %v2210, 0.0
  %v2291 = vmax.f32 %v2213, 0.0
  %v2292 = vmax.f32 %v2215, 0.0
  %v2293 = vmax.f32 %v2218, 0.0
  %v2294 = vmax.f32 %v2220, 0.0
  %v2295 = vmax.f32 %v2223, 0.0
  %v2296 = vmax.f32 %v2225, 0.0
  %v2297 = vmax.f32 %v2228, 0.0
  %v2298 = vmax.f32 %v2230, 0.0
  %v2299 = vmax.f32 %v2233, 0.0
  %v2300 = vmax.f32 %v2235, 0.0
  %v2301 = vpack.c.bf16 %v2237, %v2237
  %v2302 = vpack.c.bf16 %v2238, %v2238
  %v2303 = vpack.c.bf16 %v2239, %v2239
  %v2304 = vpack.c.bf16 %v2240, %v2240
  %v2305 = vpack.c.bf16 %v2241, %v2241
  %v2306 = vpack.c.bf16 %v2242, %v2242
  %v2307 = vpack.c.bf16 %v2243, %v2243
  %v2308 = vpack.c.bf16 %v2244, %v2244
  %v2309 = vpack.c.bf16 %v2245, %v2245
  %v2310 = vpack.c.bf16 %v2246, %v2246
  %v2311 = vpack.c.bf16 %v2247, %v2247
  %v2312 = vpack.c.bf16 %v2248, %v2248
  %v2313 = vpack.c.bf16 %v2249, %v2249
  %v2314 = vpack.c.bf16 %v2250, %v2250
  %v2315 = vpack.c.bf16 %v2251, %v2251
  %v2316 = vpack.c.bf16 %v2252, %v2252
  %v2317 = vpack.c.bf16 %v2253, %v2253
  %v2318 = vpack.c.bf16 %v2254, %v2254
  %v2319 = vpack.c.bf16 %v2255, %v2255
  %v2320 = vpack.c.bf16 %v2256, %v2256
  %v2321 = vpack.c.bf16 %v2257, %v2257
  %v2322 = vpack.c.bf16 %v2258, %v2258
  %v2323 = vpack.c.bf16 %v2259, %v2259
  %v2324 = vpack.c.bf16 %v2260, %v2260
  %v2325 = vpack.c.bf16 %v2261, %v2261
  %v2326 = vpack.c.bf16 %v2262, %v2262
  %v2327 = vpack.c.bf16 %v2263, %v2263
  %v2328 = vpack.c.bf16 %v2264, %v2264
  %v2329 = vpack.c.bf16 %v2265, %v2265
  %v2330 = vpack.c.bf16 %v2266, %v2266
  %v2331 = vpack.c.bf16 %v2267, %v2267
  %v2332 = vpack.c.bf16 %v2268, %v2268
  %v2333 = vpack.c.bf16 %v2269, %v2269
  %v2334 = vpack.c.bf16 %v2270, %v2270
  %v2335 = vpack.c.bf16 %v2271, %v2271
  %v2336 = vpack.c.bf16 %v2272, %v2272
  %v2337 = vpack.c.bf16 %v2273, %v2273
  %v2338 = vpack.c.bf16 %v2274, %v2274
  %v2339 = vpack.c.bf16 %v2275, %v2275
  %v2340 = vpack.c.bf16 %v2276, %v2276
  %v2341 = vpack.c.bf16 %v2277, %v2277
  %v2342 = vpack.c.bf16 %v2278, %v2278
  %v2343 = vpack.c.bf16 %v2279, %v2279
  %v2344 = vpack.c.bf16 %v2280, %v2280
  %v2345 = vpack.c.bf16 %v2281, %v2281
  %v2346 = vpack.c.bf16 %v2282, %v2282
  %v2347 = vpack.c.bf16 %v2283, %v2283
  %v2348 = vpack.c.bf16 %v2284, %v2284
  %v2349 = vpack.c.bf16 %v2285, %v2285
  %v2350 = vpack.c.bf16 %v2286, %v2286
  %v2351 = vpack.c.bf16 %v2287, %v2287
  %v2352 = vpack.c.bf16 %v2288, %v2288
  %v2353 = vpack.c.bf16 %v2289, %v2289
  %v2354 = vpack.c.bf16 %v2290, %v2290
  %v2355 = vpack.c.bf16 %v2291, %v2291
  %v2356 = vpack.c.bf16 %v2292, %v2292
  %v2357 = vpack.c.bf16 %v2293, %v2293
  %v2358 = vpack.c.bf16 %v2294, %v2294
  %v2359 = vpack.c.bf16 %v2295, %v2295
  %v2360 = vpack.c.bf16 %v2296, %v2296
  %v2361 = vpack.c.bf16 %v2297, %v2297
  %v2362 = vpack.c.bf16 %v2298, %v2298
  %v2363 = vpack.c.bf16 %v2299, %v2299
  %v2364 = vpack.c.bf16 %v2300, %v2300
  %2365 = vst [vmem:[%s3] sm:$0xf] %v2301
  %2366 = vst [vmem:[%s3 + $0x4] sm:$0xf] %v2302
  %2367 = vst [vmem:[%s3 + $0x8] sm:$0xf] %v2303
  %2368 = vst [vmem:[%s3 + $0xc] sm:$0xf] %v2304
  %2369 = vst [vmem:[%s3 + $0x10] sm:$0xf] %v2305
  %2370 = vst [vmem:[%s3 + $0x14] sm:$0xf] %v2306
  %2371 = vst [vmem:[%s3 + $0x18] sm:$0xf] %v2307
  %2372 = vst [vmem:[%s3 + $0x1c] sm:$0xf] %v2308
  %2373 = vst [vmem:[%s3 + $0x20] sm:$0xf] %v2309
  %2374 = vst [vmem:[%s3 + $0x24] sm:$0xf] %v2310
  %2375 = vst [vmem:[%s3 + $0x28] sm:$0xf] %v2311
  %2376 = vst [vmem:[%s3 + $0x2c] sm:$0xf] %v2312
  %2377 = vst [vmem:[%s3 + $0x30] sm:$0xf] %v2313
  %2378 = vst [vmem:[%s3 + $0x34] sm:$0xf] %v2314
  %2379 = vst [vmem:[%s3 + $0x38] sm:$0xf] %v2315
  %2380 = vst [vmem:[%s3 + $0x3c] sm:$0xf] %v2316
  %2381 = vst [vmem:[%s3 + $0x40] sm:$0xf] %v2317
  %2382 = vst [vmem:[%s3 + $0x44] sm:$0xf] %v2318
  %2383 = vst [vmem:[%s3 + $0x48] sm:$0xf] %v2319
  %2384 = vst [vmem:[%s3 + $0x4c] sm:$0xf] %v2320
  %2385 = vst [vmem:[%s3 + $0x50] sm:$0xf] %v2321
  %2386 = vst [vmem:[%s3 + $0x54] sm:$0xf] %v2322
  %2387 = vst [vmem:[%s3 + $0x58] sm:$0xf] %v2323
  %2388 = vst [vmem:[%s3 + $0x5c] sm:$0xf] %v2324
  %2389 = vst [vmem:[%s3 + $0x60] sm:$0xf] %v2325
  %2390 = vst [vmem:[%s3 + $0x64] sm:$0xf] %v2326
  %2391 = vst [vmem:[%s3 + $0x68] sm:$0xf] %v2327
  %2392 = vst [vmem:[%s3 + $0x6c] sm:$0xf] %v2328
  %2393 = vst [vmem:[%s3 + $0x70] sm:$0xf] %v2329
  %2394 = vst [vmem:[%s3 + $0x74] sm:$0xf] %v2330
  %2395 = vst [vmem:[%s3 + $0x78] sm:$0xf] %v2331
  %2396 = vst [vmem:[%s3 + $0x7c] sm:$0xf] %v2332
  %2397 = vst [vmem:[%s3 + $0x80] sm:$0xf] %v2333
  %2398 = vst [vmem:[%s3 + $0x84] sm:$0xf] %v2334
  %2399 = vst [vmem:[%s3 + $0x88] sm:$0xf] %v2335
  %2400 = vst [vmem:[%s3 + $0x8c] sm:$0xf] %v2336
  %2401 = vst [vmem:[%s3 + $0x90] sm:$0xf] %v2337
  %2402 = vst [vmem:[%s3 + $0x94] sm:$0xf] %v2338
  %2403 = vst [vmem:[%s3 + $0x98] sm:$0xf] %v2339
  %2404 = vst [vmem:[%s3 + $0x9c] sm:$0xf] %v2340
  %2405 = vst [vmem:[%s3 + $0xa0] sm:$0xf] %v2341
  %2406 = vst [vmem:[%s3 + $0xa4] sm:$0xf] %v2342
  %2407 = vst [vmem:[%s3 + $0xa8] sm:$0xf] %v2343
  %2408 = vst [vmem:[%s3 + $0xac] sm:$0xf] %v2344
  %2409 = vst [vmem:[%s3 + $0xb0] sm:$0xf] %v2345
  %2410 = vst [vmem:[%s3 + $0xb4] sm:$0xf] %v2346
  %2411 = vst [vmem:[%s3 + $0xb8] sm:$0xf] %v2347
  %2412 = vst [vmem:[%s3 + $0xbc] sm:$0xf] %v2348
  %2413 = vst [vmem:[%s3 + $0xc0] sm:$0xf] %v2349
  %2414 = vst [vmem:[%s3 + $0xc4] sm:$0xf] %v2350
  %2415 = vst [vmem:[%s3 + $0xc8] sm:$0xf] %v2351
  %2416 = vst [vmem:[%s3 + $0xcc] sm:$0xf] %v2352
  %2417 = vst [vmem:[%s3 + $0xd0] sm:$0xf] %v2353
  %2418 = vst [vmem:[%s3 + $0xd4] sm:$0xf] %v2354
  %2419 = vst [vmem:[%s3 + $0xd8] sm:$0xf] %v2355
  %2420 = vst [vmem:[%s3 + $0xdc] sm:$0xf] %v2356
  %2421 = vst [vmem:[%s3 + $0xe0] sm:$0xf] %v2357
  %2422 = vst [vmem:[%s3 + $0xe4] sm:$0xf] %v2358
  %2423 = vst [vmem:[%s3 + $0xe8] sm:$0xf] %v2359
  %2424 = vst [vmem:[%s3 + $0xec] sm:$0xf] %v2360
  %2425 = vst [vmem:[%s3 + $0xf0] sm:$0xf] %v2361
  %2426 = vst [vmem:[%s3 + $0xf4] sm:$0xf] %v2362
  %2427 = vst [vmem:[%s3 + $0xf8] sm:$0xf] %v2363
  %2428 = vst [vmem:[%s3 + $0xfc] sm:$0xf] %v2364
  // Predicated region
  $region14: #{forward.7} parent=0 // pred_check
    _
  $region15: #{forward.7} parent=0 // pred_check_branch
    %2430 = sbr.rel (0) target = $region17
  $region16: #{forward.7} parent=0 // pred_region
    _
  $region17: #{forward.7} parent=0 // pred_fallthru
    _
  // Predicated region
  $region18: #{forward.7} parent=0 // pred_check
    _
  $region19: #{forward.7} parent=0 // pred_check_branch
    %2432 = sbr.rel (0) target = $region21
  $region20: #{forward.7} parent=0 // pred_region
    _
  $region21: #{forward.7} parent=0 // pred_fallthru
    _
  // Predicated region
  $region22: #{forward.7} parent=0 // pred_check
    _
  $region23: #{forward.7} parent=0 // pred_check_branch
    %2434 = sbr.rel (0) target = $region25
  $region24: #{forward.7} parent=0 // pred_region
    _
  $region25: #{forward.7} parent=0 // pred_fallthru
    _
  // Predicated region
  $region26: #{forward.7} parent=0 // pred_check
    _
  $region27: #{forward.7} parent=0 // pred_check_branch
    %2436 = sbr.rel (0) target = $region29
  $region28: #{forward.7} parent=0 // pred_region
    _
  $region29: #{forward.7} parent=0 // pred_fallthru
    _

// kernel: forward.8
$region0: #{forward.8}
  #allocation0 [shape = 'u32[]', space=smem, size = 0x4, offset = 0x4, fixed_abs, tag = 'smem constant byte address 0x4 - core index']
  #allocation1 [shape = 'u32[72,128]{1,0:T(1,128)}', space=vmem, size = 0x9000, scoped, tag = 'internal scratch']
  %s0 = inlined_call_operand.vmem [shape: bf16[512,128], index: 0, kind: input, shape index: {}]
  %s1 = inlined_call_operand.vmem [shape: bf16[128,128], index: 1, kind: input, shape index: {}]
  %s2 = inlined_call_operand.vmem [shape: f32[1,128], index: 2, kind: input, shape index: {}]
  %s3 = inlined_call_operand.vmem [shape: bf16[256,128], index: 3, kind: input, shape index: {}]
  %s4 = inlined_call_operand.vmem [shape: f32[1,128], index: 4, kind: input, shape index: {}]
  %s5 = inlined_call_operand.vmem [shape: bf16[512,128], index: 5, kind: input, shape index: {}]
  %s6 = inlined_call_operand.vmem [shape: bf16[128,128], index: 6, kind: input, shape index: {}]
  %s7 = inlined_call_operand.vmem [shape: f32[1,128], index: 7, kind: input, shape index: {}]
  %s8 = inlined_call_operand.vmem [shape: bf16[512,128], index: 8, kind: output, shape index: {0}]
  %s9 = inlined_call_operand.vmem [shape: bf16[512,128], index: 9, kind: output, shape index: {1}]
  %10 = xla_tuple %s8, %s9
  %s11 = sld [smem:[#allocation0]]
  $region50: #{forward.8} parent=0
    _
  %s13 = ssub.s32 1, %s11
  %s14 = scalar_select 0, %s13, %s11
  // Predicated region
  $region2: #{forward.8} parent=0 // pred_check
    _
  $region3: #{forward.8} parent=0 // pred_check_branch
    %16 = sbr.rel (0) target = $region5
  $region4: #{forward.8} parent=0 // pred_region
    _
  $region5: #{forward.8} parent=0 // pred_fallthru
    _
  // Predicated region
  $region6: #{forward.8} parent=0 // pred_check
    _
  $region7: #{forward.8} parent=0 // pred_check_branch
    %18 = sbr.rel (0) target = $region9
  $region8: #{forward.8} parent=0 // pred_region
    _
  $region9: #{forward.8} parent=0 // pred_fallthru
    _
  // Predicated region
  $region10: #{forward.8} parent=0 // pred_check
    _
  $region11: #{forward.8} parent=0 // pred_check_branch
    %20 = sbr.rel (0) target = $region13
  $region12: #{forward.8} parent=0 // pred_region
    _
  $region13: #{forward.8} parent=0 // pred_fallthru
    _
  // Predicated region
  $region14: #{forward.8} parent=0 // pred_check
    _
  $region15: #{forward.8} parent=0 // pred_check_branch
    %22 = sbr.rel (0) target = $region17
  $region16: #{forward.8} parent=0 // pred_region
    _
  $region17: #{forward.8} parent=0 // pred_fallthru
    _
  // Predicated region
  $region18: #{forward.8} parent=0 // pred_check
    _
  $region19: #{forward.8} parent=0 // pred_check_branch
    %24 = sbr.rel (0) target = $region21
  $region20: #{forward.8} parent=0 // pred_region
    _
  $region21: #{forward.8} parent=0 // pred_fallthru
    _
  // Predicated region
  $region22: #{forward.8} parent=0 // pred_check
    _
  $region23: #{forward.8} parent=0 // pred_check_branch
    %26 = sbr.rel (0) target = $region25
  $region24: #{forward.8} parent=0 // pred_region
    _
  $region25: #{forward.8} parent=0 // pred_fallthru
    _
  // Predicated region
  $region26: #{forward.8} parent=0 // pred_check
    _
  $region27: #{forward.8} parent=0 // pred_check_branch
    %28 = sbr.rel (0) target = $region29
  $region28: #{forward.8} parent=0 // pred_region
    _
  $region29: #{forward.8} parent=0 // pred_fallthru
    _
  // Predicated region
  $region30: #{forward.8} parent=0 // pred_check
    _
  $region31: #{forward.8} parent=0 // pred_check_branch
    %30 = sbr.rel (0) target = $region33
  $region32: #{forward.8} parent=0 // pred_region
    _
  $region33: #{forward.8} parent=0 // pred_fallthru
    _
  %v31 = vld [vmem:[%s0] sm:$0xf]
  %v32 = vld [vmem:[%s0 + $0x4] sm:$0xf]
  %v33 = vld [vmem:[%s0 + $0x8] sm:$0xf]
  %v34 = vld [vmem:[%s0 + $0xc] sm:$0xf]
  %v35 = vld [vmem:[%s0 + $0x10] sm:$0xf]
  %v36 = vld [vmem:[%s0 + $0x14] sm:$0xf]
  %v37 = vld [vmem:[%s0 + $0x18] sm:$0xf]
  %v38 = vld [vmem:[%s0 + $0x1c] sm:$0xf]
  %v39 = vld [vmem:[%s0 + $0x20] sm:$0xf]
  %v40 = vld [vmem:[%s0 + $0x24] sm:$0xf]
  %v41 = vld [vmem:[%s0 + $0x28] sm:$0xf]
  %v42 = vld [vmem:[%s0 + $0x2c] sm:$0xf]
  %v43 = vld [vmem:[%s0 + $0x30] sm:$0xf]
  %v44 = vld [vmem:[%s0 + $0x34] sm:$0xf]
  %v45 = vld [vmem:[%s0 + $0x38] sm:$0xf]
  %v46 = vld [vmem:[%s0 + $0x3c] sm:$0xf]
  %v47 = vld [vmem:[%s0 + $0x40] sm:$0xf]
  %v48 = vld [vmem:[%s0 + $0x44] sm:$0xf]
  %v49 = vld [vmem:[%s0 + $0x48] sm:$0xf]
  %v50 = vld [vmem:[%s0 + $0x4c] sm:$0xf]
  %v51 = vld [vmem:[%s0 + $0x50] sm:$0xf]
  %v52 = vld [vmem:[%s0 + $0x54] sm:$0xf]
  %v53 = vld [vmem:[%s0 + $0x58] sm:$0xf]
  %v54 = vld [vmem:[%s0 + $0x5c] sm:$0xf]
  %v55 = vld [vmem:[%s0 + $0x60] sm:$0xf]
  %v56 = vld [vmem:[%s0 + $0x64] sm:$0xf]
  %v57 = vld [vmem:[%s0 + $0x68] sm:$0xf]
  %v58 = vld [vmem:[%s0 + $0x6c] sm:$0xf]
  %v59 = vld [vmem:[%s0 + $0x70] sm:$0xf]
  %v60 = vld [vmem:[%s0 + $0x74] sm:$0xf]
  %v61 = vld [vmem:[%s0 + $0x78] sm:$0xf]
  %v62 = vld [vmem:[%s0 + $0x7c] sm:$0xf]
  %v63 = vld [vmem:[%s0 + $0x80] sm:$0xf]
  %v64 = vld [vmem:[%s0 + $0x84] sm:$0xf]
  %v65 = vld [vmem:[%s0 + $0x88] sm:$0xf]
  %v66 = vld [vmem:[%s0 + $0x8c] sm:$0xf]
  %v67 = vld [vmem:[%s0 + $0x90] sm:$0xf]
  %v68 = vld [vmem:[%s0 + $0x94] sm:$0xf]
  %v69 = vld [vmem:[%s0 + $0x98] sm:$0xf]
  %v70 = vld [vmem:[%s0 + $0x9c] sm:$0xf]
  %v71 = vld [vmem:[%s0 + $0xa0] sm:$0xf]
  %v72 = vld [vmem:[%s0 + $0xa4] sm:$0xf]
  %v73 = vld [vmem:[%s0 + $0xa8] sm:$0xf]
  %v74 = vld [vmem:[%s0 + $0xac] sm:$0xf]
  %v75 = vld [vmem:[%s0 + $0xb0] sm:$0xf]
  %v76 = vld [vmem:[%s0 + $0xb4] sm:$0xf]
  %v77 = vld [vmem:[%s0 + $0xb8] sm:$0xf]
  %v78 = vld [vmem:[%s0 + $0xbc] sm:$0xf]
  %v79 = vld [vmem:[%s0 + $0xc0] sm:$0xf]
  %v80 = vld [vmem:[%s0 + $0xc4] sm:$0xf]
  %v81 = vld [vmem:[%s0 + $0xc8] sm:$0xf]
  %v82 = vld [vmem:[%s0 + $0xcc] sm:$0xf]
  %v83 = vld [vmem:[%s0 + $0xd0] sm:$0xf]
  %v84 = vld [vmem:[%s0 + $0xd4] sm:$0xf]
  %v85 = vld [vmem:[%s0 + $0xd8] sm:$0xf]
  %v86 = vld [vmem:[%s0 + $0xdc] sm:$0xf]
  %v87 = vld [vmem:[%s0 + $0xe0] sm:$0xf]
  %v88 = vld [vmem:[%s0 + $0xe4] sm:$0xf]
  %v89 = vld [vmem:[%s0 + $0xe8] sm:$0xf]
  %v90 = vld [vmem:[%s0 + $0xec] sm:$0xf]
  %v91 = vld [vmem:[%s0 + $0xf0] sm:$0xf]
  %v92 = vld [vmem:[%s0 + $0xf4] sm:$0xf]
  %v93 = vld [vmem:[%s0 + $0xf8] sm:$0xf]
  %v94 = vld [vmem:[%s0 + $0xfc] sm:$0xf]
  %v95 = vld [vmem:[%s1] sm:$0xf]
  %v96 = vld [vmem:[%s1 + $0x4] sm:$0xf]
  %v97 = vld [vmem:[%s1 + $0x8] sm:$0xf]
  %v98 = vld [vmem:[%s1 + $0xc] sm:$0xf]
  %v99 = vld [vmem:[%s1 + $0x10] sm:$0xf]
  %v100 = vld [vmem:[%s1 + $0x14] sm:$0xf]
  %v101 = vld [vmem:[%s1 + $0x18] sm:$0xf]
  %v102 = vld [vmem:[%s1 + $0x1c] sm:$0xf]
  %v103 = vld [vmem:[%s1 + $0x20] sm:$0xf]
  %v104 = vld [vmem:[%s1 + $0x24] sm:$0xf]
  %v105 = vld [vmem:[%s1 + $0x28] sm:$0xf]
  %v106 = vld [vmem:[%s1 + $0x2c] sm:$0xf]
  %v107 = vld [vmem:[%s1 + $0x30] sm:$0xf]
  %v108 = vld [vmem:[%s1 + $0x34] sm:$0xf]
  %v109 = vld [vmem:[%s1 + $0x38] sm:$0xf]
  %v110 = vld [vmem:[%s1 + $0x3c] sm:$0xf]
  %v111 = vld [vmem:[%s2] sm:$0x1]
  %v113 = vperm.slane %v111, 0
  %v179 = vunpack.c.l.b16 %v31
  %v180 = vunpack.c.l.b16 %v32
  %v181 = vunpack.c.l.b16 %v33
  %v182 = vunpack.c.l.b16 %v34
  %v183 = vunpack.c.l.b16 %v35
  %v184 = vunpack.c.l.b16 %v36
  %v185 = vunpack.c.l.b16 %v37
  %v186 = vunpack.c.l.b16 %v38
  %v187 = vunpack.c.l.b16 %v39
  %v188 = vunpack.c.l.b16 %v40
  %v189 = vunpack.c.l.b16 %v41
  %v190 = vunpack.c.l.b16 %v42
  %v191 = vunpack.c.l.b16 %v43
  %v192 = vunpack.c.l.b16 %v44
  %v193 = vunpack.c.l.b16 %v45
  %v194 = vunpack.c.l.b16 %v46
  %v195 = vunpack.c.l.b16 %v47
  %v196 = vunpack.c.l.b16 %v48
  %v197 = vunpack.c.l.b16 %v49
  %v198 = vunpack.c.l.b16 %v50
  %v199 = vunpack.c.l.b16 %v51
  %v200 = vunpack.c.l.b16 %v52
  %v201 = vunpack.c.l.b16 %v53
  %v202 = vunpack.c.l.b16 %v54
  %v203 = vunpack.c.l.b16 %v55
  %v204 = vunpack.c.l.b16 %v56
  %v205 = vunpack.c.l.b16 %v57
  %v206 = vunpack.c.l.b16 %v58
  %v207 = vunpack.c.l.b16 %v59
  %v208 = vunpack.c.l.b16 %v60
  %v209 = vunpack.c.l.b16 %v61
  %v210 = vunpack.c.l.b16 %v62
  %v211 = vunpack.c.l.b16 %v63
  %v212 = vunpack.c.l.b16 %v64
  %v213 = vunpack.c.l.b16 %v65
  %v214 = vunpack.c.l.b16 %v66
  %v215 = vunpack.c.l.b16 %v67
  %v216 = vunpack.c.l.b16 %v68
  %v217 = vunpack.c.l.b16 %v69
  %v218 = vunpack.c.l.b16 %v70
  %v219 = vunpack.c.l.b16 %v71
  %v220 = vunpack.c.l.b16 %v72
  %v221 = vunpack.c.l.b16 %v73
  %v222 = vunpack.c.l.b16 %v74
  %v223 = vunpack.c.l.b16 %v75
  %v224 = vunpack.c.l.b16 %v76
  %v225 = vunpack.c.l.b16 %v77
  %v226 = vunpack.c.l.b16 %v78
  %v227 = vunpack.c.l.b16 %v79
  %v228 = vunpack.c.l.b16 %v80
  %v229 = vunpack.c.l.b16 %v81
  %v230 = vunpack.c.l.b16 %v82
  %v231 = vunpack.c.l.b16 %v83
  %v232 = vunpack.c.l.b16 %v84
  %v233 = vunpack.c.l.b16 %v85
  %v234 = vunpack.c.l.b16 %v86
  %v235 = vunpack.c.l.b16 %v87
  %v236 = vunpack.c.l.b16 %v88
  %v237 = vunpack.c.l.b16 %v89
  %v238 = vunpack.c.l.b16 %v90
  %v239 = vunpack.c.l.b16 %v91
  %v240 = vunpack.c.l.b16 %v92
  %v241 = vunpack.c.l.b16 %v93
  %v242 = vunpack.c.l.b16 %v94
  %v243 = vpack.c.b16 %v180, %v179
  %v244 = vpack.c.b16 %v182, %v181
  %v245 = vpack.c.b16 %v184, %v183
  %v246 = vpack.c.b16 %v186, %v185
  %v247 = vpack.c.b16 %v188, %v187
  %v248 = vpack.c.b16 %v190, %v189
  %v249 = vpack.c.b16 %v192, %v191
  %v250 = vpack.c.b16 %v194, %v193
  %v251 = vpack.c.b16 %v196, %v195
  %v252 = vpack.c.b16 %v198, %v197
  %v253 = vpack.c.b16 %v200, %v199
  %v254 = vpack.c.b16 %v202, %v201
  %v255 = vpack.c.b16 %v204, %v203
  %v256 = vpack.c.b16 %v206, %v205
  %v257 = vpack.c.b16 %v208, %v207
  %v258 = vpack.c.b16 %v210, %v209
  %v259 = vpack.c.b16 %v212, %v211
  %v260 = vpack.c.b16 %v214, %v213
  %v261 = vpack.c.b16 %v216, %v215
  %v262 = vpack.c.b16 %v218, %v217
  %v263 = vpack.c.b16 %v220, %v219
  %v264 = vpack.c.b16 %v222, %v221
  %v265 = vpack.c.b16 %v224, %v223
  %v266 = vpack.c.b16 %v226, %v225
  %v267 = vpack.c.b16 %v228, %v227
  %v268 = vpack.c.b16 %v230, %v229
  %v269 = vpack.c.b16 %v232, %v231
  %v270 = vpack.c.b16 %v234, %v233
  %v271 = vpack.c.b16 %v236, %v235
  %v272 = vpack.c.b16 %v238, %v237
  %v273 = vpack.c.b16 %v240, %v239
  %v274 = vpack.c.b16 %v242, %v241
  %v323 = vunpack.c.l.b16 %v95
  %v324 = vunpack.c.l.b16 %v96
  %v325 = vunpack.c.l.b16 %v97
  %v326 = vunpack.c.l.b16 %v98
  %v327 = vunpack.c.l.b16 %v99
  %v328 = vunpack.c.l.b16 %v100
  %v329 = vunpack.c.l.b16 %v101
  %v330 = vunpack.c.l.b16 %v102
  %v331 = vunpack.c.l.b16 %v103
  %v332 = vunpack.c.l.b16 %v104
  %v333 = vunpack.c.l.b16 %v105
  %v334 = vunpack.c.l.b16 %v106
  %v335 = vunpack.c.l.b16 %v107
  %v336 = vunpack.c.l.b16 %v108
  %v337 = vunpack.c.l.b16 %v109
  %v338 = vunpack.c.l.b16 %v110
  %v339 = vpack.c.b16 %v324, %v323
  %v340 = vpack.c.b16 %v326, %v325
  %v341 = vpack.c.b16 %v328, %v327
  %v342 = vpack.c.b16 %v330, %v329
  %v343 = vpack.c.b16 %v332, %v331
  %v344 = vpack.c.b16 %v334, %v333
  %v345 = vpack.c.b16 %v336, %v335
  %v346 = vpack.c.b16 %v338, %v337
  %355 = vmatpush.bf16.msra.mxu0 %v346
  %356 = vmatpush.bf16.msra.mxu0 %v345
  %357 = vmatpush.bf16.msra.mxu0 %v344
  %358 = vmatpush.bf16.msra.mxu0 %v343
  %359 = vmatpush.bf16.msra.mxu0 %v342
  %360 = vmatpush.bf16.msra.mxu0 %v341
  %361 = vmatpush.bf16.msra.mxu0 %v340
  %362 = vmatpush.bf16.msra.mxu0 %v339
  %363 = vmatmul.bf16.gmra.mxu0 %v243
  %v364 = vpop.f32.mrf.mxu0
  %v365 = vadd.f32 %v113, %v364
  %v366 = vpop.f32.mrf.mxu0
  %v367 = vadd.f32 %v113, %v366
  %368 = vmatmul.bf16.gmra.mxu0 %v244
  %v369 = vpop.f32.mrf.mxu0
  %v370 = vadd.f32 %v113, %v369
  %v371 = vpop.f32.mrf.mxu0
  %v372 = vadd.f32 %v113, %v371
  %373 = vmatmul.bf16.gmra.mxu0 %v245
  %v374 = vpop.f32.mrf.mxu0
  %v375 = vadd.f32 %v113, %v374
  %v376 = vpop.f32.mrf.mxu0
  %v377 = vadd.f32 %v113, %v376
  %378 = vmatmul.bf16.gmra.mxu0 %v246
  %v379 = vpop.f32.mrf.mxu0
  %v380 = vadd.f32 %v113, %v379
  %v381 = vpop.f32.mrf.mxu0
  %v382 = vadd.f32 %v113, %v381
  %383 = vmatmul.bf16.gmra.mxu0 %v247
  %v384 = vpop.f32.mrf.mxu0
  %v385 = vadd.f32 %v113, %v384
  %v386 = vpop.f32.mrf.mxu0
  %v387 = vadd.f32 %v113, %v386
  %388 = vmatmul.bf16.gmra.mxu0 %v248
  %v389 = vpop.f32.mrf.mxu0
  %v390 = vadd.f32 %v113, %v389
  %v391 = vpop.f32.mrf.mxu0
  %v392 = vadd.f32 %v113, %v391
  %393 = vmatmul.bf16.gmra.mxu0 %v249
  %v394 = vpop.f32.mrf.mxu0
  %v395 = vadd.f32 %v113, %v394
  %v396 = vpop.f32.mrf.mxu0
  %v397 = vadd.f32 %v113, %v396
  %398 = vmatmul.bf16.gmra.mxu0 %v250
  %v399 = vpop.f32.mrf.mxu0
  %v400 = vadd.f32 %v113, %v399
  %v401 = vpop.f32.mrf.mxu0
  %v402 = vadd.f32 %v113, %v401
  %403 = vmatmul.bf16.gmra.mxu0 %v251
  %v404 = vpop.f32.mrf.mxu0
  %v405 = vadd.f32 %v113, %v404
  %v406 = vpop.f32.mrf.mxu0
  %v407 = vadd.f32 %v113, %v406
  %408 = vmatmul.bf16.gmra.mxu0 %v252
  %v409 = vpop.f32.mrf.mxu0
  %v410 = vadd.f32 %v113, %v409
  %v411 = vpop.f32.mrf.mxu0
  %v412 = vadd.f32 %v113, %v411
  %413 = vmatmul.bf16.gmra.mxu0 %v253
  %v414 = vpop.f32.mrf.mxu0
  %v415 = vadd.f32 %v113, %v414
  %v416 = vpop.f32.mrf.mxu0
  %v417 = vadd.f32 %v113, %v416
  %418 = vmatmul.bf16.gmra.mxu0 %v254
  %v419 = vpop.f32.mrf.mxu0
  %v420 = vadd.f32 %v113, %v419
  %v421 = vpop.f32.mrf.mxu0
  %v422 = vadd.f32 %v113, %v421
  %423 = vmatmul.bf16.gmra.mxu0 %v255
  %v424 = vpop.f32.mrf.mxu0
  %v425 = vadd.f32 %v113, %v424
  %v426 = vpop.f32.mrf.mxu0
  %v427 = vadd.f32 %v113, %v426
  %428 = vmatmul.bf16.gmra.mxu0 %v256
  %v429 = vpop.f32.mrf.mxu0
  %v430 = vadd.f32 %v113, %v429
  %v431 = vpop.f32.mrf.mxu0
  %v432 = vadd.f32 %v113, %v431
  %433 = vmatmul.bf16.gmra.mxu0 %v257
  %v434 = vpop.f32.mrf.mxu0
  %v435 = vadd.f32 %v113, %v434
  %v436 = vpop.f32.mrf.mxu0
  %v437 = vadd.f32 %v113, %v436
  %438 = vmatmul.bf16.gmra.mxu0 %v258
  %v439 = vpop.f32.mrf.mxu0
  %v440 = vadd.f32 %v113, %v439
  %v441 = vpop.f32.mrf.mxu0
  %v442 = vadd.f32 %v113, %v441
  %443 = vmatmul.bf16.gmra.mxu0 %v259
  %v444 = vpop.f32.mrf.mxu0
  %v445 = vadd.f32 %v113, %v444
  %v446 = vpop.f32.mrf.mxu0
  %v447 = vadd.f32 %v113, %v446
  %448 = vmatmul.bf16.gmra.mxu0 %v260
  %v449 = vpop.f32.mrf.mxu0
  %v450 = vadd.f32 %v113, %v449
  %v451 = vpop.f32.mrf.mxu0
  %v452 = vadd.f32 %v113, %v451
  %453 = vmatmul.bf16.gmra.mxu0 %v261
  %v454 = vpop.f32.mrf.mxu0
  %v455 = vadd.f32 %v113, %v454
  %v456 = vpop.f32.mrf.mxu0
  %v457 = vadd.f32 %v113, %v456
  %458 = vmatmul.bf16.gmra.mxu0 %v262
  %v459 = vpop.f32.mrf.mxu0
  %v460 = vadd.f32 %v113, %v459
  %v461 = vpop.f32.mrf.mxu0
  %v462 = vadd.f32 %v113, %v461
  %463 = vmatmul.bf16.gmra.mxu0 %v263
  %v464 = vpop.f32.mrf.mxu0
  %v465 = vadd.f32 %v113, %v464
  %v466 = vpop.f32.mrf.mxu0
  %v467 = vadd.f32 %v113, %v466
  %468 = vmatmul.bf16.gmra.mxu0 %v264
  %v469 = vpop.f32.mrf.mxu0
  %v470 = vadd.f32 %v113, %v469
  %v471 = vpop.f32.mrf.mxu0
  %v472 = vadd.f32 %v113, %v471
  %473 = vmatmul.bf16.gmra.mxu0 %v265
  %v474 = vpop.f32.mrf.mxu0
  %v475 = vadd.f32 %v113, %v474
  %v476 = vpop.f32.mrf.mxu0
  %v477 = vadd.f32 %v113, %v476
  %478 = vmatmul.bf16.gmra.mxu0 %v266
  %v479 = vpop.f32.mrf.mxu0
  %v480 = vadd.f32 %v113, %v479
  %v481 = vpop.f32.mrf.mxu0
  %v482 = vadd.f32 %v113, %v481
  %483 = vmatmul.bf16.gmra.mxu0 %v267
  %v484 = vpop.f32.mrf.mxu0
  %v485 = vadd.f32 %v113, %v484
  %v486 = vpop.f32.mrf.mxu0
  %v487 = vadd.f32 %v113, %v486
  %488 = vmatmul.bf16.gmra.mxu0 %v268
  %v489 = vpop.f32.mrf.mxu0
  %v490 = vadd.f32 %v113, %v489
  %v491 = vpop.f32.mrf.mxu0
  %v492 = vadd.f32 %v113, %v491
  %493 = vmatmul.bf16.gmra.mxu0 %v269
  %v494 = vpop.f32.mrf.mxu0
  %v495 = vadd.f32 %v113, %v494
  %v496 = vpop.f32.mrf.mxu0
  %v497 = vadd.f32 %v113, %v496
  %498 = vmatmul.bf16.gmra.mxu0 %v270
  %v499 = vpop.f32.mrf.mxu0
  %v500 = vadd.f32 %v113, %v499
  %v501 = vpop.f32.mrf.mxu0
  %v502 = vadd.f32 %v113, %v501
  %503 = vmatmul.bf16.gmra.mxu0 %v271
  %v504 = vpop.f32.mrf.mxu0
  %v505 = vadd.f32 %v113, %v504
  %v506 = vpop.f32.mrf.mxu0
  %v507 = vadd.f32 %v113, %v506
  %508 = vmatmul.bf16.gmra.mxu0 %v272
  %v509 = vpop.f32.mrf.mxu0
  %v510 = vadd.f32 %v113, %v509
  %v511 = vpop.f32.mrf.mxu0
  %v512 = vadd.f32 %v113, %v511
  %513 = vmatmul.bf16.gmra.mxu0 %v273
  %v514 = vpop.f32.mrf.mxu0
  %v515 = vadd.f32 %v113, %v514
  %v516 = vpop.f32.mrf.mxu0
  %v517 = vadd.f32 %v113, %v516
  %518 = vmatmul.bf16.gmra.mxu0 %v274
  %v519 = vpop.f32.mrf.mxu0
  %v520 = vadd.f32 %v113, %v519
  %v521 = vpop.f32.mrf.mxu0
  %v522 = vadd.f32 %v113, %v521
  %523 = vdwg.mxu0
  %v524 = vmax.f32 %v365, 0.0
  %v525 = vmax.f32 %v367, 0.0
  %v526 = vmax.f32 %v370, 0.0
  %v527 = vmax.f32 %v372, 0.0
  %v528 = vmax.f32 %v375, 0.0
  %v529 = vmax.f32 %v377, 0.0
  %v530 = vmax.f32 %v380, 0.0
  %v531 = vmax.f32 %v382, 0.0
  %v532 = vmax.f32 %v385, 0.0
  %v533 = vmax.f32 %v387, 0.0
  %v534 = vmax.f32 %v390, 0.0
  %v535 = vmax.f32 %v392, 0.0
  %v536 = vmax.f32 %v395, 0.0
  %v537 = vmax.f32 %v397, 0.0
  %v538 = vmax.f32 %v400, 0.0
  %v539 = vmax.f32 %v402, 0.0
  %v540 = vmax.f32 %v405, 0.0
  %v541 = vmax.f32 %v407, 0.0
  %v542 = vmax.f32 %v410, 0.0
  %v543 = vmax.f32 %v412, 0.0
  %v544 = vmax.f32 %v415, 0.0
  %v545 = vmax.f32 %v417, 0.0
  %v546 = vmax.f32 %v420, 0.0
  %v547 = vmax.f32 %v422, 0.0
  %v548 = vmax.f32 %v425, 0.0
  %v549 = vmax.f32 %v427, 0.0
  %v550 = vmax.f32 %v430, 0.0
  %v551 = vmax.f32 %v432, 0.0
  %v552 = vmax.f32 %v435, 0.0
  %v553 = vmax.f32 %v437, 0.0
  %v554 = vmax.f32 %v440, 0.0
  %v555 = vmax.f32 %v442, 0.0
  %v556 = vmax.f32 %v445, 0.0
  %v557 = vmax.f32 %v447, 0.0
  %v558 = vmax.f32 %v450, 0.0
  %v559 = vmax.f32 %v452, 0.0
  %v560 = vmax.f32 %v455, 0.0
  %v561 = vmax.f32 %v457, 0.0
  %v562 = vmax.f32 %v460, 0.0
  %v563 = vmax.f32 %v462, 0.0
  %v564 = vmax.f32 %v465, 0.0
  %v565 = vmax.f32 %v467, 0.0
  %v566 = vmax.f32 %v470, 0.0
  %v567 = vmax.f32 %v472, 0.0
  %v568 = vmax.f32 %v475, 0.0
  %v569 = vmax.f32 %v477, 0.0
  %v570 = vmax.f32 %v480, 0.0
  %v571 = vmax.f32 %v482, 0.0
  %v572 = vmax.f32 %v485, 0.0
  %v573 = vmax.f32 %v487, 0.0
  %v574 = vmax.f32 %v490, 0.0
  %v575 = vmax.f32 %v492, 0.0
  %v576 = vmax.f32 %v495, 0.0
  %v577 = vmax.f32 %v497, 0.0
  %v578 = vmax.f32 %v500, 0.0
  %v579 = vmax.f32 %v502, 0.0
  %v580 = vmax.f32 %v505, 0.0
  %v581 = vmax.f32 %v507, 0.0
  %v582 = vmax.f32 %v510, 0.0
  %v583 = vmax.f32 %v512, 0.0
  %v584 = vmax.f32 %v515, 0.0
  %v585 = vmax.f32 %v517, 0.0
  %v586 = vmax.f32 %v520, 0.0
  %v587 = vmax.f32 %v522, 0.0
  %v588 = vpack.c.bf16 %v524, %v524
  %v589 = vpack.c.bf16 %v525, %v525
  %v590 = vpack.c.bf16 %v526, %v526
  %v591 = vpack.c.bf16 %v527, %v527
  %v592 = vpack.c.bf16 %v528, %v528
  %v593 = vpack.c.bf16 %v529, %v529
  %v594 = vpack.c.bf16 %v530, %v530
  %v595 = vpack.c.bf16 %v531, %v531
  %v596 = vpack.c.bf16 %v532, %v532
  %v597 = vpack.c.bf16 %v533, %v533
  %v598 = vpack.c.bf16 %v534, %v534
  %v599 = vpack.c.bf16 %v535, %v535
  %v600 = vpack.c.bf16 %v536, %v536
  %v601 = vpack.c.bf16 %v537, %v537
  %v602 = vpack.c.bf16 %v538, %v538
  %v603 = vpack.c.bf16 %v539, %v539
  %v604 = vpack.c.bf16 %v540, %v540
  %v605 = vpack.c.bf16 %v541, %v541
  %v606 = vpack.c.bf16 %v542, %v542
  %v607 = vpack.c.bf16 %v543, %v543
  %v608 = vpack.c.bf16 %v544, %v544
  %v609 = vpack.c.bf16 %v545, %v545
  %v610 = vpack.c.bf16 %v546, %v546
  %v611 = vpack.c.bf16 %v547, %v547
  %v612 = vpack.c.bf16 %v548, %v548
  %v613 = vpack.c.bf16 %v549, %v549
  %v614 = vpack.c.bf16 %v550, %v550
  %v615 = vpack.c.bf16 %v551, %v551
  %v616 = vpack.c.bf16 %v552, %v552
  %v617 = vpack.c.bf16 %v553, %v553
  %v618 = vpack.c.bf16 %v554, %v554
  %v619 = vpack.c.bf16 %v555, %v555
  %v620 = vpack.c.bf16 %v556, %v556
  %v621 = vpack.c.bf16 %v557, %v557
  %v622 = vpack.c.bf16 %v558, %v558
  %v623 = vpack.c.bf16 %v559, %v559
  %v624 = vpack.c.bf16 %v560, %v560
  %v625 = vpack.c.bf16 %v561, %v561
  %v626 = vpack.c.bf16 %v562, %v562
  %v627 = vpack.c.bf16 %v563, %v563
  %v628 = vpack.c.bf16 %v564, %v564
  %v629 = vpack.c.bf16 %v565, %v565
  %v630 = vpack.c.bf16 %v566, %v566
  %v631 = vpack.c.bf16 %v567, %v567
  %v632 = vpack.c.bf16 %v568, %v568
  %v633 = vpack.c.bf16 %v569, %v569
  %v634 = vpack.c.bf16 %v570, %v570
  %v635 = vpack.c.bf16 %v571, %v571
  %v636 = vpack.c.bf16 %v572, %v572
  %v637 = vpack.c.bf16 %v573, %v573
  %v638 = vpack.c.bf16 %v574, %v574
  %v639 = vpack.c.bf16 %v575, %v575
  %v640 = vpack.c.bf16 %v576, %v576
  %v641 = vpack.c.bf16 %v577, %v577
  %v642 = vpack.c.bf16 %v578, %v578
  %v643 = vpack.c.bf16 %v579, %v579
  %v644 = vpack.c.bf16 %v580, %v580
  %v645 = vpack.c.bf16 %v581, %v581
  %v646 = vpack.c.bf16 %v582, %v582
  %v647 = vpack.c.bf16 %v583, %v583
  %v648 = vpack.c.bf16 %v584, %v584
  %v649 = vpack.c.bf16 %v585, %v585
  %v650 = vpack.c.bf16 %v586, %v586
  %v651 = vpack.c.bf16 %v587, %v587
  %v652 = vld [vmem:[%s5] sm:$0xf]
  %v653 = vld [vmem:[%s5 + $0x4] sm:$0xf]
  %v654 = vld [vmem:[%s5 + $0x8] sm:$0xf]
  %v655 = vld [vmem:[%s5 + $0xc] sm:$0xf]
  %v656 = vld [vmem:[%s5 + $0x10] sm:$0xf]
  %v657 = vld [vmem:[%s5 + $0x14] sm:$0xf]
  %v658 = vld [vmem:[%s5 + $0x18] sm:$0xf]
  %v659 = vld [vmem:[%s5 + $0x1c] sm:$0xf]
  %v660 = vld [vmem:[%s5 + $0x20] sm:$0xf]
  %v661 = vld [vmem:[%s5 + $0x24] sm:$0xf]
  %v662 = vld [vmem:[%s5 + $0x28] sm:$0xf]
  %v663 = vld [vmem:[%s5 + $0x2c] sm:$0xf]
  %v664 = vld [vmem:[%s5 + $0x30] sm:$0xf]
  %v665 = vld [vmem:[%s5 + $0x34] sm:$0xf]
  %v666 = vld [vmem:[%s5 + $0x38] sm:$0xf]
  %v667 = vld [vmem:[%s5 + $0x3c] sm:$0xf]
  %v668 = vld [vmem:[%s5 + $0x40] sm:$0xf]
  %v669 = vld [vmem:[%s5 + $0x44] sm:$0xf]
  %v670 = vld [vmem:[%s5 + $0x48] sm:$0xf]
  %v671 = vld [vmem:[%s5 + $0x4c] sm:$0xf]
  %v672 = vld [vmem:[%s5 + $0x50] sm:$0xf]
  %v673 = vld [vmem:[%s5 + $0x54] sm:$0xf]
  %v674 = vld [vmem:[%s5 + $0x58] sm:$0xf]
  %v675 = vld [vmem:[%s5 + $0x5c] sm:$0xf]
  %v676 = vld [vmem:[%s5 + $0x60] sm:$0xf]
  %v677 = vld [vmem:[%s5 + $0x64] sm:$0xf]
  %v678 = vld [vmem:[%s5 + $0x68] sm:$0xf]
  %v679 = vld [vmem:[%s5 + $0x6c] sm:$0xf]
  %v680 = vld [vmem:[%s5 + $0x70] sm:$0xf]
  %v681 = vld [vmem:[%s5 + $0x74] sm:$0xf]
  %v682 = vld [vmem:[%s5 + $0x78] sm:$0xf]
  %v683 = vld [vmem:[%s5 + $0x7c] sm:$0xf]
  %v684 = vld [vmem:[%s5 + $0x80] sm:$0xf]
  %v685 = vld [vmem:[%s5 + $0x84] sm:$0xf]
  %v686 = vld [vmem:[%s5 + $0x88] sm:$0xf]
  %v687 = vld [vmem:[%s5 + $0x8c] sm:$0xf]
  %v688 = vld [vmem:[%s5 + $0x90] sm:$0xf]
  %v689 = vld [vmem:[%s5 + $0x94] sm:$0xf]
  %v690 = vld [vmem:[%s5 + $0x98] sm:$0xf]
  %v691 = vld [vmem:[%s5 + $0x9c] sm:$0xf]
  %v692 = vld [vmem:[%s5 + $0xa0] sm:$0xf]
  %v693 = vld [vmem:[%s5 + $0xa4] sm:$0xf]
  %v694 = vld [vmem:[%s5 + $0xa8] sm:$0xf]
  %v695 = vld [vmem:[%s5 + $0xac] sm:$0xf]
  %v696 = vld [vmem:[%s5 + $0xb0] sm:$0xf]
  %v697 = vld [vmem:[%s5 + $0xb4] sm:$0xf]
  %v698 = vld [vmem:[%s5 + $0xb8] sm:$0xf]
  %v699 = vld [vmem:[%s5 + $0xbc] sm:$0xf]
  %v700 = vld [vmem:[%s5 + $0xc0] sm:$0xf]
  %v701 = vld [vmem:[%s5 + $0xc4] sm:$0xf]
  %v702 = vld [vmem:[%s5 + $0xc8] sm:$0xf]
  %v703 = vld [vmem:[%s5 + $0xcc] sm:$0xf]
  %v704 = vld [vmem:[%s5 + $0xd0] sm:$0xf]
  %v705 = vld [vmem:[%s5 + $0xd4] sm:$0xf]
  %v706 = vld [vmem:[%s5 + $0xd8] sm:$0xf]
  %v707 = vld [vmem:[%s5 + $0xdc] sm:$0xf]
  %v708 = vld [vmem:[%s5 + $0xe0] sm:$0xf]
  %v709 = vld [vmem:[%s5 + $0xe4] sm:$0xf]
  %v710 = vld [vmem:[%s5 + $0xe8] sm:$0xf]
  %v711 = vld [vmem:[%s5 + $0xec] sm:$0xf]
  %v712 = vld [vmem:[%s5 + $0xf0] sm:$0xf]
  %v713 = vld [vmem:[%s5 + $0xf4] sm:$0xf]
  %v714 = vld [vmem:[%s5 + $0xf8] sm:$0xf]
  %v715 = vld [vmem:[%s5 + $0xfc] sm:$0xf]
  %v780 = vunpack.c.l.b16 %v588
  %v781 = vunpack.c.l.b16 %v589
  %v782 = vunpack.c.l.b16 %v590
  %v783 = vunpack.c.l.b16 %v591
  %v784 = vunpack.c.l.b16 %v592
  %v785 = vunpack.c.l.b16 %v593
  %v786 = vunpack.c.l.b16 %v594
  %v787 = vunpack.c.l.b16 %v595
  %v788 = vunpack.c.l.b16 %v596
  %v789 = vunpack.c.l.b16 %v597
  %v790 = vunpack.c.l.b16 %v598
  %v791 = vunpack.c.l.b16 %v599
  %v792 = vunpack.c.l.b16 %v600
  %v793 = vunpack.c.l.b16 %v601
  %v794 = vunpack.c.l.b16 %v602
  %v795 = vunpack.c.l.b16 %v603
  %v796 = vunpack.c.l.b16 %v604
  %v797 = vunpack.c.l.b16 %v605
  %v798 = vunpack.c.l.b16 %v606
  %v799 = vunpack.c.l.b16 %v607
  %v800 = vunpack.c.l.b16 %v608
  %v801 = vunpack.c.l.b16 %v609
  %v802 = vunpack.c.l.b16 %v610
  %v803 = vunpack.c.l.b16 %v611
  %v804 = vunpack.c.l.b16 %v612
  %v805 = vunpack.c.l.b16 %v613
  %v806 = vunpack.c.l.b16 %v614
  %v807 = vunpack.c.l.b16 %v615
  %v808 = vunpack.c.l.b16 %v616
  %v809 = vunpack.c.l.b16 %v617
  %v810 = vunpack.c.l.b16 %v618
  %v811 = vunpack.c.l.b16 %v619
  %v812 = vunpack.c.l.b16 %v620
  %v813 = vunpack.c.l.b16 %v621
  %v814 = vunpack.c.l.b16 %v622
  %v815 = vunpack.c.l.b16 %v623
  %v816 = vunpack.c.l.b16 %v624
  %v817 = vunpack.c.l.b16 %v625
  %v818 = vunpack.c.l.b16 %v626
  %v819 = vunpack.c.l.b16 %v627
  %v820 = vunpack.c.l.b16 %v628
  %v821 = vunpack.c.l.b16 %v629
  %v822 = vunpack.c.l.b16 %v630
  %v823 = vunpack.c.l.b16 %v631
  %v824 = vunpack.c.l.b16 %v632
  %v825 = vunpack.c.l.b16 %v633
  %v826 = vunpack.c.l.b16 %v634
  %v827 = vunpack.c.l.b16 %v635
  %v828 = vunpack.c.l.b16 %v636
  %v829 = vunpack.c.l.b16 %v637
  %v830 = vunpack.c.l.b16 %v638
  %v831 = vunpack.c.l.b16 %v639
  %v832 = vunpack.c.l.b16 %v640
  %v833 = vunpack.c.l.b16 %v641
  %v834 = vunpack.c.l.b16 %v642
  %v835 = vunpack.c.l.b16 %v643
  %v836 = vunpack.c.l.b16 %v644
  %v837 = vunpack.c.l.b16 %v645
  %v838 = vunpack.c.l.b16 %v646
  %v839 = vunpack.c.l.b16 %v647
  %v840 = vunpack.c.l.b16 %v648
  %v841 = vunpack.c.l.b16 %v649
  %v842 = vunpack.c.l.b16 %v650
  %v843 = vunpack.c.l.b16 %v651
  %v844 = vpack.c.b16 %v781, %v780
  %v845 = vpack.c.b16 %v783, %v782
  %v846 = vpack.c.b16 %v785, %v784
  %v847 = vpack.c.b16 %v787, %v786
  %v848 = vpack.c.b16 %v789, %v788
  %v849 = vpack.c.b16 %v791, %v790
  %v850 = vpack.c.b16 %v793, %v792
  %v851 = vpack.c.b16 %v795, %v794
  %v852 = vpack.c.b16 %v797, %v796
  %v853 = vpack.c.b16 %v799, %v798
  %v854 = vpack.c.b16 %v801, %v800
  %v855 = vpack.c.b16 %v803, %v802
  %v856 = vpack.c.b16 %v805, %v804
  %v857 = vpack.c.b16 %v807, %v806
  %v858 = vpack.c.b16 %v809, %v808
  %v859 = vpack.c.b16 %v811, %v810
  %v860 = vpack.c.b16 %v813, %v812
  %v861 = vpack.c.b16 %v815, %v814
  %v862 = vpack.c.b16 %v817, %v816
  %v863 = vpack.c.b16 %v819, %v818
  %v864 = vpack.c.b16 %v821, %v820
  %v865 = vpack.c.b16 %v823, %v822
  %v866 = vpack.c.b16 %v825, %v824
  %v867 = vpack.c.b16 %v827, %v826
  %v868 = vpack.c.b16 %v829, %v828
  %v869 = vpack.c.b16 %v831, %v830
  %v870 = vpack.c.b16 %v833, %v832
  %v871 = vpack.c.b16 %v835, %v834
  %v872 = vpack.c.b16 %v837, %v836
  %v873 = vpack.c.b16 %v839, %v838
  %v874 = vpack.c.b16 %v841, %v840
  %v875 = vpack.c.b16 %v843, %v842
  %v972 = vunpack.c.l.b16 %v652
  %v973 = vunpack.c.l.b16 %v653
  %v974 = vunpack.c.l.b16 %v654
  %v975 = vunpack.c.l.b16 %v655
  %v976 = vunpack.c.l.b16 %v656
  %v977 = vunpack.c.l.b16 %v657
  %v978 = vunpack.c.l.b16 %v658
  %v979 = vunpack.c.l.b16 %v659
  %v980 = vunpack.c.l.b16 %v660
  %v981 = vunpack.c.l.b16 %v661
  %v982 = vunpack.c.l.b16 %v662
  %v983 = vunpack.c.l.b16 %v663
  %v984 = vunpack.c.l.b16 %v664
  %v985 = vunpack.c.l.b16 %v665
  %v986 = vunpack.c.l.b16 %v666
  %v987 = vunpack.c.l.b16 %v667
  %v988 = vunpack.c.l.b16 %v668
  %v989 = vunpack.c.l.b16 %v669
  %v990 = vunpack.c.l.b16 %v670
  %v991 = vunpack.c.l.b16 %v671
  %v992 = vunpack.c.l.b16 %v672
  %v993 = vunpack.c.l.b16 %v673
  %v994 = vunpack.c.l.b16 %v674
  %v995 = vunpack.c.l.b16 %v675
  %v996 = vunpack.c.l.b16 %v676
  %v997 = vunpack.c.l.b16 %v677
  %v998 = vunpack.c.l.b16 %v678
  %v999 = vunpack.c.l.b16 %v679
  %v1000 = vunpack.c.l.b16 %v680
  %v1001 = vunpack.c.l.b16 %v681
  %v1002 = vunpack.c.l.b16 %v682
  %v1003 = vunpack.c.l.b16 %v683
  %v1004 = vunpack.c.l.b16 %v684
  %v1005 = vunpack.c.l.b16 %v685
  %v1006 = vunpack.c.l.b16 %v686
  %v1007 = vunpack.c.l.b16 %v687
  %v1008 = vunpack.c.l.b16 %v688
  %v1009 = vunpack.c.l.b16 %v689
  %v1010 = vunpack.c.l.b16 %v690
  %v1011 = vunpack.c.l.b16 %v691
  %v1012 = vunpack.c.l.b16 %v692
  %v1013 = vunpack.c.l.b16 %v693
  %v1014 = vunpack.c.l.b16 %v694
  %v1015 = vunpack.c.l.b16 %v695
  %v1016 = vunpack.c.l.b16 %v696
  %v1017 = vunpack.c.l.b16 %v697
  %v1018 = vunpack.c.l.b16 %v698
  %v1019 = vunpack.c.l.b16 %v699
  %v1020 = vunpack.c.l.b16 %v700
  %v1021 = vunpack.c.l.b16 %v701
  %v1022 = vunpack.c.l.b16 %v702
  %v1023 = vunpack.c.l.b16 %v703
  %v1024 = vunpack.c.l.b16 %v704
  %v1025 = vunpack.c.l.b16 %v705
  %v1026 = vunpack.c.l.b16 %v706
  %v1027 = vunpack.c.l.b16 %v707
  %v1028 = vunpack.c.l.b16 %v708
  %v1029 = vunpack.c.l.b16 %v709
  %v1030 = vunpack.c.l.b16 %v710
  %v1031 = vunpack.c.l.b16 %v711
  %v1032 = vunpack.c.l.b16 %v712
  %v1033 = vunpack.c.l.b16 %v713
  %v1034 = vunpack.c.l.b16 %v714
  %v1035 = vunpack.c.l.b16 %v715
  %v1036 = vpack.c.b16 %v973, %v972
  %v1037 = vpack.c.b16 %v975, %v974
  %v1038 = vpack.c.b16 %v977, %v976
  %v1039 = vpack.c.b16 %v979, %v978
  %v1040 = vpack.c.b16 %v981, %v980
  %v1041 = vpack.c.b16 %v983, %v982
  %v1042 = vpack.c.b16 %v985, %v984
  %v1043 = vpack.c.b16 %v987, %v986
  %v1044 = vpack.c.b16 %v989, %v988
  %v1045 = vpack.c.b16 %v991, %v990
  %v1046 = vpack.c.b16 %v993, %v992
  %v1047 = vpack.c.b16 %v995, %v994
  %v1048 = vpack.c.b16 %v997, %v996
  %v1049 = vpack.c.b16 %v999, %v998
  %v1050 = vpack.c.b16 %v1001, %v1000
  %v1051 = vpack.c.b16 %v1003, %v1002
  %v1052 = vpack.c.b16 %v1005, %v1004
  %v1053 = vpack.c.b16 %v1007, %v1006
  %v1054 = vpack.c.b16 %v1009, %v1008
  %v1055 = vpack.c.b16 %v1011, %v1010
  %v1056 = vpack.c.b16 %v1013, %v1012
  %v1057 = vpack.c.b16 %v1015, %v1014
  %v1058 = vpack.c.b16 %v1017, %v1016
  %v1059 = vpack.c.b16 %v1019, %v1018
  %v1060 = vpack.c.b16 %v1021, %v1020
  %v1061 = vpack.c.b16 %v1023, %v1022
  %v1062 = vpack.c.b16 %v1025, %v1024
  %v1063 = vpack.c.b16 %v1027, %v1026
  %v1064 = vpack.c.b16 %v1029, %v1028
  %v1065 = vpack.c.b16 %v1031, %v1030
  %v1066 = vpack.c.b16 %v1033, %v1032
  %v1067 = vpack.c.b16 %v1035, %v1034
  %v1100 = vld [vmem:[%s3] sm:$0xf]
  %v1101 = vld [vmem:[%s3 + $0x4] sm:$0xf]
  %v1102 = vld [vmem:[%s3 + $0x8] sm:$0xf]
  %v1103 = vld [vmem:[%s3 + $0xc] sm:$0xf]
  %v1104 = vld [vmem:[%s3 + $0x10] sm:$0xf]
  %v1105 = vld [vmem:[%s3 + $0x14] sm:$0xf]
  %v1106 = vld [vmem:[%s3 + $0x18] sm:$0xf]
  %v1107 = vld [vmem:[%s3 + $0x1c] sm:$0xf]
  %v1108 = vld [vmem:[%s3 + $0x20] sm:$0xf]
  %v1109 = vld [vmem:[%s3 + $0x24] sm:$0xf]
  %v1110 = vld [vmem:[%s3 + $0x28] sm:$0xf]
  %v1111 = vld [vmem:[%s3 + $0x2c] sm:$0xf]
  %v1112 = vld [vmem:[%s3 + $0x30] sm:$0xf]
  %v1113 = vld [vmem:[%s3 + $0x34] sm:$0xf]
  %v1114 = vld [vmem:[%s3 + $0x38] sm:$0xf]
  %v1115 = vld [vmem:[%s3 + $0x3c] sm:$0xf]
  %v1116 = vld [vmem:[%s3 + $0x40] sm:$0xf]
  %v1117 = vld [vmem:[%s3 + $0x44] sm:$0xf]
  %v1118 = vld [vmem:[%s3 + $0x48] sm:$0xf]
  %v1119 = vld [vmem:[%s3 + $0x4c] sm:$0xf]
  %v1120 = vld [vmem:[%s3 + $0x50] sm:$0xf]
  %v1121 = vld [vmem:[%s3 + $0x54] sm:$0xf]
  %v1122 = vld [vmem:[%s3 + $0x58] sm:$0xf]
  %v1123 = vld [vmem:[%s3 + $0x5c] sm:$0xf]
  %v1124 = vld [vmem:[%s3 + $0x60] sm:$0xf]
  %v1125 = vld [vmem:[%s3 + $0x64] sm:$0xf]
  %v1126 = vld [vmem:[%s3 + $0x68] sm:$0xf]
  %v1127 = vld [vmem:[%s3 + $0x6c] sm:$0xf]
  %v1128 = vld [vmem:[%s3 + $0x70] sm:$0xf]
  %v1129 = vld [vmem:[%s3 + $0x74] sm:$0xf]
  %v1130 = vld [vmem:[%s3 + $0x78] sm:$0xf]
  %v1131 = vld [vmem:[%s3 + $0x7c] sm:$0xf]
  %v1132 = vld [vmem:[%s4] sm:$0x1]
  %v1134 = vperm.slane %v1132, 0
  %v1168 = vunpack.c.l.b16 %v1100
  %v1169 = vunpack.c.l.b16 %v1101
  %v1170 = vunpack.c.l.b16 %v1102
  %v1171 = vunpack.c.l.b16 %v1103
  %v1172 = vunpack.c.l.b16 %v1104
  %v1173 = vunpack.c.l.b16 %v1105
  %v1174 = vunpack.c.l.b16 %v1106
  %v1175 = vunpack.c.l.b16 %v1107
  %v1176 = vunpack.c.l.b16 %v1108
  %v1177 = vunpack.c.l.b16 %v1109
  %v1178 = vunpack.c.l.b16 %v1110
  %v1179 = vunpack.c.l.b16 %v1111
  %v1180 = vunpack.c.l.b16 %v1112
  %v1181 = vunpack.c.l.b16 %v1113
  %v1182 = vunpack.c.l.b16 %v1114
  %v1183 = vunpack.c.l.b16 %v1115
  %v1184 = vunpack.c.l.b16 %v1116
  %v1185 = vunpack.c.l.b16 %v1117
  %v1186 = vunpack.c.l.b16 %v1118
  %v1187 = vunpack.c.l.b16 %v1119
  %v1188 = vunpack.c.l.b16 %v1120
  %v1189 = vunpack.c.l.b16 %v1121
  %v1190 = vunpack.c.l.b16 %v1122
  %v1191 = vunpack.c.l.b16 %v1123
  %v1192 = vunpack.c.l.b16 %v1124
  %v1193 = vunpack.c.l.b16 %v1125
  %v1194 = vunpack.c.l.b16 %v1126
  %v1195 = vunpack.c.l.b16 %v1127
  %v1196 = vunpack.c.l.b16 %v1128
  %v1197 = vunpack.c.l.b16 %v1129
  %v1198 = vunpack.c.l.b16 %v1130
  %v1199 = vunpack.c.l.b16 %v1131
  %v1200 = vpack.c.b16 %v1169, %v1168
  %v1201 = vpack.c.b16 %v1171, %v1170
  %v1202 = vpack.c.b16 %v1173, %v1172
  %v1203 = vpack.c.b16 %v1175, %v1174
  %v1204 = vpack.c.b16 %v1177, %v1176
  %v1205 = vpack.c.b16 %v1179, %v1178
  %v1206 = vpack.c.b16 %v1181, %v1180
  %v1207 = vpack.c.b16 %v1183, %v1182
  %v1208 = vpack.c.b16 %v1185, %v1184
  %v1209 = vpack.c.b16 %v1187, %v1186
  %v1210 = vpack.c.b16 %v1189, %v1188
  %v1211 = vpack.c.b16 %v1191, %v1190
  %v1212 = vpack.c.b16 %v1193, %v1192
  %v1213 = vpack.c.b16 %v1195, %v1194
  %v1214 = vpack.c.b16 %v1197, %v1196
  %v1215 = vpack.c.b16 %v1199, %v1198
  %1232 = vmatpush.bf16.msra.mxu0 %v1207
  %1233 = vmatpush.bf16.msra.mxu0 %v1206
  %1234 = vmatpush.bf16.msra.mxu0 %v1205
  %1235 = vmatpush.bf16.msra.mxu0 %v1204
  %1236 = vmatpush.bf16.msra.mxu0 %v1203
  %1237 = vmatpush.bf16.msra.mxu0 %v1202
  %1238 = vmatpush.bf16.msra.mxu0 %v1201
  %1239 = vmatpush.bf16.msra.mxu0 %v1200
  %1240 = vmatmul.bf16.gmra.mxu0 %v844
  %v1241 = vpop.f32.mrf.mxu0
  %v1242 = vadd.f32 %v1134, %v1241
  %v1243 = vpop.f32.mrf.mxu0
  %v1244 = vadd.f32 %v1134, %v1243
  %1245 = vmatmul.bf16.gmra.mxu0 %v845
  %v1246 = vpop.f32.mrf.mxu0
  %v1247 = vadd.f32 %v1134, %v1246
  %v1248 = vpop.f32.mrf.mxu0
  %v1249 = vadd.f32 %v1134, %v1248
  %1250 = vmatmul.bf16.gmra.mxu0 %v846
  %v1251 = vpop.f32.mrf.mxu0
  %v1252 = vadd.f32 %v1134, %v1251
  %v1253 = vpop.f32.mrf.mxu0
  %v1254 = vadd.f32 %v1134, %v1253
  %1255 = vmatmul.bf16.gmra.mxu0 %v847
  %v1256 = vpop.f32.mrf.mxu0
  %v1257 = vadd.f32 %v1134, %v1256
  %v1258 = vpop.f32.mrf.mxu0
  %v1259 = vadd.f32 %v1134, %v1258
  %1260 = vmatmul.bf16.gmra.mxu0 %v848
  %v1261 = vpop.f32.mrf.mxu0
  %v1262 = vadd.f32 %v1134, %v1261
  %v1263 = vpop.f32.mrf.mxu0
  %v1264 = vadd.f32 %v1134, %v1263
  %1265 = vmatmul.bf16.gmra.mxu0 %v849
  %v1266 = vpop.f32.mrf.mxu0
  %v1267 = vadd.f32 %v1134, %v1266
  %v1268 = vpop.f32.mrf.mxu0
  %v1269 = vadd.f32 %v1134, %v1268
  %1270 = vmatmul.bf16.gmra.mxu0 %v850
  %v1271 = vpop.f32.mrf.mxu0
  %v1272 = vadd.f32 %v1134, %v1271
  %v1273 = vpop.f32.mrf.mxu0
  %v1274 = vadd.f32 %v1134, %v1273
  %1275 = vmatmul.bf16.gmra.mxu0 %v851
  %v1276 = vpop.f32.mrf.mxu0
  %v1277 = vadd.f32 %v1134, %v1276
  %v1278 = vpop.f32.mrf.mxu0
  %v1279 = vadd.f32 %v1134, %v1278
  %1280 = vmatmul.bf16.gmra.mxu0 %v852
  %v1281 = vpop.f32.mrf.mxu0
  %v1282 = vadd.f32 %v1134, %v1281
  %v1283 = vpop.f32.mrf.mxu0
  %v1284 = vadd.f32 %v1134, %v1283
  %1285 = vmatmul.bf16.gmra.mxu0 %v853
  %v1286 = vpop.f32.mrf.mxu0
  %v1287 = vadd.f32 %v1134, %v1286
  %v1288 = vpop.f32.mrf.mxu0
  %v1289 = vadd.f32 %v1134, %v1288
  %1290 = vmatmul.bf16.gmra.mxu0 %v854
  %v1291 = vpop.f32.mrf.mxu0
  %v1292 = vadd.f32 %v1134, %v1291
  %v1293 = vpop.f32.mrf.mxu0
  %v1294 = vadd.f32 %v1134, %v1293
  %1295 = vmatmul.bf16.gmra.mxu0 %v855
  %v1296 = vpop.f32.mrf.mxu0
  %v1297 = vadd.f32 %v1134, %v1296
  %v1298 = vpop.f32.mrf.mxu0
  %v1299 = vadd.f32 %v1134, %v1298
  %1300 = vmatmul.bf16.gmra.mxu0 %v856
  %v1301 = vpop.f32.mrf.mxu0
  %v1302 = vadd.f32 %v1134, %v1301
  %v1303 = vpop.f32.mrf.mxu0
  %v1304 = vadd.f32 %v1134, %v1303
  %1305 = vmatmul.bf16.gmra.mxu0 %v857
  %v1306 = vpop.f32.mrf.mxu0
  %v1307 = vadd.f32 %v1134, %v1306
  %v1308 = vpop.f32.mrf.mxu0
  %v1309 = vadd.f32 %v1134, %v1308
  %1310 = vmatmul.bf16.gmra.mxu0 %v858
  %v1311 = vpop.f32.mrf.mxu0
  %v1312 = vadd.f32 %v1134, %v1311
  %v1313 = vpop.f32.mrf.mxu0
  %v1314 = vadd.f32 %v1134, %v1313
  %1315 = vmatmul.bf16.gmra.mxu0 %v859
  %v1316 = vpop.f32.mrf.mxu0
  %v1317 = vadd.f32 %v1134, %v1316
  %v1318 = vpop.f32.mrf.mxu0
  %v1319 = vadd.f32 %v1134, %v1318
  %1320 = vmatmul.bf16.gmra.mxu0 %v860
  %v1321 = vpop.f32.mrf.mxu0
  %v1322 = vadd.f32 %v1134, %v1321
  %v1323 = vpop.f32.mrf.mxu0
  %v1324 = vadd.f32 %v1134, %v1323
  %1325 = vmatmul.bf16.gmra.mxu0 %v861
  %v1326 = vpop.f32.mrf.mxu0
  %v1327 = vadd.f32 %v1134, %v1326
  %v1328 = vpop.f32.mrf.mxu0
  %v1329 = vadd.f32 %v1134, %v1328
  %1330 = vmatmul.bf16.gmra.mxu0 %v862
  %v1331 = vpop.f32.mrf.mxu0
  %v1332 = vadd.f32 %v1134, %v1331
  %v1333 = vpop.f32.mrf.mxu0
  %v1334 = vadd.f32 %v1134, %v1333
  %1335 = vmatmul.bf16.gmra.mxu0 %v863
  %v1336 = vpop.f32.mrf.mxu0
  %v1337 = vadd.f32 %v1134, %v1336
  %v1338 = vpop.f32.mrf.mxu0
  %v1339 = vadd.f32 %v1134, %v1338
  %1340 = vmatmul.bf16.gmra.mxu0 %v864
  %v1341 = vpop.f32.mrf.mxu0
  %v1342 = vadd.f32 %v1134, %v1341
  %v1343 = vpop.f32.mrf.mxu0
  %v1344 = vadd.f32 %v1134, %v1343
  %1345 = vmatmul.bf16.gmra.mxu0 %v865
  %v1346 = vpop.f32.mrf.mxu0
  %v1347 = vadd.f32 %v1134, %v1346
  %v1348 = vpop.f32.mrf.mxu0
  %v1349 = vadd.f32 %v1134, %v1348
  %1350 = vmatmul.bf16.gmra.mxu0 %v866
  %v1351 = vpop.f32.mrf.mxu0
  %v1352 = vadd.f32 %v1134, %v1351
  %v1353 = vpop.f32.mrf.mxu0
  %v1354 = vadd.f32 %v1134, %v1353
  %1355 = vmatmul.bf16.gmra.mxu0 %v867
  %v1356 = vpop.f32.mrf.mxu0
  %v1357 = vadd.f32 %v1134, %v1356
  %v1358 = vpop.f32.mrf.mxu0
  %v1359 = vadd.f32 %v1134, %v1358
  %1360 = vmatmul.bf16.gmra.mxu0 %v868
  %v1361 = vpop.f32.mrf.mxu0
  %v1362 = vadd.f32 %v1134, %v1361
  %v1363 = vpop.f32.mrf.mxu0
  %v1364 = vadd.f32 %v1134, %v1363
  %1365 = vmatmul.bf16.gmra.mxu0 %v869
  %v1366 = vpop.f32.mrf.mxu0
  %v1367 = vadd.f32 %v1134, %v1366
  %v1368 = vpop.f32.mrf.mxu0
  %v1369 = vadd.f32 %v1134, %v1368
  %1370 = vmatmul.bf16.gmra.mxu0 %v870
  %v1371 = vpop.f32.mrf.mxu0
  %v1372 = vadd.f32 %v1134, %v1371
  %v1373 = vpop.f32.mrf.mxu0
  %v1374 = vadd.f32 %v1134, %v1373
  %1375 = vmatmul.bf16.gmra.mxu0 %v871
  %v1376 = vpop.f32.mrf.mxu0
  %v1377 = vadd.f32 %v1134, %v1376
  %v1378 = vpop.f32.mrf.mxu0
  %v1379 = vadd.f32 %v1134, %v1378
  %1380 = vmatmul.bf16.gmra.mxu0 %v872
  %v1381 = vpop.f32.mrf.mxu0
  %v1382 = vadd.f32 %v1134, %v1381
  %v1383 = vpop.f32.mrf.mxu0
  %v1384 = vadd.f32 %v1134, %v1383
  %1385 = vmatmul.bf16.gmra.mxu0 %v873
  %v1386 = vpop.f32.mrf.mxu0
  %v1387 = vadd.f32 %v1134, %v1386
  %v1388 = vpop.f32.mrf.mxu0
  %v1389 = vadd.f32 %v1134, %v1388
  %1390 = vmatmul.bf16.gmra.mxu0 %v874
  %v1391 = vpop.f32.mrf.mxu0
  %v1392 = vadd.f32 %v1134, %v1391
  %v1393 = vpop.f32.mrf.mxu0
  %v1394 = vadd.f32 %v1134, %v1393
  %1395 = vmatmul.bf16.gmra.mxu0 %v875
  %v1396 = vpop.f32.mrf.mxu0
  %v1397 = vadd.f32 %v1134, %v1396
  %v1398 = vpop.f32.mrf.mxu0
  %v1399 = vadd.f32 %v1134, %v1398
  %1400 = vdwg.mxu0
  %1401 = vmatpush.bf16.msra.mxu0 %v1215
  %1402 = vmatpush.bf16.msra.mxu0 %v1214
  %1403 = vmatpush.bf16.msra.mxu0 %v1213
  %1404 = vmatpush.bf16.msra.mxu0 %v1212
  %1405 = vmatpush.bf16.msra.mxu0 %v1211
  %1406 = vmatpush.bf16.msra.mxu0 %v1210
  %1407 = vmatpush.bf16.msra.mxu0 %v1209
  %1408 = vmatpush.bf16.msra.mxu0 %v1208
  %1409 = vmatmul.bf16.gmra.mxu0 %v1036
  %v1410 = vpop.f32.mrf.mxu0
  %v1411 = vadd.f32 %v1242, %v1410
  %v1412 = vpop.f32.mrf.mxu0
  %v1413 = vadd.f32 %v1244, %v1412
  %1414 = vmatmul.bf16.gmra.mxu0 %v1037
  %v1415 = vpop.f32.mrf.mxu0
  %v1416 = vadd.f32 %v1247, %v1415
  %v1417 = vpop.f32.mrf.mxu0
  %v1418 = vadd.f32 %v1249, %v1417
  %1419 = vmatmul.bf16.gmra.mxu0 %v1038
  %v1420 = vpop.f32.mrf.mxu0
  %v1421 = vadd.f32 %v1252, %v1420
  %v1422 = vpop.f32.mrf.mxu0
  %v1423 = vadd.f32 %v1254, %v1422
  %1424 = vmatmul.bf16.gmra.mxu0 %v1039
  %v1425 = vpop.f32.mrf.mxu0
  %v1426 = vadd.f32 %v1257, %v1425
  %v1427 = vpop.f32.mrf.mxu0
  %v1428 = vadd.f32 %v1259, %v1427
  %1429 = vmatmul.bf16.gmra.mxu0 %v1040
  %v1430 = vpop.f32.mrf.mxu0
  %v1431 = vadd.f32 %v1262, %v1430
  %v1432 = vpop.f32.mrf.mxu0
  %v1433 = vadd.f32 %v1264, %v1432
  %1434 = vmatmul.bf16.gmra.mxu0 %v1041
  %v1435 = vpop.f32.mrf.mxu0
  %v1436 = vadd.f32 %v1267, %v1435
  %v1437 = vpop.f32.mrf.mxu0
  %v1438 = vadd.f32 %v1269, %v1437
  %1439 = vmatmul.bf16.gmra.mxu0 %v1042
  %v1440 = vpop.f32.mrf.mxu0
  %v1441 = vadd.f32 %v1272, %v1440
  %v1442 = vpop.f32.mrf.mxu0
  %v1443 = vadd.f32 %v1274, %v1442
  %1444 = vmatmul.bf16.gmra.mxu0 %v1043
  %v1445 = vpop.f32.mrf.mxu0
  %v1446 = vadd.f32 %v1277, %v1445
  %v1447 = vpop.f32.mrf.mxu0
  %v1448 = vadd.f32 %v1279, %v1447
  %1449 = vmatmul.bf16.gmra.mxu0 %v1044
  %v1450 = vpop.f32.mrf.mxu0
  %v1451 = vadd.f32 %v1282, %v1450
  %v1452 = vpop.f32.mrf.mxu0
  %v1453 = vadd.f32 %v1284, %v1452
  %1454 = vmatmul.bf16.gmra.mxu0 %v1045
  %v1455 = vpop.f32.mrf.mxu0
  %v1456 = vadd.f32 %v1287, %v1455
  %v1457 = vpop.f32.mrf.mxu0
  %v1458 = vadd.f32 %v1289, %v1457
  %1459 = vmatmul.bf16.gmra.mxu0 %v1046
  %v1460 = vpop.f32.mrf.mxu0
  %v1461 = vadd.f32 %v1292, %v1460
  %v1462 = vpop.f32.mrf.mxu0
  %v1463 = vadd.f32 %v1294, %v1462
  %1464 = vmatmul.bf16.gmra.mxu0 %v1047
  %v1465 = vpop.f32.mrf.mxu0
  %v1466 = vadd.f32 %v1297, %v1465
  %v1467 = vpop.f32.mrf.mxu0
  %v1468 = vadd.f32 %v1299, %v1467
  %1469 = vmatmul.bf16.gmra.mxu0 %v1048
  %v1470 = vpop.f32.mrf.mxu0
  %v1471 = vadd.f32 %v1302, %v1470
  %v1472 = vpop.f32.mrf.mxu0
  %v1473 = vadd.f32 %v1304, %v1472
  %1474 = vmatmul.bf16.gmra.mxu0 %v1049
  %v1475 = vpop.f32.mrf.mxu0
  %v1476 = vadd.f32 %v1307, %v1475
  %v1477 = vpop.f32.mrf.mxu0
  %v1478 = vadd.f32 %v1309, %v1477
  %1479 = vmatmul.bf16.gmra.mxu0 %v1050
  %v1480 = vpop.f32.mrf.mxu0
  %v1481 = vadd.f32 %v1312, %v1480
  %v1482 = vpop.f32.mrf.mxu0
  %v1483 = vadd.f32 %v1314, %v1482
  %1484 = vmatmul.bf16.gmra.mxu0 %v1051
  %v1485 = vpop.f32.mrf.mxu0
  %v1486 = vadd.f32 %v1317, %v1485
  %v1487 = vpop.f32.mrf.mxu0
  %v1488 = vadd.f32 %v1319, %v1487
  %1489 = vmatmul.bf16.gmra.mxu0 %v1052
  %v1490 = vpop.f32.mrf.mxu0
  %v1491 = vadd.f32 %v1322, %v1490
  %v1492 = vpop.f32.mrf.mxu0
  %v1493 = vadd.f32 %v1324, %v1492
  %1494 = vmatmul.bf16.gmra.mxu0 %v1053
  %v1495 = vpop.f32.mrf.mxu0
  %v1496 = vadd.f32 %v1327, %v1495
  %v1497 = vpop.f32.mrf.mxu0
  %v1498 = vadd.f32 %v1329, %v1497
  %1499 = vmatmul.bf16.gmra.mxu0 %v1054
  %v1500 = vpop.f32.mrf.mxu0
  %v1501 = vadd.f32 %v1332, %v1500
  %v1502 = vpop.f32.mrf.mxu0
  %v1503 = vadd.f32 %v1334, %v1502
  %1504 = vmatmul.bf16.gmra.mxu0 %v1055
  %v1505 = vpop.f32.mrf.mxu0
  %v1506 = vadd.f32 %v1337, %v1505
  %v1507 = vpop.f32.mrf.mxu0
  %v1508 = vadd.f32 %v1339, %v1507
  %1509 = vmatmul.bf16.gmra.mxu0 %v1056
  %v1510 = vpop.f32.mrf.mxu0
  %v1511 = vadd.f32 %v1342, %v1510
  %v1512 = vpop.f32.mrf.mxu0
  %v1513 = vadd.f32 %v1344, %v1512
  %1514 = vmatmul.bf16.gmra.mxu0 %v1057
  %v1515 = vpop.f32.mrf.mxu0
  %v1516 = vadd.f32 %v1347, %v1515
  %v1517 = vpop.f32.mrf.mxu0
  %v1518 = vadd.f32 %v1349, %v1517
  %1519 = vmatmul.bf16.gmra.mxu0 %v1058
  %v1520 = vpop.f32.mrf.mxu0
  %v1521 = vadd.f32 %v1352, %v1520
  %v1522 = vpop.f32.mrf.mxu0
  %v1523 = vadd.f32 %v1354, %v1522
  %1524 = vmatmul.bf16.gmra.mxu0 %v1059
  %v1525 = vpop.f32.mrf.mxu0
  %v1526 = vadd.f32 %v1357, %v1525
  %v1527 = vpop.f32.mrf.mxu0
  %v1528 = vadd.f32 %v1359, %v1527
  %1529 = vmatmul.bf16.gmra.mxu0 %v1060
  %v1530 = vpop.f32.mrf.mxu0
  %v1531 = vadd.f32 %v1362, %v1530
  %v1532 = vpop.f32.mrf.mxu0
  %v1533 = vadd.f32 %v1364, %v1532
  %1534 = vmatmul.bf16.gmra.mxu0 %v1061
  %v1535 = vpop.f32.mrf.mxu0
  %v1536 = vadd.f32 %v1367, %v1535
  %v1537 = vpop.f32.mrf.mxu0
  %v1538 = vadd.f32 %v1369, %v1537
  %1539 = vmatmul.bf16.gmra.mxu0 %v1062
  %v1540 = vpop.f32.mrf.mxu0
  %v1541 = vadd.f32 %v1372, %v1540
  %v1542 = vpop.f32.mrf.mxu0
  %v1543 = vadd.f32 %v1374, %v1542
  %1544 = vmatmul.bf16.gmra.mxu0 %v1063
  %v1545 = vpop.f32.mrf.mxu0
  %v1546 = vadd.f32 %v1377, %v1545
  %v1547 = vpop.f32.mrf.mxu0
  %v1548 = vadd.f32 %v1379, %v1547
  %1549 = vmatmul.bf16.gmra.mxu0 %v1064
  %v1550 = vpop.f32.mrf.mxu0
  %v1551 = vadd.f32 %v1382, %v1550
  %v1552 = vpop.f32.mrf.mxu0
  %v1553 = vadd.f32 %v1384, %v1552
  %1554 = vmatmul.bf16.gmra.mxu0 %v1065
  %v1555 = vpop.f32.mrf.mxu0
  %v1556 = vadd.f32 %v1387, %v1555
  %v1557 = vpop.f32.mrf.mxu0
  %v1558 = vadd.f32 %v1389, %v1557
  %1559 = vmatmul.bf16.gmra.mxu0 %v1066
  %v1560 = vpop.f32.mrf.mxu0
  %v1561 = vadd.f32 %v1392, %v1560
  %v1562 = vpop.f32.mrf.mxu0
  %v1563 = vadd.f32 %v1394, %v1562
  %1564 = vmatmul.bf16.gmra.mxu0 %v1067
  %v1565 = vpop.f32.mrf.mxu0
  %v1566 = vadd.f32 %v1397, %v1565
  %v1567 = vpop.f32.mrf.mxu0
  %v1568 = vadd.f32 %v1399, %v1567
  %1569 = vdwg.mxu0
  %v1570 = vpack.c.bf16 %v1411, %v1411
  %v1571 = vpack.c.bf16 %v1413, %v1413
  %v1572 = vpack.c.bf16 %v1416, %v1416
  %v1573 = vpack.c.bf16 %v1418, %v1418
  %v1574 = vpack.c.bf16 %v1421, %v1421
  %v1575 = vpack.c.bf16 %v1423, %v1423
  %v1576 = vpack.c.bf16 %v1426, %v1426
  %v1577 = vpack.c.bf16 %v1428, %v1428
  %v1578 = vpack.c.bf16 %v1431, %v1431
  %v1579 = vpack.c.bf16 %v1433, %v1433
  %v1580 = vpack.c.bf16 %v1436, %v1436
  %v1581 = vpack.c.bf16 %v1438, %v1438
  %v1582 = vpack.c.bf16 %v1441, %v1441
  %v1583 = vpack.c.bf16 %v1443, %v1443
  %v1584 = vpack.c.bf16 %v1446, %v1446
  %v1585 = vpack.c.bf16 %v1448, %v1448
  %v1586 = vpack.c.bf16 %v1451, %v1451
  %v1587 = vpack.c.bf16 %v1453, %v1453
  %v1588 = vpack.c.bf16 %v1456, %v1456
  %v1589 = vpack.c.bf16 %v1458, %v1458
  %v1590 = vpack.c.bf16 %v1461, %v1461
  %v1591 = vpack.c.bf16 %v1463, %v1463
  %v1592 = vpack.c.bf16 %v1466, %v1466
  %v1593 = vpack.c.bf16 %v1468, %v1468
  %v1594 = vpack.c.bf16 %v1471, %v1471
  %v1595 = vpack.c.bf16 %v1473, %v1473
  %v1596 = vpack.c.bf16 %v1476, %v1476
  %v1597 = vpack.c.bf16 %v1478, %v1478
  %v1598 = vpack.c.bf16 %v1481, %v1481
  %v1599 = vpack.c.bf16 %v1483, %v1483
  %v1600 = vpack.c.bf16 %v1486, %v1486
  %v1601 = vpack.c.bf16 %v1488, %v1488
  %v1602 = vpack.c.bf16 %v1491, %v1491
  %v1603 = vpack.c.bf16 %v1493, %v1493
  %v1604 = vpack.c.bf16 %v1496, %v1496
  %v1605 = vpack.c.bf16 %v1498, %v1498
  %v1606 = vpack.c.bf16 %v1501, %v1501
  %v1607 = vpack.c.bf16 %v1503, %v1503
  %v1608 = vpack.c.bf16 %v1506, %v1506
  %v1609 = vpack.c.bf16 %v1508, %v1508
  %v1610 = vpack.c.bf16 %v1511, %v1511
  %v1611 = vpack.c.bf16 %v1513, %v1513
  %v1612 = vpack.c.bf16 %v1516, %v1516
  %v1613 = vpack.c.bf16 %v1518, %v1518
  %v1614 = vpack.c.bf16 %v1521, %v1521
  %v1615 = vpack.c.bf16 %v1523, %v1523
  %v1616 = vpack.c.bf16 %v1526, %v1526
  %v1617 = vpack.c.bf16 %v1528, %v1528
  %v1618 = vpack.c.bf16 %v1531, %v1531
  %v1619 = vpack.c.bf16 %v1533, %v1533
  %v1620 = vpack.c.bf16 %v1536, %v1536
  %v1621 = vpack.c.bf16 %v1538, %v1538
  %v1622 = vpack.c.bf16 %v1541, %v1541
  %v1623 = vpack.c.bf16 %v1543, %v1543
  %v1624 = vpack.c.bf16 %v1546, %v1546
  %v1625 = vpack.c.bf16 %v1548, %v1548
  %v1626 = vpack.c.bf16 %v1551, %v1551
  %v1627 = vpack.c.bf16 %v1553, %v1553
  %v1628 = vpack.c.bf16 %v1556, %v1556
  %v1629 = vpack.c.bf16 %v1558, %v1558
  %v1630 = vpack.c.bf16 %v1561, %v1561
  %v1631 = vpack.c.bf16 %v1563, %v1563
  %v1632 = vpack.c.bf16 %v1566, %v1566
  %v1633 = vpack.c.bf16 %v1568, %v1568
  %1634 = vst [vmem:[%s8] sm:$0xf] %v1570
  %1635 = vst [vmem:[%s8 + $0x4] sm:$0xf] %v1571
  %1636 = vst [vmem:[%s8 + $0x8] sm:$0xf] %v1572
  %1637 = vst [vmem:[%s8 + $0xc] sm:$0xf] %v1573
  %1638 = vst [vmem:[%s8 + $0x10] sm:$0xf] %v1574
  %1639 = vst [vmem:[%s8 + $0x14] sm:$0xf] %v1575
  %1640 = vst [vmem:[%s8 + $0x18] sm:$0xf] %v1576
  %1641 = vst [vmem:[%s8 + $0x1c] sm:$0xf] %v1577
  %1642 = vst [vmem:[%s8 + $0x20] sm:$0xf] %v1578
  %1643 = vst [vmem:[%s8 + $0x24] sm:$0xf] %v1579
  %1644 = vst [vmem:[%s8 + $0x28] sm:$0xf] %v1580
  %1645 = vst [vmem:[%s8 + $0x2c] sm:$0xf] %v1581
  %1646 = vst [vmem:[%s8 + $0x30] sm:$0xf] %v1582
  %1647 = vst [vmem:[%s8 + $0x34] sm:$0xf] %v1583
  %1648 = vst [vmem:[%s8 + $0x38] sm:$0xf] %v1584
  %1649 = vst [vmem:[%s8 + $0x3c] sm:$0xf] %v1585
  %1650 = vst [vmem:[%s8 + $0x40] sm:$0xf] %v1586
  %1651 = vst [vmem:[%s8 + $0x44] sm:$0xf] %v1587
  %1652 = vst [vmem:[%s8 + $0x48] sm:$0xf] %v1588
  %1653 = vst [vmem:[%s8 + $0x4c] sm:$0xf] %v1589
  %1654 = vst [vmem:[%s8 + $0x50] sm:$0xf] %v1590
  %1655 = vst [vmem:[%s8 + $0x54] sm:$0xf] %v1591
  %1656 = vst [vmem:[%s8 + $0x58] sm:$0xf] %v1592
  %1657 = vst [vmem:[%s8 + $0x5c] sm:$0xf] %v1593
  %1658 = vst [vmem:[%s8 + $0x60] sm:$0xf] %v1594
  %1659 = vst [vmem:[%s8 + $0x64] sm:$0xf] %v1595
  %1660 = vst [vmem:[%s8 + $0x68] sm:$0xf] %v1596
  %1661 = vst [vmem:[%s8 + $0x6c] sm:$0xf] %v1597
  %1662 = vst [vmem:[%s8 + $0x70] sm:$0xf] %v1598
  %1663 = vst [vmem:[%s8 + $0x74] sm:$0xf] %v1599
  %1664 = vst [vmem:[%s8 + $0x78] sm:$0xf] %v1600
  %1665 = vst [vmem:[%s8 + $0x7c] sm:$0xf] %v1601
  %1666 = vst [vmem:[%s8 + $0x80] sm:$0xf] %v1602
  %1667 = vst [vmem:[%s8 + $0x84] sm:$0xf] %v1603
  %1668 = vst [vmem:[%s8 + $0x88] sm:$0xf] %v1604
  %1669 = vst [vmem:[%s8 + $0x8c] sm:$0xf] %v1605
  %1670 = vst [vmem:[%s8 + $0x90] sm:$0xf] %v1606
  %1671 = vst [vmem:[%s8 + $0x94] sm:$0xf] %v1607
  %1672 = vst [vmem:[%s8 + $0x98] sm:$0xf] %v1608
  %1673 = vst [vmem:[%s8 + $0x9c] sm:$0xf] %v1609
  %1674 = vst [vmem:[%s8 + $0xa0] sm:$0xf] %v1610
  %1675 = vst [vmem:[%s8 + $0xa4] sm:$0xf] %v1611
  %1676 = vst [vmem:[%s8 + $0xa8] sm:$0xf] %v1612
  %1677 = vst [vmem:[%s8 + $0xac] sm:$0xf] %v1613
  %1678 = vst [vmem:[%s8 + $0xb0] sm:$0xf] %v1614
  %1679 = vst [vmem:[%s8 + $0xb4] sm:$0xf] %v1615
  %1680 = vst [vmem:[%s8 + $0xb8] sm:$0xf] %v1616
  %1681 = vst [vmem:[%s8 + $0xbc] sm:$0xf] %v1617
  %1682 = vst [vmem:[%s8 + $0xc0] sm:$0xf] %v1618
  %1683 = vst [vmem:[%s8 + $0xc4] sm:$0xf] %v1619
  %1684 = vst [vmem:[%s8 + $0xc8] sm:$0xf] %v1620
  %1685 = vst [vmem:[%s8 + $0xcc] sm:$0xf] %v1621
  %1686 = vst [vmem:[%s8 + $0xd0] sm:$0xf] %v1622
  %1687 = vst [vmem:[%s8 + $0xd4] sm:$0xf] %v1623
  %1688 = vst [vmem:[%s8 + $0xd8] sm:$0xf] %v1624
  %1689 = vst [vmem:[%s8 + $0xdc] sm:$0xf] %v1625
  %1690 = vst [vmem:[%s8 + $0xe0] sm:$0xf] %v1626
  %1691 = vst [vmem:[%s8 + $0xe4] sm:$0xf] %v1627
  %1692 = vst [vmem:[%s8 + $0xe8] sm:$0xf] %v1628
  %1693 = vst [vmem:[%s8 + $0xec] sm:$0xf] %v1629
  %1694 = vst [vmem:[%s8 + $0xf0] sm:$0xf] %v1630
  %1695 = vst [vmem:[%s8 + $0xf4] sm:$0xf] %v1631
  %1696 = vst [vmem:[%s8 + $0xf8] sm:$0xf] %v1632
  %1697 = vst [vmem:[%s8 + $0xfc] sm:$0xf] %v1633
  %v1698 = vld [vmem:[%s6] sm:$0xf]
  %v1699 = vld [vmem:[%s6 + $0x4] sm:$0xf]
  %v1700 = vld [vmem:[%s6 + $0x8] sm:$0xf]
  %v1701 = vld [vmem:[%s6 + $0xc] sm:$0xf]
  %v1702 = vld [vmem:[%s6 + $0x10] sm:$0xf]
  %v1703 = vld [vmem:[%s6 + $0x14] sm:$0xf]
  %v1704 = vld [vmem:[%s6 + $0x18] sm:$0xf]
  %v1705 = vld [vmem:[%s6 + $0x1c] sm:$0xf]
  %v1706 = vld [vmem:[%s6 + $0x20] sm:$0xf]
  %v1707 = vld [vmem:[%s6 + $0x24] sm:$0xf]
  %v1708 = vld [vmem:[%s6 + $0x28] sm:$0xf]
  %v1709 = vld [vmem:[%s6 + $0x2c] sm:$0xf]
  %v1710 = vld [vmem:[%s6 + $0x30] sm:$0xf]
  %v1711 = vld [vmem:[%s6 + $0x34] sm:$0xf]
  %v1712 = vld [vmem:[%s6 + $0x38] sm:$0xf]
  %v1713 = vld [vmem:[%s6 + $0x3c] sm:$0xf]
  %v1714 = vld [vmem:[%s7] sm:$0x1]
  %v1716 = vperm.slane %v1714, 0
  %v1782 = vunpack.c.l.b16 %v1570
  %v1783 = vunpack.c.l.b16 %v1571
  %v1784 = vunpack.c.l.b16 %v1572
  %v1785 = vunpack.c.l.b16 %v1573
  %v1786 = vunpack.c.l.b16 %v1574
  %v1787 = vunpack.c.l.b16 %v1575
  %v1788 = vunpack.c.l.b16 %v1576
  %v1789 = vunpack.c.l.b16 %v1577
  %v1790 = vunpack.c.l.b16 %v1578
  %v1791 = vunpack.c.l.b16 %v1579
  %v1792 = vunpack.c.l.b16 %v1580
  %v1793 = vunpack.c.l.b16 %v1581
  %v1794 = vunpack.c.l.b16 %v1582
  %v1795 = vunpack.c.l.b16 %v1583
  %v1796 = vunpack.c.l.b16 %v1584
  %v1797 = vunpack.c.l.b16 %v1585
  %v1798 = vunpack.c.l.b16 %v1586
  %v1799 = vunpack.c.l.b16 %v1587
  %v1800 = vunpack.c.l.b16 %v1588
  %v1801 = vunpack.c.l.b16 %v1589
  %v1802 = vunpack.c.l.b16 %v1590
  %v1803 = vunpack.c.l.b16 %v1591
  %v1804 = vunpack.c.l.b16 %v1592
  %v1805 = vunpack.c.l.b16 %v1593
  %v1806 = vunpack.c.l.b16 %v1594
  %v1807 = vunpack.c.l.b16 %v1595
  %v1808 = vunpack.c.l.b16 %v1596
  %v1809 = vunpack.c.l.b16 %v1597
  %v1810 = vunpack.c.l.b16 %v1598
  %v1811 = vunpack.c.l.b16 %v1599
  %v1812 = vunpack.c.l.b16 %v1600
  %v1813 = vunpack.c.l.b16 %v1601
  %v1814 = vunpack.c.l.b16 %v1602
  %v1815 = vunpack.c.l.b16 %v1603
  %v1816 = vunpack.c.l.b16 %v1604
  %v1817 = vunpack.c.l.b16 %v1605
  %v1818 = vunpack.c.l.b16 %v1606
  %v1819 = vunpack.c.l.b16 %v1607
  %v1820 = vunpack.c.l.b16 %v1608
  %v1821 = vunpack.c.l.b16 %v1609
  %v1822 = vunpack.c.l.b16 %v1610
  %v1823 = vunpack.c.l.b16 %v1611
  %v1824 = vunpack.c.l.b16 %v1612
  %v1825 = vunpack.c.l.b16 %v1613
  %v1826 = vunpack.c.l.b16 %v1614
  %v1827 = vunpack.c.l.b16 %v1615
  %v1828 = vunpack.c.l.b16 %v1616
  %v1829 = vunpack.c.l.b16 %v1617
  %v1830 = vunpack.c.l.b16 %v1618
  %v1831 = vunpack.c.l.b16 %v1619
  %v1832 = vunpack.c.l.b16 %v1620
  %v1833 = vunpack.c.l.b16 %v1621
  %v1834 = vunpack.c.l.b16 %v1622
  %v1835 = vunpack.c.l.b16 %v1623
  %v1836 = vunpack.c.l.b16 %v1624
  %v1837 = vunpack.c.l.b16 %v1625
  %v1838 = vunpack.c.l.b16 %v1626
  %v1839 = vunpack.c.l.b16 %v1627
  %v1840 = vunpack.c.l.b16 %v1628
  %v1841 = vunpack.c.l.b16 %v1629
  %v1842 = vunpack.c.l.b16 %v1630
  %v1843 = vunpack.c.l.b16 %v1631
  %v1844 = vunpack.c.l.b16 %v1632
  %v1845 = vunpack.c.l.b16 %v1633
  %v1846 = vpack.c.b16 %v1783, %v1782
  %v1847 = vpack.c.b16 %v1785, %v1784
  %v1848 = vpack.c.b16 %v1787, %v1786
  %v1849 = vpack.c.b16 %v1789, %v1788
  %v1850 = vpack.c.b16 %v1791, %v1790
  %v1851 = vpack.c.b16 %v1793, %v1792
  %v1852 = vpack.c.b16 %v1795, %v1794
  %v1853 = vpack.c.b16 %v1797, %v1796
  %v1854 = vpack.c.b16 %v1799, %v1798
  %v1855 = vpack.c.b16 %v1801, %v1800
  %v1856 = vpack.c.b16 %v1803, %v1802
  %v1857 = vpack.c.b16 %v1805, %v1804
  %v1858 = vpack.c.b16 %v1807, %v1806
  %v1859 = vpack.c.b16 %v1809, %v1808
  %v1860 = vpack.c.b16 %v1811, %v1810
  %v1861 = vpack.c.b16 %v1813, %v1812
  %v1862 = vpack.c.b16 %v1815, %v1814
  %v1863 = vpack.c.b16 %v1817, %v1816
  %v1864 = vpack.c.b16 %v1819, %v1818
  %v1865 = vpack.c.b16 %v1821, %v1820
  %v1866 = vpack.c.b16 %v1823, %v1822
  %v1867 = vpack.c.b16 %v1825, %v1824
  %v1868 = vpack.c.b16 %v1827, %v1826
  %v1869 = vpack.c.b16 %v1829, %v1828
  %v1870 = vpack.c.b16 %v1831, %v1830
  %v1871 = vpack.c.b16 %v1833, %v1832
  %v1872 = vpack.c.b16 %v1835, %v1834
  %v1873 = vpack.c.b16 %v1837, %v1836
  %v1874 = vpack.c.b16 %v1839, %v1838
  %v1875 = vpack.c.b16 %v1841, %v1840
  %v1876 = vpack.c.b16 %v1843, %v1842
  %v1877 = vpack.c.b16 %v1845, %v1844
  %v1926 = vunpack.c.l.b16 %v1698
  %v1927 = vunpack.c.l.b16 %v1699
  %v1928 = vunpack.c.l.b16 %v1700
  %v1929 = vunpack.c.l.b16 %v1701
  %v1930 = vunpack.c.l.b16 %v1702
  %v1931 = vunpack.c.l.b16 %v1703
  %v1932 = vunpack.c.l.b16 %v1704
  %v1933 = vunpack.c.l.b16 %v1705
  %v1934 = vunpack.c.l.b16 %v1706
  %v1935 = vunpack.c.l.b16 %v1707
  %v1936 = vunpack.c.l.b16 %v1708
  %v1937 = vunpack.c.l.b16 %v1709
  %v1938 = vunpack.c.l.b16 %v1710
  %v1939 = vunpack.c.l.b16 %v1711
  %v1940 = vunpack.c.l.b16 %v1712
  %v1941 = vunpack.c.l.b16 %v1713
  %v1942 = vpack.c.b16 %v1927, %v1926
  %v1943 = vpack.c.b16 %v1929, %v1928
  %v1944 = vpack.c.b16 %v1931, %v1930
  %v1945 = vpack.c.b16 %v1933, %v1932
  %v1946 = vpack.c.b16 %v1935, %v1934
  %v1947 = vpack.c.b16 %v1937, %v1936
  %v1948 = vpack.c.b16 %v1939, %v1938
  %v1949 = vpack.c.b16 %v1941, %v1940
  %1958 = vmatpush.bf16.msra.mxu0 %v1949
  %1959 = vmatpush.bf16.msra.mxu0 %v1948
  %1960 = vmatpush.bf16.msra.mxu0 %v1947
  %1961 = vmatpush.bf16.msra.mxu0 %v1946
  %1962 = vmatpush.bf16.msra.mxu0 %v1945
  %1963 = vmatpush.bf16.msra.mxu0 %v1944
  %1964 = vmatpush.bf16.msra.mxu0 %v1943
  %1965 = vmatpush.bf16.msra.mxu0 %v1942
  %1966 = vmatmul.bf16.gmra.mxu0 %v1846
  %v1967 = vpop.f32.mrf.mxu0
  %v1968 = vadd.f32 %v1716, %v1967
  %v1969 = vpop.f32.mrf.mxu0
  %v1970 = vadd.f32 %v1716, %v1969
  %1971 = vmatmul.bf16.gmra.mxu0 %v1847
  %v1972 = vpop.f32.mrf.mxu0
  %v1973 = vadd.f32 %v1716, %v1972
  %v1974 = vpop.f32.mrf.mxu0
  %v1975 = vadd.f32 %v1716, %v1974
  %1976 = vmatmul.bf16.gmra.mxu0 %v1848
  %v1977 = vpop.f32.mrf.mxu0
  %v1978 = vadd.f32 %v1716, %v1977
  %v1979 = vpop.f32.mrf.mxu0
  %v1980 = vadd.f32 %v1716, %v1979
  %1981 = vmatmul.bf16.gmra.mxu0 %v1849
  %v1982 = vpop.f32.mrf.mxu0
  %v1983 = vadd.f32 %v1716, %v1982
  %v1984 = vpop.f32.mrf.mxu0
  %v1985 = vadd.f32 %v1716, %v1984
  %1986 = vmatmul.bf16.gmra.mxu0 %v1850
  %v1987 = vpop.f32.mrf.mxu0
  %v1988 = vadd.f32 %v1716, %v1987
  %v1989 = vpop.f32.mrf.mxu0
  %v1990 = vadd.f32 %v1716, %v1989
  %1991 = vmatmul.bf16.gmra.mxu0 %v1851
  %v1992 = vpop.f32.mrf.mxu0
  %v1993 = vadd.f32 %v1716, %v1992
  %v1994 = vpop.f32.mrf.mxu0
  %v1995 = vadd.f32 %v1716, %v1994
  %1996 = vmatmul.bf16.gmra.mxu0 %v1852
  %v1997 = vpop.f32.mrf.mxu0
  %v1998 = vadd.f32 %v1716, %v1997
  %v1999 = vpop.f32.mrf.mxu0
  %v2000 = vadd.f32 %v1716, %v1999
  %2001 = vmatmul.bf16.gmra.mxu0 %v1853
  %v2002 = vpop.f32.mrf.mxu0
  %v2003 = vadd.f32 %v1716, %v2002
  %v2004 = vpop.f32.mrf.mxu0
  %v2005 = vadd.f32 %v1716, %v2004
  %2006 = vmatmul.bf16.gmra.mxu0 %v1854
  %v2007 = vpop.f32.mrf.mxu0
  %v2008 = vadd.f32 %v1716, %v2007
  %v2009 = vpop.f32.mrf.mxu0
  %v2010 = vadd.f32 %v1716, %v2009
  %2011 = vmatmul.bf16.gmra.mxu0 %v1855
  %v2012 = vpop.f32.mrf.mxu0
  %v2013 = vadd.f32 %v1716, %v2012
  %v2014 = vpop.f32.mrf.mxu0
  %v2015 = vadd.f32 %v1716, %v2014
  %2016 = vmatmul.bf16.gmra.mxu0 %v1856
  %v2017 = vpop.f32.mrf.mxu0
  %v2018 = vadd.f32 %v1716, %v2017
  %v2019 = vpop.f32.mrf.mxu0
  %v2020 = vadd.f32 %v1716, %v2019
  %2021 = vmatmul.bf16.gmra.mxu0 %v1857
  %v2022 = vpop.f32.mrf.mxu0
  %v2023 = vadd.f32 %v1716, %v2022
  %v2024 = vpop.f32.mrf.mxu0
  %v2025 = vadd.f32 %v1716, %v2024
  %2026 = vmatmul.bf16.gmra.mxu0 %v1858
  %v2027 = vpop.f32.mrf.mxu0
  %v2028 = vadd.f32 %v1716, %v2027
  %v2029 = vpop.f32.mrf.mxu0
  %v2030 = vadd.f32 %v1716, %v2029
  %2031 = vmatmul.bf16.gmra.mxu0 %v1859
  %v2032 = vpop.f32.mrf.mxu0
  %v2033 = vadd.f32 %v1716, %v2032
  %v2034 = vpop.f32.mrf.mxu0
  %v2035 = vadd.f32 %v1716, %v2034
  %2036 = vmatmul.bf16.gmra.mxu0 %v1860
  %v2037 = vpop.f32.mrf.mxu0
  %v2038 = vadd.f32 %v1716, %v2037
  %v2039 = vpop.f32.mrf.mxu0
  %v2040 = vadd.f32 %v1716, %v2039
  %2041 = vmatmul.bf16.gmra.mxu0 %v1861
  %v2042 = vpop.f32.mrf.mxu0
  %v2043 = vadd.f32 %v1716, %v2042
  %v2044 = vpop.f32.mrf.mxu0
  %v2045 = vadd.f32 %v1716, %v2044
  %2046 = vmatmul.bf16.gmra.mxu0 %v1862
  %v2047 = vpop.f32.mrf.mxu0
  %v2048 = vadd.f32 %v1716, %v2047
  %v2049 = vpop.f32.mrf.mxu0
  %v2050 = vadd.f32 %v1716, %v2049
  %2051 = vmatmul.bf16.gmra.mxu0 %v1863
  %v2052 = vpop.f32.mrf.mxu0
  %v2053 = vadd.f32 %v1716, %v2052
  %v2054 = vpop.f32.mrf.mxu0
  %v2055 = vadd.f32 %v1716, %v2054
  %2056 = vmatmul.bf16.gmra.mxu0 %v1864
  %v2057 = vpop.f32.mrf.mxu0
  %v2058 = vadd.f32 %v1716, %v2057
  %v2059 = vpop.f32.mrf.mxu0
  %v2060 = vadd.f32 %v1716, %v2059
  %2061 = vmatmul.bf16.gmra.mxu0 %v1865
  %v2062 = vpop.f32.mrf.mxu0
  %v2063 = vadd.f32 %v1716, %v2062
  %v2064 = vpop.f32.mrf.mxu0
  %v2065 = vadd.f32 %v1716, %v2064
  %2066 = vmatmul.bf16.gmra.mxu0 %v1866
  %v2067 = vpop.f32.mrf.mxu0
  %v2068 = vadd.f32 %v1716, %v2067
  %v2069 = vpop.f32.mrf.mxu0
  %v2070 = vadd.f32 %v1716, %v2069
  %2071 = vmatmul.bf16.gmra.mxu0 %v1867
  %v2072 = vpop.f32.mrf.mxu0
  %v2073 = vadd.f32 %v1716, %v2072
  %v2074 = vpop.f32.mrf.mxu0
  %v2075 = vadd.f32 %v1716, %v2074
  %2076 = vmatmul.bf16.gmra.mxu0 %v1868
  %v2077 = vpop.f32.mrf.mxu0
  %v2078 = vadd.f32 %v1716, %v2077
  %v2079 = vpop.f32.mrf.mxu0
  %v2080 = vadd.f32 %v1716, %v2079
  %2081 = vmatmul.bf16.gmra.mxu0 %v1869
  %v2082 = vpop.f32.mrf.mxu0
  %v2083 = vadd.f32 %v1716, %v2082
  %v2084 = vpop.f32.mrf.mxu0
  %v2085 = vadd.f32 %v1716, %v2084
  %2086 = vmatmul.bf16.gmra.mxu0 %v1870
  %v2087 = vpop.f32.mrf.mxu0
  %v2088 = vadd.f32 %v1716, %v2087
  %v2089 = vpop.f32.mrf.mxu0
  %v2090 = vadd.f32 %v1716, %v2089
  %2091 = vmatmul.bf16.gmra.mxu0 %v1871
  %v2092 = vpop.f32.mrf.mxu0
  %v2093 = vadd.f32 %v1716, %v2092
  %v2094 = vpop.f32.mrf.mxu0
  %v2095 = vadd.f32 %v1716, %v2094
  %2096 = vmatmul.bf16.gmra.mxu0 %v1872
  %v2097 = vpop.f32.mrf.mxu0
  %v2098 = vadd.f32 %v1716, %v2097
  %v2099 = vpop.f32.mrf.mxu0
  %v2100 = vadd.f32 %v1716, %v2099
  %2101 = vmatmul.bf16.gmra.mxu0 %v1873
  %v2102 = vpop.f32.mrf.mxu0
  %v2103 = vadd.f32 %v1716, %v2102
  %v2104 = vpop.f32.mrf.mxu0
  %v2105 = vadd.f32 %v1716, %v2104
  %2106 = vmatmul.bf16.gmra.mxu0 %v1874
  %v2107 = vpop.f32.mrf.mxu0
  %v2108 = vadd.f32 %v1716, %v2107
  %v2109 = vpop.f32.mrf.mxu0
  %v2110 = vadd.f32 %v1716, %v2109
  %2111 = vmatmul.bf16.gmra.mxu0 %v1875
  %v2112 = vpop.f32.mrf.mxu0
  %v2113 = vadd.f32 %v1716, %v2112
  %v2114 = vpop.f32.mrf.mxu0
  %v2115 = vadd.f32 %v1716, %v2114
  %2116 = vmatmul.bf16.gmra.mxu0 %v1876
  %v2117 = vpop.f32.mrf.mxu0
  %v2118 = vadd.f32 %v1716, %v2117
  %v2119 = vpop.f32.mrf.mxu0
  %v2120 = vadd.f32 %v1716, %v2119
  %2121 = vmatmul.bf16.gmra.mxu0 %v1877
  %v2122 = vpop.f32.mrf.mxu0
  %v2123 = vadd.f32 %v1716, %v2122
  %v2124 = vpop.f32.mrf.mxu0
  %v2125 = vadd.f32 %v1716, %v2124
  %2126 = vdwg.mxu0
  %v2127 = vmax.f32 %v1968, 0.0
  %v2128 = vmax.f32 %v1970, 0.0
  %v2129 = vmax.f32 %v1973, 0.0
  %v2130 = vmax.f32 %v1975, 0.0
  %v2131 = vmax.f32 %v1978, 0.0
  %v2132 = vmax.f32 %v1980, 0.0
  %v2133 = vmax.f32 %v1983, 0.0
  %v2134 = vmax.f32 %v1985, 0.0
  %v2135 = vmax.f32 %v1988, 0.0
  %v2136 = vmax.f32 %v1990, 0.0
  %v2137 = vmax.f32 %v1993, 0.0
  %v2138 = vmax.f32 %v1995, 0.0
  %v2139 = vmax.f32 %v1998, 0.0
  %v2140 = vmax.f32 %v2000, 0.0
  %v2141 = vmax.f32 %v2003, 0.0
  %v2142 = vmax.f32 %v2005, 0.0
  %v2143 = vmax.f32 %v2008, 0.0
  %v2144 = vmax.f32 %v2010, 0.0
  %v2145 = vmax.f32 %v2013, 0.0
  %v2146 = vmax.f32 %v2015, 0.0
  %v2147 = vmax.f32 %v2018, 0.0
  %v2148 = vmax.f32 %v2020, 0.0
  %v2149 = vmax.f32 %v2023, 0.0
  %v2150 = vmax.f32 %v2025, 0.0
  %v2151 = vmax.f32 %v2028, 0.0
  %v2152 = vmax.f32 %v2030, 0.0
  %v2153 = vmax.f32 %v2033, 0.0
  %v2154 = vmax.f32 %v2035, 0.0
  %v2155 = vmax.f32 %v2038, 0.0
  %v2156 = vmax.f32 %v2040, 0.0
  %v2157 = vmax.f32 %v2043, 0.0
  %v2158 = vmax.f32 %v2045, 0.0
  %v2159 = vmax.f32 %v2048, 0.0
  %v2160 = vmax.f32 %v2050, 0.0
  %v2161 = vmax.f32 %v2053, 0.0
  %v2162 = vmax.f32 %v2055, 0.0
  %v2163 = vmax.f32 %v2058, 0.0
  %v2164 = vmax.f32 %v2060, 0.0
  %v2165 = vmax.f32 %v2063, 0.0
  %v2166 = vmax.f32 %v2065, 0.0
  %v2167 = vmax.f32 %v2068, 0.0
  %v2168 = vmax.f32 %v2070, 0.0
  %v2169 = vmax.f32 %v2073, 0.0
  %v2170 = vmax.f32 %v2075, 0.0
  %v2171 = vmax.f32 %v2078, 0.0
  %v2172 = vmax.f32 %v2080, 0.0
  %v2173 = vmax.f32 %v2083, 0.0
  %v2174 = vmax.f32 %v2085, 0.0
  %v2175 = vmax.f32 %v2088, 0.0
  %v2176 = vmax.f32 %v2090, 0.0
  %v2177 = vmax.f32 %v2093, 0.0
  %v2178 = vmax.f32 %v2095, 0.0
  %v2179 = vmax.f32 %v2098, 0.0
  %v2180 = vmax.f32 %v2100, 0.0
  %v2181 = vmax.f32 %v2103, 0.0
  %v2182 = vmax.f32 %v2105, 0.0
  %v2183 = vmax.f32 %v2108, 0.0
  %v2184 = vmax.f32 %v2110, 0.0
  %v2185 = vmax.f32 %v2113, 0.0
  %v2186 = vmax.f32 %v2115, 0.0
  %v2187 = vmax.f32 %v2118, 0.0
  %v2188 = vmax.f32 %v2120, 0.0
  %v2189 = vmax.f32 %v2123, 0.0
  %v2190 = vmax.f32 %v2125, 0.0
  %v2191 = vpack.c.bf16 %v2127, %v2127
  %v2192 = vpack.c.bf16 %v2128, %v2128
  %v2193 = vpack.c.bf16 %v2129, %v2129
  %v2194 = vpack.c.bf16 %v2130, %v2130
  %v2195 = vpack.c.bf16 %v2131, %v2131
  %v2196 = vpack.c.bf16 %v2132, %v2132
  %v2197 = vpack.c.bf16 %v2133, %v2133
  %v2198 = vpack.c.bf16 %v2134, %v2134
  %v2199 = vpack.c.bf16 %v2135, %v2135
  %v2200 = vpack.c.bf16 %v2136, %v2136
  %v2201 = vpack.c.bf16 %v2137, %v2137
  %v2202 = vpack.c.bf16 %v2138, %v2138
  %v2203 = vpack.c.bf16 %v2139, %v2139
  %v2204 = vpack.c.bf16 %v2140, %v2140
  %v2205 = vpack.c.bf16 %v2141, %v2141
  %v2206 = vpack.c.bf16 %v2142, %v2142
  %v2207 = vpack.c.bf16 %v2143, %v2143
  %v2208 = vpack.c.bf16 %v2144, %v2144
  %v2209 = vpack.c.bf16 %v2145, %v2145
  %v2210 = vpack.c.bf16 %v2146, %v2146
  %v2211 = vpack.c.bf16 %v2147, %v2147
  %v2212 = vpack.c.bf16 %v2148, %v2148
  %v2213 = vpack.c.bf16 %v2149, %v2149
  %v2214 = vpack.c.bf16 %v2150, %v2150
  %v2215 = vpack.c.bf16 %v2151, %v2151
  %v2216 = vpack.c.bf16 %v2152, %v2152
  %v2217 = vpack.c.bf16 %v2153, %v2153
  %v2218 = vpack.c.bf16 %v2154, %v2154
  %v2219 = vpack.c.bf16 %v2155, %v2155
  %v2220 = vpack.c.bf16 %v2156, %v2156
  %v2221 = vpack.c.bf16 %v2157, %v2157
  %v2222 = vpack.c.bf16 %v2158, %v2158
  %v2223 = vpack.c.bf16 %v2159, %v2159
  %v2224 = vpack.c.bf16 %v2160, %v2160
  %v2225 = vpack.c.bf16 %v2161, %v2161
  %v2226 = vpack.c.bf16 %v2162, %v2162
  %v2227 = vpack.c.bf16 %v2163, %v2163
  %v2228 = vpack.c.bf16 %v2164, %v2164
  %v2229 = vpack.c.bf16 %v2165, %v2165
  %v2230 = vpack.c.bf16 %v2166, %v2166
  %v2231 = vpack.c.bf16 %v2167, %v2167
  %v2232 = vpack.c.bf16 %v2168, %v2168
  %v2233 = vpack.c.bf16 %v2169, %v2169
  %v2234 = vpack.c.bf16 %v2170, %v2170
  %v2235 = vpack.c.bf16 %v2171, %v2171
  %v2236 = vpack.c.bf16 %v2172, %v2172
  %v2237 = vpack.c.bf16 %v2173, %v2173
  %v2238 = vpack.c.bf16 %v2174, %v2174
  %v2239 = vpack.c.bf16 %v2175, %v2175
  %v2240 = vpack.c.bf16 %v2176, %v2176
  %v2241 = vpack.c.bf16 %v2177, %v2177
  %v2242 = vpack.c.bf16 %v2178, %v2178
  %v2243 = vpack.c.bf16 %v2179, %v2179
  %v2244 = vpack.c.bf16 %v2180, %v2180
  %v2245 = vpack.c.bf16 %v2181, %v2181
  %v2246 = vpack.c.bf16 %v2182, %v2182
  %v2247 = vpack.c.bf16 %v2183, %v2183
  %v2248 = vpack.c.bf16 %v2184, %v2184
  %v2249 = vpack.c.bf16 %v2185, %v2185
  %v2250 = vpack.c.bf16 %v2186, %v2186
  %v2251 = vpack.c.bf16 %v2187, %v2187
  %v2252 = vpack.c.bf16 %v2188, %v2188
  %v2253 = vpack.c.bf16 %v2189, %v2189
  %v2254 = vpack.c.bf16 %v2190, %v2190
  %2255 = vst [vmem:[%s9] sm:$0xf] %v2191
  %2256 = vst [vmem:[%s9 + $0x4] sm:$0xf] %v2192
  %2257 = vst [vmem:[%s9 + $0x8] sm:$0xf] %v2193
  %2258 = vst [vmem:[%s9 + $0xc] sm:$0xf] %v2194
  %2259 = vst [vmem:[%s9 + $0x10] sm:$0xf] %v2195
  %2260 = vst [vmem:[%s9 + $0x14] sm:$0xf] %v2196
  %2261 = vst [vmem:[%s9 + $0x18] sm:$0xf] %v2197
  %2262 = vst [vmem:[%s9 + $0x1c] sm:$0xf] %v2198
  %2263 = vst [vmem:[%s9 + $0x20] sm:$0xf] %v2199
  %2264 = vst [vmem:[%s9 + $0x24] sm:$0xf] %v2200
  %2265 = vst [vmem:[%s9 + $0x28] sm:$0xf] %v2201
  %2266 = vst [vmem:[%s9 + $0x2c] sm:$0xf] %v2202
  %2267 = vst [vmem:[%s9 + $0x30] sm:$0xf] %v2203
  %2268 = vst [vmem:[%s9 + $0x34] sm:$0xf] %v2204
  %2269 = vst [vmem:[%s9 + $0x38] sm:$0xf] %v2205
  %2270 = vst [vmem:[%s9 + $0x3c] sm:$0xf] %v2206
  %2271 = vst [vmem:[%s9 + $0x40] sm:$0xf] %v2207
  %2272 = vst [vmem:[%s9 + $0x44] sm:$0xf] %v2208
  %2273 = vst [vmem:[%s9 + $0x48] sm:$0xf] %v2209
  %2274 = vst [vmem:[%s9 + $0x4c] sm:$0xf] %v2210
  %2275 = vst [vmem:[%s9 + $0x50] sm:$0xf] %v2211
  %2276 = vst [vmem:[%s9 + $0x54] sm:$0xf] %v2212
  %2277 = vst [vmem:[%s9 + $0x58] sm:$0xf] %v2213
  %2278 = vst [vmem:[%s9 + $0x5c] sm:$0xf] %v2214
  %2279 = vst [vmem:[%s9 + $0x60] sm:$0xf] %v2215
  %2280 = vst [vmem:[%s9 + $0x64] sm:$0xf] %v2216
  %2281 = vst [vmem:[%s9 + $0x68] sm:$0xf] %v2217
  %2282 = vst [vmem:[%s9 + $0x6c] sm:$0xf] %v2218
  %2283 = vst [vmem:[%s9 + $0x70] sm:$0xf] %v2219
  %2284 = vst [vmem:[%s9 + $0x74] sm:$0xf] %v2220
  %2285 = vst [vmem:[%s9 + $0x78] sm:$0xf] %v2221
  %2286 = vst [vmem:[%s9 + $0x7c] sm:$0xf] %v2222
  %2287 = vst [vmem:[%s9 + $0x80] sm:$0xf] %v2223
  %2288 = vst [vmem:[%s9 + $0x84] sm:$0xf] %v2224
  %2289 = vst [vmem:[%s9 + $0x88] sm:$0xf] %v2225
  %2290 = vst [vmem:[%s9 + $0x8c] sm:$0xf] %v2226
  %2291 = vst [vmem:[%s9 + $0x90] sm:$0xf] %v2227
  %2292 = vst [vmem:[%s9 + $0x94] sm:$0xf] %v2228
  %2293 = vst [vmem:[%s9 + $0x98] sm:$0xf] %v2229
  %2294 = vst [vmem:[%s9 + $0x9c] sm:$0xf] %v2230
  %2295 = vst [vmem:[%s9 + $0xa0] sm:$0xf] %v2231
  %2296 = vst [vmem:[%s9 + $0xa4] sm:$0xf] %v2232
  %2297 = vst [vmem:[%s9 + $0xa8] sm:$0xf] %v2233
  %2298 = vst [vmem:[%s9 + $0xac] sm:$0xf] %v2234
  %2299 = vst [vmem:[%s9 + $0xb0] sm:$0xf] %v2235
  %2300 = vst [vmem:[%s9 + $0xb4] sm:$0xf] %v2236
  %2301 = vst [vmem:[%s9 + $0xb8] sm:$0xf] %v2237
  %2302 = vst [vmem:[%s9 + $0xbc] sm:$0xf] %v2238
  %2303 = vst [vmem:[%s9 + $0xc0] sm:$0xf] %v2239
  %2304 = vst [vmem:[%s9 + $0xc4] sm:$0xf] %v2240
  %2305 = vst [vmem:[%s9 + $0xc8] sm:$0xf] %v2241
  %2306 = vst [vmem:[%s9 + $0xcc] sm:$0xf] %v2242
  %2307 = vst [vmem:[%s9 + $0xd0] sm:$0xf] %v2243
  %2308 = vst [vmem:[%s9 + $0xd4] sm:$0xf] %v2244
  %2309 = vst [vmem:[%s9 + $0xd8] sm:$0xf] %v2245
  %2310 = vst [vmem:[%s9 + $0xdc] sm:$0xf] %v2246
  %2311 = vst [vmem:[%s9 + $0xe0] sm:$0xf] %v2247
  %2312 = vst [vmem:[%s9 + $0xe4] sm:$0xf] %v2248
  %2313 = vst [vmem:[%s9 + $0xe8] sm:$0xf] %v2249
  %2314 = vst [vmem:[%s9 + $0xec] sm:$0xf] %v2250
  %2315 = vst [vmem:[%s9 + $0xf0] sm:$0xf] %v2251
  %2316 = vst [vmem:[%s9 + $0xf4] sm:$0xf] %v2252
  %2317 = vst [vmem:[%s9 + $0xf8] sm:$0xf] %v2253
  %2318 = vst [vmem:[%s9 + $0xfc] sm:$0xf] %v2254
  // Predicated region
  $region34: #{forward.8} parent=0 // pred_check
    _
  $region35: #{forward.8} parent=0 // pred_check_branch
    %2320 = sbr.rel (0) target = $region37
  $region36: #{forward.8} parent=0 // pred_region
    _
  $region37: #{forward.8} parent=0 // pred_fallthru
    _
  // Predicated region
  $region38: #{forward.8} parent=0 // pred_check
    _
  $region39: #{forward.8} parent=0 // pred_check_branch
    %2322 = sbr.rel (0) target = $region41
  $region40: #{forward.8} parent=0 // pred_region
    _
  $region41: #{forward.8} parent=0 // pred_fallthru
    _
  // Predicated region
  $region42: #{forward.8} parent=0 // pred_check
    _
  $region43: #{forward.8} parent=0 // pred_check_branch
    %2324 = sbr.rel (0) target = $region45
  $region44: #{forward.8} parent=0 // pred_region
    _
  $region45: #{forward.8} parent=0 // pred_fallthru
    _
  // Predicated region
  $region46: #{forward.8} parent=0 // pred_check
    _
  $region47: #{forward.8} parent=0 // pred_check_branch
    %2326 = sbr.rel (0) target = $region49
  $region48: #{forward.8} parent=0 // pred_region
    _
  $region49: #{forward.8} parent=0 // pred_fallthru
    _

// kernel: forward.9
$region0: #{forward.9}
  #allocation0 [shape = 'u32[]', space=smem, size = 0x4, offset = 0x4, fixed_abs, tag = 'smem constant byte address 0x4 - core index']
  #allocation1 [shape = 'u32[72,128]{1,0:T(1,128)}', space=vmem, size = 0x9000, scoped, tag = 'internal scratch']
  %s0 = inlined_call_operand.vmem [shape: bf16[128,256], index: 0, kind: input, shape index: {}]
  %s1 = inlined_call_operand.vmem [shape: bf16[256,128], index: 1, kind: input, shape index: {}]
  %s2 = inlined_call_operand.vmem [shape: f32[1,128], index: 2, kind: input, shape index: {}]
  %s3 = inlined_call_operand.vmem [shape: bf16[256,128], index: 3, kind: input, shape index: {}]
  %s4 = inlined_call_operand.vmem [shape: f32[1,128], index: 4, kind: input, shape index: {}]
  %s5 = inlined_call_operand.vmem [shape: bf16[128,128], index: 5, kind: input, shape index: {}]
  %s6 = inlined_call_operand.vmem [shape: bf16[128,128], index: 6, kind: input, shape index: {}]
  %s7 = inlined_call_operand.vmem [shape: f32[1,128], index: 7, kind: input, shape index: {}]
  %s8 = inlined_call_operand.vmem [shape: bf16[128,128], index: 8, kind: output, shape index: {0}]
  %s9 = inlined_call_operand.vmem [shape: bf16[128,128], index: 9, kind: output, shape index: {1}]
  %10 = xla_tuple %s8, %s9
  %s11 = sld [smem:[#allocation0]]
  $region50: #{forward.9} parent=0
    _
  %s13 = ssub.s32 1, %s11
  %s14 = scalar_select 0, %s13, %s11
  // Predicated region
  $region2: #{forward.9} parent=0 // pred_check
    _
  $region3: #{forward.9} parent=0 // pred_check_branch
    %16 = sbr.rel (0) target = $region5
  $region4: #{forward.9} parent=0 // pred_region
    _
  $region5: #{forward.9} parent=0 // pred_fallthru
    _
  // Predicated region
  $region6: #{forward.9} parent=0 // pred_check
    _
  $region7: #{forward.9} parent=0 // pred_check_branch
    %18 = sbr.rel (0) target = $region9
  $region8: #{forward.9} parent=0 // pred_region
    _
  $region9: #{forward.9} parent=0 // pred_fallthru
    _
  // Predicated region
  $region10: #{forward.9} parent=0 // pred_check
    _
  $region11: #{forward.9} parent=0 // pred_check_branch
    %20 = sbr.rel (0) target = $region13
  $region12: #{forward.9} parent=0 // pred_region
    _
  $region13: #{forward.9} parent=0 // pred_fallthru
    _
  // Predicated region
  $region14: #{forward.9} parent=0 // pred_check
    _
  $region15: #{forward.9} parent=0 // pred_check_branch
    %22 = sbr.rel (0) target = $region17
  $region16: #{forward.9} parent=0 // pred_region
    _
  $region17: #{forward.9} parent=0 // pred_fallthru
    _
  // Predicated region
  $region18: #{forward.9} parent=0 // pred_check
    _
  $region19: #{forward.9} parent=0 // pred_check_branch
    %24 = sbr.rel (0) target = $region21
  $region20: #{forward.9} parent=0 // pred_region
    _
  $region21: #{forward.9} parent=0 // pred_fallthru
    _
  // Predicated region
  $region22: #{forward.9} parent=0 // pred_check
    _
  $region23: #{forward.9} parent=0 // pred_check_branch
    %26 = sbr.rel (0) target = $region25
  $region24: #{forward.9} parent=0 // pred_region
    _
  $region25: #{forward.9} parent=0 // pred_fallthru
    _
  // Predicated region
  $region26: #{forward.9} parent=0 // pred_check
    _
  $region27: #{forward.9} parent=0 // pred_check_branch
    %28 = sbr.rel (0) target = $region29
  $region28: #{forward.9} parent=0 // pred_region
    _
  $region29: #{forward.9} parent=0 // pred_fallthru
    _
  // Predicated region
  $region30: #{forward.9} parent=0 // pred_check
    _
  $region31: #{forward.9} parent=0 // pred_check_branch
    %30 = sbr.rel (0) target = $region33
  $region32: #{forward.9} parent=0 // pred_region
    _
  $region33: #{forward.9} parent=0 // pred_fallthru
    _
  %v31 = vld [vmem:[%s0] sm:$0xff]
  %v32 = vld [vmem:[%s0 + $0x8] sm:$0xff]
  %v33 = vld [vmem:[%s0 + $0x10] sm:$0xff]
  %v34 = vld [vmem:[%s0 + $0x18] sm:$0xff]
  %v35 = vld [vmem:[%s0 + $0x20] sm:$0xff]
  %v36 = vld [vmem:[%s0 + $0x28] sm:$0xff]
  %v37 = vld [vmem:[%s0 + $0x30] sm:$0xff]
  %v38 = vld [vmem:[%s0 + $0x38] sm:$0xff]
  %v39 = vld [vmem:[%s0 + $0x40] sm:$0xff]
  %v40 = vld [vmem:[%s0 + $0x48] sm:$0xff]
  %v41 = vld [vmem:[%s0 + $0x50] sm:$0xff]
  %v42 = vld [vmem:[%s0 + $0x58] sm:$0xff]
  %v43 = vld [vmem:[%s0 + $0x60] sm:$0xff]
  %v44 = vld [vmem:[%s0 + $0x68] sm:$0xff]
  %v45 = vld [vmem:[%s0 + $0x70] sm:$0xff]
  %v46 = vld [vmem:[%s0 + $0x78] sm:$0xff]
  %v47 = vld [vmem:[%s1] sm:$0xf]
  %v48 = vld [vmem:[%s1 + $0x4] sm:$0xf]
  %v49 = vld [vmem:[%s1 + $0x8] sm:$0xf]
  %v50 = vld [vmem:[%s1 + $0xc] sm:$0xf]
  %v51 = vld [vmem:[%s1 + $0x10] sm:$0xf]
  %v52 = vld [vmem:[%s1 + $0x14] sm:$0xf]
  %v53 = vld [vmem:[%s1 + $0x18] sm:$0xf]
  %v54 = vld [vmem:[%s1 + $0x1c] sm:$0xf]
  %v55 = vld [vmem:[%s1 + $0x20] sm:$0xf]
  %v56 = vld [vmem:[%s1 + $0x24] sm:$0xf]
  %v57 = vld [vmem:[%s1 + $0x28] sm:$0xf]
  %v58 = vld [vmem:[%s1 + $0x2c] sm:$0xf]
  %v59 = vld [vmem:[%s1 + $0x30] sm:$0xf]
  %v60 = vld [vmem:[%s1 + $0x34] sm:$0xf]
  %v61 = vld [vmem:[%s1 + $0x38] sm:$0xf]
  %v62 = vld [vmem:[%s1 + $0x3c] sm:$0xf]
  %v63 = vld [vmem:[%s1 + $0x40] sm:$0xf]
  %v64 = vld [vmem:[%s1 + $0x44] sm:$0xf]
  %v65 = vld [vmem:[%s1 + $0x48] sm:$0xf]
  %v66 = vld [vmem:[%s1 + $0x4c] sm:$0xf]
  %v67 = vld [vmem:[%s1 + $0x50] sm:$0xf]
  %v68 = vld [vmem:[%s1 + $0x54] sm:$0xf]
  %v69 = vld [vmem:[%s1 + $0x58] sm:$0xf]
  %v70 = vld [vmem:[%s1 + $0x5c] sm:$0xf]
  %v71 = vld [vmem:[%s1 + $0x60] sm:$0xf]
  %v72 = vld [vmem:[%s1 + $0x64] sm:$0xf]
  %v73 = vld [vmem:[%s1 + $0x68] sm:$0xf]
  %v74 = vld [vmem:[%s1 + $0x6c] sm:$0xf]
  %v75 = vld [vmem:[%s1 + $0x70] sm:$0xf]
  %v76 = vld [vmem:[%s1 + $0x74] sm:$0xf]
  %v77 = vld [vmem:[%s1 + $0x78] sm:$0xf]
  %v78 = vld [vmem:[%s1 + $0x7c] sm:$0xf]
  %v79 = vld [vmem:[%s2] sm:$0x1]
  %v81 = vperm.slane %v79, 0
  %v99 = vunpack.c.l.b16 %v31
  %v100 = vunpack.c.h.b16 %v31
  %v101 = vunpack.c.l.b16 %v32
  %v102 = vunpack.c.h.b16 %v32
  %v103 = vunpack.c.l.b16 %v33
  %v104 = vunpack.c.h.b16 %v33
  %v105 = vunpack.c.l.b16 %v34
  %v106 = vunpack.c.h.b16 %v34
  %v107 = vunpack.c.l.b16 %v35
  %v108 = vunpack.c.h.b16 %v35
  %v109 = vunpack.c.l.b16 %v36
  %v110 = vunpack.c.h.b16 %v36
  %v111 = vunpack.c.l.b16 %v37
  %v112 = vunpack.c.h.b16 %v37
  %v113 = vunpack.c.l.b16 %v38
  %v114 = vunpack.c.h.b16 %v38
  %v115 = vunpack.c.l.b16 %v39
  %v116 = vunpack.c.h.b16 %v39
  %v117 = vunpack.c.l.b16 %v40
  %v118 = vunpack.c.h.b16 %v40
  %v119 = vunpack.c.l.b16 %v41
  %v120 = vunpack.c.h.b16 %v41
  %v121 = vunpack.c.l.b16 %v42
  %v122 = vunpack.c.h.b16 %v42
  %v123 = vunpack.c.l.b16 %v43
  %v124 = vunpack.c.h.b16 %v43
  %v125 = vunpack.c.l.b16 %v44
  %v126 = vunpack.c.h.b16 %v44
  %v127 = vunpack.c.l.b16 %v45
  %v128 = vunpack.c.h.b16 %v45
  %v129 = vunpack.c.l.b16 %v46
  %v130 = vunpack.c.h.b16 %v46
  %v131 = vpack.c.b16 %v101, %v99
  %v132 = vpack.c.b16 %v102, %v100
  %v133 = vpack.c.b16 %v105, %v103
  %v134 = vpack.c.b16 %v106, %v104
  %v135 = vpack.c.b16 %v109, %v107
  %v136 = vpack.c.b16 %v110, %v108
  %v137 = vpack.c.b16 %v113, %v111
  %v138 = vpack.c.b16 %v114, %v112
  %v139 = vpack.c.b16 %v117, %v115
  %v140 = vpack.c.b16 %v118, %v116
  %v141 = vpack.c.b16 %v121, %v119
  %v142 = vpack.c.b16 %v122, %v120
  %v143 = vpack.c.b16 %v125, %v123
  %v144 = vpack.c.b16 %v126, %v124
  %v145 = vpack.c.b16 %v129, %v127
  %v146 = vpack.c.b16 %v130, %v128
  %v195 = vunpack.c.l.b16 %v47
  %v196 = vunpack.c.l.b16 %v48
  %v197 = vunpack.c.l.b16 %v49
  %v198 = vunpack.c.l.b16 %v50
  %v199 = vunpack.c.l.b16 %v51
  %v200 = vunpack.c.l.b16 %v52
  %v201 = vunpack.c.l.b16 %v53
  %v202 = vunpack.c.l.b16 %v54
  %v203 = vunpack.c.l.b16 %v55
  %v204 = vunpack.c.l.b16 %v56
  %v205 = vunpack.c.l.b16 %v57
  %v206 = vunpack.c.l.b16 %v58
  %v207 = vunpack.c.l.b16 %v59
  %v208 = vunpack.c.l.b16 %v60
  %v209 = vunpack.c.l.b16 %v61
  %v210 = vunpack.c.l.b16 %v62
  %v211 = vunpack.c.l.b16 %v63
  %v212 = vunpack.c.l.b16 %v64
  %v213 = vunpack.c.l.b16 %v65
  %v214 = vunpack.c.l.b16 %v66
  %v215 = vunpack.c.l.b16 %v67
  %v216 = vunpack.c.l.b16 %v68
  %v217 = vunpack.c.l.b16 %v69
  %v218 = vunpack.c.l.b16 %v70
  %v219 = vunpack.c.l.b16 %v71
  %v220 = vunpack.c.l.b16 %v72
  %v221 = vunpack.c.l.b16 %v73
  %v222 = vunpack.c.l.b16 %v74
  %v223 = vunpack.c.l.b16 %v75
  %v224 = vunpack.c.l.b16 %v76
  %v225 = vunpack.c.l.b16 %v77
  %v226 = vunpack.c.l.b16 %v78
  %v227 = vpack.c.b16 %v196, %v195
  %v228 = vpack.c.b16 %v198, %v197
  %v229 = vpack.c.b16 %v200, %v199
  %v230 = vpack.c.b16 %v202, %v201
  %v231 = vpack.c.b16 %v204, %v203
  %v232 = vpack.c.b16 %v206, %v205
  %v233 = vpack.c.b16 %v208, %v207
  %v234 = vpack.c.b16 %v210, %v209
  %v235 = vpack.c.b16 %v212, %v211
  %v236 = vpack.c.b16 %v214, %v213
  %v237 = vpack.c.b16 %v216, %v215
  %v238 = vpack.c.b16 %v218, %v217
  %v239 = vpack.c.b16 %v220, %v219
  %v240 = vpack.c.b16 %v222, %v221
  %v241 = vpack.c.b16 %v224, %v223
  %v242 = vpack.c.b16 %v226, %v225
  %259 = vmatpush.bf16.msra.mxu0 %v234
  %260 = vmatpush.bf16.msra.mxu0 %v233
  %261 = vmatpush.bf16.msra.mxu0 %v232
  %262 = vmatpush.bf16.msra.mxu0 %v231
  %263 = vmatpush.bf16.msra.mxu0 %v230
  %264 = vmatpush.bf16.msra.mxu0 %v229
  %265 = vmatpush.bf16.msra.mxu0 %v228
  %266 = vmatpush.bf16.msra.mxu0 %v227
  %267 = vmatmul.bf16.gmra.mxu0 %v131
  %v268 = vpop.f32.mrf.mxu0
  %v269 = vadd.f32 %v81, %v268
  %v270 = vpop.f32.mrf.mxu0
  %v271 = vadd.f32 %v81, %v270
  %272 = vmatmul.bf16.gmra.mxu0 %v133
  %v273 = vpop.f32.mrf.mxu0
  %v274 = vadd.f32 %v81, %v273
  %v275 = vpop.f32.mrf.mxu0
  %v276 = vadd.f32 %v81, %v275
  %277 = vmatmul.bf16.gmra.mxu0 %v135
  %v278 = vpop.f32.mrf.mxu0
  %v279 = vadd.f32 %v81, %v278
  %v280 = vpop.f32.mrf.mxu0
  %v281 = vadd.f32 %v81, %v280
  %282 = vmatmul.bf16.gmra.mxu0 %v137
  %v283 = vpop.f32.mrf.mxu0
  %v284 = vadd.f32 %v81, %v283
  %v285 = vpop.f32.mrf.mxu0
  %v286 = vadd.f32 %v81, %v285
  %287 = vmatmul.bf16.gmra.mxu0 %v139
  %v288 = vpop.f32.mrf.mxu0
  %v289 = vadd.f32 %v81, %v288
  %v290 = vpop.f32.mrf.mxu0
  %v291 = vadd.f32 %v81, %v290
  %292 = vmatmul.bf16.gmra.mxu0 %v141
  %v293 = vpop.f32.mrf.mxu0
  %v294 = vadd.f32 %v81, %v293
  %v295 = vpop.f32.mrf.mxu0
  %v296 = vadd.f32 %v81, %v295
  %297 = vmatmul.bf16.gmra.mxu0 %v143
  %v298 = vpop.f32.mrf.mxu0
  %v299 = vadd.f32 %v81, %v298
  %v300 = vpop.f32.mrf.mxu0
  %v301 = vadd.f32 %v81, %v300
  %302 = vmatmul.bf16.gmra.mxu0 %v145
  %v303 = vpop.f32.mrf.mxu0
  %v304 = vadd.f32 %v81, %v303
  %v305 = vpop.f32.mrf.mxu0
  %v306 = vadd.f32 %v81, %v305
  %307 = vdwg.mxu0
  %308 = vmatpush.bf16.msra.mxu0 %v242
  %309 = vmatpush.bf16.msra.mxu0 %v241
  %310 = vmatpush.bf16.msra.mxu0 %v240
  %311 = vmatpush.bf16.msra.mxu0 %v239
  %312 = vmatpush.bf16.msra.mxu0 %v238
  %313 = vmatpush.bf16.msra.mxu0 %v237
  %314 = vmatpush.bf16.msra.mxu0 %v236
  %315 = vmatpush.bf16.msra.mxu0 %v235
  %316 = vmatmul.bf16.gmra.mxu0 %v132
  %v317 = vpop.f32.mrf.mxu0
  %v318 = vadd.f32 %v269, %v317
  %v319 = vpop.f32.mrf.mxu0
  %v320 = vadd.f32 %v271, %v319
  %321 = vmatmul.bf16.gmra.mxu0 %v134
  %v322 = vpop.f32.mrf.mxu0
  %v323 = vadd.f32 %v274, %v322
  %v324 = vpop.f32.mrf.mxu0
  %v325 = vadd.f32 %v276, %v324
  %326 = vmatmul.bf16.gmra.mxu0 %v136
  %v327 = vpop.f32.mrf.mxu0
  %v328 = vadd.f32 %v279, %v327
  %v329 = vpop.f32.mrf.mxu0
  %v330 = vadd.f32 %v281, %v329
  %331 = vmatmul.bf16.gmra.mxu0 %v138
  %v332 = vpop.f32.mrf.mxu0
  %v333 = vadd.f32 %v284, %v332
  %v334 = vpop.f32.mrf.mxu0
  %v335 = vadd.f32 %v286, %v334
  %336 = vmatmul.bf16.gmra.mxu0 %v140
  %v337 = vpop.f32.mrf.mxu0
  %v338 = vadd.f32 %v289, %v337
  %v339 = vpop.f32.mrf.mxu0
  %v340 = vadd.f32 %v291, %v339
  %341 = vmatmul.bf16.gmra.mxu0 %v142
  %v342 = vpop.f32.mrf.mxu0
  %v343 = vadd.f32 %v294, %v342
  %v344 = vpop.f32.mrf.mxu0
  %v345 = vadd.f32 %v296, %v344
  %346 = vmatmul.bf16.gmra.mxu0 %v144
  %v347 = vpop.f32.mrf.mxu0
  %v348 = vadd.f32 %v299, %v347
  %v349 = vpop.f32.mrf.mxu0
  %v350 = vadd.f32 %v301, %v349
  %351 = vmatmul.bf16.gmra.mxu0 %v146
  %v352 = vpop.f32.mrf.mxu0
  %v353 = vadd.f32 %v304, %v352
  %v354 = vpop.f32.mrf.mxu0
  %v355 = vadd.f32 %v306, %v354
  %356 = vdwg.mxu0
  %v357 = vmax.f32 %v318, 0.0
  %v358 = vmax.f32 %v320, 0.0
  %v359 = vmax.f32 %v323, 0.0
  %v360 = vmax.f32 %v325, 0.0
  %v361 = vmax.f32 %v328, 0.0
  %v362 = vmax.f32 %v330, 0.0
  %v363 = vmax.f32 %v333, 0.0
  %v364 = vmax.f32 %v335, 0.0
  %v365 = vmax.f32 %v338, 0.0
  %v366 = vmax.f32 %v340, 0.0
  %v367 = vmax.f32 %v343, 0.0
  %v368 = vmax.f32 %v345, 0.0
  %v369 = vmax.f32 %v348, 0.0
  %v370 = vmax.f32 %v350, 0.0
  %v371 = vmax.f32 %v353, 0.0
  %v372 = vmax.f32 %v355, 0.0
  %v373 = vpack.c.bf16 %v357, %v357
  %v374 = vpack.c.bf16 %v358, %v358
  %v375 = vpack.c.bf16 %v359, %v359
  %v376 = vpack.c.bf16 %v360, %v360
  %v377 = vpack.c.bf16 %v361, %v361
  %v378 = vpack.c.bf16 %v362, %v362
  %v379 = vpack.c.bf16 %v363, %v363
  %v380 = vpack.c.bf16 %v364, %v364
  %v381 = vpack.c.bf16 %v365, %v365
  %v382 = vpack.c.bf16 %v366, %v366
  %v383 = vpack.c.bf16 %v367, %v367
  %v384 = vpack.c.bf16 %v368, %v368
  %v385 = vpack.c.bf16 %v369, %v369
  %v386 = vpack.c.bf16 %v370, %v370
  %v387 = vpack.c.bf16 %v371, %v371
  %v388 = vpack.c.bf16 %v372, %v372
  %v389 = vld [vmem:[%s5] sm:$0xf]
  %v390 = vld [vmem:[%s5 + $0x4] sm:$0xf]
  %v391 = vld [vmem:[%s5 + $0x8] sm:$0xf]
  %v392 = vld [vmem:[%s5 + $0xc] sm:$0xf]
  %v393 = vld [vmem:[%s5 + $0x10] sm:$0xf]
  %v394 = vld [vmem:[%s5 + $0x14] sm:$0xf]
  %v395 = vld [vmem:[%s5 + $0x18] sm:$0xf]
  %v396 = vld [vmem:[%s5 + $0x1c] sm:$0xf]
  %v397 = vld [vmem:[%s5 + $0x20] sm:$0xf]
  %v398 = vld [vmem:[%s5 + $0x24] sm:$0xf]
  %v399 = vld [vmem:[%s5 + $0x28] sm:$0xf]
  %v400 = vld [vmem:[%s5 + $0x2c] sm:$0xf]
  %v401 = vld [vmem:[%s5 + $0x30] sm:$0xf]
  %v402 = vld [vmem:[%s5 + $0x34] sm:$0xf]
  %v403 = vld [vmem:[%s5 + $0x38] sm:$0xf]
  %v404 = vld [vmem:[%s5 + $0x3c] sm:$0xf]
  %v421 = vunpack.c.l.b16 %v373
  %v422 = vunpack.c.l.b16 %v374
  %v423 = vunpack.c.l.b16 %v375
  %v424 = vunpack.c.l.b16 %v376
  %v425 = vunpack.c.l.b16 %v377
  %v426 = vunpack.c.l.b16 %v378
  %v427 = vunpack.c.l.b16 %v379
  %v428 = vunpack.c.l.b16 %v380
  %v429 = vunpack.c.l.b16 %v381
  %v430 = vunpack.c.l.b16 %v382
  %v431 = vunpack.c.l.b16 %v383
  %v432 = vunpack.c.l.b16 %v384
  %v433 = vunpack.c.l.b16 %v385
  %v434 = vunpack.c.l.b16 %v386
  %v435 = vunpack.c.l.b16 %v387
  %v436 = vunpack.c.l.b16 %v388
  %v437 = vpack.c.b16 %v422, %v421
  %v438 = vpack.c.b16 %v424, %v423
  %v439 = vpack.c.b16 %v426, %v425
  %v440 = vpack.c.b16 %v428, %v427
  %v441 = vpack.c.b16 %v430, %v429
  %v442 = vpack.c.b16 %v432, %v431
  %v443 = vpack.c.b16 %v434, %v433
  %v444 = vpack.c.b16 %v436, %v435
  %v469 = vunpack.c.l.b16 %v389
  %v470 = vunpack.c.l.b16 %v390
  %v471 = vunpack.c.l.b16 %v391
  %v472 = vunpack.c.l.b16 %v392
  %v473 = vunpack.c.l.b16 %v393
  %v474 = vunpack.c.l.b16 %v394
  %v475 = vunpack.c.l.b16 %v395
  %v476 = vunpack.c.l.b16 %v396
  %v477 = vunpack.c.l.b16 %v397
  %v478 = vunpack.c.l.b16 %v398
  %v479 = vunpack.c.l.b16 %v399
  %v480 = vunpack.c.l.b16 %v400
  %v481 = vunpack.c.l.b16 %v401
  %v482 = vunpack.c.l.b16 %v402
  %v483 = vunpack.c.l.b16 %v403
  %v484 = vunpack.c.l.b16 %v404
  %v485 = vpack.c.b16 %v470, %v469
  %v486 = vpack.c.b16 %v472, %v471
  %v487 = vpack.c.b16 %v474, %v473
  %v488 = vpack.c.b16 %v476, %v475
  %v489 = vpack.c.b16 %v478, %v477
  %v490 = vpack.c.b16 %v480, %v479
  %v491 = vpack.c.b16 %v482, %v481
  %v492 = vpack.c.b16 %v484, %v483
  %v501 = vld [vmem:[%s3] sm:$0xf]
  %v502 = vld [vmem:[%s3 + $0x4] sm:$0xf]
  %v503 = vld [vmem:[%s3 + $0x8] sm:$0xf]
  %v504 = vld [vmem:[%s3 + $0xc] sm:$0xf]
  %v505 = vld [vmem:[%s3 + $0x10] sm:$0xf]
  %v506 = vld [vmem:[%s3 + $0x14] sm:$0xf]
  %v507 = vld [vmem:[%s3 + $0x18] sm:$0xf]
  %v508 = vld [vmem:[%s3 + $0x1c] sm:$0xf]
  %v509 = vld [vmem:[%s3 + $0x20] sm:$0xf]
  %v510 = vld [vmem:[%s3 + $0x24] sm:$0xf]
  %v511 = vld [vmem:[%s3 + $0x28] sm:$0xf]
  %v512 = vld [vmem:[%s3 + $0x2c] sm:$0xf]
  %v513 = vld [vmem:[%s3 + $0x30] sm:$0xf]
  %v514 = vld [vmem:[%s3 + $0x34] sm:$0xf]
  %v515 = vld [vmem:[%s3 + $0x38] sm:$0xf]
  %v516 = vld [vmem:[%s3 + $0x3c] sm:$0xf]
  %v517 = vld [vmem:[%s3 + $0x40] sm:$0xf]
  %v518 = vld [vmem:[%s3 + $0x44] sm:$0xf]
  %v519 = vld [vmem:[%s3 + $0x48] sm:$0xf]
  %v520 = vld [vmem:[%s3 + $0x4c] sm:$0xf]
  %v521 = vld [vmem:[%s3 + $0x50] sm:$0xf]
  %v522 = vld [vmem:[%s3 + $0x54] sm:$0xf]
  %v523 = vld [vmem:[%s3 + $0x58] sm:$0xf]
  %v524 = vld [vmem:[%s3 + $0x5c] sm:$0xf]
  %v525 = vld [vmem:[%s3 + $0x60] sm:$0xf]
  %v526 = vld [vmem:[%s3 + $0x64] sm:$0xf]
  %v527 = vld [vmem:[%s3 + $0x68] sm:$0xf]
  %v528 = vld [vmem:[%s3 + $0x6c] sm:$0xf]
  %v529 = vld [vmem:[%s3 + $0x70] sm:$0xf]
  %v530 = vld [vmem:[%s3 + $0x74] sm:$0xf]
  %v531 = vld [vmem:[%s3 + $0x78] sm:$0xf]
  %v532 = vld [vmem:[%s3 + $0x7c] sm:$0xf]
  %v533 = vld [vmem:[%s4] sm:$0x1]
  %v535 = vperm.slane %v533, 0
  %v569 = vunpack.c.l.b16 %v501
  %v570 = vunpack.c.l.b16 %v502
  %v571 = vunpack.c.l.b16 %v503
  %v572 = vunpack.c.l.b16 %v504
  %v573 = vunpack.c.l.b16 %v505
  %v574 = vunpack.c.l.b16 %v506
  %v575 = vunpack.c.l.b16 %v507
  %v576 = vunpack.c.l.b16 %v508
  %v577 = vunpack.c.l.b16 %v509
  %v578 = vunpack.c.l.b16 %v510
  %v579 = vunpack.c.l.b16 %v511
  %v580 = vunpack.c.l.b16 %v512
  %v581 = vunpack.c.l.b16 %v513
  %v582 = vunpack.c.l.b16 %v514
  %v583 = vunpack.c.l.b16 %v515
  %v584 = vunpack.c.l.b16 %v516
  %v585 = vunpack.c.l.b16 %v517
  %v586 = vunpack.c.l.b16 %v518
  %v587 = vunpack.c.l.b16 %v519
  %v588 = vunpack.c.l.b16 %v520
  %v589 = vunpack.c.l.b16 %v521
  %v590 = vunpack.c.l.b16 %v522
  %v591 = vunpack.c.l.b16 %v523
  %v592 = vunpack.c.l.b16 %v524
  %v593 = vunpack.c.l.b16 %v525
  %v594 = vunpack.c.l.b16 %v526
  %v595 = vunpack.c.l.b16 %v527
  %v596 = vunpack.c.l.b16 %v528
  %v597 = vunpack.c.l.b16 %v529
  %v598 = vunpack.c.l.b16 %v530
  %v599 = vunpack.c.l.b16 %v531
  %v600 = vunpack.c.l.b16 %v532
  %v601 = vpack.c.b16 %v570, %v569
  %v602 = vpack.c.b16 %v572, %v571
  %v603 = vpack.c.b16 %v574, %v573
  %v604 = vpack.c.b16 %v576, %v575
  %v605 = vpack.c.b16 %v578, %v577
  %v606 = vpack.c.b16 %v580, %v579
  %v607 = vpack.c.b16 %v582, %v581
  %v608 = vpack.c.b16 %v584, %v583
  %v609 = vpack.c.b16 %v586, %v585
  %v610 = vpack.c.b16 %v588, %v587
  %v611 = vpack.c.b16 %v590, %v589
  %v612 = vpack.c.b16 %v592, %v591
  %v613 = vpack.c.b16 %v594, %v593
  %v614 = vpack.c.b16 %v596, %v595
  %v615 = vpack.c.b16 %v598, %v597
  %v616 = vpack.c.b16 %v600, %v599
  %633 = vmatpush.bf16.msra.mxu0 %v608
  %634 = vmatpush.bf16.msra.mxu0 %v607
  %635 = vmatpush.bf16.msra.mxu0 %v606
  %636 = vmatpush.bf16.msra.mxu0 %v605
  %637 = vmatpush.bf16.msra.mxu0 %v604
  %638 = vmatpush.bf16.msra.mxu0 %v603
  %639 = vmatpush.bf16.msra.mxu0 %v602
  %640 = vmatpush.bf16.msra.mxu0 %v601
  %641 = vmatmul.bf16.gmra.mxu0 %v437
  %v642 = vpop.f32.mrf.mxu0
  %v643 = vadd.f32 %v535, %v642
  %v644 = vpop.f32.mrf.mxu0
  %v645 = vadd.f32 %v535, %v644
  %646 = vmatmul.bf16.gmra.mxu0 %v438
  %v647 = vpop.f32.mrf.mxu0
  %v648 = vadd.f32 %v535, %v647
  %v649 = vpop.f32.mrf.mxu0
  %v650 = vadd.f32 %v535, %v649
  %651 = vmatmul.bf16.gmra.mxu0 %v439
  %v652 = vpop.f32.mrf.mxu0
  %v653 = vadd.f32 %v535, %v652
  %v654 = vpop.f32.mrf.mxu0
  %v655 = vadd.f32 %v535, %v654
  %656 = vmatmul.bf16.gmra.mxu0 %v440
  %v657 = vpop.f32.mrf.mxu0
  %v658 = vadd.f32 %v535, %v657
  %v659 = vpop.f32.mrf.mxu0
  %v660 = vadd.f32 %v535, %v659
  %661 = vmatmul.bf16.gmra.mxu0 %v441
  %v662 = vpop.f32.mrf.mxu0
  %v663 = vadd.f32 %v535, %v662
  %v664 = vpop.f32.mrf.mxu0
  %v665 = vadd.f32 %v535, %v664
  %666 = vmatmul.bf16.gmra.mxu0 %v442
  %v667 = vpop.f32.mrf.mxu0
  %v668 = vadd.f32 %v535, %v667
  %v669 = vpop.f32.mrf.mxu0
  %v670 = vadd.f32 %v535, %v669
  %671 = vmatmul.bf16.gmra.mxu0 %v443
  %v672 = vpop.f32.mrf.mxu0
  %v673 = vadd.f32 %v535, %v672
  %v674 = vpop.f32.mrf.mxu0
  %v675 = vadd.f32 %v535, %v674
  %676 = vmatmul.bf16.gmra.mxu0 %v444
  %v677 = vpop.f32.mrf.mxu0
  %v678 = vadd.f32 %v535, %v677
  %v679 = vpop.f32.mrf.mxu0
  %v680 = vadd.f32 %v535, %v679
  %681 = vdwg.mxu0
  %682 = vmatpush.bf16.msra.mxu0 %v616
  %683 = vmatpush.bf16.msra.mxu0 %v615
  %684 = vmatpush.bf16.msra.mxu0 %v614
  %685 = vmatpush.bf16.msra.mxu0 %v613
  %686 = vmatpush.bf16.msra.mxu0 %v612
  %687 = vmatpush.bf16.msra.mxu0 %v611
  %688 = vmatpush.bf16.msra.mxu0 %v610
  %689 = vmatpush.bf16.msra.mxu0 %v609
  %690 = vmatmul.bf16.gmra.mxu0 %v485
  %v691 = vpop.f32.mrf.mxu0
  %v692 = vadd.f32 %v643, %v691
  %v693 = vpop.f32.mrf.mxu0
  %v694 = vadd.f32 %v645, %v693
  %695 = vmatmul.bf16.gmra.mxu0 %v486
  %v696 = vpop.f32.mrf.mxu0
  %v697 = vadd.f32 %v648, %v696
  %v698 = vpop.f32.mrf.mxu0
  %v699 = vadd.f32 %v650, %v698
  %700 = vmatmul.bf16.gmra.mxu0 %v487
  %v701 = vpop.f32.mrf.mxu0
  %v702 = vadd.f32 %v653, %v701
  %v703 = vpop.f32.mrf.mxu0
  %v704 = vadd.f32 %v655, %v703
  %705 = vmatmul.bf16.gmra.mxu0 %v488
  %v706 = vpop.f32.mrf.mxu0
  %v707 = vadd.f32 %v658, %v706
  %v708 = vpop.f32.mrf.mxu0
  %v709 = vadd.f32 %v660, %v708
  %710 = vmatmul.bf16.gmra.mxu0 %v489
  %v711 = vpop.f32.mrf.mxu0
  %v712 = vadd.f32 %v663, %v711
  %v713 = vpop.f32.mrf.mxu0
  %v714 = vadd.f32 %v665, %v713
  %715 = vmatmul.bf16.gmra.mxu0 %v490
  %v716 = vpop.f32.mrf.mxu0
  %v717 = vadd.f32 %v668, %v716
  %v718 = vpop.f32.mrf.mxu0
  %v719 = vadd.f32 %v670, %v718
  %720 = vmatmul.bf16.gmra.mxu0 %v491
  %v721 = vpop.f32.mrf.mxu0
  %v722 = vadd.f32 %v673, %v721
  %v723 = vpop.f32.mrf.mxu0
  %v724 = vadd.f32 %v675, %v723
  %725 = vmatmul.bf16.gmra.mxu0 %v492
  %v726 = vpop.f32.mrf.mxu0
  %v727 = vadd.f32 %v678, %v726
  %v728 = vpop.f32.mrf.mxu0
  %v729 = vadd.f32 %v680, %v728
  %730 = vdwg.mxu0
  %v731 = vpack.c.bf16 %v692, %v692
  %v732 = vpack.c.bf16 %v694, %v694
  %v733 = vpack.c.bf16 %v697, %v697
  %v734 = vpack.c.bf16 %v699, %v699
  %v735 = vpack.c.bf16 %v702, %v702
  %v736 = vpack.c.bf16 %v704, %v704
  %v737 = vpack.c.bf16 %v707, %v707
  %v738 = vpack.c.bf16 %v709, %v709
  %v739 = vpack.c.bf16 %v712, %v712
  %v740 = vpack.c.bf16 %v714, %v714
  %v741 = vpack.c.bf16 %v717, %v717
  %v742 = vpack.c.bf16 %v719, %v719
  %v743 = vpack.c.bf16 %v722, %v722
  %v744 = vpack.c.bf16 %v724, %v724
  %v745 = vpack.c.bf16 %v727, %v727
  %v746 = vpack.c.bf16 %v729, %v729
  %747 = vst [vmem:[%s8] sm:$0xf] %v731
  %748 = vst [vmem:[%s8 + $0x4] sm:$0xf] %v732
  %749 = vst [vmem:[%s8 + $0x8] sm:$0xf] %v733
  %750 = vst [vmem:[%s8 + $0xc] sm:$0xf] %v734
  %751 = vst [vmem:[%s8 + $0x10] sm:$0xf] %v735
  %752 = vst [vmem:[%s8 + $0x14] sm:$0xf] %v736
  %753 = vst [vmem:[%s8 + $0x18] sm:$0xf] %v737
  %754 = vst [vmem:[%s8 + $0x1c] sm:$0xf] %v738
  %755 = vst [vmem:[%s8 + $0x20] sm:$0xf] %v739
  %756 = vst [vmem:[%s8 + $0x24] sm:$0xf] %v740
  %757 = vst [vmem:[%s8 + $0x28] sm:$0xf] %v741
  %758 = vst [vmem:[%s8 + $0x2c] sm:$0xf] %v742
  %759 = vst [vmem:[%s8 + $0x30] sm:$0xf] %v743
  %760 = vst [vmem:[%s8 + $0x34] sm:$0xf] %v744
  %761 = vst [vmem:[%s8 + $0x38] sm:$0xf] %v745
  %762 = vst [vmem:[%s8 + $0x3c] sm:$0xf] %v746
  %v763 = vld [vmem:[%s6] sm:$0xf]
  %v764 = vld [vmem:[%s6 + $0x4] sm:$0xf]
  %v765 = vld [vmem:[%s6 + $0x8] sm:$0xf]
  %v766 = vld [vmem:[%s6 + $0xc] sm:$0xf]
  %v767 = vld [vmem:[%s6 + $0x10] sm:$0xf]
  %v768 = vld [vmem:[%s6 + $0x14] sm:$0xf]
  %v769 = vld [vmem:[%s6 + $0x18] sm:$0xf]
  %v770 = vld [vmem:[%s6 + $0x1c] sm:$0xf]
  %v771 = vld [vmem:[%s6 + $0x20] sm:$0xf]
  %v772 = vld [vmem:[%s6 + $0x24] sm:$0xf]
  %v773 = vld [vmem:[%s6 + $0x28] sm:$0xf]
  %v774 = vld [vmem:[%s6 + $0x2c] sm:$0xf]
  %v775 = vld [vmem:[%s6 + $0x30] sm:$0xf]
  %v776 = vld [vmem:[%s6 + $0x34] sm:$0xf]
  %v777 = vld [vmem:[%s6 + $0x38] sm:$0xf]
  %v778 = vld [vmem:[%s6 + $0x3c] sm:$0xf]
  %v779 = vld [vmem:[%s7] sm:$0x1]
  %v781 = vperm.slane %v779, 0
  %v799 = vunpack.c.l.b16 %v731
  %v800 = vunpack.c.l.b16 %v732
  %v801 = vunpack.c.l.b16 %v733
  %v802 = vunpack.c.l.b16 %v734
  %v803 = vunpack.c.l.b16 %v735
  %v804 = vunpack.c.l.b16 %v736
  %v805 = vunpack.c.l.b16 %v737
  %v806 = vunpack.c.l.b16 %v738
  %v807 = vunpack.c.l.b16 %v739
  %v808 = vunpack.c.l.b16 %v740
  %v809 = vunpack.c.l.b16 %v741
  %v810 = vunpack.c.l.b16 %v742
  %v811 = vunpack.c.l.b16 %v743
  %v812 = vunpack.c.l.b16 %v744
  %v813 = vunpack.c.l.b16 %v745
  %v814 = vunpack.c.l.b16 %v746
  %v815 = vpack.c.b16 %v800, %v799
  %v816 = vpack.c.b16 %v802, %v801
  %v817 = vpack.c.b16 %v804, %v803
  %v818 = vpack.c.b16 %v806, %v805
  %v819 = vpack.c.b16 %v808, %v807
  %v820 = vpack.c.b16 %v810, %v809
  %v821 = vpack.c.b16 %v812, %v811
  %v822 = vpack.c.b16 %v814, %v813
  %v847 = vunpack.c.l.b16 %v763
  %v848 = vunpack.c.l.b16 %v764
  %v849 = vunpack.c.l.b16 %v765
  %v850 = vunpack.c.l.b16 %v766
  %v851 = vunpack.c.l.b16 %v767
  %v852 = vunpack.c.l.b16 %v768
  %v853 = vunpack.c.l.b16 %v769
  %v854 = vunpack.c.l.b16 %v770
  %v855 = vunpack.c.l.b16 %v771
  %v856 = vunpack.c.l.b16 %v772
  %v857 = vunpack.c.l.b16 %v773
  %v858 = vunpack.c.l.b16 %v774
  %v859 = vunpack.c.l.b16 %v775
  %v860 = vunpack.c.l.b16 %v776
  %v861 = vunpack.c.l.b16 %v777
  %v862 = vunpack.c.l.b16 %v778
  %v863 = vpack.c.b16 %v848, %v847
  %v864 = vpack.c.b16 %v850, %v849
  %v865 = vpack.c.b16 %v852, %v851
  %v866 = vpack.c.b16 %v854, %v853
  %v867 = vpack.c.b16 %v856, %v855
  %v868 = vpack.c.b16 %v858, %v857
  %v869 = vpack.c.b16 %v860, %v859
  %v870 = vpack.c.b16 %v862, %v861
  %879 = vmatpush.bf16.msra.mxu0 %v870
  %880 = vmatpush.bf16.msra.mxu0 %v869
  %881 = vmatpush.bf16.msra.mxu0 %v868
  %882 = vmatpush.bf16.msra.mxu0 %v867
  %883 = vmatpush.bf16.msra.mxu0 %v866
  %884 = vmatpush.bf16.msra.mxu0 %v865
  %885 = vmatpush.bf16.msra.mxu0 %v864
  %886 = vmatpush.bf16.msra.mxu0 %v863
  %887 = vmatmul.bf16.gmra.mxu0 %v815
  %v888 = vpop.f32.mrf.mxu0
  %v889 = vadd.f32 %v781, %v888
  %v890 = vpop.f32.mrf.mxu0
  %v891 = vadd.f32 %v781, %v890
  %892 = vmatmul.bf16.gmra.mxu0 %v816
  %v893 = vpop.f32.mrf.mxu0
  %v894 = vadd.f32 %v781, %v893
  %v895 = vpop.f32.mrf.mxu0
  %v896 = vadd.f32 %v781, %v895
  %897 = vmatmul.bf16.gmra.mxu0 %v817
  %v898 = vpop.f32.mrf.mxu0
  %v899 = vadd.f32 %v781, %v898
  %v900 = vpop.f32.mrf.mxu0
  %v901 = vadd.f32 %v781, %v900
  %902 = vmatmul.bf16.gmra.mxu0 %v818
  %v903 = vpop.f32.mrf.mxu0
  %v904 = vadd.f32 %v781, %v903
  %v905 = vpop.f32.mrf.mxu0
  %v906 = vadd.f32 %v781, %v905
  %907 = vmatmul.bf16.gmra.mxu0 %v819
  %v908 = vpop.f32.mrf.mxu0
  %v909 = vadd.f32 %v781, %v908
  %v910 = vpop.f32.mrf.mxu0
  %v911 = vadd.f32 %v781, %v910
  %912 = vmatmul.bf16.gmra.mxu0 %v820
  %v913 = vpop.f32.mrf.mxu0
  %v914 = vadd.f32 %v781, %v913
  %v915 = vpop.f32.mrf.mxu0
  %v916 = vadd.f32 %v781, %v915
  %917 = vmatmul.bf16.gmra.mxu0 %v821
  %v918 = vpop.f32.mrf.mxu0
  %v919 = vadd.f32 %v781, %v918
  %v920 = vpop.f32.mrf.mxu0
  %v921 = vadd.f32 %v781, %v920
  %922 = vmatmul.bf16.gmra.mxu0 %v822
  %v923 = vpop.f32.mrf.mxu0
  %v924 = vadd.f32 %v781, %v923
  %v925 = vpop.f32.mrf.mxu0
  %v926 = vadd.f32 %v781, %v925
  %927 = vdwg.mxu0
  %v928 = vmax.f32 %v889, 0.0
  %v929 = vmax.f32 %v891, 0.0
  %v930 = vmax.f32 %v894, 0.0
  %v931 = vmax.f32 %v896, 0.0
  %v932 = vmax.f32 %v899, 0.0
  %v933 = vmax.f32 %v901, 0.0
  %v934 = vmax.f32 %v904, 0.0
  %v935 = vmax.f32 %v906, 0.0
  %v936 = vmax.f32 %v909, 0.0
  %v937 = vmax.f32 %v911, 0.0
  %v938 = vmax.f32 %v914, 0.0
  %v939 = vmax.f32 %v916, 0.0
  %v940 = vmax.f32 %v919, 0.0
  %v941 = vmax.f32 %v921, 0.0
  %v942 = vmax.f32 %v924, 0.0
  %v943 = vmax.f32 %v926, 0.0
  %v944 = vpack.c.bf16 %v928, %v928
  %v945 = vpack.c.bf16 %v929, %v929
  %v946 = vpack.c.bf16 %v930, %v930
  %v947 = vpack.c.bf16 %v931, %v931
  %v948 = vpack.c.bf16 %v932, %v932
  %v949 = vpack.c.bf16 %v933, %v933
  %v950 = vpack.c.bf16 %v934, %v934
  %v951 = vpack.c.bf16 %v935, %v935
  %v952 = vpack.c.bf16 %v936, %v936
  %v953 = vpack.c.bf16 %v937, %v937
  %v954 = vpack.c.bf16 %v938, %v938
  %v955 = vpack.c.bf16 %v939, %v939
  %v956 = vpack.c.bf16 %v940, %v940
  %v957 = vpack.c.bf16 %v941, %v941
  %v958 = vpack.c.bf16 %v942, %v942
  %v959 = vpack.c.bf16 %v943, %v943
  %960 = vst [vmem:[%s9] sm:$0xf] %v944
  %961 = vst [vmem:[%s9 + $0x4] sm:$0xf] %v945
  %962 = vst [vmem:[%s9 + $0x8] sm:$0xf] %v946
  %963 = vst [vmem:[%s9 + $0xc] sm:$0xf] %v947
  %964 = vst [vmem:[%s9 + $0x10] sm:$0xf] %v948
  %965 = vst [vmem:[%s9 + $0x14] sm:$0xf] %v949
  %966 = vst [vmem:[%s9 + $0x18] sm:$0xf] %v950
  %967 = vst [vmem:[%s9 + $0x1c] sm:$0xf] %v951
  %968 = vst [vmem:[%s9 + $0x20] sm:$0xf] %v952
  %969 = vst [vmem:[%s9 + $0x24] sm:$0xf] %v953
  %970 = vst [vmem:[%s9 + $0x28] sm:$0xf] %v954
  %971 = vst [vmem:[%s9 + $0x2c] sm:$0xf] %v955
  %972 = vst [vmem:[%s9 + $0x30] sm:$0xf] %v956
  %973 = vst [vmem:[%s9 + $0x34] sm:$0xf] %v957
  %974 = vst [vmem:[%s9 + $0x38] sm:$0xf] %v958
  %975 = vst [vmem:[%s9 + $0x3c] sm:$0xf] %v959
  // Predicated region
  $region34: #{forward.9} parent=0 // pred_check
    _
  $region35: #{forward.9} parent=0 // pred_check_branch
    %977 = sbr.rel (0) target = $region37
  $region36: #{forward.9} parent=0 // pred_region
    _
  $region37: #{forward.9} parent=0 // pred_fallthru
    _
  // Predicated region
  $region38: #{forward.9} parent=0 // pred_check
    _
  $region39: #{forward.9} parent=0 // pred_check_branch
    %979 = sbr.rel (0) target = $region41
  $region40: #{forward.9} parent=0 // pred_region
    _
  $region41: #{forward.9} parent=0 // pred_fallthru
    _
  // Predicated region
  $region42: #{forward.9} parent=0 // pred_check
    _
  $region43: #{forward.9} parent=0 // pred_check_branch
    %981 = sbr.rel (0) target = $region45
  $region44: #{forward.9} parent=0 // pred_region
    _
  $region45: #{forward.9} parent=0 // pred_fallthru
    _
  // Predicated region
  $region46: #{forward.9} parent=0 // pred_check
    _
  $region47: #{forward.9} parent=0 // pred_check_branch
    %983 = sbr.rel (0) target = $region49
  $region48: #{forward.9} parent=0 // pred_region
    _
  $region49: #{forward.9} parent=0 // pred_fallthru
    _

// kernel: forward.10
$region0: #{forward.10}
  #allocation0 [shape = 'u32[]', space=smem, size = 0x4, offset = 0x4, fixed_abs, tag = 'smem constant byte address 0x4 - core index']
  #allocation1 [shape = 'u32[72,128]{1,0:T(1,128)}', space=vmem, size = 0x9000, scoped, tag = 'internal scratch']
  %s0 = inlined_call_operand.vmem [shape: bf16[32,384], index: 0, kind: input, shape index: {}]
  %s1 = inlined_call_operand.vmem [shape: bf16[384,128], index: 1, kind: input, shape index: {}]
  %s2 = inlined_call_operand.vmem [shape: f32[1,128], index: 2, kind: input, shape index: {}]
  %s3 = inlined_call_operand.vmem [shape: bf16[256,128], index: 3, kind: input, shape index: {}]
  %s4 = inlined_call_operand.vmem [shape: f32[1,128], index: 4, kind: input, shape index: {}]
  %s5 = inlined_call_operand.vmem [shape: bf16[32,128], index: 5, kind: input, shape index: {}]
  %s6 = inlined_call_operand.vmem [shape: bf16[128,128], index: 6, kind: input, shape index: {}]
  %s7 = inlined_call_operand.vmem [shape: f32[1,128], index: 7, kind: input, shape index: {}]
  %s8 = inlined_call_operand.vmem [shape: bf16[32,128], index: 8, kind: output, shape index: {0}]
  %s9 = inlined_call_operand.vmem [shape: bf16[32,128], index: 9, kind: output, shape index: {1}]
  %10 = xla_tuple %s8, %s9
  %s11 = sld [smem:[#allocation0]]
  $region50: #{forward.10} parent=0
    _
  %s13 = ssub.s32 1, %s11
  %s14 = scalar_select 0, %s13, %s11
  // Predicated region
  $region2: #{forward.10} parent=0 // pred_check
    _
  $region3: #{forward.10} parent=0 // pred_check_branch
    %16 = sbr.rel (0) target = $region5
  $region4: #{forward.10} parent=0 // pred_region
    _
  $region5: #{forward.10} parent=0 // pred_fallthru
    _
  // Predicated region
  $region6: #{forward.10} parent=0 // pred_check
    _
  $region7: #{forward.10} parent=0 // pred_check_branch
    %18 = sbr.rel (0) target = $region9
  $region8: #{forward.10} parent=0 // pred_region
    _
  $region9: #{forward.10} parent=0 // pred_fallthru
    _
  // Predicated region
  $region10: #{forward.10} parent=0 // pred_check
    _
  $region11: #{forward.10} parent=0 // pred_check_branch
    %20 = sbr.rel (0) target = $region13
  $region12: #{forward.10} parent=0 // pred_region
    _
  $region13: #{forward.10} parent=0 // pred_fallthru
    _
  // Predicated region
  $region14: #{forward.10} parent=0 // pred_check
    _
  $region15: #{forward.10} parent=0 // pred_check_branch
    %22 = sbr.rel (0) target = $region17
  $region16: #{forward.10} parent=0 // pred_region
    _
  $region17: #{forward.10} parent=0 // pred_fallthru
    _
  // Predicated region
  $region18: #{forward.10} parent=0 // pred_check
    _
  $region19: #{forward.10} parent=0 // pred_check_branch
    %24 = sbr.rel (0) target = $region21
  $region20: #{forward.10} parent=0 // pred_region
    _
  $region21: #{forward.10} parent=0 // pred_fallthru
    _
  // Predicated region
  $region22: #{forward.10} parent=0 // pred_check
    _
  $region23: #{forward.10} parent=0 // pred_check_branch
    %26 = sbr.rel (0) target = $region25
  $region24: #{forward.10} parent=0 // pred_region
    _
  $region25: #{forward.10} parent=0 // pred_fallthru
    _
  // Predicated region
  $region26: #{forward.10} parent=0 // pred_check
    _
  $region27: #{forward.10} parent=0 // pred_check_branch
    %28 = sbr.rel (0) target = $region29
  $region28: #{forward.10} parent=0 // pred_region
    _
  $region29: #{forward.10} parent=0 // pred_fallthru
    _
  // Predicated region
  $region30: #{forward.10} parent=0 // pred_check
    _
  $region31: #{forward.10} parent=0 // pred_check_branch
    %30 = sbr.rel (0) target = $region33
  $region32: #{forward.10} parent=0 // pred_region
    _
  $region33: #{forward.10} parent=0 // pred_fallthru
    _
  %v31 = vld [vmem:[%s0] sm:$0xff]
  %v32 = vld [vmem:[%s0 + $0x8] sm:$0xf]
  %v33 = vld [vmem:[%s0 + $0xc] sm:$0xff]
  %v34 = vld [vmem:[%s0 + $0x14] sm:$0xf]
  %v35 = vld [vmem:[%s0 + $0x18] sm:$0xff]
  %v36 = vld [vmem:[%s0 + $0x20] sm:$0xf]
  %v37 = vld [vmem:[%s0 + $0x24] sm:$0xff]
  %v38 = vld [vmem:[%s0 + $0x2c] sm:$0xf]
  %v39 = vld [vmem:[%s1] sm:$0xf]
  %v40 = vld [vmem:[%s1 + $0x4] sm:$0xf]
  %v41 = vld [vmem:[%s1 + $0x8] sm:$0xf]
  %v42 = vld [vmem:[%s1 + $0xc] sm:$0xf]
  %v43 = vld [vmem:[%s1 + $0x10] sm:$0xf]
  %v44 = vld [vmem:[%s1 + $0x14] sm:$0xf]
  %v45 = vld [vmem:[%s1 + $0x18] sm:$0xf]
  %v46 = vld [vmem:[%s1 + $0x1c] sm:$0xf]
  %v47 = vld [vmem:[%s1 + $0x20] sm:$0xf]
  %v48 = vld [vmem:[%s1 + $0x24] sm:$0xf]
  %v49 = vld [vmem:[%s1 + $0x28] sm:$0xf]
  %v50 = vld [vmem:[%s1 + $0x2c] sm:$0xf]
  %v51 = vld [vmem:[%s1 + $0x30] sm:$0xf]
  %v52 = vld [vmem:[%s1 + $0x34] sm:$0xf]
  %v53 = vld [vmem:[%s1 + $0x38] sm:$0xf]
  %v54 = vld [vmem:[%s1 + $0x3c] sm:$0xf]
  %v55 = vld [vmem:[%s1 + $0x40] sm:$0xf]
  %v56 = vld [vmem:[%s1 + $0x44] sm:$0xf]
  %v57 = vld [vmem:[%s1 + $0x48] sm:$0xf]
  %v58 = vld [vmem:[%s1 + $0x4c] sm:$0xf]
  %v59 = vld [vmem:[%s1 + $0x50] sm:$0xf]
  %v60 = vld [vmem:[%s1 + $0x54] sm:$0xf]
  %v61 = vld [vmem:[%s1 + $0x58] sm:$0xf]
  %v62 = vld [vmem:[%s1 + $0x5c] sm:$0xf]
  %v63 = vld [vmem:[%s1 + $0x60] sm:$0xf]
  %v64 = vld [vmem:[%s1 + $0x64] sm:$0xf]
  %v65 = vld [vmem:[%s1 + $0x68] sm:$0xf]
  %v66 = vld [vmem:[%s1 + $0x6c] sm:$0xf]
  %v67 = vld [vmem:[%s1 + $0x70] sm:$0xf]
  %v68 = vld [vmem:[%s1 + $0x74] sm:$0xf]
  %v69 = vld [vmem:[%s1 + $0x78] sm:$0xf]
  %v70 = vld [vmem:[%s1 + $0x7c] sm:$0xf]
  %v71 = vld [vmem:[%s1 + $0x80] sm:$0xf]
  %v72 = vld [vmem:[%s1 + $0x84] sm:$0xf]
  %v73 = vld [vmem:[%s1 + $0x88] sm:$0xf]
  %v74 = vld [vmem:[%s1 + $0x8c] sm:$0xf]
  %v75 = vld [vmem:[%s1 + $0x90] sm:$0xf]
  %v76 = vld [vmem:[%s1 + $0x94] sm:$0xf]
  %v77 = vld [vmem:[%s1 + $0x98] sm:$0xf]
  %v78 = vld [vmem:[%s1 + $0x9c] sm:$0xf]
  %v79 = vld [vmem:[%s1 + $0xa0] sm:$0xf]
  %v80 = vld [vmem:[%s1 + $0xa4] sm:$0xf]
  %v81 = vld [vmem:[%s1 + $0xa8] sm:$0xf]
  %v82 = vld [vmem:[%s1 + $0xac] sm:$0xf]
  %v83 = vld [vmem:[%s1 + $0xb0] sm:$0xf]
  %v84 = vld [vmem:[%s1 + $0xb4] sm:$0xf]
  %v85 = vld [vmem:[%s1 + $0xb8] sm:$0xf]
  %v86 = vld [vmem:[%s1 + $0xbc] sm:$0xf]
  %v87 = vld [vmem:[%s2] sm:$0x1]
  %v89 = vperm.slane %v87, 0
  %v99 = vunpack.c.l.b16 %v31
  %v100 = vunpack.c.h.b16 %v31
  %v101 = vunpack.c.l.b16 %v32
  %v102 = vunpack.c.l.b16 %v33
  %v103 = vunpack.c.h.b16 %v33
  %v104 = vunpack.c.l.b16 %v34
  %v105 = vunpack.c.l.b16 %v35
  %v106 = vunpack.c.h.b16 %v35
  %v107 = vunpack.c.l.b16 %v36
  %v108 = vunpack.c.l.b16 %v37
  %v109 = vunpack.c.h.b16 %v37
  %v110 = vunpack.c.l.b16 %v38
  %v111 = vpack.c.b16 %v102, %v99
  %v112 = vpack.c.b16 %v103, %v100
  %v113 = vpack.c.b16 %v104, %v101
  %v114 = vpack.c.b16 %v108, %v105
  %v115 = vpack.c.b16 %v109, %v106
  %v116 = vpack.c.b16 %v110, %v107
  %v171 = vunpack.c.l.b16 %v39
  %v172 = vunpack.c.l.b16 %v40
  %v173 = vunpack.c.l.b16 %v41
  %v174 = vunpack.c.l.b16 %v42
  %v175 = vunpack.c.l.b16 %v43
  %v176 = vunpack.c.l.b16 %v44
  %v177 = vunpack.c.l.b16 %v45
  %v178 = vunpack.c.l.b16 %v46
  %v179 = vunpack.c.l.b16 %v47
  %v180 = vunpack.c.l.b16 %v48
  %v181 = vunpack.c.l.b16 %v49
  %v182 = vunpack.c.l.b16 %v50
  %v183 = vunpack.c.l.b16 %v51
  %v184 = vunpack.c.l.b16 %v52
  %v185 = vunpack.c.l.b16 %v53
  %v186 = vunpack.c.l.b16 %v54
  %v187 = vunpack.c.l.b16 %v55
  %v188 = vunpack.c.l.b16 %v56
  %v189 = vunpack.c.l.b16 %v57
  %v190 = vunpack.c.l.b16 %v58
  %v191 = vunpack.c.l.b16 %v59
  %v192 = vunpack.c.l.b16 %v60
  %v193 = vunpack.c.l.b16 %v61
  %v194 = vunpack.c.l.b16 %v62
  %v195 = vunpack.c.l.b16 %v63
  %v196 = vunpack.c.l.b16 %v64
  %v197 = vunpack.c.l.b16 %v65
  %v198 = vunpack.c.l.b16 %v66
  %v199 = vunpack.c.l.b16 %v67
  %v200 = vunpack.c.l.b16 %v68
  %v201 = vunpack.c.l.b16 %v69
  %v202 = vunpack.c.l.b16 %v70
  %v203 = vunpack.c.l.b16 %v71
  %v204 = vunpack.c.l.b16 %v72
  %v205 = vunpack.c.l.b16 %v73
  %v206 = vunpack.c.l.b16 %v74
  %v207 = vunpack.c.l.b16 %v75
  %v208 = vunpack.c.l.b16 %v76
  %v209 = vunpack.c.l.b16 %v77
  %v210 = vunpack.c.l.b16 %v78
  %v211 = vunpack.c.l.b16 %v79
  %v212 = vunpack.c.l.b16 %v80
  %v213 = vunpack.c.l.b16 %v81
  %v214 = vunpack.c.l.b16 %v82
  %v215 = vunpack.c.l.b16 %v83
  %v216 = vunpack.c.l.b16 %v84
  %v217 = vunpack.c.l.b16 %v85
  %v218 = vunpack.c.l.b16 %v86
  %v219 = vpack.c.b16 %v172, %v171
  %v220 = vpack.c.b16 %v174, %v173
  %v221 = vpack.c.b16 %v176, %v175
  %v222 = vpack.c.b16 %v178, %v177
  %v223 = vpack.c.b16 %v180, %v179
  %v224 = vpack.c.b16 %v182, %v181
  %v225 = vpack.c.b16 %v184, %v183
  %v226 = vpack.c.b16 %v186, %v185
  %v227 = vpack.c.b16 %v188, %v187
  %v228 = vpack.c.b16 %v190, %v189
  %v229 = vpack.c.b16 %v192, %v191
  %v230 = vpack.c.b16 %v194, %v193
  %v231 = vpack.c.b16 %v196, %v195
  %v232 = vpack.c.b16 %v198, %v197
  %v233 = vpack.c.b16 %v200, %v199
  %v234 = vpack.c.b16 %v202, %v201
  %v235 = vpack.c.b16 %v204, %v203
  %v236 = vpack.c.b16 %v206, %v205
  %v237 = vpack.c.b16 %v208, %v207
  %v238 = vpack.c.b16 %v210, %v209
  %v239 = vpack.c.b16 %v212, %v211
  %v240 = vpack.c.b16 %v214, %v213
  %v241 = vpack.c.b16 %v216, %v215
  %v242 = vpack.c.b16 %v218, %v217
  %267 = vmatpush.bf16.msra.mxu0 %v226
  %268 = vmatpush.bf16.msra.mxu0 %v225
  %269 = vmatpush.bf16.msra.mxu0 %v224
  %270 = vmatpush.bf16.msra.mxu0 %v223
  %271 = vmatpush.bf16.msra.mxu0 %v222
  %272 = vmatpush.bf16.msra.mxu0 %v221
  %273 = vmatpush.bf16.msra.mxu0 %v220
  %274 = vmatpush.bf16.msra.mxu0 %v219
  %275 = vmatmul.bf16.gmra.mxu0 %v111
  %v276 = vpop.f32.mrf.mxu0
  %v277 = vadd.f32 %v89, %v276
  %v278 = vpop.f32.mrf.mxu0
  %v279 = vadd.f32 %v89, %v278
  %280 = vmatmul.bf16.gmra.mxu0 %v114
  %v281 = vpop.f32.mrf.mxu0
  %v282 = vadd.f32 %v89, %v281
  %v283 = vpop.f32.mrf.mxu0
  %v284 = vadd.f32 %v89, %v283
  %285 = vdwg.mxu0
  %286 = vmatpush.bf16.msra.mxu0 %v234
  %287 = vmatpush.bf16.msra.mxu0 %v233
  %288 = vmatpush.bf16.msra.mxu0 %v232
  %289 = vmatpush.bf16.msra.mxu0 %v231
  %290 = vmatpush.bf16.msra.mxu0 %v230
  %291 = vmatpush.bf16.msra.mxu0 %v229
  %292 = vmatpush.bf16.msra.mxu0 %v228
  %293 = vmatpush.bf16.msra.mxu0 %v227
  %294 = vmatmul.bf16.gmra.mxu0 %v112
  %v295 = vpop.f32.mrf.mxu0
  %v296 = vadd.f32 %v277, %v295
  %v297 = vpop.f32.mrf.mxu0
  %v298 = vadd.f32 %v279, %v297
  %299 = vmatmul.bf16.gmra.mxu0 %v115
  %v300 = vpop.f32.mrf.mxu0
  %v301 = vadd.f32 %v282, %v300
  %v302 = vpop.f32.mrf.mxu0
  %v303 = vadd.f32 %v284, %v302
  %304 = vdwg.mxu0
  %305 = vmatpush.bf16.msra.mxu0 %v242
  %306 = vmatpush.bf16.msra.mxu0 %v241
  %307 = vmatpush.bf16.msra.mxu0 %v240
  %308 = vmatpush.bf16.msra.mxu0 %v239
  %309 = vmatpush.bf16.msra.mxu0 %v238
  %310 = vmatpush.bf16.msra.mxu0 %v237
  %311 = vmatpush.bf16.msra.mxu0 %v236
  %312 = vmatpush.bf16.msra.mxu0 %v235
  %313 = vmatmul.bf16.gmra.mxu0 %v113
  %v314 = vpop.f32.mrf.mxu0
  %v315 = vadd.f32 %v296, %v314
  %v316 = vpop.f32.mrf.mxu0
  %v317 = vadd.f32 %v298, %v316
  %318 = vmatmul.bf16.gmra.mxu0 %v116
  %v319 = vpop.f32.mrf.mxu0
  %v320 = vadd.f32 %v301, %v319
  %v321 = vpop.f32.mrf.mxu0
  %v322 = vadd.f32 %v303, %v321
  %323 = vdwg.mxu0
  %v324 = vmax.f32 %v315, 0.0
  %v325 = vmax.f32 %v317, 0.0
  %v326 = vmax.f32 %v320, 0.0
  %v327 = vmax.f32 %v322, 0.0
  %v328 = vpack.c.bf16 %v324, %v324
  %v329 = vpack.c.bf16 %v325, %v325
  %v330 = vpack.c.bf16 %v326, %v326
  %v331 = vpack.c.bf16 %v327, %v327
  %v332 = vld [vmem:[%s5] sm:$0xf]
  %v333 = vld [vmem:[%s5 + $0x4] sm:$0xf]
  %v334 = vld [vmem:[%s5 + $0x8] sm:$0xf]
  %v335 = vld [vmem:[%s5 + $0xc] sm:$0xf]
  %v340 = vunpack.c.l.b16 %v328
  %v341 = vunpack.c.l.b16 %v329
  %v342 = vunpack.c.l.b16 %v330
  %v343 = vunpack.c.l.b16 %v331
  %v344 = vpack.c.b16 %v341, %v340
  %v345 = vpack.c.b16 %v343, %v342
  %v352 = vunpack.c.l.b16 %v332
  %v353 = vunpack.c.l.b16 %v333
  %v354 = vunpack.c.l.b16 %v334
  %v355 = vunpack.c.l.b16 %v335
  %v356 = vpack.c.b16 %v353, %v352
  %v357 = vpack.c.b16 %v355, %v354
  %v360 = vld [vmem:[%s3] sm:$0xf]
  %v361 = vld [vmem:[%s3 + $0x4] sm:$0xf]
  %v362 = vld [vmem:[%s3 + $0x8] sm:$0xf]
  %v363 = vld [vmem:[%s3 + $0xc] sm:$0xf]
  %v364 = vld [vmem:[%s3 + $0x10] sm:$0xf]
  %v365 = vld [vmem:[%s3 + $0x14] sm:$0xf]
  %v366 = vld [vmem:[%s3 + $0x18] sm:$0xf]
  %v367 = vld [vmem:[%s3 + $0x1c] sm:$0xf]
  %v368 = vld [vmem:[%s3 + $0x20] sm:$0xf]
  %v369 = vld [vmem:[%s3 + $0x24] sm:$0xf]
  %v370 = vld [vmem:[%s3 + $0x28] sm:$0xf]
  %v371 = vld [vmem:[%s3 + $0x2c] sm:$0xf]
  %v372 = vld [vmem:[%s3 + $0x30] sm:$0xf]
  %v373 = vld [vmem:[%s3 + $0x34] sm:$0xf]
  %v374 = vld [vmem:[%s3 + $0x38] sm:$0xf]
  %v375 = vld [vmem:[%s3 + $0x3c] sm:$0xf]
  %v376 = vld [vmem:[%s3 + $0x40] sm:$0xf]
  %v377 = vld [vmem:[%s3 + $0x44] sm:$0xf]
  %v378 = vld [vmem:[%s3 + $0x48] sm:$0xf]
  %v379 = vld [vmem:[%s3 + $0x4c] sm:$0xf]
  %v380 = vld [vmem:[%s3 + $0x50] sm:$0xf]
  %v381 = vld [vmem:[%s3 + $0x54] sm:$0xf]
  %v382 = vld [vmem:[%s3 + $0x58] sm:$0xf]
  %v383 = vld [vmem:[%s3 + $0x5c] sm:$0xf]
  %v384 = vld [vmem:[%s3 + $0x60] sm:$0xf]
  %v385 = vld [vmem:[%s3 + $0x64] sm:$0xf]
  %v386 = vld [vmem:[%s3 + $0x68] sm:$0xf]
  %v387 = vld [vmem:[%s3 + $0x6c] sm:$0xf]
  %v388 = vld [vmem:[%s3 + $0x70] sm:$0xf]
  %v389 = vld [vmem:[%s3 + $0x74] sm:$0xf]
  %v390 = vld [vmem:[%s3 + $0x78] sm:$0xf]
  %v391 = vld [vmem:[%s3 + $0x7c] sm:$0xf]
  %v392 = vld [vmem:[%s4] sm:$0x1]
  %v394 = vperm.slane %v392, 0
  %v428 = vunpack.c.l.b16 %v360
  %v429 = vunpack.c.l.b16 %v361
  %v430 = vunpack.c.l.b16 %v362
  %v431 = vunpack.c.l.b16 %v363
  %v432 = vunpack.c.l.b16 %v364
  %v433 = vunpack.c.l.b16 %v365
  %v434 = vunpack.c.l.b16 %v366
  %v435 = vunpack.c.l.b16 %v367
  %v436 = vunpack.c.l.b16 %v368
  %v437 = vunpack.c.l.b16 %v369
  %v438 = vunpack.c.l.b16 %v370
  %v439 = vunpack.c.l.b16 %v371
  %v440 = vunpack.c.l.b16 %v372
  %v441 = vunpack.c.l.b16 %v373
  %v442 = vunpack.c.l.b16 %v374
  %v443 = vunpack.c.l.b16 %v375
  %v444 = vunpack.c.l.b16 %v376
  %v445 = vunpack.c.l.b16 %v377
  %v446 = vunpack.c.l.b16 %v378
  %v447 = vunpack.c.l.b16 %v379
  %v448 = vunpack.c.l.b16 %v380
  %v449 = vunpack.c.l.b16 %v381
  %v450 = vunpack.c.l.b16 %v382
  %v451 = vunpack.c.l.b16 %v383
  %v452 = vunpack.c.l.b16 %v384
  %v453 = vunpack.c.l.b16 %v385
  %v454 = vunpack.c.l.b16 %v386
  %v455 = vunpack.c.l.b16 %v387
  %v456 = vunpack.c.l.b16 %v388
  %v457 = vunpack.c.l.b16 %v389
  %v458 = vunpack.c.l.b16 %v390
  %v459 = vunpack.c.l.b16 %v391
  %v460 = vpack.c.b16 %v429, %v428
  %v461 = vpack.c.b16 %v431, %v430
  %v462 = vpack.c.b16 %v433, %v432
  %v463 = vpack.c.b16 %v435, %v434
  %v464 = vpack.c.b16 %v437, %v436
  %v465 = vpack.c.b16 %v439, %v438
  %v466 = vpack.c.b16 %v441, %v440
  %v467 = vpack.c.b16 %v443, %v442
  %v468 = vpack.c.b16 %v445, %v444
  %v469 = vpack.c.b16 %v447, %v446
  %v470 = vpack.c.b16 %v449, %v448
  %v471 = vpack.c.b16 %v451, %v450
  %v472 = vpack.c.b16 %v453, %v452
  %v473 = vpack.c.b16 %v455, %v454
  %v474 = vpack.c.b16 %v457, %v456
  %v475 = vpack.c.b16 %v459, %v458
  %492 = vmatpush.bf16.msra.mxu0 %v467
  %493 = vmatpush.bf16.msra.mxu0 %v466
  %494 = vmatpush.bf16.msra.mxu0 %v465
  %495 = vmatpush.bf16.msra.mxu0 %v464
  %496 = vmatpush.bf16.msra.mxu0 %v463
  %497 = vmatpush.bf16.msra.mxu0 %v462
  %498 = vmatpush.bf16.msra.mxu0 %v461
  %499 = vmatpush.bf16.msra.mxu0 %v460
  %500 = vmatmul.bf16.gmra.mxu0 %v344
  %v501 = vpop.f32.mrf.mxu0
  %v502 = vadd.f32 %v394, %v501
  %v503 = vpop.f32.mrf.mxu0
  %v504 = vadd.f32 %v394, %v503
  %505 = vmatmul.bf16.gmra.mxu0 %v345
  %v506 = vpop.f32.mrf.mxu0
  %v507 = vadd.f32 %v394, %v506
  %v508 = vpop.f32.mrf.mxu0
  %v509 = vadd.f32 %v394, %v508
  %510 = vdwg.mxu0
  %511 = vmatpush.bf16.msra.mxu0 %v475
  %512 = vmatpush.bf16.msra.mxu0 %v474
  %513 = vmatpush.bf16.msra.mxu0 %v473
  %514 = vmatpush.bf16.msra.mxu0 %v472
  %515 = vmatpush.bf16.msra.mxu0 %v471
  %516 = vmatpush.bf16.msra.mxu0 %v470
  %517 = vmatpush.bf16.msra.mxu0 %v469
  %518 = vmatpush.bf16.msra.mxu0 %v468
  %519 = vmatmul.bf16.gmra.mxu0 %v356
  %v520 = vpop.f32.mrf.mxu0
  %v521 = vadd.f32 %v502, %v520
  %v522 = vpop.f32.mrf.mxu0
  %v523 = vadd.f32 %v504, %v522
  %524 = vmatmul.bf16.gmra.mxu0 %v357
  %v525 = vpop.f32.mrf.mxu0
  %v526 = vadd.f32 %v507, %v525
  %v527 = vpop.f32.mrf.mxu0
  %v528 = vadd.f32 %v509, %v527
  %529 = vdwg.mxu0
  %v530 = vpack.c.bf16 %v521, %v521
  %v531 = vpack.c.bf16 %v523, %v523
  %v532 = vpack.c.bf16 %v526, %v526
  %v533 = vpack.c.bf16 %v528, %v528
  %534 = vst [vmem:[%s8] sm:$0xf] %v530
  %535 = vst [vmem:[%s8 + $0x4] sm:$0xf] %v531
  %536 = vst [vmem:[%s8 + $0x8] sm:$0xf] %v532
  %537 = vst [vmem:[%s8 + $0xc] sm:$0xf] %v533
  %v538 = vld [vmem:[%s6] sm:$0xf]
  %v539 = vld [vmem:[%s6 + $0x4] sm:$0xf]
  %v540 = vld [vmem:[%s6 + $0x8] sm:$0xf]
  %v541 = vld [vmem:[%s6 + $0xc] sm:$0xf]
  %v542 = vld [vmem:[%s6 + $0x10] sm:$0xf]
  %v543 = vld [vmem:[%s6 + $0x14] sm:$0xf]
  %v544 = vld [vmem:[%s6 + $0x18] sm:$0xf]
  %v545 = vld [vmem:[%s6 + $0x1c] sm:$0xf]
  %v546 = vld [vmem:[%s6 + $0x20] sm:$0xf]
  %v547 = vld [vmem:[%s6 + $0x24] sm:$0xf]
  %v548 = vld [vmem:[%s6 + $0x28] sm:$0xf]
  %v549 = vld [vmem:[%s6 + $0x2c] sm:$0xf]
  %v550 = vld [vmem:[%s6 + $0x30] sm:$0xf]
  %v551 = vld [vmem:[%s6 + $0x34] sm:$0xf]
  %v552 = vld [vmem:[%s6 + $0x38] sm:$0xf]
  %v553 = vld [vmem:[%s6 + $0x3c] sm:$0xf]
  %v554 = vld [vmem:[%s7] sm:$0x1]
  %v556 = vperm.slane %v554, 0
  %v562 = vunpack.c.l.b16 %v530
  %v563 = vunpack.c.l.b16 %v531
  %v564 = vunpack.c.l.b16 %v532
  %v565 = vunpack.c.l.b16 %v533
  %v566 = vpack.c.b16 %v563, %v562
  %v567 = vpack.c.b16 %v565, %v564
  %v586 = vunpack.c.l.b16 %v538
  %v587 = vunpack.c.l.b16 %v539
  %v588 = vunpack.c.l.b16 %v540
  %v589 = vunpack.c.l.b16 %v541
  %v590 = vunpack.c.l.b16 %v542
  %v591 = vunpack.c.l.b16 %v543
  %v592 = vunpack.c.l.b16 %v544
  %v593 = vunpack.c.l.b16 %v545
  %v594 = vunpack.c.l.b16 %v546
  %v595 = vunpack.c.l.b16 %v547
  %v596 = vunpack.c.l.b16 %v548
  %v597 = vunpack.c.l.b16 %v549
  %v598 = vunpack.c.l.b16 %v550
  %v599 = vunpack.c.l.b16 %v551
  %v600 = vunpack.c.l.b16 %v552
  %v601 = vunpack.c.l.b16 %v553
  %v602 = vpack.c.b16 %v587, %v586
  %v603 = vpack.c.b16 %v589, %v588
  %v604 = vpack.c.b16 %v591, %v590
  %v605 = vpack.c.b16 %v593, %v592
  %v606 = vpack.c.b16 %v595, %v594
  %v607 = vpack.c.b16 %v597, %v596
  %v608 = vpack.c.b16 %v599, %v598
  %v609 = vpack.c.b16 %v601, %v600
  %618 = vmatpush.bf16.msra.mxu0 %v609
  %619 = vmatpush.bf16.msra.mxu0 %v608
  %620 = vmatpush.bf16.msra.mxu0 %v607
  %621 = vmatpush.bf16.msra.mxu0 %v606
  %622 = vmatpush.bf16.msra.mxu0 %v605
  %623 = vmatpush.bf16.msra.mxu0 %v604
  %624 = vmatpush.bf16.msra.mxu0 %v603
  %625 = vmatpush.bf16.msra.mxu0 %v602
  %626 = vmatmul.bf16.gmra.mxu0 %v566
  %v627 = vpop.f32.mrf.mxu0
  %v628 = vadd.f32 %v556, %v627
  %v629 = vpop.f32.mrf.mxu0
  %v630 = vadd.f32 %v556, %v629
  %631 = vmatmul.bf16.gmra.mxu0 %v567
  %v632 = vpop.f32.mrf.mxu0
  %v633 = vadd.f32 %v556, %v632
  %v634 = vpop.f32.mrf.mxu0
  %v635 = vadd.f32 %v556, %v634
  %636 = vdwg.mxu0
  %v637 = vmax.f32 %v628, 0.0
  %v638 = vmax.f32 %v630, 0.0
  %v639 = vmax.f32 %v633, 0.0
  %v640 = vmax.f32 %v635, 0.0
  %v641 = vpack.c.bf16 %v637, %v637
  %v642 = vpack.c.bf16 %v638, %v638
  %v643 = vpack.c.bf16 %v639, %v639
  %v644 = vpack.c.bf16 %v640, %v640
  %645 = vst [vmem:[%s9] sm:$0xf] %v641
  %646 = vst [vmem:[%s9 + $0x4] sm:$0xf] %v642
  %647 = vst [vmem:[%s9 + $0x8] sm:$0xf] %v643
  %648 = vst [vmem:[%s9 + $0xc] sm:$0xf] %v644
  // Predicated region
  $region34: #{forward.10} parent=0 // pred_check
    _
  $region35: #{forward.10} parent=0 // pred_check_branch
    %650 = sbr.rel (0) target = $region37
  $region36: #{forward.10} parent=0 // pred_region
    _
  $region37: #{forward.10} parent=0 // pred_fallthru
    _
  // Predicated region
  $region38: #{forward.10} parent=0 // pred_check
    _
  $region39: #{forward.10} parent=0 // pred_check_branch
    %652 = sbr.rel (0) target = $region41
  $region40: #{forward.10} parent=0 // pred_region
    _
  $region41: #{forward.10} parent=0 // pred_fallthru
    _
  // Predicated region
  $region42: #{forward.10} parent=0 // pred_check
    _
  $region43: #{forward.10} parent=0 // pred_check_branch
    %654 = sbr.rel (0) target = $region45
  $region44: #{forward.10} parent=0 // pred_region
    _
  $region45: #{forward.10} parent=0 // pred_fallthru
    _
  // Predicated region
  $region46: #{forward.10} parent=0 // pred_check
    _
  $region47: #{forward.10} parent=0 // pred_check_branch
    %656 = sbr.rel (0) target = $region49
  $region48: #{forward.10} parent=0 // pred_region
    _
  $region49: #{forward.10} parent=0 // pred_fallthru
    _

// kernel: forward.11
$region0: #{forward.11}
  #allocation0 [shape = 'u32[]', space=smem, size = 0x4, offset = 0x4, fixed_abs, tag = 'smem constant byte address 0x4 - core index']
  #allocation1 [shape = 'u32[72,128]{1,0:T(1,128)}', space=vmem, size = 0x9000, scoped, tag = 'internal scratch']
  %s0 = inlined_call_operand.vmem [shape: bf16[8,640], index: 0, kind: input, shape index: {}]
  %s1 = inlined_call_operand.vmem [shape: bf16[640,128], index: 1, kind: input, shape index: {}]
  %s2 = inlined_call_operand.vmem [shape: f32[1,128], index: 2, kind: input, shape index: {}]
  %s3 = inlined_call_operand.vmem [shape: bf16[256,256], index: 3, kind: input, shape index: {}]
  %s4 = inlined_call_operand.vmem [shape: f32[1,256], index: 4, kind: input, shape index: {}]
  %s5 = inlined_call_operand.vmem [shape: bf16[8,128], index: 5, kind: input, shape index: {}]
  %s6 = inlined_call_operand.vmem [shape: bf16[8,256], index: 6, kind: output, shape index: {0}]
  %s7 = inlined_call_operand.hbm [shape: f32[2,256], index: 7, kind: output, shape index: {1}]
  %8 = xla_tuple %s6, %s7
  %s9 = sld [smem:[#allocation0]]
  $region42: #{forward.11} parent=0
    _
  %s11 = ssub.s32 1, %s9
  %s12 = scalar_select 0, %s11, %s9
  $region1: #{forward.11} parent=0
    #allocation2 [shape = 'u8[2048]{0}', space=vmem, size = 0x800, scoped, tag = 'output window, operand 1, single buffered']
    #allocation3 [shape = 's32[1]{0}', space=sflag, size = 0x4, scoped, tag = 'scoped memory for forward.11']
    %13 = vsyncpa [#allocation3], 0
    // Predicated region
    $region2: #{forward.11} parent=1 // pred_check
      _
    $region3: #{forward.11} parent=1 // pred_check_branch
      %15 = sbr.rel (0) target = $region5
    $region4: #{forward.11} parent=1 // pred_region
      _
    $region5: #{forward.11} parent=1 // pred_fallthru
      _
    // Predicated region
    $region6: #{forward.11} parent=1 // pred_check
      _
    $region7: #{forward.11} parent=1 // pred_check_branch
      %17 = sbr.rel (0) target = $region9
    $region8: #{forward.11} parent=1 // pred_region
      _
    $region9: #{forward.11} parent=1 // pred_fallthru
      _
    // Predicated region
    $region10: #{forward.11} parent=1 // pred_check
      _
    $region11: #{forward.11} parent=1 // pred_check_branch
      %19 = sbr.rel (0) target = $region13
    $region12: #{forward.11} parent=1 // pred_region
      _
    $region13: #{forward.11} parent=1 // pred_fallthru
      _
    // Predicated region
    $region14: #{forward.11} parent=1 // pred_check
      _
    $region15: #{forward.11} parent=1 // pred_check_branch
      %21 = sbr.rel (0) target = $region17
    $region16: #{forward.11} parent=1 // pred_region
      _
    $region17: #{forward.11} parent=1 // pred_fallthru
      _
    // Predicated region
    $region18: #{forward.11} parent=1 // pred_check
      _
    $region19: #{forward.11} parent=1 // pred_check_branch
      %23 = sbr.rel (0) target = $region21
    $region20: #{forward.11} parent=1 // pred_region
      _
    $region21: #{forward.11} parent=1 // pred_fallthru
      _
    // Predicated region
    $region22: #{forward.11} parent=1 // pred_check
      _
    $region23: #{forward.11} parent=1 // pred_check_branch
      %25 = sbr.rel (0) target = $region25
    $region24: #{forward.11} parent=1 // pred_region
      _
    $region25: #{forward.11} parent=1 // pred_fallthru
      _
    %v26 = vld [vmem:[%s0] sm:$0xff]
    %v27 = vld [vmem:[%s0 + $0x8] sm:$0xff]
    %v28 = vld [vmem:[%s0 + $0x10] sm:$0xf]
    %v29 = vld [vmem:[%s1] sm:$0xf]
    %v30 = vld [vmem:[%s1 + $0x4] sm:$0xf]
    %v31 = vld [vmem:[%s1 + $0x8] sm:$0xf]
    %v32 = vld [vmem:[%s1 + $0xc] sm:$0xf]
    %v33 = vld [vmem:[%s1 + $0x10] sm:$0xf]
    %v34 = vld [vmem:[%s1 + $0x14] sm:$0xf]
    %v35 = vld [vmem:[%s1 + $0x18] sm:$0xf]
    %v36 = vld [vmem:[%s1 + $0x1c] sm:$0xf]
    %v37 = vld [vmem:[%s1 + $0x20] sm:$0xf]
    %v38 = vld [vmem:[%s1 + $0x24] sm:$0xf]
    %v39 = vld [vmem:[%s1 + $0x28] sm:$0xf]
    %v40 = vld [vmem:[%s1 + $0x2c] sm:$0xf]
    %v41 = vld [vmem:[%s1 + $0x30] sm:$0xf]
    %v42 = vld [vmem:[%s1 + $0x34] sm:$0xf]
    %v43 = vld [vmem:[%s1 + $0x38] sm:$0xf]
    %v44 = vld [vmem:[%s1 + $0x3c] sm:$0xf]
    %v45 = vld [vmem:[%s1 + $0x40] sm:$0xf]
    %v46 = vld [vmem:[%s1 + $0x44] sm:$0xf]
    %v47 = vld [vmem:[%s1 + $0x48] sm:$0xf]
    %v48 = vld [vmem:[%s1 + $0x4c] sm:$0xf]
    %v49 = vld [vmem:[%s1 + $0x50] sm:$0xf]
    %v50 = vld [vmem:[%s1 + $0x54] sm:$0xf]
    %v51 = vld [vmem:[%s1 + $0x58] sm:$0xf]
    %v52 = vld [vmem:[%s1 + $0x5c] sm:$0xf]
    %v53 = vld [vmem:[%s1 + $0x60] sm:$0xf]
    %v54 = vld [vmem:[%s1 + $0x64] sm:$0xf]
    %v55 = vld [vmem:[%s1 + $0x68] sm:$0xf]
    %v56 = vld [vmem:[%s1 + $0x6c] sm:$0xf]
    %v57 = vld [vmem:[%s1 + $0x70] sm:$0xf]
    %v58 = vld [vmem:[%s1 + $0x74] sm:$0xf]
    %v59 = vld [vmem:[%s1 + $0x78] sm:$0xf]
    %v60 = vld [vmem:[%s1 + $0x7c] sm:$0xf]
    %v61 = vld [vmem:[%s1 + $0x80] sm:$0xf]
    %v62 = vld [vmem:[%s1 + $0x84] sm:$0xf]
    %v63 = vld [vmem:[%s1 + $0x88] sm:$0xf]
    %v64 = vld [vmem:[%s1 + $0x8c] sm:$0xf]
    %v65 = vld [vmem:[%s1 + $0x90] sm:$0xf]
    %v66 = vld [vmem:[%s1 + $0x94] sm:$0xf]
    %v67 = vld [vmem:[%s1 + $0x98] sm:$0xf]
    %v68 = vld [vmem:[%s1 + $0x9c] sm:$0xf]
    %v69 = vld [vmem:[%s1 + $0xa0] sm:$0xf]
    %v70 = vld [vmem:[%s1 + $0xa4] sm:$0xf]
    %v71 = vld [vmem:[%s1 + $0xa8] sm:$0xf]
    %v72 = vld [vmem:[%s1 + $0xac] sm:$0xf]
    %v73 = vld [vmem:[%s1 + $0xb0] sm:$0xf]
    %v74 = vld [vmem:[%s1 + $0xb4] sm:$0xf]
    %v75 = vld [vmem:[%s1 + $0xb8] sm:$0xf]
    %v76 = vld [vmem:[%s1 + $0xbc] sm:$0xf]
    %v77 = vld [vmem:[%s1 + $0xc0] sm:$0xf]
    %v78 = vld [vmem:[%s1 + $0xc4] sm:$0xf]
    %v79 = vld [vmem:[%s1 + $0xc8] sm:$0xf]
    %v80 = vld [vmem:[%s1 + $0xcc] sm:$0xf]
    %v81 = vld [vmem:[%s1 + $0xd0] sm:$0xf]
    %v82 = vld [vmem:[%s1 + $0xd4] sm:$0xf]
    %v83 = vld [vmem:[%s1 + $0xd8] sm:$0xf]
    %v84 = vld [vmem:[%s1 + $0xdc] sm:$0xf]
    %v85 = vld [vmem:[%s1 + $0xe0] sm:$0xf]
    %v86 = vld [vmem:[%s1 + $0xe4] sm:$0xf]
    %v87 = vld [vmem:[%s1 + $0xe8] sm:$0xf]
    %v88 = vld [vmem:[%s1 + $0xec] sm:$0xf]
    %v89 = vld [vmem:[%s1 + $0xf0] sm:$0xf]
    %v90 = vld [vmem:[%s1 + $0xf4] sm:$0xf]
    %v91 = vld [vmem:[%s1 + $0xf8] sm:$0xf]
    %v92 = vld [vmem:[%s1 + $0xfc] sm:$0xf]
    %v93 = vld [vmem:[%s1 + $0x100] sm:$0xf]
    %v94 = vld [vmem:[%s1 + $0x104] sm:$0xf]
    %v95 = vld [vmem:[%s1 + $0x108] sm:$0xf]
    %v96 = vld [vmem:[%s1 + $0x10c] sm:$0xf]
    %v97 = vld [vmem:[%s1 + $0x110] sm:$0xf]
    %v98 = vld [vmem:[%s1 + $0x114] sm:$0xf]
    %v99 = vld [vmem:[%s1 + $0x118] sm:$0xf]
    %v100 = vld [vmem:[%s1 + $0x11c] sm:$0xf]
    %v101 = vld [vmem:[%s1 + $0x120] sm:$0xf]
    %v102 = vld [vmem:[%s1 + $0x124] sm:$0xf]
    %v103 = vld [vmem:[%s1 + $0x128] sm:$0xf]
    %v104 = vld [vmem:[%s1 + $0x12c] sm:$0xf]
    %v105 = vld [vmem:[%s1 + $0x130] sm:$0xf]
    %v106 = vld [vmem:[%s1 + $0x134] sm:$0xf]
    %v107 = vld [vmem:[%s1 + $0x138] sm:$0xf]
    %v108 = vld [vmem:[%s1 + $0x13c] sm:$0xf]
    %v109 = vld [vmem:[%s2] sm:$0x1]
    %v111 = vperm.slane %v109, 0
    %v116 = vunpack.c.l.b16 %v26
    %v117 = vunpack.c.h.b16 %v26
    %v118 = vunpack.c.l.b16 %v27
    %v119 = vunpack.c.h.b16 %v27
    %v120 = vunpack.c.l.b16 %v28
    %v121 = vpack.c.b16 %v116, %v116
    %v122 = vpack.c.b16 %v117, %v117
    %v123 = vpack.c.b16 %v118, %v118
    %v124 = vpack.c.b16 %v119, %v119
    %v125 = vpack.c.b16 %v120, %v120
    %v211 = vunpack.c.l.b16 %v29
    %v212 = vunpack.c.l.b16 %v30
    %v213 = vunpack.c.l.b16 %v31
    %v214 = vunpack.c.l.b16 %v32
    %v215 = vunpack.c.l.b16 %v33
    %v216 = vunpack.c.l.b16 %v34
    %v217 = vunpack.c.l.b16 %v35
    %v218 = vunpack.c.l.b16 %v36
    %v219 = vunpack.c.l.b16 %v37
    %v220 = vunpack.c.l.b16 %v38
    %v221 = vunpack.c.l.b16 %v39
    %v222 = vunpack.c.l.b16 %v40
    %v223 = vunpack.c.l.b16 %v41
    %v224 = vunpack.c.l.b16 %v42
    %v225 = vunpack.c.l.b16 %v43
    %v226 = vunpack.c.l.b16 %v44
    %v227 = vunpack.c.l.b16 %v45
    %v228 = vunpack.c.l.b16 %v46
    %v229 = vunpack.c.l.b16 %v47
    %v230 = vunpack.c.l.b16 %v48
    %v231 = vunpack.c.l.b16 %v49
    %v232 = vunpack.c.l.b16 %v50
    %v233 = vunpack.c.l.b16 %v51
    %v234 = vunpack.c.l.b16 %v52
    %v235 = vunpack.c.l.b16 %v53
    %v236 = vunpack.c.l.b16 %v54
    %v237 = vunpack.c.l.b16 %v55
    %v238 = vunpack.c.l.b16 %v56
    %v239 = vunpack.c.l.b16 %v57
    %v240 = vunpack.c.l.b16 %v58
    %v241 = vunpack.c.l.b16 %v59
    %v242 = vunpack.c.l.b16 %v60
    %v243 = vunpack.c.l.b16 %v61
    %v244 = vunpack.c.l.b16 %v62
    %v245 = vunpack.c.l.b16 %v63
    %v246 = vunpack.c.l.b16 %v64
    %v247 = vunpack.c.l.b16 %v65
    %v248 = vunpack.c.l.b16 %v66
    %v249 = vunpack.c.l.b16 %v67
    %v250 = vunpack.c.l.b16 %v68
    %v251 = vunpack.c.l.b16 %v69
    %v252 = vunpack.c.l.b16 %v70
    %v253 = vunpack.c.l.b16 %v71
    %v254 = vunpack.c.l.b16 %v72
    %v255 = vunpack.c.l.b16 %v73
    %v256 = vunpack.c.l.b16 %v74
    %v257 = vunpack.c.l.b16 %v75
    %v258 = vunpack.c.l.b16 %v76
    %v259 = vunpack.c.l.b16 %v77
    %v260 = vunpack.c.l.b16 %v78
    %v261 = vunpack.c.l.b16 %v79
    %v262 = vunpack.c.l.b16 %v80
    %v263 = vunpack.c.l.b16 %v81
    %v264 = vunpack.c.l.b16 %v82
    %v265 = vunpack.c.l.b16 %v83
    %v266 = vunpack.c.l.b16 %v84
    %v267 = vunpack.c.l.b16 %v85
    %v268 = vunpack.c.l.b16 %v86
    %v269 = vunpack.c.l.b16 %v87
    %v270 = vunpack.c.l.b16 %v88
    %v271 = vunpack.c.l.b16 %v89
    %v272 = vunpack.c.l.b16 %v90
    %v273 = vunpack.c.l.b16 %v91
    %v274 = vunpack.c.l.b16 %v92
    %v275 = vunpack.c.l.b16 %v93
    %v276 = vunpack.c.l.b16 %v94
    %v277 = vunpack.c.l.b16 %v95
    %v278 = vunpack.c.l.b16 %v96
    %v279 = vunpack.c.l.b16 %v97
    %v280 = vunpack.c.l.b16 %v98
    %v281 = vunpack.c.l.b16 %v99
    %v282 = vunpack.c.l.b16 %v100
    %v283 = vunpack.c.l.b16 %v101
    %v284 = vunpack.c.l.b16 %v102
    %v285 = vunpack.c.l.b16 %v103
    %v286 = vunpack.c.l.b16 %v104
    %v287 = vunpack.c.l.b16 %v105
    %v288 = vunpack.c.l.b16 %v106
    %v289 = vunpack.c.l.b16 %v107
    %v290 = vunpack.c.l.b16 %v108
    %v291 = vpack.c.b16 %v212, %v211
    %v292 = vpack.c.b16 %v214, %v213
    %v293 = vpack.c.b16 %v216, %v215
    %v294 = vpack.c.b16 %v218, %v217
    %v295 = vpack.c.b16 %v220, %v219
    %v296 = vpack.c.b16 %v222, %v221
    %v297 = vpack.c.b16 %v224, %v223
    %v298 = vpack.c.b16 %v226, %v225
    %v299 = vpack.c.b16 %v228, %v227
    %v300 = vpack.c.b16 %v230, %v229
    %v301 = vpack.c.b16 %v232, %v231
    %v302 = vpack.c.b16 %v234, %v233
    %v303 = vpack.c.b16 %v236, %v235
    %v304 = vpack.c.b16 %v238, %v237
    %v305 = vpack.c.b16 %v240, %v239
    %v306 = vpack.c.b16 %v242, %v241
    %v307 = vpack.c.b16 %v244, %v243
    %v308 = vpack.c.b16 %v246, %v245
    %v309 = vpack.c.b16 %v248, %v247
    %v310 = vpack.c.b16 %v250, %v249
    %v311 = vpack.c.b16 %v252, %v251
    %v312 = vpack.c.b16 %v254, %v253
    %v313 = vpack.c.b16 %v256, %v255
    %v314 = vpack.c.b16 %v258, %v257
    %v315 = vpack.c.b16 %v260, %v259
    %v316 = vpack.c.b16 %v262, %v261
    %v317 = vpack.c.b16 %v264, %v263
    %v318 = vpack.c.b16 %v266, %v265
    %v319 = vpack.c.b16 %v268, %v267
    %v320 = vpack.c.b16 %v270, %v269
    %v321 = vpack.c.b16 %v272, %v271
    %v322 = vpack.c.b16 %v274, %v273
    %v323 = vpack.c.b16 %v276, %v275
    %v324 = vpack.c.b16 %v278, %v277
    %v325 = vpack.c.b16 %v280, %v279
    %v326 = vpack.c.b16 %v282, %v281
    %v327 = vpack.c.b16 %v284, %v283
    %v328 = vpack.c.b16 %v286, %v285
    %v329 = vpack.c.b16 %v288, %v287
    %v330 = vpack.c.b16 %v290, %v289
    %371 = vmatpush.bf16.msra.mxu0 %v298
    %372 = vmatpush.bf16.msra.mxu0 %v297
    %373 = vmatpush.bf16.msra.mxu0 %v296
    %374 = vmatpush.bf16.msra.mxu0 %v295
    %375 = vmatpush.bf16.msra.mxu0 %v294
    %376 = vmatpush.bf16.msra.mxu0 %v293
    %377 = vmatpush.bf16.msra.mxu0 %v292
    %378 = vmatpush.bf16.msra.mxu0 %v291
    %379 = vmatmul.bf16.gmra.mxu0 %v121
    %v380 = vpop.f32.mrf.mxu0
    %v381 = vadd.f32 %v111, %v380
    %v382 = vpop.f32.mrf.mxu0
    %383 = vdwg.mxu0
    %384 = vmatpush.bf16.msra.mxu0 %v306
    %385 = vmatpush.bf16.msra.mxu0 %v305
    %386 = vmatpush.bf16.msra.mxu0 %v304
    %387 = vmatpush.bf16.msra.mxu0 %v303
    %388 = vmatpush.bf16.msra.mxu0 %v302
    %389 = vmatpush.bf16.msra.mxu0 %v301
    %390 = vmatpush.bf16.msra.mxu0 %v300
    %391 = vmatpush.bf16.msra.mxu0 %v299
    %392 = vmatmul.bf16.gmra.mxu0 %v122
    %v393 = vpop.f32.mrf.mxu0
    %v394 = vadd.f32 %v381, %v393
    %v395 = vpop.f32.mrf.mxu0
    %396 = vdwg.mxu0
    %397 = vmatpush.bf16.msra.mxu0 %v314
    %398 = vmatpush.bf16.msra.mxu0 %v313
    %399 = vmatpush.bf16.msra.mxu0 %v312
    %400 = vmatpush.bf16.msra.mxu0 %v311
    %401 = vmatpush.bf16.msra.mxu0 %v310
    %402 = vmatpush.bf16.msra.mxu0 %v309
    %403 = vmatpush.bf16.msra.mxu0 %v308
    %404 = vmatpush.bf16.msra.mxu0 %v307
    %405 = vmatmul.bf16.gmra.mxu0 %v123
    %v406 = vpop.f32.mrf.mxu0
    %v407 = vadd.f32 %v394, %v406
    %v408 = vpop.f32.mrf.mxu0
    %409 = vdwg.mxu0
    %410 = vmatpush.bf16.msra.mxu0 %v322
    %411 = vmatpush.bf16.msra.mxu0 %v321
    %412 = vmatpush.bf16.msra.mxu0 %v320
    %413 = vmatpush.bf16.msra.mxu0 %v319
    %414 = vmatpush.bf16.msra.mxu0 %v318
    %415 = vmatpush.bf16.msra.mxu0 %v317
    %416 = vmatpush.bf16.msra.mxu0 %v316
    %417 = vmatpush.bf16.msra.mxu0 %v315
    %418 = vmatmul.bf16.gmra.mxu0 %v124
    %v419 = vpop.f32.mrf.mxu0
    %v420 = vadd.f32 %v407, %v419
    %v421 = vpop.f32.mrf.mxu0
    %422 = vdwg.mxu0
    %423 = vmatpush.bf16.msra.mxu0 %v330
    %424 = vmatpush.bf16.msra.mxu0 %v329
    %425 = vmatpush.bf16.msra.mxu0 %v328
    %426 = vmatpush.bf16.msra.mxu0 %v327
    %427 = vmatpush.bf16.msra.mxu0 %v326
    %428 = vmatpush.bf16.msra.mxu0 %v325
    %429 = vmatpush.bf16.msra.mxu0 %v324
    %430 = vmatpush.bf16.msra.mxu0 %v323
    %431 = vmatmul.bf16.gmra.mxu0 %v125
    %v432 = vpop.f32.mrf.mxu0
    %v433 = vadd.f32 %v420, %v432
    %v434 = vpop.f32.mrf.mxu0
    %435 = vdwg.mxu0
    %v436 = vmax.f32 %v433, 0.0
    %v437 = vpack.c.bf16 %v436, %v436
    %v438 = vld [vmem:[%s5] sm:$0xf]
    %v439 = vld [vmem:[%s3] sm:$0xff]
    %v440 = vld [vmem:[%s3 + $0x8] sm:$0xff]
    %v441 = vld [vmem:[%s3 + $0x10] sm:$0xff]
    %v442 = vld [vmem:[%s3 + $0x18] sm:$0xff]
    %v443 = vld [vmem:[%s3 + $0x20] sm:$0xff]
    %v444 = vld [vmem:[%s3 + $0x28] sm:$0xff]
    %v445 = vld [vmem:[%s3 + $0x30] sm:$0xff]
    %v446 = vld [vmem:[%s3 + $0x38] sm:$0xff]
    %v447 = vld [vmem:[%s3 + $0x40] sm:$0xff]
    %v448 = vld [vmem:[%s3 + $0x48] sm:$0xff]
    %v449 = vld [vmem:[%s3 + $0x50] sm:$0xff]
    %v450 = vld [vmem:[%s3 + $0x58] sm:$0xff]
    %v451 = vld [vmem:[%s3 + $0x60] sm:$0xff]
    %v452 = vld [vmem:[%s3 + $0x68] sm:$0xff]
    %v453 = vld [vmem:[%s3 + $0x70] sm:$0xff]
    %v454 = vld [vmem:[%s3 + $0x78] sm:$0xff]
    %v455 = vld [vmem:[%s3 + $0x80] sm:$0xff]
    %v456 = vld [vmem:[%s3 + $0x88] sm:$0xff]
    %v457 = vld [vmem:[%s3 + $0x90] sm:$0xff]
    %v458 = vld [vmem:[%s3 + $0x98] sm:$0xff]
    %v459 = vld [vmem:[%s3 + $0xa0] sm:$0xff]
    %v460 = vld [vmem:[%s3 + $0xa8] sm:$0xff]
    %v461 = vld [vmem:[%s3 + $0xb0] sm:$0xff]
    %v462 = vld [vmem:[%s3 + $0xb8] sm:$0xff]
    %v463 = vld [vmem:[%s3 + $0xc0] sm:$0xff]
    %v464 = vld [vmem:[%s3 + $0xc8] sm:$0xff]
    %v465 = vld [vmem:[%s3 + $0xd0] sm:$0xff]
    %v466 = vld [vmem:[%s3 + $0xd8] sm:$0xff]
    %v467 = vld [vmem:[%s3 + $0xe0] sm:$0xff]
    %v468 = vld [vmem:[%s3 + $0xe8] sm:$0xff]
    %v469 = vld [vmem:[%s3 + $0xf0] sm:$0xff]
    %v470 = vld [vmem:[%s3 + $0xf8] sm:$0xff]
    %v471 = vld [vmem:[%s4] sm:$0x3]
    %v473 = vperm.slane %v471, 0
    %v474 = vperm.slane %v471, 1
    %v509 = vunpack.c.l.b16 %v439
    %v510 = vunpack.c.h.b16 %v439
    %v511 = vunpack.c.l.b16 %v440
    %v512 = vunpack.c.h.b16 %v440
    %v513 = vunpack.c.l.b16 %v441
    %v514 = vunpack.c.h.b16 %v441
    %v515 = vunpack.c.l.b16 %v442
    %v516 = vunpack.c.h.b16 %v442
    %v517 = vunpack.c.l.b16 %v443
    %v518 = vunpack.c.h.b16 %v443
    %v519 = vunpack.c.l.b16 %v444
    %v520 = vunpack.c.h.b16 %v444
    %v521 = vunpack.c.l.b16 %v445
    %v522 = vunpack.c.h.b16 %v445
    %v523 = vunpack.c.l.b16 %v446
    %v524 = vunpack.c.h.b16 %v446
    %v525 = vunpack.c.l.b16 %v447
    %v526 = vunpack.c.h.b16 %v447
    %v527 = vunpack.c.l.b16 %v448
    %v528 = vunpack.c.h.b16 %v448
    %v529 = vunpack.c.l.b16 %v449
    %v530 = vunpack.c.h.b16 %v449
    %v531 = vunpack.c.l.b16 %v450
    %v532 = vunpack.c.h.b16 %v450
    %v533 = vunpack.c.l.b16 %v451
    %v534 = vunpack.c.h.b16 %v451
    %v535 = vunpack.c.l.b16 %v452
    %v536 = vunpack.c.h.b16 %v452
    %v537 = vunpack.c.l.b16 %v453
    %v538 = vunpack.c.h.b16 %v453
    %v539 = vunpack.c.l.b16 %v454
    %v540 = vunpack.c.h.b16 %v454
    %v541 = vunpack.c.l.b16 %v455
    %v542 = vunpack.c.h.b16 %v455
    %v543 = vunpack.c.l.b16 %v456
    %v544 = vunpack.c.h.b16 %v456
    %v545 = vunpack.c.l.b16 %v457
    %v546 = vunpack.c.h.b16 %v457
    %v547 = vunpack.c.l.b16 %v458
    %v548 = vunpack.c.h.b16 %v458
    %v549 = vunpack.c.l.b16 %v459
    %v550 = vunpack.c.h.b16 %v459
    %v551 = vunpack.c.l.b16 %v460
    %v552 = vunpack.c.h.b16 %v460
    %v553 = vunpack.c.l.b16 %v461
    %v554 = vunpack.c.h.b16 %v461
    %v555 = vunpack.c.l.b16 %v462
    %v556 = vunpack.c.h.b16 %v462
    %v557 = vunpack.c.l.b16 %v463
    %v558 = vunpack.c.h.b16 %v463
    %v559 = vunpack.c.l.b16 %v464
    %v560 = vunpack.c.h.b16 %v464
    %v561 = vunpack.c.l.b16 %v465
    %v562 = vunpack.c.h.b16 %v465
    %v563 = vunpack.c.l.b16 %v466
    %v564 = vunpack.c.h.b16 %v466
    %v565 = vunpack.c.l.b16 %v467
    %v566 = vunpack.c.h.b16 %v467
    %v567 = vunpack.c.l.b16 %v468
    %v568 = vunpack.c.h.b16 %v468
    %v569 = vunpack.c.l.b16 %v469
    %v570 = vunpack.c.h.b16 %v469
    %v571 = vunpack.c.l.b16 %v470
    %v572 = vunpack.c.h.b16 %v470
    %v573 = vpack.c.b16 %v511, %v509
    %v574 = vpack.c.b16 %v512, %v510
    %v575 = vpack.c.b16 %v515, %v513
    %v576 = vpack.c.b16 %v516, %v514
    %v577 = vpack.c.b16 %v519, %v517
    %v578 = vpack.c.b16 %v520, %v518
    %v579 = vpack.c.b16 %v523, %v521
    %v580 = vpack.c.b16 %v524, %v522
    %v581 = vpack.c.b16 %v527, %v525
    %v582 = vpack.c.b16 %v528, %v526
    %v583 = vpack.c.b16 %v531, %v529
    %v584 = vpack.c.b16 %v532, %v530
    %v585 = vpack.c.b16 %v535, %v533
    %v586 = vpack.c.b16 %v536, %v534
    %v587 = vpack.c.b16 %v539, %v537
    %v588 = vpack.c.b16 %v540, %v538
    %v589 = vpack.c.b16 %v543, %v541
    %v590 = vpack.c.b16 %v544, %v542
    %v591 = vpack.c.b16 %v547, %v545
    %v592 = vpack.c.b16 %v548, %v546
    %v593 = vpack.c.b16 %v551, %v549
    %v594 = vpack.c.b16 %v552, %v550
    %v595 = vpack.c.b16 %v555, %v553
    %v596 = vpack.c.b16 %v556, %v554
    %v597 = vpack.c.b16 %v559, %v557
    %v598 = vpack.c.b16 %v560, %v558
    %v599 = vpack.c.b16 %v563, %v561
    %v600 = vpack.c.b16 %v564, %v562
    %v601 = vpack.c.b16 %v567, %v565
    %v602 = vpack.c.b16 %v568, %v566
    %v603 = vpack.c.b16 %v571, %v569
    %v604 = vpack.c.b16 %v572, %v570
    %637 = vmatpush.bf16.msra.mxu0 %v587
    %638 = vmatpush.bf16.msra.mxu0 %v585
    %639 = vmatpush.bf16.msra.mxu0 %v583
    %640 = vmatpush.bf16.msra.mxu0 %v581
    %641 = vmatpush.bf16.msra.mxu0 %v579
    %642 = vmatpush.bf16.msra.mxu0 %v577
    %643 = vmatpush.bf16.msra.mxu0 %v575
    %644 = vmatpush.bf16.msra.mxu0 %v573
    %645 = vmatmul.bf16.gmra.mxu0 %v437
    %v646 = vpop.f32.mrf.mxu0
    %v647 = vadd.f32 %v473, %v646
    %v648 = vpop.f32.mrf.mxu0
    %649 = vdwg.mxu0
    %650 = vmatpush.bf16.msra.mxu0 %v603
    %651 = vmatpush.bf16.msra.mxu0 %v601
    %652 = vmatpush.bf16.msra.mxu0 %v599
    %653 = vmatpush.bf16.msra.mxu0 %v597
    %654 = vmatpush.bf16.msra.mxu0 %v595
    %655 = vmatpush.bf16.msra.mxu0 %v593
    %656 = vmatpush.bf16.msra.mxu0 %v591
    %657 = vmatpush.bf16.msra.mxu0 %v589
    %658 = vmatmul.bf16.gmra.mxu0 %v438
    %v659 = vpop.f32.mrf.mxu0
    %v660 = vadd.f32 %v647, %v659
    %v661 = vpop.f32.mrf.mxu0
    %662 = vdwg.mxu0
    %663 = vmatpush.bf16.msra.mxu0 %v588
    %664 = vmatpush.bf16.msra.mxu0 %v586
    %665 = vmatpush.bf16.msra.mxu0 %v584
    %666 = vmatpush.bf16.msra.mxu0 %v582
    %667 = vmatpush.bf16.msra.mxu0 %v580
    %668 = vmatpush.bf16.msra.mxu0 %v578
    %669 = vmatpush.bf16.msra.mxu0 %v576
    %670 = vmatpush.bf16.msra.mxu0 %v574
    %671 = vmatmul.bf16.gmra.mxu0 %v437
    %v672 = vpop.f32.mrf.mxu0
    %v673 = vadd.f32 %v474, %v672
    %v674 = vpop.f32.mrf.mxu0
    %675 = vdwg.mxu0
    %676 = vmatpush.bf16.msra.mxu0 %v604
    %677 = vmatpush.bf16.msra.mxu0 %v602
    %678 = vmatpush.bf16.msra.mxu0 %v600
    %679 = vmatpush.bf16.msra.mxu0 %v598
    %680 = vmatpush.bf16.msra.mxu0 %v596
    %681 = vmatpush.bf16.msra.mxu0 %v594
    %682 = vmatpush.bf16.msra.mxu0 %v592
    %683 = vmatpush.bf16.msra.mxu0 %v590
    %684 = vmatmul.bf16.gmra.mxu0 %v438
    %v685 = vpop.f32.mrf.mxu0
    %v686 = vadd.f32 %v673, %v685
    %v687 = vpop.f32.mrf.mxu0
    %688 = vdwg.mxu0
    %v689 = vpack.c.bf16 %v686, %v660
    %690 = vst [vmem:[%s6] sm:$0xff] %v689
    %v693 = vrot.slane %v686, 4
    %vm694 = vcmask 1043456
    %v695 = vsel %vm694, %v660, %v693
    %v696 = vsel %vm694, %v693, %v660
    %v697 = vrot.slane %v696, 4
    %698 = vst [vmem:[#allocation1] ss:$2 sm:$0xff] %v695
    %v699 = vld.sshfl [vmem:[#allocation1] sm:$0xff pattern:$0x75316420]
    %v700 = vld.sshfl [vmem:[#allocation1 + $0x8] sm:$0xff pattern:$0x75316420]
    %s701 = scalar_lea.vmem [#allocation1], 16
    %702 = vst [vmem:[%s701] ss:$2 sm:$0xff] %v697
    %v703 = vld.sshfl [vmem:[#allocation1 + $0x10] sm:$0xff pattern:$0x75316420]
    %v704 = vld.sshfl [vmem:[#allocation1 + $0x18] sm:$0xff pattern:$0x75316420]
    %v709 = vsel %vm694, %v699, 0.0
    %v710 = vrot.slane %v709, 4
    %v711 = vadd.f32 %v709, %v710
    %v712 = vrot.slane %v711, 2
    %v713 = vadd.f32 %v711, %v712
    %v714 = vrot.slane %v713, 1
    %v715 = vadd.f32 %v713, %v714
    %v716 = vsel %vm694, %v700, 0.0
    %v717 = vrot.slane %v716, 4
    %v718 = vadd.f32 %v716, %v717
    %v719 = vrot.slane %v718, 2
    %v720 = vadd.f32 %v718, %v719
    %v721 = vrot.slane %v720, 1
    %v722 = vadd.f32 %v720, %v721
    %v723 = vsel %vm694, %v703, 0.0
    %v724 = vrot.slane %v723, 4
    %v725 = vadd.f32 %v723, %v724
    %v726 = vrot.slane %v725, 2
    %v727 = vadd.f32 %v725, %v726
    %v728 = vrot.slane %v727, 1
    %v729 = vadd.f32 %v727, %v728
    %v730 = vsel %vm694, %v704, 0.0
    %v731 = vrot.slane %v730, 4
    %v732 = vadd.f32 %v730, %v731
    %v733 = vrot.slane %v732, 2
    %v734 = vadd.f32 %v732, %v733
    %v735 = vrot.slane %v734, 1
    %v736 = vadd.f32 %v734, %v735
    %v737 = vmul.f32 %v715, 0.25
    %v738 = vmul.f32 %v722, 0.25
    %v739 = vmul.f32 %v729, 0.25
    %v740 = vmul.f32 %v736, 0.25
    %v745 = vrot.slane %v738, 6
    %v746 = vrot.slane %v740, 6
    %vm747 = vcmask 1041408
    %v748 = vsel %vm747, %v737, %v745
    %v749 = vsel %vm747, %v739, %v746
    %vm750 = vcmask 1044484
    %v751 = vsel %vm750, %v748, %v748
    %vm752 = vcmask 1046534
    %v753 = vsel %vm752, %v748, %v751
    %v754 = vrot.slane %v749, 7
    %vm755 = vcmask 1041409
    %v756 = vsel %vm755, %v754, %v753
    %vm757 = vcmask 1043459
    %v758 = vsel %vm757, %v754, %v756
    %vm759 = vcmask 1045509
    %v760 = vsel %vm759, %v754, %v758
    %vm761 = vcmask 1047559
    %v762 = vsel %vm761, %v754, %v760
    %764 = vst [vmem:[#allocation2] sm:$0xf] %v762
    // Predicated region
    $region26: #{forward.11} parent=1 // pred_check
      _
    $region27: #{forward.11} parent=1 // pred_check_branch
      %766 = sbr.rel (0) target = $region29
    $region28: #{forward.11} parent=1 // pred_region
      _
    $region29: #{forward.11} parent=1 // pred_fallthru
      _
    // Predicated region
    $region30: #{forward.11} parent=1 // pred_check
      _
    $region31: #{forward.11} parent=1 // pred_check_branch
      %768 = sbr.rel (0) target = $region33
    $region32: #{forward.11} parent=1 // pred_region
      %770 = vsyncadd [#allocation3], 0
      %s772 = sshll.u32 [#allocation2], 4
      %s773 = int_to_ptr.vmem [resolvable:$true] %s772
      %s774 = sshll.u32 %s7, 4
      %s775 = int_to_ptr.hbm [resolvable:$true] %s774
      %777 = dma.vmem_to_hbm [thread:$0]  %s773, 64, %s775, [#allocation3]
    $region33: #{forward.11} parent=1 // pred_fallthru
      _
    // Predicated region
    $region34: #{forward.11} parent=1 // pred_check
      _
    $region35: #{forward.11} parent=1 // pred_check_branch
      %779 = sbr.rel (0) target = $region37
    $region36: #{forward.11} parent=1 // pred_region
      _
    $region37: #{forward.11} parent=1 // pred_fallthru
      _
    // Predicated region
    $region38: #{forward.11} parent=1 // pred_check
      _
    $region39: #{forward.11} parent=1 // pred_check_branch
      %781 = sbr.rel (0) target = $region41
    $region40: #{forward.11} parent=1 // pred_region
      %783 = dma.done [#allocation3], 64
    $region41: #{forward.11} parent=1 // pred_fallthru
      _
    %784 = vsyncpa [#allocation3], 1

</llo_original>
